<compile_context>
chip_gen: v7x
topology: tpu7x:2x2x1
jax: 0.10.0
libtpu: 0.0.40
codegen_flags: <defaults>
</compile_context>

<pallas_src>
import functools

import numpy as np

import jax
import jax.numpy as jnp
from jax.experimental import pallas as pl
from jax.experimental.pallas import tpu as pltpu


CPAD = 8  # sublane-aligned channel slot per conv tap in the im2col scratch


# ----------------------------- layout helpers ------------------------------

def _stage_widths(B, H, W, K):
    """Lane width of each stage in the flattened-spatial layout.

    Every stage keeps the input's lane indexing (image stride H*W, row stride
    W scaled by the pooling factor); each stage's width includes the extra
    lanes the *next* stage's static shifted slices will read.
    """
    img = H * W
    nl = B * img
    l4 = nl                                        # pool2 output (strides 4W, 4)
    l3 = l4 + (2 * W + 2)                          # conv2 output (pool2 shifts)
    l2 = l3 + ((K - 1) * 2 * W + (K - 1) * 2)      # pool1 output (conv2 shifts)
    l1 = l2 + (W + 1)                              # conv1 output (pool1 shifts)
    l0 = l1 + ((K - 1) * W + (K - 1))              # padded input (conv1 shifts)
    return img, nl, l0, l1, l2, l3, l4


# ------------------------------ fused kernel -------------------------------

def _lenet_kernel(x_ref, w1_ref, b1_ref, w2_ref, b2_ref, g0_ref, w1c_ref,
                  fb1_ref, w2f_ref, fb2_ref, w3f_ref, fb3_ref, o_ref,
                  im1_ref, im2_ref, feats_ref, *, B, H, W, K):
    img, nl, l0, l1, l2, l3, l4 = _stage_widths(B, H, W, K)
    c2 = w2_ref.shape[0]            # conv2 out channels (16)
    Q = g0_ref.shape[1]             # padded per-channel flatten width (32)
    sel_w = g0_ref.shape[0]         # lanes covered by the flatten selection
    bf16, f32 = jnp.bfloat16, jnp.float32

    # ---- conv1: in-kernel im2col (8-row aligned slot per tap) + ONE matmul ----
    for di in range(K):
        for dj in range(K):
            t = di * K + dj
            s = di * W + dj
            im1_ref[CPAD * t:CPAD * (t + 1), :] = x_ref[:, s:s + l1]
    a1 = jnp.dot(w1_ref[...], im1_ref[...].astype(bf16),
                 preferred_element_type=f32)                 # (8, l1)
    a1 = jnp.maximum(a1 + b1_ref[...], 0.0)                  # rows 6..7 stay 0

    # ---- maxpool 2x2 stride 2 (lane strides (W, 1) -> (2W, 2)) ----
    wh = l2 + W
    h = jnp.maximum(a1[:, 0:wh], a1[:, 1:wh + 1])
    p1 = jnp.maximum(h[:, 0:l2], h[:, W:W + l2])             # (8, l2)

    # ---- conv2: im2col on the strided pooled layout + ONE matmul ----
    for di in range(K):
        for dj in range(K):
            t = di * K + dj
            s = di * 2 * W + dj * 2
            im2_ref[CPAD * t:CPAD * (t + 1), :] = p1[:, s:s + l3]
    a2 = jnp.dot(w2_ref[...], im2_ref[...].astype(bf16),
                 preferred_element_type=f32)                 # (16, l3)
    a2 = jnp.maximum(a2 + b2_ref[...], 0.0)

    # ---- maxpool 2x2 stride 2 (lane strides (2W, 2) -> (4W, 4)) ----
    wh2 = l4 + 2 * W
    h2 = jnp.maximum(a2[:, 0:wh2], a2[:, 2:wh2 + 2])
    p2 = jnp.maximum(h2[:, 0:l4], h2[:, 2 * W:2 * W + l4])   # (16, B*img)

    # ---- per-sample flatten: tiny selection matmul + aligned row stores ----
    g0 = g0_ref[...]                                         # (sel_w, Q)
    for b in range(B):
        cb = jnp.dot(p2[:, b * img:b * img + sel_w], g0,
                     preferred_element_type=f32)             # (16, Q)
        for c in range(c2):
            feats_ref[b:b + 1, Q * c:Q * (c + 1)] = cb[c:c + 1, :]

    # ---- fc1/fc2/fc3 as three batched matmuls (bf16 operands, f32 accum) ----
    feats = feats_ref[...].astype(bf16)                      # (B, c2*Q)
    y = jnp.dot(feats, w1c_ref[...], preferred_element_type=f32) + fb1_ref[...]
    y = jnp.maximum(y, 0.0)
    y = jnp.dot(y.astype(bf16), w2f_ref[...],
                preferred_element_type=f32) + fb2_ref[...]
    y = jnp.maximum(y, 0.0)
    logits = jnp.dot(y.astype(bf16), w3f_ref[...],
                     preferred_element_type=f32) + fb3_ref[...]      # (B, 10)

    # ---- log_softmax over dim 0 (batch), matching F.log_softmax(x, 0) ----
    m = jnp.max(logits, axis=0, keepdims=True)
    lse = m + jnp.log(jnp.sum(jnp.exp(logits - m), axis=0, keepdims=True))
    o_ref[...] = (logits - lse).astype(o_ref.dtype)          # single store


# -------------------------------- wrapper -----------------------------------

def lenet_forward(x, params):
    B, cin, H, W = x.shape
    K = params["conv1_w"].shape[-1]                 # 5
    c1 = params["conv1_w"].shape[0]                 # 6
    c2 = params["conv2_w"].shape[0]                 # 16
    img, nl, l0, l1, l2, l3, l4 = _stage_widths(B, H, W, K)
    s2 = ((H - K + 1) // 2 - K + 1) // 2            # final spatial size (5)
    Q = 32                                          # padded per-channel width

    assert cin <= CPAD and c1 <= CPAD
    # Garbage-lane invariant: every lane the flatten selects must be a valid
    # conv/pool output (no row/image crossing) for this (H, W, K) config.
    sel_w = 4 * W * s2
    assert 4 * W * (s2 - 1) + 4 * (s2 - 1) < sel_w <= img
    assert l0 > l1 > l2 > l3 > l4 == nl

    f32, bf16 = jnp.float32, jnp.bfloat16

    # input NCHW -> (CPAD, B*H*W), zero channel + lane padding (f32)
    xf = x.astype(f32).transpose(1, 0, 2, 3).reshape(cin, nl)
    xf = jnp.pad(xf, ((0, CPAD - cin), (0, l0 - nl)))

    # conv weights -> im2col layout (Cout_pad, K*K*CPAD), bf16; biases f32 cols
    w1im = jnp.pad(params["conv1_w"].transpose(0, 2, 3, 1),
                   ((0, CPAD - c1), (0, 0), (0, 0), (0, CPAD - cin)))
    w1im = w1im.reshape(CPAD, K * K * CPAD).astype(bf16)
    w2im = jnp.pad(params["conv2_w"].transpose(0, 2, 3, 1),
                   ((0, 0), (0, 0), (0, 0), (0, CPAD - c1)))
    w2im = w2im.reshape(c2, K * K * CPAD).astype(bf16)
    b1 = jnp.pad(params["conv1_b"], (0, CPAD - c1)).reshape(CPAD, 1).astype(f32)
    b2 = params["conv2_b"].reshape(c2, 1).astype(f32)

    # 0/1 selection: pooled lane (4W*i + 4*j) -> compact column (i*s2 + j).
    # Only the first 4*W*s2 lanes of each image can hold valid pooled outputs.
    g0 = np.zeros((sel_w, Q), np.float32)
    for i in range(s2):
        for j in range(s2):
            g0[4 * W * i + 4 * j, i * s2 + j] = 1.0
    g0 = jnp.asarray(g0)

    # fc1 weight (c2*s2*s2, 120) -> (c2*Q, 120) matching the kernel's feature
    # order (channel-major, compact-spatial minor, padded to Q per channel)
    n1 = params["fc1_w"].shape[1]
    w1c = params["fc1_w"].reshape(c2, s2 * s2, n1)
    w1c = jnp.pad(w1c, ((0, 0), (0, Q - s2 * s2), (0, 0)))
    w1c = w1c.reshape(c2 * Q, n1).astype(bf16)
    w2f = params["fc2_w"].astype(bf16)
    w3f = params["fc3_w"].astype(bf16)
    fb1 = params["fc1_b"].reshape(1, -1).astype(f32)
    fb2 = params["fc2_b"].reshape(1, -1).astype(f32)
    fb3 = params["fc3_b"].reshape(1, -1).astype(f32)

    kernel = functools.partial(_lenet_kernel, B=B, H=H, W=W, K=K)
    vmem = pl.BlockSpec(memory_space=pltpu.MemorySpace.VMEM)
    out = pl.pallas_call(
        kernel,
        out_shape=jax.ShapeDtypeStruct((B, params["fc3_w"].shape[1]), f32),
        in_specs=[vmem] * 12,
        out_specs=vmem,
        scratch_shapes=[
            pltpu.VMEM((CPAD * K * K, l1), f32),    # conv1 im2col
            pltpu.VMEM((CPAD * K * K, l3), f32),    # conv2 im2col
            pltpu.VMEM((B, c2 * Q), f32),           # flattened FC features
        ],
        compiler_params=pltpu.CompilerParams(
            vmem_limit_bytes=32 * 1024 * 1024),
    )(xf, w1im, b1, w2im, b2, g0, w1c, fb1, w2f, fb2, w3f, fb3)
    return out


# ----------------------- pure-JAX f32 reference (test) ----------------------

def lenet_reference(x, params):
    dn = ('NCHW', 'OIHW', 'NCHW')
    hp = jax.lax.Precision.HIGHEST
    y = jax.lax.conv_general_dilated(x, params["conv1_w"], (1, 1), 'VALID',
                                     dimension_numbers=dn, precision=hp)
    y = jnp.maximum(y + params["conv1_b"].reshape(1, -1, 1, 1), 0.0)
    y = jax.lax.reduce_window(y, -jnp.inf, jax.lax.max,
                              (1, 1, 2, 2), (1, 1, 2, 2), 'VALID')
    y = jax.lax.conv_general_dilated(y, params["conv2_w"], (1, 1), 'VALID',
                                     dimension_numbers=dn, precision=hp)
    y = jnp.maximum(y + params["conv2_b"].reshape(1, -1, 1, 1), 0.0)
    y = jax.lax.reduce_window(y, -jnp.inf, jax.lax.max,
                              (1, 1, 2, 2), (1, 1, 2, 2), 'VALID')
    y = y.reshape(y.shape[0], -1)
    y = jnp.maximum(jnp.dot(y, params["fc1_w"], precision=hp)
                    + params["fc1_b"], 0.0)
    y = jnp.maximum(jnp.dot(y, params["fc2_w"], precision=hp)
                    + params["fc2_b"], 0.0)
    y = jnp.dot(y, params["fc3_w"], precision=hp) + params["fc3_b"]
    return jax.nn.log_softmax(y, axis=0)


# ---------------------------------- main ------------------------------------

if __name__ == "__main__":
    key = jax.random.PRNGKey(0)
    keys = jax.random.split(key, 11)

    # Input: batch=2, 3x32x32 (the only spatial size consistent with 16*5*5).
    x = jax.random.normal(keys[0], (2, 3, 32, 32), dtype=jnp.float32)

    def u(k, shape, fan_in):
        bound = 1.0 / (fan_in ** 0.5)   # PyTorch default uniform init bound
        return jax.random.uniform(k, shape, jnp.float32, -bound, bound)

    params = {
        "conv1_w": u(keys[1], (6, 3, 5, 5), 3 * 25),
        "conv1_b": u(keys[2], (6,), 3 * 25),
        "conv2_w": u(keys[3], (16, 6, 5, 5), 6 * 25),
        "conv2_b": u(keys[4], (16,), 6 * 25),
        # FC weights stored already transposed to (in, out).
        "fc1_w": u(keys[5], (16 * 5 * 5, 120), 400),
        "fc1_b": u(keys[6], (120,), 400),
        "fc2_w": u(keys[7], (120, 84), 120),
        "fc2_b": u(keys[8], (84,), 120),
        "fc3_w": u(keys[9], (84, 10), 84),
        "fc3_b": u(keys[10], (10,), 84),
    }

    out = jax.jit(lenet_forward)(x, params)
    jax.block_until_ready(out)
    assert out.shape == (2, 10) and out.dtype == jnp.float32

    # Loose tolerance: conv/FC matmul operands are bf16 (f32 accumulation),
    # so small drift vs the f32 reference is expected.
    ref = lenet_reference(x, params)
    err = float(jnp.max(jnp.abs(out - ref)))
    assert err < 2e-1, f"max abs error vs f32 reference too large: {err}"

    print("KERNEL_OK")
</pallas_src>

<mosaic_0001>
module attributes {stable_mosaic.version = 11 : i64} {
  func.func @_lenet_kernel(%arg0: memref<8x2543xf32, #tpu.memory_space<vmem>>, %arg1: memref<8x200xbf16, #tpu.memory_space<vmem>>, %arg2: memref<8x1xf32, #tpu.memory_space<vmem>>, %arg3: memref<16x200xbf16, #tpu.memory_space<vmem>>, %arg4: memref<16x1xf32, #tpu.memory_space<vmem>>, %arg5: memref<640x32xf32, #tpu.memory_space<vmem>>, %arg6: memref<512x120xbf16, #tpu.memory_space<vmem>>, %arg7: memref<1x120xf32, #tpu.memory_space<vmem>>, %arg8: memref<120x84xbf16, #tpu.memory_space<vmem>>, %arg9: memref<1x84xf32, #tpu.memory_space<vmem>>, %arg10: memref<84x10xbf16, #tpu.memory_space<vmem>>, %arg11: memref<1x10xf32, #tpu.memory_space<vmem>>, %arg12: memref<2x10xf32, #tpu.memory_space<vmem>>, %arg13: memref<200x2411xf32, #tpu.memory_space<vmem>>, %arg14: memref<200x2114xf32, #tpu.memory_space<vmem>>, %arg15: memref<2x512xf32, #tpu.memory_space<vmem>>) attributes {dimension_semantics = [], scalar_prefetch = 0 : i64, scratch_operands = 3 : i64, tpu.core_type = #tpu.core_type<tc>} {
    %c0 = arith.constant 0 : index
    %c0_0 = arith.constant 0 : index
    %0 = vector.load %arg0[%c0, %c0_0] : memref<8x2543xf32, #tpu.memory_space<vmem>>, vector<8x2411xf32>
    %c0_1 = arith.constant 0 : index
    %c0_2 = arith.constant 0 : index
    %1 = vector.load %arg13[%c0_1, %c0_2] : memref<200x2411xf32, #tpu.memory_space<vmem>>, vector<8x2411xf32>
    tpu.vector_store %arg13[%c0_1, %c0_2], %0 {strides = array<i32>} : memref<200x2411xf32, #tpu.memory_space<vmem>>, vector<8x2411xf32>,
    %c0_3 = arith.constant 0 : index
    %c1 = arith.constant 1 : index
    %2 = vector.load %arg0[%c0_3, %c1] : memref<8x2543xf32, #tpu.memory_space<vmem>>, vector<8x2411xf32>
    %c8 = arith.constant 8 : index
    %c0_4 = arith.constant 0 : index
    %3 = vector.load %arg13[%c8, %c0_4] : memref<200x2411xf32, #tpu.memory_space<vmem>>, vector<8x2411xf32>
    tpu.vector_store %arg13[%c8, %c0_4], %2 {strides = array<i32>} : memref<200x2411xf32, #tpu.memory_space<vmem>>, vector<8x2411xf32>,
    %c0_5 = arith.constant 0 : index
    %c2 = arith.constant 2 : index
    %4 = vector.load %arg0[%c0_5, %c2] : memref<8x2543xf32, #tpu.memory_space<vmem>>, vector<8x2411xf32>
    %c16 = arith.constant 16 : index
    %c0_6 = arith.constant 0 : index
    %5 = vector.load %arg13[%c16, %c0_6] : memref<200x2411xf32, #tpu.memory_space<vmem>>, vector<8x2411xf32>
    tpu.vector_store %arg13[%c16, %c0_6], %4 {strides = array<i32>} : memref<200x2411xf32, #tpu.memory_space<vmem>>, vector<8x2411xf32>,
    %c0_7 = arith.constant 0 : index
    %c3 = arith.constant 3 : index
    %6 = vector.load %arg0[%c0_7, %c3] : memref<8x2543xf32, #tpu.memory_space<vmem>>, vector<8x2411xf32>
    %c24 = arith.constant 24 : index
    %c0_8 = arith.constant 0 : index
    %7 = vector.load %arg13[%c24, %c0_8] : memref<200x2411xf32, #tpu.memory_space<vmem>>, vector<8x2411xf32>
    tpu.vector_store %arg13[%c24, %c0_8], %6 {strides = array<i32>} : memref<200x2411xf32, #tpu.memory_space<vmem>>, vector<8x2411xf32>,
    %c0_9 = arith.constant 0 : index
    %c4 = arith.constant 4 : index
    %8 = vector.load %arg0[%c0_9, %c4] : memref<8x2543xf32, #tpu.memory_space<vmem>>, vector<8x2411xf32>
    %c32 = arith.constant 32 : index
    %c0_10 = arith.constant 0 : index
    %9 = vector.load %arg13[%c32, %c0_10] : memref<200x2411xf32, #tpu.memory_space<vmem>>, vector<8x2411xf32>
    tpu.vector_store %arg13[%c32, %c0_10], %8 {strides = array<i32>} : memref<200x2411xf32, #tpu.memory_space<vmem>>, vector<8x2411xf32>,
    %c0_11 = arith.constant 0 : index
    %c32_12 = arith.constant 32 : index
    %10 = vector.load %arg0[%c0_11, %c32_12] : memref<8x2543xf32, #tpu.memory_space<vmem>>, vector<8x2411xf32>
    %c40 = arith.constant 40 : index
    %c0_13 = arith.constant 0 : index
    %11 = vector.load %arg13[%c40, %c0_13] : memref<200x2411xf32, #tpu.memory_space<vmem>>, vector<8x2411xf32>
    tpu.vector_store %arg13[%c40, %c0_13], %10 {strides = array<i32>} : memref<200x2411xf32, #tpu.memory_space<vmem>>, vector<8x2411xf32>,
    %c0_14 = arith.constant 0 : index
    %c33 = arith.constant 33 : index
    %12 = vector.load %arg0[%c0_14, %c33] : memref<8x2543xf32, #tpu.memory_space<vmem>>, vector<8x2411xf32>
    %c48 = arith.constant 48 : index
    %c0_15 = arith.constant 0 : index
    %13 = vector.load %arg13[%c48, %c0_15] : memref<200x2411xf32, #tpu.memory_space<vmem>>, vector<8x2411xf32>
    tpu.vector_store %arg13[%c48, %c0_15], %12 {strides = array<i32>} : memref<200x2411xf32, #tpu.memory_space<vmem>>, vector<8x2411xf32>,
    %c0_16 = arith.constant 0 : index
    %c34 = arith.constant 34 : index
    %14 = vector.load %arg0[%c0_16, %c34] : memref<8x2543xf32, #tpu.memory_space<vmem>>, vector<8x2411xf32>
    %c56 = arith.constant 56 : index
    %c0_17 = arith.constant 0 : index
    %15 = vector.load %arg13[%c56, %c0_17] : memref<200x2411xf32, #tpu.memory_space<vmem>>, vector<8x2411xf32>
    tpu.vector_store %arg13[%c56, %c0_17], %14 {strides = array<i32>} : memref<200x2411xf32, #tpu.memory_space<vmem>>, vector<8x2411xf32>,
    %c0_18 = arith.constant 0 : index
    %c35 = arith.constant 35 : index
    %16 = vector.load %arg0[%c0_18, %c35] : memref<8x2543xf32, #tpu.memory_space<vmem>>, vector<8x2411xf32>
    %c64 = arith.constant 64 : index
    %c0_19 = arith.constant 0 : index
    %17 = vector.load %arg13[%c64, %c0_19] : memref<200x2411xf32, #tpu.memory_space<vmem>>, vector<8x2411xf32>
    tpu.vector_store %arg13[%c64, %c0_19], %16 {strides = array<i32>} : memref<200x2411xf32, #tpu.memory_space<vmem>>, vector<8x2411xf32>,
    %c0_20 = arith.constant 0 : index
    %c36 = arith.constant 36 : index
    %18 = vector.load %arg0[%c0_20, %c36] : memref<8x2543xf32, #tpu.memory_space<vmem>>, vector<8x2411xf32>
    %c72 = arith.constant 72 : index
    %c0_21 = arith.constant 0 : index
    %19 = vector.load %arg13[%c72, %c0_21] : memref<200x2411xf32, #tpu.memory_space<vmem>>, vector<8x2411xf32>
    tpu.vector_store %arg13[%c72, %c0_21], %18 {strides = array<i32>} : memref<200x2411xf32, #tpu.memory_space<vmem>>, vector<8x2411xf32>,
    %c0_22 = arith.constant 0 : index
    %c64_23 = arith.constant 64 : index
    %20 = vector.load %arg0[%c0_22, %c64_23] : memref<8x2543xf32, #tpu.memory_space<vmem>>, vector<8x2411xf32>
    %c80 = arith.constant 80 : index
    %c0_24 = arith.constant 0 : index
    %21 = vector.load %arg13[%c80, %c0_24] : memref<200x2411xf32, #tpu.memory_space<vmem>>, vector<8x2411xf32>
    tpu.vector_store %arg13[%c80, %c0_24], %20 {strides = array<i32>} : memref<200x2411xf32, #tpu.memory_space<vmem>>, vector<8x2411xf32>,
    %c0_25 = arith.constant 0 : index
    %c65 = arith.constant 65 : index
    %22 = vector.load %arg0[%c0_25, %c65] : memref<8x2543xf32, #tpu.memory_space<vmem>>, vector<8x2411xf32>
    %c88 = arith.constant 88 : index
    %c0_26 = arith.constant 0 : index
    %23 = vector.load %arg13[%c88, %c0_26] : memref<200x2411xf32, #tpu.memory_space<vmem>>, vector<8x2411xf32>
    tpu.vector_store %arg13[%c88, %c0_26], %22 {strides = array<i32>} : memref<200x2411xf32, #tpu.memory_space<vmem>>, vector<8x2411xf32>,
    %c0_27 = arith.constant 0 : index
    %c66 = arith.constant 66 : index
    %24 = vector.load %arg0[%c0_27, %c66] : memref<8x2543xf32, #tpu.memory_space<vmem>>, vector<8x2411xf32>
    %c96 = arith.constant 96 : index
    %c0_28 = arith.constant 0 : index
    %25 = vector.load %arg13[%c96, %c0_28] : memref<200x2411xf32, #tpu.memory_space<vmem>>, vector<8x2411xf32>
    tpu.vector_store %arg13[%c96, %c0_28], %24 {strides = array<i32>} : memref<200x2411xf32, #tpu.memory_space<vmem>>, vector<8x2411xf32>,
    %c0_29 = arith.constant 0 : index
    %c67 = arith.constant 67 : index
    %26 = vector.load %arg0[%c0_29, %c67] : memref<8x2543xf32, #tpu.memory_space<vmem>>, vector<8x2411xf32>
    %c104 = arith.constant 104 : index
    %c0_30 = arith.constant 0 : index
    %27 = vector.load %arg13[%c104, %c0_30] : memref<200x2411xf32, #tpu.memory_space<vmem>>, vector<8x2411xf32>
    tpu.vector_store %arg13[%c104, %c0_30], %26 {strides = array<i32>} : memref<200x2411xf32, #tpu.memory_space<vmem>>, vector<8x2411xf32>,
    %c0_31 = arith.constant 0 : index
    %c68 = arith.constant 68 : index
    %28 = vector.load %arg0[%c0_31, %c68] : memref<8x2543xf32, #tpu.memory_space<vmem>>, vector<8x2411xf32>
    %c112 = arith.constant 112 : index
    %c0_32 = arith.constant 0 : index
    %29 = vector.load %arg13[%c112, %c0_32] : memref<200x2411xf32, #tpu.memory_space<vmem>>, vector<8x2411xf32>
    tpu.vector_store %arg13[%c112, %c0_32], %28 {strides = array<i32>} : memref<200x2411xf32, #tpu.memory_space<vmem>>, vector<8x2411xf32>,
    %c0_33 = arith.constant 0 : index
    %c96_34 = arith.constant 96 : index
    %30 = vector.load %arg0[%c0_33, %c96_34] : memref<8x2543xf32, #tpu.memory_space<vmem>>, vector<8x2411xf32>
    %c120 = arith.constant 120 : index
    %c0_35 = arith.constant 0 : index
    %31 = vector.load %arg13[%c120, %c0_35] : memref<200x2411xf32, #tpu.memory_space<vmem>>, vector<8x2411xf32>
    tpu.vector_store %arg13[%c120, %c0_35], %30 {strides = array<i32>} : memref<200x2411xf32, #tpu.memory_space<vmem>>, vector<8x2411xf32>,
    %c0_36 = arith.constant 0 : index
    %c97 = arith.constant 97 : index
    %32 = vector.load %arg0[%c0_36, %c97] : memref<8x2543xf32, #tpu.memory_space<vmem>>, vector<8x2411xf32>
    %c128 = arith.constant 128 : index
    %c0_37 = arith.constant 0 : index
    %33 = vector.load %arg13[%c128, %c0_37] : memref<200x2411xf32, #tpu.memory_space<vmem>>, vector<8x2411xf32>
    tpu.vector_store %arg13[%c128, %c0_37], %32 {strides = array<i32>} : memref<200x2411xf32, #tpu.memory_space<vmem>>, vector<8x2411xf32>,
    %c0_38 = arith.constant 0 : index
    %c98 = arith.constant 98 : index
    %34 = vector.load %arg0[%c0_38, %c98] : memref<8x2543xf32, #tpu.memory_space<vmem>>, vector<8x2411xf32>
    %c136 = arith.constant 136 : index
    %c0_39 = arith.constant 0 : index
    %35 = vector.load %arg13[%c136, %c0_39] : memref<200x2411xf32, #tpu.memory_space<vmem>>, vector<8x2411xf32>
    tpu.vector_store %arg13[%c136, %c0_39], %34 {strides = array<i32>} : memref<200x2411xf32, #tpu.memory_space<vmem>>, vector<8x2411xf32>,
    %c0_40 = arith.constant 0 : index
    %c99 = arith.constant 99 : index
    %36 = vector.load %arg0[%c0_40, %c99] : memref<8x2543xf32, #tpu.memory_space<vmem>>, vector<8x2411xf32>
    %c144 = arith.constant 144 : index
    %c0_41 = arith.constant 0 : index
    %37 = vector.load %arg13[%c144, %c0_41] : memref<200x2411xf32, #tpu.memory_space<vmem>>, vector<8x2411xf32>
    tpu.vector_store %arg13[%c144, %c0_41], %36 {strides = array<i32>} : memref<200x2411xf32, #tpu.memory_space<vmem>>, vector<8x2411xf32>,
    %c0_42 = arith.constant 0 : index
    %c100 = arith.constant 100 : index
    %38 = vector.load %arg0[%c0_42, %c100] : memref<8x2543xf32, #tpu.memory_space<vmem>>, vector<8x2411xf32>
    %c152 = arith.constant 152 : index
    %c0_43 = arith.constant 0 : index
    %39 = vector.load %arg13[%c152, %c0_43] : memref<200x2411xf32, #tpu.memory_space<vmem>>, vector<8x2411xf32>
    tpu.vector_store %arg13[%c152, %c0_43], %38 {strides = array<i32>} : memref<200x2411xf32, #tpu.memory_space<vmem>>, vector<8x2411xf32>,
    %c0_44 = arith.constant 0 : index
    %c128_45 = arith.constant 128 : index
    %40 = vector.load %arg0[%c0_44, %c128_45] : memref<8x2543xf32, #tpu.memory_space<vmem>>, vector<8x2411xf32>
    %c160 = arith.constant 160 : index
    %c0_46 = arith.constant 0 : index
    %41 = vector.load %arg13[%c160, %c0_46] : memref<200x2411xf32, #tpu.memory_space<vmem>>, vector<8x2411xf32>
    tpu.vector_store %arg13[%c160, %c0_46], %40 {strides = array<i32>} : memref<200x2411xf32, #tpu.memory_space<vmem>>, vector<8x2411xf32>,
    %c0_47 = arith.constant 0 : index
    %c129 = arith.constant 129 : index
    %42 = vector.load %arg0[%c0_47, %c129] : memref<8x2543xf32, #tpu.memory_space<vmem>>, vector<8x2411xf32>
    %c168 = arith.constant 168 : index
    %c0_48 = arith.constant 0 : index
    %43 = vector.load %arg13[%c168, %c0_48] : memref<200x2411xf32, #tpu.memory_space<vmem>>, vector<8x2411xf32>
    tpu.vector_store %arg13[%c168, %c0_48], %42 {strides = array<i32>} : memref<200x2411xf32, #tpu.memory_space<vmem>>, vector<8x2411xf32>,
    %c0_49 = arith.constant 0 : index
    %c130 = arith.constant 130 : index
    %44 = vector.load %arg0[%c0_49, %c130] : memref<8x2543xf32, #tpu.memory_space<vmem>>, vector<8x2411xf32>
    %c176 = arith.constant 176 : index
    %c0_50 = arith.constant 0 : index
    %45 = vector.load %arg13[%c176, %c0_50] : memref<200x2411xf32, #tpu.memory_space<vmem>>, vector<8x2411xf32>
    tpu.vector_store %arg13[%c176, %c0_50], %44 {strides = array<i32>} : memref<200x2411xf32, #tpu.memory_space<vmem>>, vector<8x2411xf32>,
    %c0_51 = arith.constant 0 : index
    %c131 = arith.constant 131 : index
    %46 = vector.load %arg0[%c0_51, %c131] : memref<8x2543xf32, #tpu.memory_space<vmem>>, vector<8x2411xf32>
    %c184 = arith.constant 184 : index
    %c0_52 = arith.constant 0 : index
    %47 = vector.load %arg13[%c184, %c0_52] : memref<200x2411xf32, #tpu.memory_space<vmem>>, vector<8x2411xf32>
    tpu.vector_store %arg13[%c184, %c0_52], %46 {strides = array<i32>} : memref<200x2411xf32, #tpu.memory_space<vmem>>, vector<8x2411xf32>,
    %c0_53 = arith.constant 0 : index
    %c132 = arith.constant 132 : index
    %48 = vector.load %arg0[%c0_53, %c132] : memref<8x2543xf32, #tpu.memory_space<vmem>>, vector<8x2411xf32>
    %c192 = arith.constant 192 : index
    %c0_54 = arith.constant 0 : index
    %49 = vector.load %arg13[%c192, %c0_54] : memref<200x2411xf32, #tpu.memory_space<vmem>>, vector<8x2411xf32>
    tpu.vector_store %arg13[%c192, %c0_54], %48 {strides = array<i32>} : memref<200x2411xf32, #tpu.memory_space<vmem>>, vector<8x2411xf32>,
    %c0_55 = arith.constant 0 : index
    %c0_56 = arith.constant 0 : index
    %50 = vector.load %arg1[%c0_55, %c0_56] : memref<8x200xbf16, #tpu.memory_space<vmem>>, vector<8x200xbf16>
    %c0_57 = arith.constant 0 : index
    %c0_58 = arith.constant 0 : index
    %51 = vector.load %arg13[%c0_57, %c0_58] : memref<200x2411xf32, #tpu.memory_space<vmem>>, vector<200x2411xf32>
    %52 = arith.truncf %51 : vector<200x2411xf32> to vector<200x2411xbf16>
    %cst = arith.constant dense<0.000000e+00> : vector<8x2411xf32>
    %53 = tpu.matmul %50, %52, %cst {dimension_numbers = #tpu.dot_dimension_numbers<[1], [0], [0], [1], [0, 0, 1, 1], [], []>} : vector<8x200xbf16>, vector<200x2411xbf16>, vector<8x2411xf32> -> vector<8x2411xf32>
    %c0_59 = arith.constant 0 : index
    %c0_60 = arith.constant 0 : index
    %54 = vector.load %arg2[%c0_59, %c0_60] : memref<8x1xf32, #tpu.memory_space<vmem>>, vector<8x1xf32>
    %55 = vector.broadcast %54 : vector<8x1xf32> to vector<8x2411xf32>
    %56 = arith.addf %53, %55 : vector<8x2411xf32>
    %cst_61 = arith.constant 0.000000e+00 : f32
    %57 = vector.broadcast %cst_61 : f32 to vector<8x2411xf32>
    %58 = arith.maximumf %56, %57 : vector<8x2411xf32>
    %59 = vector.extract_strided_slice %58 {offsets = [0, 0], sizes = [8, 2410], strides = [1, 1]} : vector<8x2411xf32> to vector<8x2410xf32>
    %60 = vector.extract_strided_slice %58 {offsets = [0, 1], sizes = [8, 2410], strides = [1, 1]} : vector<8x2411xf32> to vector<8x2410xf32>
    %61 = arith.maximumf %59, %60 : vector<8x2410xf32>
    %62 = vector.extract_strided_slice %61 {offsets = [0, 0], sizes = [8, 2378], strides = [1, 1]} : vector<8x2410xf32> to vector<8x2378xf32>
    %63 = vector.extract_strided_slice %61 {offsets = [0, 32], sizes = [8, 2378], strides = [1, 1]} : vector<8x2410xf32> to vector<8x2378xf32>
    %64 = arith.maximumf %62, %63 : vector<8x2378xf32>
    %65 = vector.extract_strided_slice %64 {offsets = [0, 0], sizes = [8, 2114], strides = [1, 1]} : vector<8x2378xf32> to vector<8x2114xf32>
    %c0_62 = arith.constant 0 : index
    %c0_63 = arith.constant 0 : index
    %66 = vector.load %arg14[%c0_62, %c0_63] : memref<200x2114xf32, #tpu.memory_space<vmem>>, vector<8x2114xf32>
    tpu.vector_store %arg14[%c0_62, %c0_63], %65 {strides = array<i32>} : memref<200x2114xf32, #tpu.memory_space<vmem>>, vector<8x2114xf32>,
    %67 = vector.extract_strided_slice %64 {offsets = [0, 2], sizes = [8, 2114], strides = [1, 1]} : vector<8x2378xf32> to vector<8x2114xf32>
    %c8_64 = arith.constant 8 : index
    %c0_65 = arith.constant 0 : index
    %68 = vector.load %arg14[%c8_64, %c0_65] : memref<200x2114xf32, #tpu.memory_space<vmem>>, vector<8x2114xf32>
    tpu.vector_store %arg14[%c8_64, %c0_65], %67 {strides = array<i32>} : memref<200x2114xf32, #tpu.memory_space<vmem>>, vector<8x2114xf32>,
    %69 = vector.extract_strided_slice %64 {offsets = [0, 4], sizes = [8, 2114], strides = [1, 1]} : vector<8x2378xf32> to vector<8x2114xf32>
    %c16_66 = arith.constant 16 : index
    %c0_67 = arith.constant 0 : index
    %70 = vector.load %arg14[%c16_66, %c0_67] : memref<200x2114xf32, #tpu.memory_space<vmem>>, vector<8x2114xf32>
    tpu.vector_store %arg14[%c16_66, %c0_67], %69 {strides = array<i32>} : memref<200x2114xf32, #tpu.memory_space<vmem>>, vector<8x2114xf32>,
    %71 = vector.extract_strided_slice %64 {offsets = [0, 6], sizes = [8, 2114], strides = [1, 1]} : vector<8x2378xf32> to vector<8x2114xf32>
    %c24_68 = arith.constant 24 : index
    %c0_69 = arith.constant 0 : index
    %72 = vector.load %arg14[%c24_68, %c0_69] : memref<200x2114xf32, #tpu.memory_space<vmem>>, vector<8x2114xf32>
    tpu.vector_store %arg14[%c24_68, %c0_69], %71 {strides = array<i32>} : memref<200x2114xf32, #tpu.memory_space<vmem>>, vector<8x2114xf32>,
    %73 = vector.extract_strided_slice %64 {offsets = [0, 8], sizes = [8, 2114], strides = [1, 1]} : vector<8x2378xf32> to vector<8x2114xf32>
    %c32_70 = arith.constant 32 : index
    %c0_71 = arith.constant 0 : index
    %74 = vector.load %arg14[%c32_70, %c0_71] : memref<200x2114xf32, #tpu.memory_space<vmem>>, vector<8x2114xf32>
    tpu.vector_store %arg14[%c32_70, %c0_71], %73 {strides = array<i32>} : memref<200x2114xf32, #tpu.memory_space<vmem>>, vector<8x2114xf32>,
    %75 = vector.extract_strided_slice %64 {offsets = [0, 64], sizes = [8, 2114], strides = [1, 1]} : vector<8x2378xf32> to vector<8x2114xf32>
    %c40_72 = arith.constant 40 : index
    %c0_73 = arith.constant 0 : index
    %76 = vector.load %arg14[%c40_72, %c0_73] : memref<200x2114xf32, #tpu.memory_space<vmem>>, vector<8x2114xf32>
    tpu.vector_store %arg14[%c40_72, %c0_73], %75 {strides = array<i32>} : memref<200x2114xf32, #tpu.memory_space<vmem>>, vector<8x2114xf32>,
    %77 = vector.extract_strided_slice %64 {offsets = [0, 66], sizes = [8, 2114], strides = [1, 1]} : vector<8x2378xf32> to vector<8x2114xf32>
    %c48_74 = arith.constant 48 : index
    %c0_75 = arith.constant 0 : index
    %78 = vector.load %arg14[%c48_74, %c0_75] : memref<200x2114xf32, #tpu.memory_space<vmem>>, vector<8x2114xf32>
    tpu.vector_store %arg14[%c48_74, %c0_75], %77 {strides = array<i32>} : memref<200x2114xf32, #tpu.memory_space<vmem>>, vector<8x2114xf32>,
    %79 = vector.extract_strided_slice %64 {offsets = [0, 68], sizes = [8, 2114], strides = [1, 1]} : vector<8x2378xf32> to vector<8x2114xf32>
    %c56_76 = arith.constant 56 : index
    %c0_77 = arith.constant 0 : index
    %80 = vector.load %arg14[%c56_76, %c0_77] : memref<200x2114xf32, #tpu.memory_space<vmem>>, vector<8x2114xf32>
    tpu.vector_store %arg14[%c56_76, %c0_77], %79 {strides = array<i32>} : memref<200x2114xf32, #tpu.memory_space<vmem>>, vector<8x2114xf32>,
    %81 = vector.extract_strided_slice %64 {offsets = [0, 70], sizes = [8, 2114], strides = [1, 1]} : vector<8x2378xf32> to vector<8x2114xf32>
    %c64_78 = arith.constant 64 : index
    %c0_79 = arith.constant 0 : index
    %82 = vector.load %arg14[%c64_78, %c0_79] : memref<200x2114xf32, #tpu.memory_space<vmem>>, vector<8x2114xf32>
    tpu.vector_store %arg14[%c64_78, %c0_79], %81 {strides = array<i32>} : memref<200x2114xf32, #tpu.memory_space<vmem>>, vector<8x2114xf32>,
    %83 = vector.extract_strided_slice %64 {offsets = [0, 72], sizes = [8, 2114], strides = [1, 1]} : vector<8x2378xf32> to vector<8x2114xf32>
    %c72_80 = arith.constant 72 : index
    %c0_81 = arith.constant 0 : index
    %84 = vector.load %arg14[%c72_80, %c0_81] : memref<200x2114xf32, #tpu.memory_space<vmem>>, vector<8x2114xf32>
    tpu.vector_store %arg14[%c72_80, %c0_81], %83 {strides = array<i32>} : memref<200x2114xf32, #tpu.memory_space<vmem>>, vector<8x2114xf32>,
    %85 = vector.extract_strided_slice %64 {offsets = [0, 128], sizes = [8, 2114], strides = [1, 1]} : vector<8x2378xf32> to vector<8x2114xf32>
    %c80_82 = arith.constant 80 : index
    %c0_83 = arith.constant 0 : index
    %86 = vector.load %arg14[%c80_82, %c0_83] : memref<200x2114xf32, #tpu.memory_space<vmem>>, vector<8x2114xf32>
    tpu.vector_store %arg14[%c80_82, %c0_83], %85 {strides = array<i32>} : memref<200x2114xf32, #tpu.memory_space<vmem>>, vector<8x2114xf32>,
    %87 = vector.extract_strided_slice %64 {offsets = [0, 130], sizes = [8, 2114], strides = [1, 1]} : vector<8x2378xf32> to vector<8x2114xf32>
    %c88_84 = arith.constant 88 : index
    %c0_85 = arith.constant 0 : index
    %88 = vector.load %arg14[%c88_84, %c0_85] : memref<200x2114xf32, #tpu.memory_space<vmem>>, vector<8x2114xf32>
    tpu.vector_store %arg14[%c88_84, %c0_85], %87 {strides = array<i32>} : memref<200x2114xf32, #tpu.memory_space<vmem>>, vector<8x2114xf32>,
    %89 = vector.extract_strided_slice %64 {offsets = [0, 132], sizes = [8, 2114], strides = [1, 1]} : vector<8x2378xf32> to vector<8x2114xf32>
    %c96_86 = arith.constant 96 : index
    %c0_87 = arith.constant 0 : index
    %90 = vector.load %arg14[%c96_86, %c0_87] : memref<200x2114xf32, #tpu.memory_space<vmem>>, vector<8x2114xf32>
    tpu.vector_store %arg14[%c96_86, %c0_87], %89 {strides = array<i32>} : memref<200x2114xf32, #tpu.memory_space<vmem>>, vector<8x2114xf32>,
    %91 = vector.extract_strided_slice %64 {offsets = [0, 134], sizes = [8, 2114], strides = [1, 1]} : vector<8x2378xf32> to vector<8x2114xf32>
    %c104_88 = arith.constant 104 : index
    %c0_89 = arith.constant 0 : index
    %92 = vector.load %arg14[%c104_88, %c0_89] : memref<200x2114xf32, #tpu.memory_space<vmem>>, vector<8x2114xf32>
    tpu.vector_store %arg14[%c104_88, %c0_89], %91 {strides = array<i32>} : memref<200x2114xf32, #tpu.memory_space<vmem>>, vector<8x2114xf32>,
    %93 = vector.extract_strided_slice %64 {offsets = [0, 136], sizes = [8, 2114], strides = [1, 1]} : vector<8x2378xf32> to vector<8x2114xf32>
    %c112_90 = arith.constant 112 : index
    %c0_91 = arith.constant 0 : index
    %94 = vector.load %arg14[%c112_90, %c0_91] : memref<200x2114xf32, #tpu.memory_space<vmem>>, vector<8x2114xf32>
    tpu.vector_store %arg14[%c112_90, %c0_91], %93 {strides = array<i32>} : memref<200x2114xf32, #tpu.memory_space<vmem>>, vector<8x2114xf32>,
    %95 = vector.extract_strided_slice %64 {offsets = [0, 192], sizes = [8, 2114], strides = [1, 1]} : vector<8x2378xf32> to vector<8x2114xf32>
    %c120_92 = arith.constant 120 : index
    %c0_93 = arith.constant 0 : index
    %96 = vector.load %arg14[%c120_92, %c0_93] : memref<200x2114xf32, #tpu.memory_space<vmem>>, vector<8x2114xf32>
    tpu.vector_store %arg14[%c120_92, %c0_93], %95 {strides = array<i32>} : memref<200x2114xf32, #tpu.memory_space<vmem>>, vector<8x2114xf32>,
    %97 = vector.extract_strided_slice %64 {offsets = [0, 194], sizes = [8, 2114], strides = [1, 1]} : vector<8x2378xf32> to vector<8x2114xf32>
    %c128_94 = arith.constant 128 : index
    %c0_95 = arith.constant 0 : index
    %98 = vector.load %arg14[%c128_94, %c0_95] : memref<200x2114xf32, #tpu.memory_space<vmem>>, vector<8x2114xf32>
    tpu.vector_store %arg14[%c128_94, %c0_95], %97 {strides = array<i32>} : memref<200x2114xf32, #tpu.memory_space<vmem>>, vector<8x2114xf32>,
    %99 = vector.extract_strided_slice %64 {offsets = [0, 196], sizes = [8, 2114], strides = [1, 1]} : vector<8x2378xf32> to vector<8x2114xf32>
    %c136_96 = arith.constant 136 : index
    %c0_97 = arith.constant 0 : index
    %100 = vector.load %arg14[%c136_96, %c0_97] : memref<200x2114xf32, #tpu.memory_space<vmem>>, vector<8x2114xf32>
    tpu.vector_store %arg14[%c136_96, %c0_97], %99 {strides = array<i32>} : memref<200x2114xf32, #tpu.memory_space<vmem>>, vector<8x2114xf32>,
    %101 = vector.extract_strided_slice %64 {offsets = [0, 198], sizes = [8, 2114], strides = [1, 1]} : vector<8x2378xf32> to vector<8x2114xf32>
    %c144_98 = arith.constant 144 : index
    %c0_99 = arith.constant 0 : index
    %102 = vector.load %arg14[%c144_98, %c0_99] : memref<200x2114xf32, #tpu.memory_space<vmem>>, vector<8x2114xf32>
    tpu.vector_store %arg14[%c144_98, %c0_99], %101 {strides = array<i32>} : memref<200x2114xf32, #tpu.memory_space<vmem>>, vector<8x2114xf32>,
    %103 = vector.extract_strided_slice %64 {offsets = [0, 200], sizes = [8, 2114], strides = [1, 1]} : vector<8x2378xf32> to vector<8x2114xf32>
    %c152_100 = arith.constant 152 : index
    %c0_101 = arith.constant 0 : index
    %104 = vector.load %arg14[%c152_100, %c0_101] : memref<200x2114xf32, #tpu.memory_space<vmem>>, vector<8x2114xf32>
    tpu.vector_store %arg14[%c152_100, %c0_101], %103 {strides = array<i32>} : memref<200x2114xf32, #tpu.memory_space<vmem>>, vector<8x2114xf32>,
    %105 = vector.extract_strided_slice %64 {offsets = [0, 256], sizes = [8, 2114], strides = [1, 1]} : vector<8x2378xf32> to vector<8x2114xf32>
    %c160_102 = arith.constant 160 : index
    %c0_103 = arith.constant 0 : index
    %106 = vector.load %arg14[%c160_102, %c0_103] : memref<200x2114xf32, #tpu.memory_space<vmem>>, vector<8x2114xf32>
    tpu.vector_store %arg14[%c160_102, %c0_103], %105 {strides = array<i32>} : memref<200x2114xf32, #tpu.memory_space<vmem>>, vector<8x2114xf32>,
    %107 = vector.extract_strided_slice %64 {offsets = [0, 258], sizes = [8, 2114], strides = [1, 1]} : vector<8x2378xf32> to vector<8x2114xf32>
    %c168_104 = arith.constant 168 : index
    %c0_105 = arith.constant 0 : index
    %108 = vector.load %arg14[%c168_104, %c0_105] : memref<200x2114xf32, #tpu.memory_space<vmem>>, vector<8x2114xf32>
    tpu.vector_store %arg14[%c168_104, %c0_105], %107 {strides = array<i32>} : memref<200x2114xf32, #tpu.memory_space<vmem>>, vector<8x2114xf32>,
    %109 = vector.extract_strided_slice %64 {offsets = [0, 260], sizes = [8, 2114], strides = [1, 1]} : vector<8x2378xf32> to vector<8x2114xf32>
    %c176_106 = arith.constant 176 : index
    %c0_107 = arith.constant 0 : index
    %110 = vector.load %arg14[%c176_106, %c0_107] : memref<200x2114xf32, #tpu.memory_space<vmem>>, vector<8x2114xf32>
    tpu.vector_store %arg14[%c176_106, %c0_107], %109 {strides = array<i32>} : memref<200x2114xf32, #tpu.memory_space<vmem>>, vector<8x2114xf32>,
    %111 = vector.extract_strided_slice %64 {offsets = [0, 262], sizes = [8, 2114], strides = [1, 1]} : vector<8x2378xf32> to vector<8x2114xf32>
    %c184_108 = arith.constant 184 : index
    %c0_109 = arith.constant 0 : index
    %112 = vector.load %arg14[%c184_108, %c0_109] : memref<200x2114xf32, #tpu.memory_space<vmem>>, vector<8x2114xf32>
    tpu.vector_store %arg14[%c184_108, %c0_109], %111 {strides = array<i32>} : memref<200x2114xf32, #tpu.memory_space<vmem>>, vector<8x2114xf32>,
    %113 = vector.extract_strided_slice %64 {offsets = [0, 264], sizes = [8, 2114], strides = [1, 1]} : vector<8x2378xf32> to vector<8x2114xf32>
    %c192_110 = arith.constant 192 : index
    %c0_111 = arith.constant 0 : index
    %114 = vector.load %arg14[%c192_110, %c0_111] : memref<200x2114xf32, #tpu.memory_space<vmem>>, vector<8x2114xf32>
    tpu.vector_store %arg14[%c192_110, %c0_111], %113 {strides = array<i32>} : memref<200x2114xf32, #tpu.memory_space<vmem>>, vector<8x2114xf32>,
    %c0_112 = arith.constant 0 : index
    %c0_113 = arith.constant 0 : index
    %115 = vector.load %arg3[%c0_112, %c0_113] : memref<16x200xbf16, #tpu.memory_space<vmem>>, vector<16x200xbf16>
    %c0_114 = arith.constant 0 : index
    %c0_115 = arith.constant 0 : index
    %116 = vector.load %arg14[%c0_114, %c0_115] : memref<200x2114xf32, #tpu.memory_space<vmem>>, vector<200x2114xf32>
    %117 = arith.truncf %116 : vector<200x2114xf32> to vector<200x2114xbf16>
    %cst_116 = arith.constant dense<0.000000e+00> : vector<16x2114xf32>
    %118 = tpu.matmul %115, %117, %cst_116 {dimension_numbers = #tpu.dot_dimension_numbers<[1], [0], [0], [1], [0, 0, 1, 1], [], []>} : vector<16x200xbf16>, vector<200x2114xbf16>, vector<16x2114xf32> -> vector<16x2114xf32>
    %c0_117 = arith.constant 0 : index
    %c0_118 = arith.constant 0 : index
    %119 = vector.load %arg4[%c0_117, %c0_118] : memref<16x1xf32, #tpu.memory_space<vmem>>, vector<16x1xf32>
    %120 = vector.broadcast %119 : vector<16x1xf32> to vector<16x2114xf32>
    %121 = arith.addf %118, %120 : vector<16x2114xf32>
    %cst_119 = arith.constant 0.000000e+00 : f32
    %122 = vector.broadcast %cst_119 : f32 to vector<16x2114xf32>
    %123 = arith.maximumf %121, %122 : vector<16x2114xf32>
    %124 = vector.extract_strided_slice %123 {offsets = [0, 0], sizes = [16, 2112], strides = [1, 1]} : vector<16x2114xf32> to vector<16x2112xf32>
    %125 = vector.extract_strided_slice %123 {offsets = [0, 2], sizes = [16, 2112], strides = [1, 1]} : vector<16x2114xf32> to vector<16x2112xf32>
    %126 = arith.maximumf %124, %125 : vector<16x2112xf32>
    %127 = vector.extract_strided_slice %126 {offsets = [0, 0], sizes = [16, 2048], strides = [1, 1]} : vector<16x2112xf32> to vector<16x2048xf32>
    %128 = vector.extract_strided_slice %126 {offsets = [0, 64], sizes = [16, 2048], strides = [1, 1]} : vector<16x2112xf32> to vector<16x2048xf32>
    %129 = arith.maximumf %127, %128 : vector<16x2048xf32>
    %c0_120 = arith.constant 0 : index
    %c0_121 = arith.constant 0 : index
    %130 = vector.load %arg5[%c0_120, %c0_121] : memref<640x32xf32, #tpu.memory_space<vmem>>, vector<640x32xf32>
    %131 = vector.extract_strided_slice %129 {offsets = [0, 0], sizes = [16, 640], strides = [1, 1]} : vector<16x2048xf32> to vector<16x640xf32>
    %cst_122 = arith.constant dense<0.000000e+00> : vector<16x32xf32>
    %132 = tpu.matmul %131, %130, %cst_122 {dimension_numbers = #tpu.dot_dimension_numbers<[1], [0], [0], [1], [0, 0, 1, 1], [], []>} : vector<16x640xf32>, vector<640x32xf32>, vector<16x32xf32> -> vector<16x32xf32>
    %133 = vector.extract_strided_slice %132 {offsets = [0, 0], sizes = [1, 32], strides = [1, 1]} : vector<16x32xf32> to vector<1x32xf32>
    %c0_123 = arith.constant 0 : index
    %c0_124 = arith.constant 0 : index
    %134 = vector.load %arg15[%c0_123, %c0_124] : memref<2x512xf32, #tpu.memory_space<vmem>>, vector<1x32xf32>
    tpu.vector_store %arg15[%c0_123, %c0_124], %133 {strides = array<i32>} : memref<2x512xf32, #tpu.memory_space<vmem>>, vector<1x32xf32>,
    %135 = vector.extract_strided_slice %132 {offsets = [1, 0], sizes = [1, 32], strides = [1, 1]} : vector<16x32xf32> to vector<1x32xf32>
    %c0_125 = arith.constant 0 : index
    %c32_126 = arith.constant 32 : index
    %136 = vector.load %arg15[%c0_125, %c32_126] : memref<2x512xf32, #tpu.memory_space<vmem>>, vector<1x32xf32>
    tpu.vector_store %arg15[%c0_125, %c32_126], %135 {strides = array<i32>} : memref<2x512xf32, #tpu.memory_space<vmem>>, vector<1x32xf32>,
    %137 = vector.extract_strided_slice %132 {offsets = [2, 0], sizes = [1, 32], strides = [1, 1]} : vector<16x32xf32> to vector<1x32xf32>
    %c0_127 = arith.constant 0 : index
    %c64_128 = arith.constant 64 : index
    %138 = vector.load %arg15[%c0_127, %c64_128] : memref<2x512xf32, #tpu.memory_space<vmem>>, vector<1x32xf32>
    tpu.vector_store %arg15[%c0_127, %c64_128], %137 {strides = array<i32>} : memref<2x512xf32, #tpu.memory_space<vmem>>, vector<1x32xf32>,
    %139 = vector.extract_strided_slice %132 {offsets = [3, 0], sizes = [1, 32], strides = [1, 1]} : vector<16x32xf32> to vector<1x32xf32>
    %c0_129 = arith.constant 0 : index
    %c96_130 = arith.constant 96 : index
    %140 = vector.load %arg15[%c0_129, %c96_130] : memref<2x512xf32, #tpu.memory_space<vmem>>, vector<1x32xf32>
    tpu.vector_store %arg15[%c0_129, %c96_130], %139 {strides = array<i32>} : memref<2x512xf32, #tpu.memory_space<vmem>>, vector<1x32xf32>,
    %141 = vector.extract_strided_slice %132 {offsets = [4, 0], sizes = [1, 32], strides = [1, 1]} : vector<16x32xf32> to vector<1x32xf32>
    %c0_131 = arith.constant 0 : index
    %c128_132 = arith.constant 128 : index
    %142 = vector.load %arg15[%c0_131, %c128_132] : memref<2x512xf32, #tpu.memory_space<vmem>>, vector<1x32xf32>
    tpu.vector_store %arg15[%c0_131, %c128_132], %141 {strides = array<i32>} : memref<2x512xf32, #tpu.memory_space<vmem>>, vector<1x32xf32>,
    %143 = vector.extract_strided_slice %132 {offsets = [5, 0], sizes = [1, 32], strides = [1, 1]} : vector<16x32xf32> to vector<1x32xf32>
    %c0_133 = arith.constant 0 : index
    %c160_134 = arith.constant 160 : index
    %144 = vector.load %arg15[%c0_133, %c160_134] : memref<2x512xf32, #tpu.memory_space<vmem>>, vector<1x32xf32>
    tpu.vector_store %arg15[%c0_133, %c160_134], %143 {strides = array<i32>} : memref<2x512xf32, #tpu.memory_space<vmem>>, vector<1x32xf32>,
    %145 = vector.extract_strided_slice %132 {offsets = [6, 0], sizes = [1, 32], strides = [1, 1]} : vector<16x32xf32> to vector<1x32xf32>
    %c0_135 = arith.constant 0 : index
    %c192_136 = arith.constant 192 : index
    %146 = vector.load %arg15[%c0_135, %c192_136] : memref<2x512xf32, #tpu.memory_space<vmem>>, vector<1x32xf32>
    tpu.vector_store %arg15[%c0_135, %c192_136], %145 {strides = array<i32>} : memref<2x512xf32, #tpu.memory_space<vmem>>, vector<1x32xf32>,
    %147 = vector.extract_strided_slice %132 {offsets = [7, 0], sizes = [1, 32], strides = [1, 1]} : vector<16x32xf32> to vector<1x32xf32>
    %c0_137 = arith.constant 0 : index
    %c224 = arith.constant 224 : index
    %148 = vector.load %arg15[%c0_137, %c224] : memref<2x512xf32, #tpu.memory_space<vmem>>, vector<1x32xf32>
    tpu.vector_store %arg15[%c0_137, %c224], %147 {strides = array<i32>} : memref<2x512xf32, #tpu.memory_space<vmem>>, vector<1x32xf32>,
    %149 = vector.extract_strided_slice %132 {offsets = [8, 0], sizes = [1, 32], strides = [1, 1]} : vector<16x32xf32> to vector<1x32xf32>
    %c0_138 = arith.constant 0 : index
    %c256 = arith.constant 256 : index
    %150 = vector.load %arg15[%c0_138, %c256] : memref<2x512xf32, #tpu.memory_space<vmem>>, vector<1x32xf32>
    tpu.vector_store %arg15[%c0_138, %c256], %149 {strides = array<i32>} : memref<2x512xf32, #tpu.memory_space<vmem>>, vector<1x32xf32>,
    %151 = vector.extract_strided_slice %132 {offsets = [9, 0], sizes = [1, 32], strides = [1, 1]} : vector<16x32xf32> to vector<1x32xf32>
    %c0_139 = arith.constant 0 : index
    %c288 = arith.constant 288 : index
    %152 = vector.load %arg15[%c0_139, %c288] : memref<2x512xf32, #tpu.memory_space<vmem>>, vector<1x32xf32>
    tpu.vector_store %arg15[%c0_139, %c288], %151 {strides = array<i32>} : memref<2x512xf32, #tpu.memory_space<vmem>>, vector<1x32xf32>,
    %153 = vector.extract_strided_slice %132 {offsets = [10, 0], sizes = [1, 32], strides = [1, 1]} : vector<16x32xf32> to vector<1x32xf32>
    %c0_140 = arith.constant 0 : index
    %c320 = arith.constant 320 : index
    %154 = vector.load %arg15[%c0_140, %c320] : memref<2x512xf32, #tpu.memory_space<vmem>>, vector<1x32xf32>
    tpu.vector_store %arg15[%c0_140, %c320], %153 {strides = array<i32>} : memref<2x512xf32, #tpu.memory_space<vmem>>, vector<1x32xf32>,
    %155 = vector.extract_strided_slice %132 {offsets = [11, 0], sizes = [1, 32], strides = [1, 1]} : vector<16x32xf32> to vector<1x32xf32>
    %c0_141 = arith.constant 0 : index
    %c352 = arith.constant 352 : index
    %156 = vector.load %arg15[%c0_141, %c352] : memref<2x512xf32, #tpu.memory_space<vmem>>, vector<1x32xf32>
    tpu.vector_store %arg15[%c0_141, %c352], %155 {strides = array<i32>} : memref<2x512xf32, #tpu.memory_space<vmem>>, vector<1x32xf32>,
    %157 = vector.extract_strided_slice %132 {offsets = [12, 0], sizes = [1, 32], strides = [1, 1]} : vector<16x32xf32> to vector<1x32xf32>
    %c0_142 = arith.constant 0 : index
    %c384 = arith.constant 384 : index
    %158 = vector.load %arg15[%c0_142, %c384] : memref<2x512xf32, #tpu.memory_space<vmem>>, vector<1x32xf32>
    tpu.vector_store %arg15[%c0_142, %c384], %157 {strides = array<i32>} : memref<2x512xf32, #tpu.memory_space<vmem>>, vector<1x32xf32>,
    %159 = vector.extract_strided_slice %132 {offsets = [13, 0], sizes = [1, 32], strides = [1, 1]} : vector<16x32xf32> to vector<1x32xf32>
    %c0_143 = arith.constant 0 : index
    %c416 = arith.constant 416 : index
    %160 = vector.load %arg15[%c0_143, %c416] : memref<2x512xf32, #tpu.memory_space<vmem>>, vector<1x32xf32>
    tpu.vector_store %arg15[%c0_143, %c416], %159 {strides = array<i32>} : memref<2x512xf32, #tpu.memory_space<vmem>>, vector<1x32xf32>,
    %161 = vector.extract_strided_slice %132 {offsets = [14, 0], sizes = [1, 32], strides = [1, 1]} : vector<16x32xf32> to vector<1x32xf32>
    %c0_144 = arith.constant 0 : index
    %c448 = arith.constant 448 : index
    %162 = vector.load %arg15[%c0_144, %c448] : memref<2x512xf32, #tpu.memory_space<vmem>>, vector<1x32xf32>
    tpu.vector_store %arg15[%c0_144, %c448], %161 {strides = array<i32>} : memref<2x512xf32, #tpu.memory_space<vmem>>, vector<1x32xf32>,
    %163 = vector.extract_strided_slice %132 {offsets = [15, 0], sizes = [1, 32], strides = [1, 1]} : vector<16x32xf32> to vector<1x32xf32>
    %c0_145 = arith.constant 0 : index
    %c480 = arith.constant 480 : index
    %164 = vector.load %arg15[%c0_145, %c480] : memref<2x512xf32, #tpu.memory_space<vmem>>, vector<1x32xf32>
    tpu.vector_store %arg15[%c0_145, %c480], %163 {strides = array<i32>} : memref<2x512xf32, #tpu.memory_space<vmem>>, vector<1x32xf32>,
    %165 = vector.extract_strided_slice %129 {offsets = [0, 1024], sizes = [16, 640], strides = [1, 1]} : vector<16x2048xf32> to vector<16x640xf32>
    %cst_146 = arith.constant dense<0.000000e+00> : vector<16x32xf32>
    %166 = tpu.matmul %165, %130, %cst_146 {dimension_numbers = #tpu.dot_dimension_numbers<[1], [0], [0], [1], [0, 0, 1, 1], [], []>} : vector<16x640xf32>, vector<640x32xf32>, vector<16x32xf32> -> vector<16x32xf32>
    %167 = vector.extract_strided_slice %166 {offsets = [0, 0], sizes = [1, 32], strides = [1, 1]} : vector<16x32xf32> to vector<1x32xf32>
    %c1_147 = arith.constant 1 : index
    %c0_148 = arith.constant 0 : index
    %168 = vector.load %arg15[%c1_147, %c0_148] : memref<2x512xf32, #tpu.memory_space<vmem>>, vector<1x32xf32>
    tpu.vector_store %arg15[%c1_147, %c0_148], %167 {strides = array<i32>} : memref<2x512xf32, #tpu.memory_space<vmem>>, vector<1x32xf32>,
    %169 = vector.extract_strided_slice %166 {offsets = [1, 0], sizes = [1, 32], strides = [1, 1]} : vector<16x32xf32> to vector<1x32xf32>
    %c1_149 = arith.constant 1 : index
    %c32_150 = arith.constant 32 : index
    %170 = vector.load %arg15[%c1_149, %c32_150] : memref<2x512xf32, #tpu.memory_space<vmem>>, vector<1x32xf32>
    tpu.vector_store %arg15[%c1_149, %c32_150], %169 {strides = array<i32>} : memref<2x512xf32, #tpu.memory_space<vmem>>, vector<1x32xf32>,
    %171 = vector.extract_strided_slice %166 {offsets = [2, 0], sizes = [1, 32], strides = [1, 1]} : vector<16x32xf32> to vector<1x32xf32>
    %c1_151 = arith.constant 1 : index
    %c64_152 = arith.constant 64 : index
    %172 = vector.load %arg15[%c1_151, %c64_152] : memref<2x512xf32, #tpu.memory_space<vmem>>, vector<1x32xf32>
    tpu.vector_store %arg15[%c1_151, %c64_152], %171 {strides = array<i32>} : memref<2x512xf32, #tpu.memory_space<vmem>>, vector<1x32xf32>,
    %173 = vector.extract_strided_slice %166 {offsets = [3, 0], sizes = [1, 32], strides = [1, 1]} : vector<16x32xf32> to vector<1x32xf32>
    %c1_153 = arith.constant 1 : index
    %c96_154 = arith.constant 96 : index
    %174 = vector.load %arg15[%c1_153, %c96_154] : memref<2x512xf32, #tpu.memory_space<vmem>>, vector<1x32xf32>
    tpu.vector_store %arg15[%c1_153, %c96_154], %173 {strides = array<i32>} : memref<2x512xf32, #tpu.memory_space<vmem>>, vector<1x32xf32>,
    %175 = vector.extract_strided_slice %166 {offsets = [4, 0], sizes = [1, 32], strides = [1, 1]} : vector<16x32xf32> to vector<1x32xf32>
    %c1_155 = arith.constant 1 : index
    %c128_156 = arith.constant 128 : index
    %176 = vector.load %arg15[%c1_155, %c128_156] : memref<2x512xf32, #tpu.memory_space<vmem>>, vector<1x32xf32>
    tpu.vector_store %arg15[%c1_155, %c128_156], %175 {strides = array<i32>} : memref<2x512xf32, #tpu.memory_space<vmem>>, vector<1x32xf32>,
    %177 = vector.extract_strided_slice %166 {offsets = [5, 0], sizes = [1, 32], strides = [1, 1]} : vector<16x32xf32> to vector<1x32xf32>
    %c1_157 = arith.constant 1 : index
    %c160_158 = arith.constant 160 : index
    %178 = vector.load %arg15[%c1_157, %c160_158] : memref<2x512xf32, #tpu.memory_space<vmem>>, vector<1x32xf32>
    tpu.vector_store %arg15[%c1_157, %c160_158], %177 {strides = array<i32>} : memref<2x512xf32, #tpu.memory_space<vmem>>, vector<1x32xf32>,
    %179 = vector.extract_strided_slice %166 {offsets = [6, 0], sizes = [1, 32], strides = [1, 1]} : vector<16x32xf32> to vector<1x32xf32>
    %c1_159 = arith.constant 1 : index
    %c192_160 = arith.constant 192 : index
    %180 = vector.load %arg15[%c1_159, %c192_160] : memref<2x512xf32, #tpu.memory_space<vmem>>, vector<1x32xf32>
    tpu.vector_store %arg15[%c1_159, %c192_160], %179 {strides = array<i32>} : memref<2x512xf32, #tpu.memory_space<vmem>>, vector<1x32xf32>,
    %181 = vector.extract_strided_slice %166 {offsets = [7, 0], sizes = [1, 32], strides = [1, 1]} : vector<16x32xf32> to vector<1x32xf32>
    %c1_161 = arith.constant 1 : index
    %c224_162 = arith.constant 224 : index
    %182 = vector.load %arg15[%c1_161, %c224_162] : memref<2x512xf32, #tpu.memory_space<vmem>>, vector<1x32xf32>
    tpu.vector_store %arg15[%c1_161, %c224_162], %181 {strides = array<i32>} : memref<2x512xf32, #tpu.memory_space<vmem>>, vector<1x32xf32>,
    %183 = vector.extract_strided_slice %166 {offsets = [8, 0], sizes = [1, 32], strides = [1, 1]} : vector<16x32xf32> to vector<1x32xf32>
    %c1_163 = arith.constant 1 : index
    %c256_164 = arith.constant 256 : index
    %184 = vector.load %arg15[%c1_163, %c256_164] : memref<2x512xf32, #tpu.memory_space<vmem>>, vector<1x32xf32>
    tpu.vector_store %arg15[%c1_163, %c256_164], %183 {strides = array<i32>} : memref<2x512xf32, #tpu.memory_space<vmem>>, vector<1x32xf32>,
    %185 = vector.extract_strided_slice %166 {offsets = [9, 0], sizes = [1, 32], strides = [1, 1]} : vector<16x32xf32> to vector<1x32xf32>
    %c1_165 = arith.constant 1 : index
    %c288_166 = arith.constant 288 : index
    %186 = vector.load %arg15[%c1_165, %c288_166] : memref<2x512xf32, #tpu.memory_space<vmem>>, vector<1x32xf32>
    tpu.vector_store %arg15[%c1_165, %c288_166], %185 {strides = array<i32>} : memref<2x512xf32, #tpu.memory_space<vmem>>, vector<1x32xf32>,
    %187 = vector.extract_strided_slice %166 {offsets = [10, 0], sizes = [1, 32], strides = [1, 1]} : vector<16x32xf32> to vector<1x32xf32>
    %c1_167 = arith.constant 1 : index
    %c320_168 = arith.constant 320 : index
    %188 = vector.load %arg15[%c1_167, %c320_168] : memref<2x512xf32, #tpu.memory_space<vmem>>, vector<1x32xf32>
    tpu.vector_store %arg15[%c1_167, %c320_168], %187 {strides = array<i32>} : memref<2x512xf32, #tpu.memory_space<vmem>>, vector<1x32xf32>,
    %189 = vector.extract_strided_slice %166 {offsets = [11, 0], sizes = [1, 32], strides = [1, 1]} : vector<16x32xf32> to vector<1x32xf32>
    %c1_169 = arith.constant 1 : index
    %c352_170 = arith.constant 352 : index
    %190 = vector.load %arg15[%c1_169, %c352_170] : memref<2x512xf32, #tpu.memory_space<vmem>>, vector<1x32xf32>
    tpu.vector_store %arg15[%c1_169, %c352_170], %189 {strides = array<i32>} : memref<2x512xf32, #tpu.memory_space<vmem>>, vector<1x32xf32>,
    %191 = vector.extract_strided_slice %166 {offsets = [12, 0], sizes = [1, 32], strides = [1, 1]} : vector<16x32xf32> to vector<1x32xf32>
    %c1_171 = arith.constant 1 : index
    %c384_172 = arith.constant 384 : index
    %192 = vector.load %arg15[%c1_171, %c384_172] : memref<2x512xf32, #tpu.memory_space<vmem>>, vector<1x32xf32>
    tpu.vector_store %arg15[%c1_171, %c384_172], %191 {strides = array<i32>} : memref<2x512xf32, #tpu.memory_space<vmem>>, vector<1x32xf32>,
    %193 = vector.extract_strided_slice %166 {offsets = [13, 0], sizes = [1, 32], strides = [1, 1]} : vector<16x32xf32> to vector<1x32xf32>
    %c1_173 = arith.constant 1 : index
    %c416_174 = arith.constant 416 : index
    %194 = vector.load %arg15[%c1_173, %c416_174] : memref<2x512xf32, #tpu.memory_space<vmem>>, vector<1x32xf32>
    tpu.vector_store %arg15[%c1_173, %c416_174], %193 {strides = array<i32>} : memref<2x512xf32, #tpu.memory_space<vmem>>, vector<1x32xf32>,
    %195 = vector.extract_strided_slice %166 {offsets = [14, 0], sizes = [1, 32], strides = [1, 1]} : vector<16x32xf32> to vector<1x32xf32>
    %c1_175 = arith.constant 1 : index
    %c448_176 = arith.constant 448 : index
    %196 = vector.load %arg15[%c1_175, %c448_176] : memref<2x512xf32, #tpu.memory_space<vmem>>, vector<1x32xf32>
    tpu.vector_store %arg15[%c1_175, %c448_176], %195 {strides = array<i32>} : memref<2x512xf32, #tpu.memory_space<vmem>>, vector<1x32xf32>,
    %197 = vector.extract_strided_slice %166 {offsets = [15, 0], sizes = [1, 32], strides = [1, 1]} : vector<16x32xf32> to vector<1x32xf32>
    %c1_177 = arith.constant 1 : index
    %c480_178 = arith.constant 480 : index
    %198 = vector.load %arg15[%c1_177, %c480_178] : memref<2x512xf32, #tpu.memory_space<vmem>>, vector<1x32xf32>
    tpu.vector_store %arg15[%c1_177, %c480_178], %197 {strides = array<i32>} : memref<2x512xf32, #tpu.memory_space<vmem>>, vector<1x32xf32>,
    %c0_179 = arith.constant 0 : index
    %c0_180 = arith.constant 0 : index
    %199 = vector.load %arg15[%c0_179, %c0_180] : memref<2x512xf32, #tpu.memory_space<vmem>>, vector<2x512xf32>
    %200 = arith.truncf %199 : vector<2x512xf32> to vector<2x512xbf16>
    %c0_181 = arith.constant 0 : index
    %c0_182 = arith.constant 0 : index
    %201 = vector.load %arg6[%c0_181, %c0_182] : memref<512x120xbf16, #tpu.memory_space<vmem>>, vector<512x120xbf16>
    %cst_183 = arith.constant dense<0.000000e+00> : vector<2x120xf32>
    %202 = tpu.matmul %200, %201, %cst_183 {dimension_numbers = #tpu.dot_dimension_numbers<[1], [0], [0], [1], [0, 0, 1, 1], [], []>} : vector<2x512xbf16>, vector<512x120xbf16>, vector<2x120xf32> -> vector<2x120xf32>
    %c0_184 = arith.constant 0 : index
    %c0_185 = arith.constant 0 : index
    %203 = vector.load %arg7[%c0_184, %c0_185] : memref<1x120xf32, #tpu.memory_space<vmem>>, vector<1x120xf32>
    %204 = vector.broadcast %203 : vector<1x120xf32> to vector<2x120xf32>
    %205 = arith.addf %202, %204 : vector<2x120xf32>
    %cst_186 = arith.constant 0.000000e+00 : f32
    %206 = vector.broadcast %cst_186 : f32 to vector<2x120xf32>
    %207 = arith.maximumf %205, %206 : vector<2x120xf32>
    %208 = arith.truncf %207 : vector<2x120xf32> to vector<2x120xbf16>
    %c0_187 = arith.constant 0 : index
    %c0_188 = arith.constant 0 : index
    %209 = vector.load %arg8[%c0_187, %c0_188] : memref<120x84xbf16, #tpu.memory_space<vmem>>, vector<120x84xbf16>
    %cst_189 = arith.constant dense<0.000000e+00> : vector<2x84xf32>
    %210 = tpu.matmul %208, %209, %cst_189 {dimension_numbers = #tpu.dot_dimension_numbers<[1], [0], [0], [1], [0, 0, 1, 1], [], []>} : vector<2x120xbf16>, vector<120x84xbf16>, vector<2x84xf32> -> vector<2x84xf32>
    %c0_190 = arith.constant 0 : index
    %c0_191 = arith.constant 0 : index
    %211 = vector.load %arg9[%c0_190, %c0_191] : memref<1x84xf32, #tpu.memory_space<vmem>>, vector<1x84xf32>
    %212 = vector.broadcast %211 : vector<1x84xf32> to vector<2x84xf32>
    %213 = arith.addf %210, %212 : vector<2x84xf32>
    %cst_192 = arith.constant 0.000000e+00 : f32
    %214 = vector.broadcast %cst_192 : f32 to vector<2x84xf32>
    %215 = arith.maximumf %213, %214 : vector<2x84xf32>
    %216 = arith.truncf %215 : vector<2x84xf32> to vector<2x84xbf16>
    %c0_193 = arith.constant 0 : index
    %c0_194 = arith.constant 0 : index
    %217 = vector.load %arg10[%c0_193, %c0_194] : memref<84x10xbf16, #tpu.memory_space<vmem>>, vector<84x10xbf16>
    %cst_195 = arith.constant dense<0.000000e+00> : vector<2x10xf32>
    %218 = tpu.matmul %216, %217, %cst_195 {dimension_numbers = #tpu.dot_dimension_numbers<[1], [0], [0], [1], [0, 0, 1, 1], [], []>} : vector<2x84xbf16>, vector<84x10xbf16>, vector<2x10xf32> -> vector<2x10xf32>
    %c0_196 = arith.constant 0 : index
    %c0_197 = arith.constant 0 : index
    %219 = vector.load %arg11[%c0_196, %c0_197] : memref<1x10xf32, #tpu.memory_space<vmem>>, vector<1x10xf32>
    %220 = vector.broadcast %219 : vector<1x10xf32> to vector<2x10xf32>
    %221 = arith.addf %218, %220 : vector<2x10xf32>
    %cst_198 = arith.constant dense<0xFF800000> : vector<10xf32>
    %222 = vector.multi_reduction <maximumf>, %221, %cst_198 [0] : vector<2x10xf32> to vector<10xf32>
    %223 = vector.shape_cast %222 : vector<10xf32> to vector<1x10xf32>
    %224 = vector.broadcast %223 : vector<1x10xf32> to vector<2x10xf32>
    %225 = arith.subf %221, %224 : vector<2x10xf32>
    %226 = math.exp %225 : vector<2x10xf32>
    %cst_199 = arith.constant dense<0.000000e+00> : vector<10xf32>
    %227 = vector.multi_reduction <add>, %226, %cst_199 [0] : vector<2x10xf32> to vector<10xf32>
    %228 = vector.shape_cast %227 : vector<10xf32> to vector<1x10xf32>
    %229 = math.log %228 : vector<1x10xf32>
    %230 = arith.addf %223, %229 : vector<1x10xf32>
    %231 = vector.broadcast %230 : vector<1x10xf32> to vector<2x10xf32>
    %232 = arith.subf %221, %231 : vector<2x10xf32>
    %c0_200 = arith.constant 0 : index
    %c0_201 = arith.constant 0 : index
    %233 = vector.load %arg12[%c0_200, %c0_201] : memref<2x10xf32, #tpu.memory_space<vmem>>, vector<2x10xf32>
    tpu.vector_store %arg12[%c0_200, %c0_201], %232 {strides = array<i32>} : memref<2x10xf32, #tpu.memory_space<vmem>>, vector<2x10xf32>,
    return
  }
}

</mosaic_0001>

<llo_original>
// kernel: lenet_forward.1
$region0: #{lenet_forward.1}
  #allocation0 [shape = 'u32[]', space=smem, size = 0x4, offset = 0x4, fixed_abs, tag = 'smem constant byte address 0x4 - core index']
  #allocation1 [shape = 'u32[144,128]{1,0:T(1,128)}', space=vmem, size = 0x12000, scoped, tag = 'internal scratch']
  #allocation2 [shape = 'f32[200,2411]{1,0:T(8,128)}', space=vmem, size = 0x1db000, scoped, tag = 'scratch operand']
  #allocation3 [shape = 'f32[200,2114]{1,0:T(8,128)}', space=vmem, size = 0x1a9000, scoped, tag = 'scratch operand']
  #allocation4 [shape = 'f32[2,512]{1,0:T(2,128)}', space=vmem, size = 0x1000, scoped, tag = 'scratch operand']
  %s0 = inlined_call_operand.vmem [shape: f32[8,2543], index: 0, kind: input, shape index: {}]
  %s1 = inlined_call_operand.vmem [shape: bf16[8,200], index: 1, kind: input, shape index: {}]
  %s2 = inlined_call_operand.vmem [shape: f32[8,1], index: 2, kind: input, shape index: {}]
  %s3 = inlined_call_operand.vmem [shape: bf16[16,200], index: 3, kind: input, shape index: {}]
  %s4 = inlined_call_operand.vmem [shape: f32[16,1], index: 4, kind: input, shape index: {}]
  %s5 = inlined_call_operand.vmem [shape: f32[640,32], index: 5, kind: input, shape index: {}]
  %s6 = inlined_call_operand.vmem [shape: bf16[512,120], index: 6, kind: input, shape index: {}]
  %s7 = inlined_call_operand.vmem [shape: f32[1,120], index: 7, kind: input, shape index: {}]
  %s8 = inlined_call_operand.vmem [shape: bf16[120,84], index: 8, kind: input, shape index: {}]
  %s9 = inlined_call_operand.vmem [shape: f32[1,84], index: 9, kind: input, shape index: {}]
  %s10 = inlined_call_operand.vmem [shape: bf16[84,10], index: 10, kind: input, shape index: {}]
  %s11 = inlined_call_operand.vmem [shape: f32[1,10], index: 11, kind: input, shape index: {}]
  %s12 = inlined_call_operand.hbm [shape: f32[2,10], index: 12, kind: output, shape index: {}]
  %s13 = sld [smem:[#allocation0]]
  $region58: #{lenet_forward.1} parent=0
    _
  %s15 = ssub.s32 1, %s13
  %s16 = scalar_select 0, %s15, %s13
  $region1: #{lenet_forward.1} parent=0
    #allocation5 [shape = 'u8[1024]{0}', space=vmem, size = 0x400, scoped, tag = 'output window, operand 0, single buffered']
    #allocation6 [shape = 's32[1]{0}', space=sflag, size = 0x4, scoped, tag = 'scoped memory for lenet_forward.1']
    %17 = vsyncpa [#allocation6], 0
    // Predicated region
    $region2: #{lenet_forward.1} parent=1 // pred_check
      _
    $region3: #{lenet_forward.1} parent=1 // pred_check_branch
      %19 = sbr.rel (0) target = $region5
    $region4: #{lenet_forward.1} parent=1 // pred_region
      _
    $region5: #{lenet_forward.1} parent=1 // pred_fallthru
      _
    // Predicated region
    $region6: #{lenet_forward.1} parent=1 // pred_check
      _
    $region7: #{lenet_forward.1} parent=1 // pred_check_branch
      %21 = sbr.rel (0) target = $region9
    $region8: #{lenet_forward.1} parent=1 // pred_region
      _
    $region9: #{lenet_forward.1} parent=1 // pred_fallthru
      _
    // Predicated region
    $region10: #{lenet_forward.1} parent=1 // pred_check
      _
    $region11: #{lenet_forward.1} parent=1 // pred_check_branch
      %23 = sbr.rel (0) target = $region13
    $region12: #{lenet_forward.1} parent=1 // pred_region
      _
    $region13: #{lenet_forward.1} parent=1 // pred_fallthru
      _
    // Predicated region
    $region14: #{lenet_forward.1} parent=1 // pred_check
      _
    $region15: #{lenet_forward.1} parent=1 // pred_check_branch
      %25 = sbr.rel (0) target = $region17
    $region16: #{lenet_forward.1} parent=1 // pred_region
      _
    $region17: #{lenet_forward.1} parent=1 // pred_fallthru
      _
    // Predicated region
    $region18: #{lenet_forward.1} parent=1 // pred_check
      _
    $region19: #{lenet_forward.1} parent=1 // pred_check_branch
      %27 = sbr.rel (0) target = $region21
    $region20: #{lenet_forward.1} parent=1 // pred_region
      _
    $region21: #{lenet_forward.1} parent=1 // pred_fallthru
      _
    // Predicated region
    $region22: #{lenet_forward.1} parent=1 // pred_check
      _
    $region23: #{lenet_forward.1} parent=1 // pred_check_branch
      %29 = sbr.rel (0) target = $region25
    $region24: #{lenet_forward.1} parent=1 // pred_region
      _
    $region25: #{lenet_forward.1} parent=1 // pred_fallthru
      _
    // Predicated region
    $region26: #{lenet_forward.1} parent=1 // pred_check
      _
    $region27: #{lenet_forward.1} parent=1 // pred_check_branch
      %31 = sbr.rel (0) target = $region29
    $region28: #{lenet_forward.1} parent=1 // pred_region
      _
    $region29: #{lenet_forward.1} parent=1 // pred_fallthru
      _
    // Predicated region
    $region30: #{lenet_forward.1} parent=1 // pred_check
      _
    $region31: #{lenet_forward.1} parent=1 // pred_check_branch
      %33 = sbr.rel (0) target = $region33
    $region32: #{lenet_forward.1} parent=1 // pred_region
      _
    $region33: #{lenet_forward.1} parent=1 // pred_fallthru
      _
    // Predicated region
    $region34: #{lenet_forward.1} parent=1 // pred_check
      _
    $region35: #{lenet_forward.1} parent=1 // pred_check_branch
      %35 = sbr.rel (0) target = $region37
    $region36: #{lenet_forward.1} parent=1 // pred_region
      _
    $region37: #{lenet_forward.1} parent=1 // pred_fallthru
      _
    // Predicated region
    $region38: #{lenet_forward.1} parent=1 // pred_check
      _
    $region39: #{lenet_forward.1} parent=1 // pred_check_branch
      %37 = sbr.rel (0) target = $region41
    $region40: #{lenet_forward.1} parent=1 // pred_region
      _
    $region41: #{lenet_forward.1} parent=1 // pred_fallthru
      _
    // Predicated region
    $region42: #{lenet_forward.1} parent=1 // pred_check
      _
    $region43: #{lenet_forward.1} parent=1 // pred_check_branch
      %39 = sbr.rel (0) target = $region45
    $region44: #{lenet_forward.1} parent=1 // pred_region
      _
    $region45: #{lenet_forward.1} parent=1 // pred_fallthru
      _
    // Predicated region
    $region46: #{lenet_forward.1} parent=1 // pred_check
      _
    $region47: #{lenet_forward.1} parent=1 // pred_check_branch
      %41 = sbr.rel (0) target = $region49
    $region48: #{lenet_forward.1} parent=1 // pred_region
      _
    $region49: #{lenet_forward.1} parent=1 // pred_fallthru
      _
    %v43 = vld [vmem:[%s0] sm:$0xff]
    %v44 = vld [vmem:[%s0 + $0x8] sm:$0xff]
    %v45 = vld [vmem:[%s0 + $0x10] sm:$0xff]
    %v46 = vld [vmem:[%s0 + $0x18] sm:$0xff]
    %v47 = vld [vmem:[%s0 + $0x20] sm:$0xff]
    %v48 = vld [vmem:[%s0 + $0x28] sm:$0xff]
    %v49 = vld [vmem:[%s0 + $0x30] sm:$0xff]
    %v50 = vld [vmem:[%s0 + $0x38] sm:$0xff]
    %v51 = vld [vmem:[%s0 + $0x40] sm:$0xff]
    %v52 = vld [vmem:[%s0 + $0x48] sm:$0xff]
    %v53 = vld [vmem:[%s0 + $0x50] sm:$0xff]
    %v54 = vld [vmem:[%s0 + $0x58] sm:$0xff]
    %v55 = vld [vmem:[%s0 + $0x60] sm:$0xff]
    %v56 = vld [vmem:[%s0 + $0x68] sm:$0xff]
    %v57 = vld [vmem:[%s0 + $0x70] sm:$0xff]
    %v58 = vld [vmem:[%s0 + $0x78] sm:$0xff]
    %v59 = vld [vmem:[%s0 + $0x80] sm:$0xff]
    %v60 = vld [vmem:[%s0 + $0x88] sm:$0xff]
    %v61 = vld [vmem:[%s0 + $0x90] sm:$0xff]
    %62 = vst [vmem:[#allocation2] sm:$0xff] %v43
    %63 = vst [vmem:[#allocation2 + $0x8] sm:$0xff] %v44
    %64 = vst [vmem:[#allocation2 + $0x10] sm:$0xff] %v45
    %65 = vst [vmem:[#allocation2 + $0x18] sm:$0xff] %v46
    %66 = vst [vmem:[#allocation2 + $0x20] sm:$0xff] %v47
    %67 = vst [vmem:[#allocation2 + $0x28] sm:$0xff] %v48
    %68 = vst [vmem:[#allocation2 + $0x30] sm:$0xff] %v49
    %69 = vst [vmem:[#allocation2 + $0x38] sm:$0xff] %v50
    %70 = vst [vmem:[#allocation2 + $0x40] sm:$0xff] %v51
    %71 = vst [vmem:[#allocation2 + $0x48] sm:$0xff] %v52
    %72 = vst [vmem:[#allocation2 + $0x50] sm:$0xff] %v53
    %73 = vst [vmem:[#allocation2 + $0x58] sm:$0xff] %v54
    %74 = vst [vmem:[#allocation2 + $0x60] sm:$0xff] %v55
    %75 = vst [vmem:[#allocation2 + $0x68] sm:$0xff] %v56
    %76 = vst [vmem:[#allocation2 + $0x70] sm:$0xff] %v57
    %77 = vst [vmem:[#allocation2 + $0x78] sm:$0xff] %v58
    %78 = vst [vmem:[#allocation2 + $0x80] sm:$0xff] %v59
    %79 = vst [vmem:[#allocation2 + $0x88] sm:$0xff] %v60
    %vm80 = vcmask 875520
    %81 = vst.msk [vmem:[#allocation2 + $0x90] sm:$0xff] %vm80, %v61
    %v82 = vld [vmem:[%s0] sm:$0xff]
    %v83 = vld [vmem:[%s0 + $0x8] sm:$0xff]
    %v84 = vld [vmem:[%s0 + $0x10] sm:$0xff]
    %v85 = vld [vmem:[%s0 + $0x18] sm:$0xff]
    %v86 = vld [vmem:[%s0 + $0x20] sm:$0xff]
    %v87 = vld [vmem:[%s0 + $0x28] sm:$0xff]
    %v88 = vld [vmem:[%s0 + $0x30] sm:$0xff]
    %v89 = vld [vmem:[%s0 + $0x38] sm:$0xff]
    %v90 = vld [vmem:[%s0 + $0x40] sm:$0xff]
    %v91 = vld [vmem:[%s0 + $0x48] sm:$0xff]
    %v92 = vld [vmem:[%s0 + $0x50] sm:$0xff]
    %v93 = vld [vmem:[%s0 + $0x58] sm:$0xff]
    %v94 = vld [vmem:[%s0 + $0x60] sm:$0xff]
    %v95 = vld [vmem:[%s0 + $0x68] sm:$0xff]
    %v96 = vld [vmem:[%s0 + $0x70] sm:$0xff]
    %v97 = vld [vmem:[%s0 + $0x78] sm:$0xff]
    %v98 = vld [vmem:[%s0 + $0x80] sm:$0xff]
    %v99 = vld [vmem:[%s0 + $0x88] sm:$0xff]
    %v100 = vld [vmem:[%s0 + $0x90] sm:$0xff]
    %120 = vrot.lane.b32.xlu0 %v82, 127
    %v121 = vpop.permute.xlu0 %120
    %122 = vrot.lane.b32.xlu0 %v83, 127
    %v123 = vpop.permute.xlu0 %122
    %124 = vrot.lane.b32.xlu0 %v84, 127
    %v125 = vpop.permute.xlu0 %124
    %126 = vrot.lane.b32.xlu0 %v85, 127
    %v127 = vpop.permute.xlu0 %126
    %128 = vrot.lane.b32.xlu0 %v86, 127
    %v129 = vpop.permute.xlu0 %128
    %130 = vrot.lane.b32.xlu0 %v87, 127
    %v131 = vpop.permute.xlu0 %130
    %132 = vrot.lane.b32.xlu0 %v88, 127
    %v133 = vpop.permute.xlu0 %132
    %134 = vrot.lane.b32.xlu0 %v89, 127
    %v135 = vpop.permute.xlu0 %134
    %136 = vrot.lane.b32.xlu0 %v90, 127
    %v137 = vpop.permute.xlu0 %136
    %138 = vrot.lane.b32.xlu0 %v91, 127
    %v139 = vpop.permute.xlu0 %138
    %140 = vrot.lane.b32.xlu0 %v92, 127
    %v141 = vpop.permute.xlu0 %140
    %142 = vrot.lane.b32.xlu0 %v93, 127
    %v143 = vpop.permute.xlu0 %142
    %144 = vrot.lane.b32.xlu0 %v94, 127
    %v145 = vpop.permute.xlu0 %144
    %146 = vrot.lane.b32.xlu0 %v95, 127
    %v147 = vpop.permute.xlu0 %146
    %148 = vrot.lane.b32.xlu0 %v96, 127
    %v149 = vpop.permute.xlu0 %148
    %150 = vrot.lane.b32.xlu0 %v97, 127
    %v151 = vpop.permute.xlu0 %150
    %152 = vrot.lane.b32.xlu0 %v98, 127
    %v153 = vpop.permute.xlu0 %152
    %154 = vrot.lane.b32.xlu0 %v99, 127
    %v155 = vpop.permute.xlu0 %154
    %156 = vrot.lane.b32.xlu0 %v100, 127
    %v157 = vpop.permute.xlu0 %156
    %vm158 = vcmask 1039360
    %v159 = vsel %vm158, %v121, %v123
    %v160 = vsel %vm158, %v123, %v125
    %v161 = vsel %vm158, %v125, %v127
    %v162 = vsel %vm158, %v127, %v129
    %v163 = vsel %vm158, %v129, %v131
    %v164 = vsel %vm158, %v131, %v133
    %v165 = vsel %vm158, %v133, %v135
    %v166 = vsel %vm158, %v135, %v137
    %v167 = vsel %vm158, %v137, %v139
    %v168 = vsel %vm158, %v139, %v141
    %v169 = vsel %vm158, %v141, %v143
    %v170 = vsel %vm158, %v143, %v145
    %v171 = vsel %vm158, %v145, %v147
    %v172 = vsel %vm158, %v147, %v149
    %v173 = vsel %vm158, %v149, %v151
    %v174 = vsel %vm158, %v151, %v153
    %v175 = vsel %vm158, %v153, %v155
    %v176 = vsel %vm158, %v155, %v157
    %196 = vst [vmem:[#allocation2 + $0x98] sm:$0xff] %v159
    %197 = vst [vmem:[#allocation2 + $0xa0] sm:$0xff] %v160
    %198 = vst [vmem:[#allocation2 + $0xa8] sm:$0xff] %v161
    %199 = vst [vmem:[#allocation2 + $0xb0] sm:$0xff] %v162
    %200 = vst [vmem:[#allocation2 + $0xb8] sm:$0xff] %v163
    %201 = vst [vmem:[#allocation2 + $0xc0] sm:$0xff] %v164
    %202 = vst [vmem:[#allocation2 + $0xc8] sm:$0xff] %v165
    %203 = vst [vmem:[#allocation2 + $0xd0] sm:$0xff] %v166
    %204 = vst [vmem:[#allocation2 + $0xd8] sm:$0xff] %v167
    %205 = vst [vmem:[#allocation2 + $0xe0] sm:$0xff] %v168
    %206 = vst [vmem:[#allocation2 + $0xe8] sm:$0xff] %v169
    %207 = vst [vmem:[#allocation2 + $0xf0] sm:$0xff] %v170
    %208 = vst [vmem:[#allocation2 + $0xf8] sm:$0xff] %v171
    %209 = vst [vmem:[#allocation2 + $0x100] sm:$0xff] %v172
    %210 = vst [vmem:[#allocation2 + $0x108] sm:$0xff] %v173
    %211 = vst [vmem:[#allocation2 + $0x110] sm:$0xff] %v174
    %212 = vst [vmem:[#allocation2 + $0x118] sm:$0xff] %v175
    %213 = vst [vmem:[#allocation2 + $0x120] sm:$0xff] %v176
    %214 = vst.msk [vmem:[#allocation2 + $0x128] sm:$0xff] %vm80, %v157
    %v215 = vld [vmem:[%s0] sm:$0xff]
    %v216 = vld [vmem:[%s0 + $0x8] sm:$0xff]
    %v217 = vld [vmem:[%s0 + $0x10] sm:$0xff]
    %v218 = vld [vmem:[%s0 + $0x18] sm:$0xff]
    %v219 = vld [vmem:[%s0 + $0x20] sm:$0xff]
    %v220 = vld [vmem:[%s0 + $0x28] sm:$0xff]
    %v221 = vld [vmem:[%s0 + $0x30] sm:$0xff]
    %v222 = vld [vmem:[%s0 + $0x38] sm:$0xff]
    %v223 = vld [vmem:[%s0 + $0x40] sm:$0xff]
    %v224 = vld [vmem:[%s0 + $0x48] sm:$0xff]
    %v225 = vld [vmem:[%s0 + $0x50] sm:$0xff]
    %v226 = vld [vmem:[%s0 + $0x58] sm:$0xff]
    %v227 = vld [vmem:[%s0 + $0x60] sm:$0xff]
    %v228 = vld [vmem:[%s0 + $0x68] sm:$0xff]
    %v229 = vld [vmem:[%s0 + $0x70] sm:$0xff]
    %v230 = vld [vmem:[%s0 + $0x78] sm:$0xff]
    %v231 = vld [vmem:[%s0 + $0x80] sm:$0xff]
    %v232 = vld [vmem:[%s0 + $0x88] sm:$0xff]
    %v233 = vld [vmem:[%s0 + $0x90] sm:$0xff]
    %253 = vrot.lane.b32.xlu0 %v215, 126
    %v254 = vpop.permute.xlu0 %253
    %255 = vrot.lane.b32.xlu0 %v216, 126
    %v256 = vpop.permute.xlu0 %255
    %257 = vrot.lane.b32.xlu0 %v217, 126
    %v258 = vpop.permute.xlu0 %257
    %259 = vrot.lane.b32.xlu0 %v218, 126
    %v260 = vpop.permute.xlu0 %259
    %261 = vrot.lane.b32.xlu0 %v219, 126
    %v262 = vpop.permute.xlu0 %261
    %263 = vrot.lane.b32.xlu0 %v220, 126
    %v264 = vpop.permute.xlu0 %263
    %265 = vrot.lane.b32.xlu0 %v221, 126
    %v266 = vpop.permute.xlu0 %265
    %267 = vrot.lane.b32.xlu0 %v222, 126
    %v268 = vpop.permute.xlu0 %267
    %269 = vrot.lane.b32.xlu0 %v223, 126
    %v270 = vpop.permute.xlu0 %269
    %271 = vrot.lane.b32.xlu0 %v224, 126
    %v272 = vpop.permute.xlu0 %271
    %273 = vrot.lane.b32.xlu0 %v225, 126
    %v274 = vpop.permute.xlu0 %273
    %275 = vrot.lane.b32.xlu0 %v226, 126
    %v276 = vpop.permute.xlu0 %275
    %277 = vrot.lane.b32.xlu0 %v227, 126
    %v278 = vpop.permute.xlu0 %277
    %279 = vrot.lane.b32.xlu0 %v228, 126
    %v280 = vpop.permute.xlu0 %279
    %281 = vrot.lane.b32.xlu0 %v229, 126
    %v282 = vpop.permute.xlu0 %281
    %283 = vrot.lane.b32.xlu0 %v230, 126
    %v284 = vpop.permute.xlu0 %283
    %285 = vrot.lane.b32.xlu0 %v231, 126
    %v286 = vpop.permute.xlu0 %285
    %287 = vrot.lane.b32.xlu0 %v232, 126
    %v288 = vpop.permute.xlu0 %287
    %289 = vrot.lane.b32.xlu0 %v233, 126
    %v290 = vpop.permute.xlu0 %289
    %vm291 = vcmask 1031168
    %v292 = vsel %vm291, %v254, %v256
    %v293 = vsel %vm291, %v256, %v258
    %v294 = vsel %vm291, %v258, %v260
    %v295 = vsel %vm291, %v260, %v262
    %v296 = vsel %vm291, %v262, %v264
    %v297 = vsel %vm291, %v264, %v266
    %v298 = vsel %vm291, %v266, %v268
    %v299 = vsel %vm291, %v268, %v270
    %v300 = vsel %vm291, %v270, %v272
    %v301 = vsel %vm291, %v272, %v274
    %v302 = vsel %vm291, %v274, %v276
    %v303 = vsel %vm291, %v276, %v278
    %v304 = vsel %vm291, %v278, %v280
    %v305 = vsel %vm291, %v280, %v282
    %v306 = vsel %vm291, %v282, %v284
    %v307 = vsel %vm291, %v284, %v286
    %v308 = vsel %vm291, %v286, %v288
    %v309 = vsel %vm291, %v288, %v290
    %329 = vst [vmem:[#allocation2 + $0x130] sm:$0xff] %v292
    %330 = vst [vmem:[#allocation2 + $0x138] sm:$0xff] %v293
    %331 = vst [vmem:[#allocation2 + $0x140] sm:$0xff] %v294
    %332 = vst [vmem:[#allocation2 + $0x148] sm:$0xff] %v295
    %333 = vst [vmem:[#allocation2 + $0x150] sm:$0xff] %v296
    %334 = vst [vmem:[#allocation2 + $0x158] sm:$0xff] %v297
    %335 = vst [vmem:[#allocation2 + $0x160] sm:$0xff] %v298
    %336 = vst [vmem:[#allocation2 + $0x168] sm:$0xff] %v299
    %337 = vst [vmem:[#allocation2 + $0x170] sm:$0xff] %v300
    %338 = vst [vmem:[#allocation2 + $0x178] sm:$0xff] %v301
    %339 = vst [vmem:[#allocation2 + $0x180] sm:$0xff] %v302
    %340 = vst [vmem:[#allocation2 + $0x188] sm:$0xff] %v303
    %341 = vst [vmem:[#allocation2 + $0x190] sm:$0xff] %v304
    %342 = vst [vmem:[#allocation2 + $0x198] sm:$0xff] %v305
    %343 = vst [vmem:[#allocation2 + $0x1a0] sm:$0xff] %v306
    %344 = vst [vmem:[#allocation2 + $0x1a8] sm:$0xff] %v307
    %345 = vst [vmem:[#allocation2 + $0x1b0] sm:$0xff] %v308
    %346 = vst [vmem:[#allocation2 + $0x1b8] sm:$0xff] %v309
    %347 = vst.msk [vmem:[#allocation2 + $0x1c0] sm:$0xff] %vm80, %v290
    %v348 = vld [vmem:[%s0] sm:$0xff]
    %v349 = vld [vmem:[%s0 + $0x8] sm:$0xff]
    %v350 = vld [vmem:[%s0 + $0x10] sm:$0xff]
    %v351 = vld [vmem:[%s0 + $0x18] sm:$0xff]
    %v352 = vld [vmem:[%s0 + $0x20] sm:$0xff]
    %v353 = vld [vmem:[%s0 + $0x28] sm:$0xff]
    %v354 = vld [vmem:[%s0 + $0x30] sm:$0xff]
    %v355 = vld [vmem:[%s0 + $0x38] sm:$0xff]
    %v356 = vld [vmem:[%s0 + $0x40] sm:$0xff]
    %v357 = vld [vmem:[%s0 + $0x48] sm:$0xff]
    %v358 = vld [vmem:[%s0 + $0x50] sm:$0xff]
    %v359 = vld [vmem:[%s0 + $0x58] sm:$0xff]
    %v360 = vld [vmem:[%s0 + $0x60] sm:$0xff]
    %v361 = vld [vmem:[%s0 + $0x68] sm:$0xff]
    %v362 = vld [vmem:[%s0 + $0x70] sm:$0xff]
    %v363 = vld [vmem:[%s0 + $0x78] sm:$0xff]
    %v364 = vld [vmem:[%s0 + $0x80] sm:$0xff]
    %v365 = vld [vmem:[%s0 + $0x88] sm:$0xff]
    %v366 = vld [vmem:[%s0 + $0x90] sm:$0xff]
    %386 = vrot.lane.b32.xlu0 %v348, 125
    %v387 = vpop.permute.xlu0 %386
    %388 = vrot.lane.b32.xlu0 %v349, 125
    %v389 = vpop.permute.xlu0 %388
    %390 = vrot.lane.b32.xlu0 %v350, 125
    %v391 = vpop.permute.xlu0 %390
    %392 = vrot.lane.b32.xlu0 %v351, 125
    %v393 = vpop.permute.xlu0 %392
    %394 = vrot.lane.b32.xlu0 %v352, 125
    %v395 = vpop.permute.xlu0 %394
    %396 = vrot.lane.b32.xlu0 %v353, 125
    %v397 = vpop.permute.xlu0 %396
    %398 = vrot.lane.b32.xlu0 %v354, 125
    %v399 = vpop.permute.xlu0 %398
    %400 = vrot.lane.b32.xlu0 %v355, 125
    %v401 = vpop.permute.xlu0 %400
    %402 = vrot.lane.b32.xlu0 %v356, 125
    %v403 = vpop.permute.xlu0 %402
    %404 = vrot.lane.b32.xlu0 %v357, 125
    %v405 = vpop.permute.xlu0 %404
    %406 = vrot.lane.b32.xlu0 %v358, 125
    %v407 = vpop.permute.xlu0 %406
    %408 = vrot.lane.b32.xlu0 %v359, 125
    %v409 = vpop.permute.xlu0 %408
    %410 = vrot.lane.b32.xlu0 %v360, 125
    %v411 = vpop.permute.xlu0 %410
    %412 = vrot.lane.b32.xlu0 %v361, 125
    %v413 = vpop.permute.xlu0 %412
    %414 = vrot.lane.b32.xlu0 %v362, 125
    %v415 = vpop.permute.xlu0 %414
    %416 = vrot.lane.b32.xlu0 %v363, 125
    %v417 = vpop.permute.xlu0 %416
    %418 = vrot.lane.b32.xlu0 %v364, 125
    %v419 = vpop.permute.xlu0 %418
    %420 = vrot.lane.b32.xlu0 %v365, 125
    %v421 = vpop.permute.xlu0 %420
    %422 = vrot.lane.b32.xlu0 %v366, 125
    %v423 = vpop.permute.xlu0 %422
    %vm424 = vcmask 1022976
    %v425 = vsel %vm424, %v387, %v389
    %v426 = vsel %vm424, %v389, %v391
    %v427 = vsel %vm424, %v391, %v393
    %v428 = vsel %vm424, %v393, %v395
    %v429 = vsel %vm424, %v395, %v397
    %v430 = vsel %vm424, %v397, %v399
    %v431 = vsel %vm424, %v399, %v401
    %v432 = vsel %vm424, %v401, %v403
    %v433 = vsel %vm424, %v403, %v405
    %v434 = vsel %vm424, %v405, %v407
    %v435 = vsel %vm424, %v407, %v409
    %v436 = vsel %vm424, %v409, %v411
    %v437 = vsel %vm424, %v411, %v413
    %v438 = vsel %vm424, %v413, %v415
    %v439 = vsel %vm424, %v415, %v417
    %v440 = vsel %vm424, %v417, %v419
    %v441 = vsel %vm424, %v419, %v421
    %v442 = vsel %vm424, %v421, %v423
    %462 = vst [vmem:[#allocation2 + $0x1c8] sm:$0xff] %v425
    %463 = vst [vmem:[#allocation2 + $0x1d0] sm:$0xff] %v426
    %464 = vst [vmem:[#allocation2 + $0x1d8] sm:$0xff] %v427
    %465 = vst [vmem:[#allocation2 + $0x1e0] sm:$0xff] %v428
    %466 = vst [vmem:[#allocation2 + $0x1e8] sm:$0xff] %v429
    %467 = vst [vmem:[#allocation2 + $0x1f0] sm:$0xff] %v430
    %468 = vst [vmem:[#allocation2 + $0x1f8] sm:$0xff] %v431
    %469 = vst [vmem:[#allocation2 + $0x200] sm:$0xff] %v432
    %470 = vst [vmem:[#allocation2 + $0x208] sm:$0xff] %v433
    %471 = vst [vmem:[#allocation2 + $0x210] sm:$0xff] %v434
    %472 = vst [vmem:[#allocation2 + $0x218] sm:$0xff] %v435
    %473 = vst [vmem:[#allocation2 + $0x220] sm:$0xff] %v436
    %474 = vst [vmem:[#allocation2 + $0x228] sm:$0xff] %v437
    %475 = vst [vmem:[#allocation2 + $0x230] sm:$0xff] %v438
    %476 = vst [vmem:[#allocation2 + $0x238] sm:$0xff] %v439
    %477 = vst [vmem:[#allocation2 + $0x240] sm:$0xff] %v440
    %478 = vst [vmem:[#allocation2 + $0x248] sm:$0xff] %v441
    %479 = vst [vmem:[#allocation2 + $0x250] sm:$0xff] %v442
    %480 = vst.msk [vmem:[#allocation2 + $0x258] sm:$0xff] %vm80, %v423
    %v481 = vld [vmem:[%s0] sm:$0xff]
    %v482 = vld [vmem:[%s0 + $0x8] sm:$0xff]
    %v483 = vld [vmem:[%s0 + $0x10] sm:$0xff]
    %v484 = vld [vmem:[%s0 + $0x18] sm:$0xff]
    %v485 = vld [vmem:[%s0 + $0x20] sm:$0xff]
    %v486 = vld [vmem:[%s0 + $0x28] sm:$0xff]
    %v487 = vld [vmem:[%s0 + $0x30] sm:$0xff]
    %v488 = vld [vmem:[%s0 + $0x38] sm:$0xff]
    %v489 = vld [vmem:[%s0 + $0x40] sm:$0xff]
    %v490 = vld [vmem:[%s0 + $0x48] sm:$0xff]
    %v491 = vld [vmem:[%s0 + $0x50] sm:$0xff]
    %v492 = vld [vmem:[%s0 + $0x58] sm:$0xff]
    %v493 = vld [vmem:[%s0 + $0x60] sm:$0xff]
    %v494 = vld [vmem:[%s0 + $0x68] sm:$0xff]
    %v495 = vld [vmem:[%s0 + $0x70] sm:$0xff]
    %v496 = vld [vmem:[%s0 + $0x78] sm:$0xff]
    %v497 = vld [vmem:[%s0 + $0x80] sm:$0xff]
    %v498 = vld [vmem:[%s0 + $0x88] sm:$0xff]
    %v499 = vld [vmem:[%s0 + $0x90] sm:$0xff]
    %519 = vrot.lane.b32.xlu0 %v481, 124
    %v520 = vpop.permute.xlu0 %519
    %521 = vrot.lane.b32.xlu0 %v482, 124
    %v522 = vpop.permute.xlu0 %521
    %523 = vrot.lane.b32.xlu0 %v483, 124
    %v524 = vpop.permute.xlu0 %523
    %525 = vrot.lane.b32.xlu0 %v484, 124
    %v526 = vpop.permute.xlu0 %525
    %527 = vrot.lane.b32.xlu0 %v485, 124
    %v528 = vpop.permute.xlu0 %527
    %529 = vrot.lane.b32.xlu0 %v486, 124
    %v530 = vpop.permute.xlu0 %529
    %531 = vrot.lane.b32.xlu0 %v487, 124
    %v532 = vpop.permute.xlu0 %531
    %533 = vrot.lane.b32.xlu0 %v488, 124
    %v534 = vpop.permute.xlu0 %533
    %535 = vrot.lane.b32.xlu0 %v489, 124
    %v536 = vpop.permute.xlu0 %535
    %537 = vrot.lane.b32.xlu0 %v490, 124
    %v538 = vpop.permute.xlu0 %537
    %539 = vrot.lane.b32.xlu0 %v491, 124
    %v540 = vpop.permute.xlu0 %539
    %541 = vrot.lane.b32.xlu0 %v492, 124
    %v542 = vpop.permute.xlu0 %541
    %543 = vrot.lane.b32.xlu0 %v493, 124
    %v544 = vpop.permute.xlu0 %543
    %545 = vrot.lane.b32.xlu0 %v494, 124
    %v546 = vpop.permute.xlu0 %545
    %547 = vrot.lane.b32.xlu0 %v495, 124
    %v548 = vpop.permute.xlu0 %547
    %549 = vrot.lane.b32.xlu0 %v496, 124
    %v550 = vpop.permute.xlu0 %549
    %551 = vrot.lane.b32.xlu0 %v497, 124
    %v552 = vpop.permute.xlu0 %551
    %553 = vrot.lane.b32.xlu0 %v498, 124
    %v554 = vpop.permute.xlu0 %553
    %555 = vrot.lane.b32.xlu0 %v499, 124
    %v556 = vpop.permute.xlu0 %555
    %vm557 = vcmask 1014784
    %v558 = vsel %vm557, %v520, %v522
    %v559 = vsel %vm557, %v522, %v524
    %v560 = vsel %vm557, %v524, %v526
    %v561 = vsel %vm557, %v526, %v528
    %v562 = vsel %vm557, %v528, %v530
    %v563 = vsel %vm557, %v530, %v532
    %v564 = vsel %vm557, %v532, %v534
    %v565 = vsel %vm557, %v534, %v536
    %v566 = vsel %vm557, %v536, %v538
    %v567 = vsel %vm557, %v538, %v540
    %v568 = vsel %vm557, %v540, %v542
    %v569 = vsel %vm557, %v542, %v544
    %v570 = vsel %vm557, %v544, %v546
    %v571 = vsel %vm557, %v546, %v548
    %v572 = vsel %vm557, %v548, %v550
    %v573 = vsel %vm557, %v550, %v552
    %v574 = vsel %vm557, %v552, %v554
    %v575 = vsel %vm557, %v554, %v556
    %595 = vst [vmem:[#allocation2 + $0x260] sm:$0xff] %v558
    %596 = vst [vmem:[#allocation2 + $0x268] sm:$0xff] %v559
    %597 = vst [vmem:[#allocation2 + $0x270] sm:$0xff] %v560
    %598 = vst [vmem:[#allocation2 + $0x278] sm:$0xff] %v561
    %599 = vst [vmem:[#allocation2 + $0x280] sm:$0xff] %v562
    %600 = vst [vmem:[#allocation2 + $0x288] sm:$0xff] %v563
    %601 = vst [vmem:[#allocation2 + $0x290] sm:$0xff] %v564
    %602 = vst [vmem:[#allocation2 + $0x298] sm:$0xff] %v565
    %603 = vst [vmem:[#allocation2 + $0x2a0] sm:$0xff] %v566
    %604 = vst [vmem:[#allocation2 + $0x2a8] sm:$0xff] %v567
    %605 = vst [vmem:[#allocation2 + $0x2b0] sm:$0xff] %v568
    %606 = vst [vmem:[#allocation2 + $0x2b8] sm:$0xff] %v569
    %607 = vst [vmem:[#allocation2 + $0x2c0] sm:$0xff] %v570
    %608 = vst [vmem:[#allocation2 + $0x2c8] sm:$0xff] %v571
    %609 = vst [vmem:[#allocation2 + $0x2d0] sm:$0xff] %v572
    %610 = vst [vmem:[#allocation2 + $0x2d8] sm:$0xff] %v573
    %611 = vst [vmem:[#allocation2 + $0x2e0] sm:$0xff] %v574
    %612 = vst [vmem:[#allocation2 + $0x2e8] sm:$0xff] %v575
    %613 = vst.msk [vmem:[#allocation2 + $0x2f0] sm:$0xff] %vm80, %v556
    %v614 = vld [vmem:[%s0] sm:$0xff]
    %v615 = vld [vmem:[%s0 + $0x8] sm:$0xff]
    %v616 = vld [vmem:[%s0 + $0x10] sm:$0xff]
    %v617 = vld [vmem:[%s0 + $0x18] sm:$0xff]
    %v618 = vld [vmem:[%s0 + $0x20] sm:$0xff]
    %v619 = vld [vmem:[%s0 + $0x28] sm:$0xff]
    %v620 = vld [vmem:[%s0 + $0x30] sm:$0xff]
    %v621 = vld [vmem:[%s0 + $0x38] sm:$0xff]
    %v622 = vld [vmem:[%s0 + $0x40] sm:$0xff]
    %v623 = vld [vmem:[%s0 + $0x48] sm:$0xff]
    %v624 = vld [vmem:[%s0 + $0x50] sm:$0xff]
    %v625 = vld [vmem:[%s0 + $0x58] sm:$0xff]
    %v626 = vld [vmem:[%s0 + $0x60] sm:$0xff]
    %v627 = vld [vmem:[%s0 + $0x68] sm:$0xff]
    %v628 = vld [vmem:[%s0 + $0x70] sm:$0xff]
    %v629 = vld [vmem:[%s0 + $0x78] sm:$0xff]
    %v630 = vld [vmem:[%s0 + $0x80] sm:$0xff]
    %v631 = vld [vmem:[%s0 + $0x88] sm:$0xff]
    %v632 = vld [vmem:[%s0 + $0x90] sm:$0xff]
    %v633 = vld [vmem:[%s0 + $0x98] sm:$0xff]
    %654 = vrot.lane.b32.xlu0 %v614, 96
    %v655 = vpop.permute.xlu0 %654
    %656 = vrot.lane.b32.xlu0 %v615, 96
    %v657 = vpop.permute.xlu0 %656
    %658 = vrot.lane.b32.xlu0 %v616, 96
    %v659 = vpop.permute.xlu0 %658
    %660 = vrot.lane.b32.xlu0 %v617, 96
    %v661 = vpop.permute.xlu0 %660
    %662 = vrot.lane.b32.xlu0 %v618, 96
    %v663 = vpop.permute.xlu0 %662
    %664 = vrot.lane.b32.xlu0 %v619, 96
    %v665 = vpop.permute.xlu0 %664
    %666 = vrot.lane.b32.xlu0 %v620, 96
    %v667 = vpop.permute.xlu0 %666
    %668 = vrot.lane.b32.xlu0 %v621, 96
    %v669 = vpop.permute.xlu0 %668
    %670 = vrot.lane.b32.xlu0 %v622, 96
    %v671 = vpop.permute.xlu0 %670
    %672 = vrot.lane.b32.xlu0 %v623, 96
    %v673 = vpop.permute.xlu0 %672
    %674 = vrot.lane.b32.xlu0 %v624, 96
    %v675 = vpop.permute.xlu0 %674
    %676 = vrot.lane.b32.xlu0 %v625, 96
    %v677 = vpop.permute.xlu0 %676
    %678 = vrot.lane.b32.xlu0 %v626, 96
    %v679 = vpop.permute.xlu0 %678
    %680 = vrot.lane.b32.xlu0 %v627, 96
    %v681 = vpop.permute.xlu0 %680
    %682 = vrot.lane.b32.xlu0 %v628, 96
    %v683 = vpop.permute.xlu0 %682
    %684 = vrot.lane.b32.xlu0 %v629, 96
    %v685 = vpop.permute.xlu0 %684
    %686 = vrot.lane.b32.xlu0 %v630, 96
    %v687 = vpop.permute.xlu0 %686
    %688 = vrot.lane.b32.xlu0 %v631, 96
    %v689 = vpop.permute.xlu0 %688
    %690 = vrot.lane.b32.xlu0 %v632, 96
    %v691 = vpop.permute.xlu0 %690
    %692 = vrot.lane.b32.xlu0 %v633, 96
    %v693 = vpop.permute.xlu0 %692
    %vm694 = vcmask 785408
    %v695 = vsel %vm694, %v655, %v657
    %v696 = vsel %vm694, %v657, %v659
    %v697 = vsel %vm694, %v659, %v661
    %v698 = vsel %vm694, %v661, %v663
    %v699 = vsel %vm694, %v663, %v665
    %v700 = vsel %vm694, %v665, %v667
    %v701 = vsel %vm694, %v667, %v669
    %v702 = vsel %vm694, %v669, %v671
    %v703 = vsel %vm694, %v671, %v673
    %v704 = vsel %vm694, %v673, %v675
    %v705 = vsel %vm694, %v675, %v677
    %v706 = vsel %vm694, %v677, %v679
    %v707 = vsel %vm694, %v679, %v681
    %v708 = vsel %vm694, %v681, %v683
    %v709 = vsel %vm694, %v683, %v685
    %v710 = vsel %vm694, %v685, %v687
    %v711 = vsel %vm694, %v687, %v689
    %v712 = vsel %vm694, %v689, %v691
    %v713 = vsel %vm694, %v691, %v693
    %733 = vst [vmem:[#allocation2 + $0x2f8] sm:$0xff] %v695
    %734 = vst [vmem:[#allocation2 + $0x300] sm:$0xff] %v696
    %735 = vst [vmem:[#allocation2 + $0x308] sm:$0xff] %v697
    %736 = vst [vmem:[#allocation2 + $0x310] sm:$0xff] %v698
    %737 = vst [vmem:[#allocation2 + $0x318] sm:$0xff] %v699
    %738 = vst [vmem:[#allocation2 + $0x320] sm:$0xff] %v700
    %739 = vst [vmem:[#allocation2 + $0x328] sm:$0xff] %v701
    %740 = vst [vmem:[#allocation2 + $0x330] sm:$0xff] %v702
    %741 = vst [vmem:[#allocation2 + $0x338] sm:$0xff] %v703
    %742 = vst [vmem:[#allocation2 + $0x340] sm:$0xff] %v704
    %743 = vst [vmem:[#allocation2 + $0x348] sm:$0xff] %v705
    %744 = vst [vmem:[#allocation2 + $0x350] sm:$0xff] %v706
    %745 = vst [vmem:[#allocation2 + $0x358] sm:$0xff] %v707
    %746 = vst [vmem:[#allocation2 + $0x360] sm:$0xff] %v708
    %747 = vst [vmem:[#allocation2 + $0x368] sm:$0xff] %v709
    %748 = vst [vmem:[#allocation2 + $0x370] sm:$0xff] %v710
    %749 = vst [vmem:[#allocation2 + $0x378] sm:$0xff] %v711
    %750 = vst [vmem:[#allocation2 + $0x380] sm:$0xff] %v712
    %751 = vst.msk [vmem:[#allocation2 + $0x388] sm:$0xff] %vm80, %v713
    %v752 = vld [vmem:[%s0] sm:$0xff]
    %v753 = vld [vmem:[%s0 + $0x8] sm:$0xff]
    %v754 = vld [vmem:[%s0 + $0x10] sm:$0xff]
    %v755 = vld [vmem:[%s0 + $0x18] sm:$0xff]
    %v756 = vld [vmem:[%s0 + $0x20] sm:$0xff]
    %v757 = vld [vmem:[%s0 + $0x28] sm:$0xff]
    %v758 = vld [vmem:[%s0 + $0x30] sm:$0xff]
    %v759 = vld [vmem:[%s0 + $0x38] sm:$0xff]
    %v760 = vld [vmem:[%s0 + $0x40] sm:$0xff]
    %v761 = vld [vmem:[%s0 + $0x48] sm:$0xff]
    %v762 = vld [vmem:[%s0 + $0x50] sm:$0xff]
    %v763 = vld [vmem:[%s0 + $0x58] sm:$0xff]
    %v764 = vld [vmem:[%s0 + $0x60] sm:$0xff]
    %v765 = vld [vmem:[%s0 + $0x68] sm:$0xff]
    %v766 = vld [vmem:[%s0 + $0x70] sm:$0xff]
    %v767 = vld [vmem:[%s0 + $0x78] sm:$0xff]
    %v768 = vld [vmem:[%s0 + $0x80] sm:$0xff]
    %v769 = vld [vmem:[%s0 + $0x88] sm:$0xff]
    %v770 = vld [vmem:[%s0 + $0x90] sm:$0xff]
    %v771 = vld [vmem:[%s0 + $0x98] sm:$0xff]
    %792 = vrot.lane.b32.xlu0 %v752, 95
    %v793 = vpop.permute.xlu0 %792
    %794 = vrot.lane.b32.xlu0 %v753, 95
    %v795 = vpop.permute.xlu0 %794
    %796 = vrot.lane.b32.xlu0 %v754, 95
    %v797 = vpop.permute.xlu0 %796
    %798 = vrot.lane.b32.xlu0 %v755, 95
    %v799 = vpop.permute.xlu0 %798
    %800 = vrot.lane.b32.xlu0 %v756, 95
    %v801 = vpop.permute.xlu0 %800
    %802 = vrot.lane.b32.xlu0 %v757, 95
    %v803 = vpop.permute.xlu0 %802
    %804 = vrot.lane.b32.xlu0 %v758, 95
    %v805 = vpop.permute.xlu0 %804
    %806 = vrot.lane.b32.xlu0 %v759, 95
    %v807 = vpop.permute.xlu0 %806
    %808 = vrot.lane.b32.xlu0 %v760, 95
    %v809 = vpop.permute.xlu0 %808
    %810 = vrot.lane.b32.xlu0 %v761, 95
    %v811 = vpop.permute.xlu0 %810
    %812 = vrot.lane.b32.xlu0 %v762, 95
    %v813 = vpop.permute.xlu0 %812
    %814 = vrot.lane.b32.xlu0 %v763, 95
    %v815 = vpop.permute.xlu0 %814
    %816 = vrot.lane.b32.xlu0 %v764, 95
    %v817 = vpop.permute.xlu0 %816
    %818 = vrot.lane.b32.xlu0 %v765, 95
    %v819 = vpop.permute.xlu0 %818
    %820 = vrot.lane.b32.xlu0 %v766, 95
    %v821 = vpop.permute.xlu0 %820
    %822 = vrot.lane.b32.xlu0 %v767, 95
    %v823 = vpop.permute.xlu0 %822
    %824 = vrot.lane.b32.xlu0 %v768, 95
    %v825 = vpop.permute.xlu0 %824
    %826 = vrot.lane.b32.xlu0 %v769, 95
    %v827 = vpop.permute.xlu0 %826
    %828 = vrot.lane.b32.xlu0 %v770, 95
    %v829 = vpop.permute.xlu0 %828
    %830 = vrot.lane.b32.xlu0 %v771, 95
    %v831 = vpop.permute.xlu0 %830
    %vm832 = vcmask 777216
    %v833 = vsel %vm832, %v793, %v795
    %v834 = vsel %vm832, %v795, %v797
    %v835 = vsel %vm832, %v797, %v799
    %v836 = vsel %vm832, %v799, %v801
    %v837 = vsel %vm832, %v801, %v803
    %v838 = vsel %vm832, %v803, %v805
    %v839 = vsel %vm832, %v805, %v807
    %v840 = vsel %vm832, %v807, %v809
    %v841 = vsel %vm832, %v809, %v811
    %v842 = vsel %vm832, %v811, %v813
    %v843 = vsel %vm832, %v813, %v815
    %v844 = vsel %vm832, %v815, %v817
    %v845 = vsel %vm832, %v817, %v819
    %v846 = vsel %vm832, %v819, %v821
    %v847 = vsel %vm832, %v821, %v823
    %v848 = vsel %vm832, %v823, %v825
    %v849 = vsel %vm832, %v825, %v827
    %v850 = vsel %vm832, %v827, %v829
    %v851 = vsel %vm832, %v829, %v831
    %871 = vst [vmem:[#allocation2 + $0x390] sm:$0xff] %v833
    %872 = vst [vmem:[#allocation2 + $0x398] sm:$0xff] %v834
    %873 = vst [vmem:[#allocation2 + $0x3a0] sm:$0xff] %v835
    %874 = vst [vmem:[#allocation2 + $0x3a8] sm:$0xff] %v836
    %875 = vst [vmem:[#allocation2 + $0x3b0] sm:$0xff] %v837
    %876 = vst [vmem:[#allocation2 + $0x3b8] sm:$0xff] %v838
    %877 = vst [vmem:[#allocation2 + $0x3c0] sm:$0xff] %v839
    %878 = vst [vmem:[#allocation2 + $0x3c8] sm:$0xff] %v840
    %879 = vst [vmem:[#allocation2 + $0x3d0] sm:$0xff] %v841
    %880 = vst [vmem:[#allocation2 + $0x3d8] sm:$0xff] %v842
    %881 = vst [vmem:[#allocation2 + $0x3e0] sm:$0xff] %v843
    %882 = vst [vmem:[#allocation2 + $0x3e8] sm:$0xff] %v844
    %883 = vst [vmem:[#allocation2 + $0x3f0] sm:$0xff] %v845
    %884 = vst [vmem:[#allocation2 + $0x3f8] sm:$0xff] %v846
    %885 = vst [vmem:[#allocation2 + $0x400] sm:$0xff] %v847
    %886 = vst [vmem:[#allocation2 + $0x408] sm:$0xff] %v848
    %887 = vst [vmem:[#allocation2 + $0x410] sm:$0xff] %v849
    %888 = vst [vmem:[#allocation2 + $0x418] sm:$0xff] %v850
    %889 = vst.msk [vmem:[#allocation2 + $0x420] sm:$0xff] %vm80, %v851
    %v890 = vld [vmem:[%s0] sm:$0xff]
    %v891 = vld [vmem:[%s0 + $0x8] sm:$0xff]
    %v892 = vld [vmem:[%s0 + $0x10] sm:$0xff]
    %v893 = vld [vmem:[%s0 + $0x18] sm:$0xff]
    %v894 = vld [vmem:[%s0 + $0x20] sm:$0xff]
    %v895 = vld [vmem:[%s0 + $0x28] sm:$0xff]
    %v896 = vld [vmem:[%s0 + $0x30] sm:$0xff]
    %v897 = vld [vmem:[%s0 + $0x38] sm:$0xff]
    %v898 = vld [vmem:[%s0 + $0x40] sm:$0xff]
    %v899 = vld [vmem:[%s0 + $0x48] sm:$0xff]
    %v900 = vld [vmem:[%s0 + $0x50] sm:$0xff]
    %v901 = vld [vmem:[%s0 + $0x58] sm:$0xff]
    %v902 = vld [vmem:[%s0 + $0x60] sm:$0xff]
    %v903 = vld [vmem:[%s0 + $0x68] sm:$0xff]
    %v904 = vld [vmem:[%s0 + $0x70] sm:$0xff]
    %v905 = vld [vmem:[%s0 + $0x78] sm:$0xff]
    %v906 = vld [vmem:[%s0 + $0x80] sm:$0xff]
    %v907 = vld [vmem:[%s0 + $0x88] sm:$0xff]
    %v908 = vld [vmem:[%s0 + $0x90] sm:$0xff]
    %v909 = vld [vmem:[%s0 + $0x98] sm:$0xff]
    %930 = vrot.lane.b32.xlu0 %v890, 94
    %v931 = vpop.permute.xlu0 %930
    %932 = vrot.lane.b32.xlu0 %v891, 94
    %v933 = vpop.permute.xlu0 %932
    %934 = vrot.lane.b32.xlu0 %v892, 94
    %v935 = vpop.permute.xlu0 %934
    %936 = vrot.lane.b32.xlu0 %v893, 94
    %v937 = vpop.permute.xlu0 %936
    %938 = vrot.lane.b32.xlu0 %v894, 94
    %v939 = vpop.permute.xlu0 %938
    %940 = vrot.lane.b32.xlu0 %v895, 94
    %v941 = vpop.permute.xlu0 %940
    %942 = vrot.lane.b32.xlu0 %v896, 94
    %v943 = vpop.permute.xlu0 %942
    %944 = vrot.lane.b32.xlu0 %v897, 94
    %v945 = vpop.permute.xlu0 %944
    %946 = vrot.lane.b32.xlu0 %v898, 94
    %v947 = vpop.permute.xlu0 %946
    %948 = vrot.lane.b32.xlu0 %v899, 94
    %v949 = vpop.permute.xlu0 %948
    %950 = vrot.lane.b32.xlu0 %v900, 94
    %v951 = vpop.permute.xlu0 %950
    %952 = vrot.lane.b32.xlu0 %v901, 94
    %v953 = vpop.permute.xlu0 %952
    %954 = vrot.lane.b32.xlu0 %v902, 94
    %v955 = vpop.permute.xlu0 %954
    %956 = vrot.lane.b32.xlu0 %v903, 94
    %v957 = vpop.permute.xlu0 %956
    %958 = vrot.lane.b32.xlu0 %v904, 94
    %v959 = vpop.permute.xlu0 %958
    %960 = vrot.lane.b32.xlu0 %v905, 94
    %v961 = vpop.permute.xlu0 %960
    %962 = vrot.lane.b32.xlu0 %v906, 94
    %v963 = vpop.permute.xlu0 %962
    %964 = vrot.lane.b32.xlu0 %v907, 94
    %v965 = vpop.permute.xlu0 %964
    %966 = vrot.lane.b32.xlu0 %v908, 94
    %v967 = vpop.permute.xlu0 %966
    %968 = vrot.lane.b32.xlu0 %v909, 94
    %v969 = vpop.permute.xlu0 %968
    %vm970 = vcmask 769024
    %v971 = vsel %vm970, %v931, %v933
    %v972 = vsel %vm970, %v933, %v935
    %v973 = vsel %vm970, %v935, %v937
    %v974 = vsel %vm970, %v937, %v939
    %v975 = vsel %vm970, %v939, %v941
    %v976 = vsel %vm970, %v941, %v943
    %v977 = vsel %vm970, %v943, %v945
    %v978 = vsel %vm970, %v945, %v947
    %v979 = vsel %vm970, %v947, %v949
    %v980 = vsel %vm970, %v949, %v951
    %v981 = vsel %vm970, %v951, %v953
    %v982 = vsel %vm970, %v953, %v955
    %v983 = vsel %vm970, %v955, %v957
    %v984 = vsel %vm970, %v957, %v959
    %v985 = vsel %vm970, %v959, %v961
    %v986 = vsel %vm970, %v961, %v963
    %v987 = vsel %vm970, %v963, %v965
    %v988 = vsel %vm970, %v965, %v967
    %v989 = vsel %vm970, %v967, %v969
    %1009 = vst [vmem:[#allocation2 + $0x428] sm:$0xff] %v971
    %1010 = vst [vmem:[#allocation2 + $0x430] sm:$0xff] %v972
    %1011 = vst [vmem:[#allocation2 + $0x438] sm:$0xff] %v973
    %1012 = vst [vmem:[#allocation2 + $0x440] sm:$0xff] %v974
    %1013 = vst [vmem:[#allocation2 + $0x448] sm:$0xff] %v975
    %1014 = vst [vmem:[#allocation2 + $0x450] sm:$0xff] %v976
    %1015 = vst [vmem:[#allocation2 + $0x458] sm:$0xff] %v977
    %1016 = vst [vmem:[#allocation2 + $0x460] sm:$0xff] %v978
    %1017 = vst [vmem:[#allocation2 + $0x468] sm:$0xff] %v979
    %1018 = vst [vmem:[#allocation2 + $0x470] sm:$0xff] %v980
    %1019 = vst [vmem:[#allocation2 + $0x478] sm:$0xff] %v981
    %1020 = vst [vmem:[#allocation2 + $0x480] sm:$0xff] %v982
    %1021 = vst [vmem:[#allocation2 + $0x488] sm:$0xff] %v983
    %1022 = vst [vmem:[#allocation2 + $0x490] sm:$0xff] %v984
    %1023 = vst [vmem:[#allocation2 + $0x498] sm:$0xff] %v985
    %1024 = vst [vmem:[#allocation2 + $0x4a0] sm:$0xff] %v986
    %1025 = vst [vmem:[#allocation2 + $0x4a8] sm:$0xff] %v987
    %1026 = vst [vmem:[#allocation2 + $0x4b0] sm:$0xff] %v988
    %1027 = vst.msk [vmem:[#allocation2 + $0x4b8] sm:$0xff] %vm80, %v989
    %v1028 = vld [vmem:[%s0] sm:$0xff]
    %v1029 = vld [vmem:[%s0 + $0x8] sm:$0xff]
    %v1030 = vld [vmem:[%s0 + $0x10] sm:$0xff]
    %v1031 = vld [vmem:[%s0 + $0x18] sm:$0xff]
    %v1032 = vld [vmem:[%s0 + $0x20] sm:$0xff]
    %v1033 = vld [vmem:[%s0 + $0x28] sm:$0xff]
    %v1034 = vld [vmem:[%s0 + $0x30] sm:$0xff]
    %v1035 = vld [vmem:[%s0 + $0x38] sm:$0xff]
    %v1036 = vld [vmem:[%s0 + $0x40] sm:$0xff]
    %v1037 = vld [vmem:[%s0 + $0x48] sm:$0xff]
    %v1038 = vld [vmem:[%s0 + $0x50] sm:$0xff]
    %v1039 = vld [vmem:[%s0 + $0x58] sm:$0xff]
    %v1040 = vld [vmem:[%s0 + $0x60] sm:$0xff]
    %v1041 = vld [vmem:[%s0 + $0x68] sm:$0xff]
    %v1042 = vld [vmem:[%s0 + $0x70] sm:$0xff]
    %v1043 = vld [vmem:[%s0 + $0x78] sm:$0xff]
    %v1044 = vld [vmem:[%s0 + $0x80] sm:$0xff]
    %v1045 = vld [vmem:[%s0 + $0x88] sm:$0xff]
    %v1046 = vld [vmem:[%s0 + $0x90] sm:$0xff]
    %v1047 = vld [vmem:[%s0 + $0x98] sm:$0xff]
    %1068 = vrot.lane.b32.xlu0 %v1028, 93
    %v1069 = vpop.permute.xlu0 %1068
    %1070 = vrot.lane.b32.xlu0 %v1029, 93
    %v1071 = vpop.permute.xlu0 %1070
    %1072 = vrot.lane.b32.xlu0 %v1030, 93
    %v1073 = vpop.permute.xlu0 %1072
    %1074 = vrot.lane.b32.xlu0 %v1031, 93
    %v1075 = vpop.permute.xlu0 %1074
    %1076 = vrot.lane.b32.xlu0 %v1032, 93
    %v1077 = vpop.permute.xlu0 %1076
    %1078 = vrot.lane.b32.xlu0 %v1033, 93
    %v1079 = vpop.permute.xlu0 %1078
    %1080 = vrot.lane.b32.xlu0 %v1034, 93
    %v1081 = vpop.permute.xlu0 %1080
    %1082 = vrot.lane.b32.xlu0 %v1035, 93
    %v1083 = vpop.permute.xlu0 %1082
    %1084 = vrot.lane.b32.xlu0 %v1036, 93
    %v1085 = vpop.permute.xlu0 %1084
    %1086 = vrot.lane.b32.xlu0 %v1037, 93
    %v1087 = vpop.permute.xlu0 %1086
    %1088 = vrot.lane.b32.xlu0 %v1038, 93
    %v1089 = vpop.permute.xlu0 %1088
    %1090 = vrot.lane.b32.xlu0 %v1039, 93
    %v1091 = vpop.permute.xlu0 %1090
    %1092 = vrot.lane.b32.xlu0 %v1040, 93
    %v1093 = vpop.permute.xlu0 %1092
    %1094 = vrot.lane.b32.xlu0 %v1041, 93
    %v1095 = vpop.permute.xlu0 %1094
    %1096 = vrot.lane.b32.xlu0 %v1042, 93
    %v1097 = vpop.permute.xlu0 %1096
    %1098 = vrot.lane.b32.xlu0 %v1043, 93
    %v1099 = vpop.permute.xlu0 %1098
    %1100 = vrot.lane.b32.xlu0 %v1044, 93
    %v1101 = vpop.permute.xlu0 %1100
    %1102 = vrot.lane.b32.xlu0 %v1045, 93
    %v1103 = vpop.permute.xlu0 %1102
    %1104 = vrot.lane.b32.xlu0 %v1046, 93
    %v1105 = vpop.permute.xlu0 %1104
    %1106 = vrot.lane.b32.xlu0 %v1047, 93
    %v1107 = vpop.permute.xlu0 %1106
    %vm1108 = vcmask 760832
    %v1109 = vsel %vm1108, %v1069, %v1071
    %v1110 = vsel %vm1108, %v1071, %v1073
    %v1111 = vsel %vm1108, %v1073, %v1075
    %v1112 = vsel %vm1108, %v1075, %v1077
    %v1113 = vsel %vm1108, %v1077, %v1079
    %v1114 = vsel %vm1108, %v1079, %v1081
    %v1115 = vsel %vm1108, %v1081, %v1083
    %v1116 = vsel %vm1108, %v1083, %v1085
    %v1117 = vsel %vm1108, %v1085, %v1087
    %v1118 = vsel %vm1108, %v1087, %v1089
    %v1119 = vsel %vm1108, %v1089, %v1091
    %v1120 = vsel %vm1108, %v1091, %v1093
    %v1121 = vsel %vm1108, %v1093, %v1095
    %v1122 = vsel %vm1108, %v1095, %v1097
    %v1123 = vsel %vm1108, %v1097, %v1099
    %v1124 = vsel %vm1108, %v1099, %v1101
    %v1125 = vsel %vm1108, %v1101, %v1103
    %v1126 = vsel %vm1108, %v1103, %v1105
    %v1127 = vsel %vm1108, %v1105, %v1107
    %1147 = vst [vmem:[#allocation2 + $0x4c0] sm:$0xff] %v1109
    %1148 = vst [vmem:[#allocation2 + $0x4c8] sm:$0xff] %v1110
    %1149 = vst [vmem:[#allocation2 + $0x4d0] sm:$0xff] %v1111
    %1150 = vst [vmem:[#allocation2 + $0x4d8] sm:$0xff] %v1112
    %1151 = vst [vmem:[#allocation2 + $0x4e0] sm:$0xff] %v1113
    %1152 = vst [vmem:[#allocation2 + $0x4e8] sm:$0xff] %v1114
    %1153 = vst [vmem:[#allocation2 + $0x4f0] sm:$0xff] %v1115
    %1154 = vst [vmem:[#allocation2 + $0x4f8] sm:$0xff] %v1116
    %1155 = vst [vmem:[#allocation2 + $0x500] sm:$0xff] %v1117
    %1156 = vst [vmem:[#allocation2 + $0x508] sm:$0xff] %v1118
    %1157 = vst [vmem:[#allocation2 + $0x510] sm:$0xff] %v1119
    %1158 = vst [vmem:[#allocation2 + $0x518] sm:$0xff] %v1120
    %1159 = vst [vmem:[#allocation2 + $0x520] sm:$0xff] %v1121
    %1160 = vst [vmem:[#allocation2 + $0x528] sm:$0xff] %v1122
    %1161 = vst [vmem:[#allocation2 + $0x530] sm:$0xff] %v1123
    %1162 = vst [vmem:[#allocation2 + $0x538] sm:$0xff] %v1124
    %1163 = vst [vmem:[#allocation2 + $0x540] sm:$0xff] %v1125
    %1164 = vst [vmem:[#allocation2 + $0x548] sm:$0xff] %v1126
    %1165 = vst.msk [vmem:[#allocation2 + $0x550] sm:$0xff] %vm80, %v1127
    %v1166 = vld [vmem:[%s0] sm:$0xff]
    %v1167 = vld [vmem:[%s0 + $0x8] sm:$0xff]
    %v1168 = vld [vmem:[%s0 + $0x10] sm:$0xff]
    %v1169 = vld [vmem:[%s0 + $0x18] sm:$0xff]
    %v1170 = vld [vmem:[%s0 + $0x20] sm:$0xff]
    %v1171 = vld [vmem:[%s0 + $0x28] sm:$0xff]
    %v1172 = vld [vmem:[%s0 + $0x30] sm:$0xff]
    %v1173 = vld [vmem:[%s0 + $0x38] sm:$0xff]
    %v1174 = vld [vmem:[%s0 + $0x40] sm:$0xff]
    %v1175 = vld [vmem:[%s0 + $0x48] sm:$0xff]
    %v1176 = vld [vmem:[%s0 + $0x50] sm:$0xff]
    %v1177 = vld [vmem:[%s0 + $0x58] sm:$0xff]
    %v1178 = vld [vmem:[%s0 + $0x60] sm:$0xff]
    %v1179 = vld [vmem:[%s0 + $0x68] sm:$0xff]
    %v1180 = vld [vmem:[%s0 + $0x70] sm:$0xff]
    %v1181 = vld [vmem:[%s0 + $0x78] sm:$0xff]
    %v1182 = vld [vmem:[%s0 + $0x80] sm:$0xff]
    %v1183 = vld [vmem:[%s0 + $0x88] sm:$0xff]
    %v1184 = vld [vmem:[%s0 + $0x90] sm:$0xff]
    %v1185 = vld [vmem:[%s0 + $0x98] sm:$0xff]
    %1206 = vrot.lane.b32.xlu0 %v1166, 92
    %v1207 = vpop.permute.xlu0 %1206
    %1208 = vrot.lane.b32.xlu0 %v1167, 92
    %v1209 = vpop.permute.xlu0 %1208
    %1210 = vrot.lane.b32.xlu0 %v1168, 92
    %v1211 = vpop.permute.xlu0 %1210
    %1212 = vrot.lane.b32.xlu0 %v1169, 92
    %v1213 = vpop.permute.xlu0 %1212
    %1214 = vrot.lane.b32.xlu0 %v1170, 92
    %v1215 = vpop.permute.xlu0 %1214
    %1216 = vrot.lane.b32.xlu0 %v1171, 92
    %v1217 = vpop.permute.xlu0 %1216
    %1218 = vrot.lane.b32.xlu0 %v1172, 92
    %v1219 = vpop.permute.xlu0 %1218
    %1220 = vrot.lane.b32.xlu0 %v1173, 92
    %v1221 = vpop.permute.xlu0 %1220
    %1222 = vrot.lane.b32.xlu0 %v1174, 92
    %v1223 = vpop.permute.xlu0 %1222
    %1224 = vrot.lane.b32.xlu0 %v1175, 92
    %v1225 = vpop.permute.xlu0 %1224
    %1226 = vrot.lane.b32.xlu0 %v1176, 92
    %v1227 = vpop.permute.xlu0 %1226
    %1228 = vrot.lane.b32.xlu0 %v1177, 92
    %v1229 = vpop.permute.xlu0 %1228
    %1230 = vrot.lane.b32.xlu0 %v1178, 92
    %v1231 = vpop.permute.xlu0 %1230
    %1232 = vrot.lane.b32.xlu0 %v1179, 92
    %v1233 = vpop.permute.xlu0 %1232
    %1234 = vrot.lane.b32.xlu0 %v1180, 92
    %v1235 = vpop.permute.xlu0 %1234
    %1236 = vrot.lane.b32.xlu0 %v1181, 92
    %v1237 = vpop.permute.xlu0 %1236
    %1238 = vrot.lane.b32.xlu0 %v1182, 92
    %v1239 = vpop.permute.xlu0 %1238
    %1240 = vrot.lane.b32.xlu0 %v1183, 92
    %v1241 = vpop.permute.xlu0 %1240
    %1242 = vrot.lane.b32.xlu0 %v1184, 92
    %v1243 = vpop.permute.xlu0 %1242
    %1244 = vrot.lane.b32.xlu0 %v1185, 92
    %v1245 = vpop.permute.xlu0 %1244
    %vm1246 = vcmask 752640
    %v1247 = vsel %vm1246, %v1207, %v1209
    %v1248 = vsel %vm1246, %v1209, %v1211
    %v1249 = vsel %vm1246, %v1211, %v1213
    %v1250 = vsel %vm1246, %v1213, %v1215
    %v1251 = vsel %vm1246, %v1215, %v1217
    %v1252 = vsel %vm1246, %v1217, %v1219
    %v1253 = vsel %vm1246, %v1219, %v1221
    %v1254 = vsel %vm1246, %v1221, %v1223
    %v1255 = vsel %vm1246, %v1223, %v1225
    %v1256 = vsel %vm1246, %v1225, %v1227
    %v1257 = vsel %vm1246, %v1227, %v1229
    %v1258 = vsel %vm1246, %v1229, %v1231
    %v1259 = vsel %vm1246, %v1231, %v1233
    %v1260 = vsel %vm1246, %v1233, %v1235
    %v1261 = vsel %vm1246, %v1235, %v1237
    %v1262 = vsel %vm1246, %v1237, %v1239
    %v1263 = vsel %vm1246, %v1239, %v1241
    %v1264 = vsel %vm1246, %v1241, %v1243
    %v1265 = vsel %vm1246, %v1243, %v1245
    %1285 = vst [vmem:[#allocation2 + $0x558] sm:$0xff] %v1247
    %1286 = vst [vmem:[#allocation2 + $0x560] sm:$0xff] %v1248
    %1287 = vst [vmem:[#allocation2 + $0x568] sm:$0xff] %v1249
    %1288 = vst [vmem:[#allocation2 + $0x570] sm:$0xff] %v1250
    %1289 = vst [vmem:[#allocation2 + $0x578] sm:$0xff] %v1251
    %1290 = vst [vmem:[#allocation2 + $0x580] sm:$0xff] %v1252
    %1291 = vst [vmem:[#allocation2 + $0x588] sm:$0xff] %v1253
    %1292 = vst [vmem:[#allocation2 + $0x590] sm:$0xff] %v1254
    %1293 = vst [vmem:[#allocation2 + $0x598] sm:$0xff] %v1255
    %1294 = vst [vmem:[#allocation2 + $0x5a0] sm:$0xff] %v1256
    %1295 = vst [vmem:[#allocation2 + $0x5a8] sm:$0xff] %v1257
    %1296 = vst [vmem:[#allocation2 + $0x5b0] sm:$0xff] %v1258
    %1297 = vst [vmem:[#allocation2 + $0x5b8] sm:$0xff] %v1259
    %1298 = vst [vmem:[#allocation2 + $0x5c0] sm:$0xff] %v1260
    %1299 = vst [vmem:[#allocation2 + $0x5c8] sm:$0xff] %v1261
    %1300 = vst [vmem:[#allocation2 + $0x5d0] sm:$0xff] %v1262
    %1301 = vst [vmem:[#allocation2 + $0x5d8] sm:$0xff] %v1263
    %1302 = vst [vmem:[#allocation2 + $0x5e0] sm:$0xff] %v1264
    %1303 = vst.msk [vmem:[#allocation2 + $0x5e8] sm:$0xff] %vm80, %v1265
    %v1304 = vld [vmem:[%s0] sm:$0xff]
    %v1305 = vld [vmem:[%s0 + $0x8] sm:$0xff]
    %v1306 = vld [vmem:[%s0 + $0x10] sm:$0xff]
    %v1307 = vld [vmem:[%s0 + $0x18] sm:$0xff]
    %v1308 = vld [vmem:[%s0 + $0x20] sm:$0xff]
    %v1309 = vld [vmem:[%s0 + $0x28] sm:$0xff]
    %v1310 = vld [vmem:[%s0 + $0x30] sm:$0xff]
    %v1311 = vld [vmem:[%s0 + $0x38] sm:$0xff]
    %v1312 = vld [vmem:[%s0 + $0x40] sm:$0xff]
    %v1313 = vld [vmem:[%s0 + $0x48] sm:$0xff]
    %v1314 = vld [vmem:[%s0 + $0x50] sm:$0xff]
    %v1315 = vld [vmem:[%s0 + $0x58] sm:$0xff]
    %v1316 = vld [vmem:[%s0 + $0x60] sm:$0xff]
    %v1317 = vld [vmem:[%s0 + $0x68] sm:$0xff]
    %v1318 = vld [vmem:[%s0 + $0x70] sm:$0xff]
    %v1319 = vld [vmem:[%s0 + $0x78] sm:$0xff]
    %v1320 = vld [vmem:[%s0 + $0x80] sm:$0xff]
    %v1321 = vld [vmem:[%s0 + $0x88] sm:$0xff]
    %v1322 = vld [vmem:[%s0 + $0x90] sm:$0xff]
    %v1323 = vld [vmem:[%s0 + $0x98] sm:$0xff]
    %1344 = vrot.lane.b32.xlu0 %v1304, 64
    %v1345 = vpop.permute.xlu0 %1344
    %1346 = vrot.lane.b32.xlu0 %v1305, 64
    %v1347 = vpop.permute.xlu0 %1346
    %1348 = vrot.lane.b32.xlu0 %v1306, 64
    %v1349 = vpop.permute.xlu0 %1348
    %1350 = vrot.lane.b32.xlu0 %v1307, 64
    %v1351 = vpop.permute.xlu0 %1350
    %1352 = vrot.lane.b32.xlu0 %v1308, 64
    %v1353 = vpop.permute.xlu0 %1352
    %1354 = vrot.lane.b32.xlu0 %v1309, 64
    %v1355 = vpop.permute.xlu0 %1354
    %1356 = vrot.lane.b32.xlu0 %v1310, 64
    %v1357 = vpop.permute.xlu0 %1356
    %1358 = vrot.lane.b32.xlu0 %v1311, 64
    %v1359 = vpop.permute.xlu0 %1358
    %1360 = vrot.lane.b32.xlu0 %v1312, 64
    %v1361 = vpop.permute.xlu0 %1360
    %1362 = vrot.lane.b32.xlu0 %v1313, 64
    %v1363 = vpop.permute.xlu0 %1362
    %1364 = vrot.lane.b32.xlu0 %v1314, 64
    %v1365 = vpop.permute.xlu0 %1364
    %1366 = vrot.lane.b32.xlu0 %v1315, 64
    %v1367 = vpop.permute.xlu0 %1366
    %1368 = vrot.lane.b32.xlu0 %v1316, 64
    %v1369 = vpop.permute.xlu0 %1368
    %1370 = vrot.lane.b32.xlu0 %v1317, 64
    %v1371 = vpop.permute.xlu0 %1370
    %1372 = vrot.lane.b32.xlu0 %v1318, 64
    %v1373 = vpop.permute.xlu0 %1372
    %1374 = vrot.lane.b32.xlu0 %v1319, 64
    %v1375 = vpop.permute.xlu0 %1374
    %1376 = vrot.lane.b32.xlu0 %v1320, 64
    %v1377 = vpop.permute.xlu0 %1376
    %1378 = vrot.lane.b32.xlu0 %v1321, 64
    %v1379 = vpop.permute.xlu0 %1378
    %1380 = vrot.lane.b32.xlu0 %v1322, 64
    %v1381 = vpop.permute.xlu0 %1380
    %1382 = vrot.lane.b32.xlu0 %v1323, 64
    %v1383 = vpop.permute.xlu0 %1382
    %vm1384 = vcmask 523264
    %v1385 = vsel %vm1384, %v1345, %v1347
    %v1386 = vsel %vm1384, %v1347, %v1349
    %v1387 = vsel %vm1384, %v1349, %v1351
    %v1388 = vsel %vm1384, %v1351, %v1353
    %v1389 = vsel %vm1384, %v1353, %v1355
    %v1390 = vsel %vm1384, %v1355, %v1357
    %v1391 = vsel %vm1384, %v1357, %v1359
    %v1392 = vsel %vm1384, %v1359, %v1361
    %v1393 = vsel %vm1384, %v1361, %v1363
    %v1394 = vsel %vm1384, %v1363, %v1365
    %v1395 = vsel %vm1384, %v1365, %v1367
    %v1396 = vsel %vm1384, %v1367, %v1369
    %v1397 = vsel %vm1384, %v1369, %v1371
    %v1398 = vsel %vm1384, %v1371, %v1373
    %v1399 = vsel %vm1384, %v1373, %v1375
    %v1400 = vsel %vm1384, %v1375, %v1377
    %v1401 = vsel %vm1384, %v1377, %v1379
    %v1402 = vsel %vm1384, %v1379, %v1381
    %v1403 = vsel %vm1384, %v1381, %v1383
    %1423 = vst [vmem:[#allocation2 + $0x5f0] sm:$0xff] %v1385
    %1424 = vst [vmem:[#allocation2 + $0x5f8] sm:$0xff] %v1386
    %1425 = vst [vmem:[#allocation2 + $0x600] sm:$0xff] %v1387
    %1426 = vst [vmem:[#allocation2 + $0x608] sm:$0xff] %v1388
    %1427 = vst [vmem:[#allocation2 + $0x610] sm:$0xff] %v1389
    %1428 = vst [vmem:[#allocation2 + $0x618] sm:$0xff] %v1390
    %1429 = vst [vmem:[#allocation2 + $0x620] sm:$0xff] %v1391
    %1430 = vst [vmem:[#allocation2 + $0x628] sm:$0xff] %v1392
    %1431 = vst [vmem:[#allocation2 + $0x630] sm:$0xff] %v1393
    %1432 = vst [vmem:[#allocation2 + $0x638] sm:$0xff] %v1394
    %1433 = vst [vmem:[#allocation2 + $0x640] sm:$0xff] %v1395
    %1434 = vst [vmem:[#allocation2 + $0x648] sm:$0xff] %v1396
    %1435 = vst [vmem:[#allocation2 + $0x650] sm:$0xff] %v1397
    %1436 = vst [vmem:[#allocation2 + $0x658] sm:$0xff] %v1398
    %1437 = vst [vmem:[#allocation2 + $0x660] sm:$0xff] %v1399
    %1438 = vst [vmem:[#allocation2 + $0x668] sm:$0xff] %v1400
    %1439 = vst [vmem:[#allocation2 + $0x670] sm:$0xff] %v1401
    %1440 = vst [vmem:[#allocation2 + $0x678] sm:$0xff] %v1402
    %1441 = vst.msk [vmem:[#allocation2 + $0x680] sm:$0xff] %vm80, %v1403
    %v1442 = vld [vmem:[%s0] sm:$0xff]
    %v1443 = vld [vmem:[%s0 + $0x8] sm:$0xff]
    %v1444 = vld [vmem:[%s0 + $0x10] sm:$0xff]
    %v1445 = vld [vmem:[%s0 + $0x18] sm:$0xff]
    %v1446 = vld [vmem:[%s0 + $0x20] sm:$0xff]
    %v1447 = vld [vmem:[%s0 + $0x28] sm:$0xff]
    %v1448 = vld [vmem:[%s0 + $0x30] sm:$0xff]
    %v1449 = vld [vmem:[%s0 + $0x38] sm:$0xff]
    %v1450 = vld [vmem:[%s0 + $0x40] sm:$0xff]
    %v1451 = vld [vmem:[%s0 + $0x48] sm:$0xff]
    %v1452 = vld [vmem:[%s0 + $0x50] sm:$0xff]
    %v1453 = vld [vmem:[%s0 + $0x58] sm:$0xff]
    %v1454 = vld [vmem:[%s0 + $0x60] sm:$0xff]
    %v1455 = vld [vmem:[%s0 + $0x68] sm:$0xff]
    %v1456 = vld [vmem:[%s0 + $0x70] sm:$0xff]
    %v1457 = vld [vmem:[%s0 + $0x78] sm:$0xff]
    %v1458 = vld [vmem:[%s0 + $0x80] sm:$0xff]
    %v1459 = vld [vmem:[%s0 + $0x88] sm:$0xff]
    %v1460 = vld [vmem:[%s0 + $0x90] sm:$0xff]
    %v1461 = vld [vmem:[%s0 + $0x98] sm:$0xff]
    %1482 = vrot.lane.b32.xlu0 %v1442, 63
    %v1483 = vpop.permute.xlu0 %1482
    %1484 = vrot.lane.b32.xlu0 %v1443, 63
    %v1485 = vpop.permute.xlu0 %1484
    %1486 = vrot.lane.b32.xlu0 %v1444, 63
    %v1487 = vpop.permute.xlu0 %1486
    %1488 = vrot.lane.b32.xlu0 %v1445, 63
    %v1489 = vpop.permute.xlu0 %1488
    %1490 = vrot.lane.b32.xlu0 %v1446, 63
    %v1491 = vpop.permute.xlu0 %1490
    %1492 = vrot.lane.b32.xlu0 %v1447, 63
    %v1493 = vpop.permute.xlu0 %1492
    %1494 = vrot.lane.b32.xlu0 %v1448, 63
    %v1495 = vpop.permute.xlu0 %1494
    %1496 = vrot.lane.b32.xlu0 %v1449, 63
    %v1497 = vpop.permute.xlu0 %1496
    %1498 = vrot.lane.b32.xlu0 %v1450, 63
    %v1499 = vpop.permute.xlu0 %1498
    %1500 = vrot.lane.b32.xlu0 %v1451, 63
    %v1501 = vpop.permute.xlu0 %1500
    %1502 = vrot.lane.b32.xlu0 %v1452, 63
    %v1503 = vpop.permute.xlu0 %1502
    %1504 = vrot.lane.b32.xlu0 %v1453, 63
    %v1505 = vpop.permute.xlu0 %1504
    %1506 = vrot.lane.b32.xlu0 %v1454, 63
    %v1507 = vpop.permute.xlu0 %1506
    %1508 = vrot.lane.b32.xlu0 %v1455, 63
    %v1509 = vpop.permute.xlu0 %1508
    %1510 = vrot.lane.b32.xlu0 %v1456, 63
    %v1511 = vpop.permute.xlu0 %1510
    %1512 = vrot.lane.b32.xlu0 %v1457, 63
    %v1513 = vpop.permute.xlu0 %1512
    %1514 = vrot.lane.b32.xlu0 %v1458, 63
    %v1515 = vpop.permute.xlu0 %1514
    %1516 = vrot.lane.b32.xlu0 %v1459, 63
    %v1517 = vpop.permute.xlu0 %1516
    %1518 = vrot.lane.b32.xlu0 %v1460, 63
    %v1519 = vpop.permute.xlu0 %1518
    %1520 = vrot.lane.b32.xlu0 %v1461, 63
    %v1521 = vpop.permute.xlu0 %1520
    %vm1522 = vcmask 515072
    %v1523 = vsel %vm1522, %v1483, %v1485
    %v1524 = vsel %vm1522, %v1485, %v1487
    %v1525 = vsel %vm1522, %v1487, %v1489
    %v1526 = vsel %vm1522, %v1489, %v1491
    %v1527 = vsel %vm1522, %v1491, %v1493
    %v1528 = vsel %vm1522, %v1493, %v1495
    %v1529 = vsel %vm1522, %v1495, %v1497
    %v1530 = vsel %vm1522, %v1497, %v1499
    %v1531 = vsel %vm1522, %v1499, %v1501
    %v1532 = vsel %vm1522, %v1501, %v1503
    %v1533 = vsel %vm1522, %v1503, %v1505
    %v1534 = vsel %vm1522, %v1505, %v1507
    %v1535 = vsel %vm1522, %v1507, %v1509
    %v1536 = vsel %vm1522, %v1509, %v1511
    %v1537 = vsel %vm1522, %v1511, %v1513
    %v1538 = vsel %vm1522, %v1513, %v1515
    %v1539 = vsel %vm1522, %v1515, %v1517
    %v1540 = vsel %vm1522, %v1517, %v1519
    %v1541 = vsel %vm1522, %v1519, %v1521
    %1561 = vst [vmem:[#allocation2 + $0x688] sm:$0xff] %v1523
    %1562 = vst [vmem:[#allocation2 + $0x690] sm:$0xff] %v1524
    %1563 = vst [vmem:[#allocation2 + $0x698] sm:$0xff] %v1525
    %1564 = vst [vmem:[#allocation2 + $0x6a0] sm:$0xff] %v1526
    %1565 = vst [vmem:[#allocation2 + $0x6a8] sm:$0xff] %v1527
    %1566 = vst [vmem:[#allocation2 + $0x6b0] sm:$0xff] %v1528
    %1567 = vst [vmem:[#allocation2 + $0x6b8] sm:$0xff] %v1529
    %1568 = vst [vmem:[#allocation2 + $0x6c0] sm:$0xff] %v1530
    %1569 = vst [vmem:[#allocation2 + $0x6c8] sm:$0xff] %v1531
    %1570 = vst [vmem:[#allocation2 + $0x6d0] sm:$0xff] %v1532
    %1571 = vst [vmem:[#allocation2 + $0x6d8] sm:$0xff] %v1533
    %1572 = vst [vmem:[#allocation2 + $0x6e0] sm:$0xff] %v1534
    %1573 = vst [vmem:[#allocation2 + $0x6e8] sm:$0xff] %v1535
    %1574 = vst [vmem:[#allocation2 + $0x6f0] sm:$0xff] %v1536
    %1575 = vst [vmem:[#allocation2 + $0x6f8] sm:$0xff] %v1537
    %1576 = vst [vmem:[#allocation2 + $0x700] sm:$0xff] %v1538
    %1577 = vst [vmem:[#allocation2 + $0x708] sm:$0xff] %v1539
    %1578 = vst [vmem:[#allocation2 + $0x710] sm:$0xff] %v1540
    %1579 = vst.msk [vmem:[#allocation2 + $0x718] sm:$0xff] %vm80, %v1541
    %v1580 = vld [vmem:[%s0] sm:$0xff]
    %v1581 = vld [vmem:[%s0 + $0x8] sm:$0xff]
    %v1582 = vld [vmem:[%s0 + $0x10] sm:$0xff]
    %v1583 = vld [vmem:[%s0 + $0x18] sm:$0xff]
    %v1584 = vld [vmem:[%s0 + $0x20] sm:$0xff]
    %v1585 = vld [vmem:[%s0 + $0x28] sm:$0xff]
    %v1586 = vld [vmem:[%s0 + $0x30] sm:$0xff]
    %v1587 = vld [vmem:[%s0 + $0x38] sm:$0xff]
    %v1588 = vld [vmem:[%s0 + $0x40] sm:$0xff]
    %v1589 = vld [vmem:[%s0 + $0x48] sm:$0xff]
    %v1590 = vld [vmem:[%s0 + $0x50] sm:$0xff]
    %v1591 = vld [vmem:[%s0 + $0x58] sm:$0xff]
    %v1592 = vld [vmem:[%s0 + $0x60] sm:$0xff]
    %v1593 = vld [vmem:[%s0 + $0x68] sm:$0xff]
    %v1594 = vld [vmem:[%s0 + $0x70] sm:$0xff]
    %v1595 = vld [vmem:[%s0 + $0x78] sm:$0xff]
    %v1596 = vld [vmem:[%s0 + $0x80] sm:$0xff]
    %v1597 = vld [vmem:[%s0 + $0x88] sm:$0xff]
    %v1598 = vld [vmem:[%s0 + $0x90] sm:$0xff]
    %v1599 = vld [vmem:[%s0 + $0x98] sm:$0xff]
    %1620 = vrot.lane.b32.xlu0 %v1580, 62
    %v1621 = vpop.permute.xlu0 %1620
    %1622 = vrot.lane.b32.xlu0 %v1581, 62
    %v1623 = vpop.permute.xlu0 %1622
    %1624 = vrot.lane.b32.xlu0 %v1582, 62
    %v1625 = vpop.permute.xlu0 %1624
    %1626 = vrot.lane.b32.xlu0 %v1583, 62
    %v1627 = vpop.permute.xlu0 %1626
    %1628 = vrot.lane.b32.xlu0 %v1584, 62
    %v1629 = vpop.permute.xlu0 %1628
    %1630 = vrot.lane.b32.xlu0 %v1585, 62
    %v1631 = vpop.permute.xlu0 %1630
    %1632 = vrot.lane.b32.xlu0 %v1586, 62
    %v1633 = vpop.permute.xlu0 %1632
    %1634 = vrot.lane.b32.xlu0 %v1587, 62
    %v1635 = vpop.permute.xlu0 %1634
    %1636 = vrot.lane.b32.xlu0 %v1588, 62
    %v1637 = vpop.permute.xlu0 %1636
    %1638 = vrot.lane.b32.xlu0 %v1589, 62
    %v1639 = vpop.permute.xlu0 %1638
    %1640 = vrot.lane.b32.xlu0 %v1590, 62
    %v1641 = vpop.permute.xlu0 %1640
    %1642 = vrot.lane.b32.xlu0 %v1591, 62
    %v1643 = vpop.permute.xlu0 %1642
    %1644 = vrot.lane.b32.xlu0 %v1592, 62
    %v1645 = vpop.permute.xlu0 %1644
    %1646 = vrot.lane.b32.xlu0 %v1593, 62
    %v1647 = vpop.permute.xlu0 %1646
    %1648 = vrot.lane.b32.xlu0 %v1594, 62
    %v1649 = vpop.permute.xlu0 %1648
    %1650 = vrot.lane.b32.xlu0 %v1595, 62
    %v1651 = vpop.permute.xlu0 %1650
    %1652 = vrot.lane.b32.xlu0 %v1596, 62
    %v1653 = vpop.permute.xlu0 %1652
    %1654 = vrot.lane.b32.xlu0 %v1597, 62
    %v1655 = vpop.permute.xlu0 %1654
    %1656 = vrot.lane.b32.xlu0 %v1598, 62
    %v1657 = vpop.permute.xlu0 %1656
    %1658 = vrot.lane.b32.xlu0 %v1599, 62
    %v1659 = vpop.permute.xlu0 %1658
    %vm1660 = vcmask 506880
    %v1661 = vsel %vm1660, %v1621, %v1623
    %v1662 = vsel %vm1660, %v1623, %v1625
    %v1663 = vsel %vm1660, %v1625, %v1627
    %v1664 = vsel %vm1660, %v1627, %v1629
    %v1665 = vsel %vm1660, %v1629, %v1631
    %v1666 = vsel %vm1660, %v1631, %v1633
    %v1667 = vsel %vm1660, %v1633, %v1635
    %v1668 = vsel %vm1660, %v1635, %v1637
    %v1669 = vsel %vm1660, %v1637, %v1639
    %v1670 = vsel %vm1660, %v1639, %v1641
    %v1671 = vsel %vm1660, %v1641, %v1643
    %v1672 = vsel %vm1660, %v1643, %v1645
    %v1673 = vsel %vm1660, %v1645, %v1647
    %v1674 = vsel %vm1660, %v1647, %v1649
    %v1675 = vsel %vm1660, %v1649, %v1651
    %v1676 = vsel %vm1660, %v1651, %v1653
    %v1677 = vsel %vm1660, %v1653, %v1655
    %v1678 = vsel %vm1660, %v1655, %v1657
    %v1679 = vsel %vm1660, %v1657, %v1659
    %1699 = vst [vmem:[#allocation2 + $0x720] sm:$0xff] %v1661
    %1700 = vst [vmem:[#allocation2 + $0x728] sm:$0xff] %v1662
    %1701 = vst [vmem:[#allocation2 + $0x730] sm:$0xff] %v1663
    %1702 = vst [vmem:[#allocation2 + $0x738] sm:$0xff] %v1664
    %1703 = vst [vmem:[#allocation2 + $0x740] sm:$0xff] %v1665
    %1704 = vst [vmem:[#allocation2 + $0x748] sm:$0xff] %v1666
    %1705 = vst [vmem:[#allocation2 + $0x750] sm:$0xff] %v1667
    %1706 = vst [vmem:[#allocation2 + $0x758] sm:$0xff] %v1668
    %1707 = vst [vmem:[#allocation2 + $0x760] sm:$0xff] %v1669
    %1708 = vst [vmem:[#allocation2 + $0x768] sm:$0xff] %v1670
    %1709 = vst [vmem:[#allocation2 + $0x770] sm:$0xff] %v1671
    %1710 = vst [vmem:[#allocation2 + $0x778] sm:$0xff] %v1672
    %1711 = vst [vmem:[#allocation2 + $0x780] sm:$0xff] %v1673
    %1712 = vst [vmem:[#allocation2 + $0x788] sm:$0xff] %v1674
    %1713 = vst [vmem:[#allocation2 + $0x790] sm:$0xff] %v1675
    %1714 = vst [vmem:[#allocation2 + $0x798] sm:$0xff] %v1676
    %1715 = vst [vmem:[#allocation2 + $0x7a0] sm:$0xff] %v1677
    %1716 = vst [vmem:[#allocation2 + $0x7a8] sm:$0xff] %v1678
    %1717 = vst.msk [vmem:[#allocation2 + $0x7b0] sm:$0xff] %vm80, %v1679
    %v1718 = vld [vmem:[%s0] sm:$0xff]
    %v1719 = vld [vmem:[%s0 + $0x8] sm:$0xff]
    %v1720 = vld [vmem:[%s0 + $0x10] sm:$0xff]
    %v1721 = vld [vmem:[%s0 + $0x18] sm:$0xff]
    %v1722 = vld [vmem:[%s0 + $0x20] sm:$0xff]
    %v1723 = vld [vmem:[%s0 + $0x28] sm:$0xff]
    %v1724 = vld [vmem:[%s0 + $0x30] sm:$0xff]
    %v1725 = vld [vmem:[%s0 + $0x38] sm:$0xff]
    %v1726 = vld [vmem:[%s0 + $0x40] sm:$0xff]
    %v1727 = vld [vmem:[%s0 + $0x48] sm:$0xff]
    %v1728 = vld [vmem:[%s0 + $0x50] sm:$0xff]
    %v1729 = vld [vmem:[%s0 + $0x58] sm:$0xff]
    %v1730 = vld [vmem:[%s0 + $0x60] sm:$0xff]
    %v1731 = vld [vmem:[%s0 + $0x68] sm:$0xff]
    %v1732 = vld [vmem:[%s0 + $0x70] sm:$0xff]
    %v1733 = vld [vmem:[%s0 + $0x78] sm:$0xff]
    %v1734 = vld [vmem:[%s0 + $0x80] sm:$0xff]
    %v1735 = vld [vmem:[%s0 + $0x88] sm:$0xff]
    %v1736 = vld [vmem:[%s0 + $0x90] sm:$0xff]
    %v1737 = vld [vmem:[%s0 + $0x98] sm:$0xff]
    %1758 = vrot.lane.b32.xlu0 %v1718, 61
    %v1759 = vpop.permute.xlu0 %1758
    %1760 = vrot.lane.b32.xlu0 %v1719, 61
    %v1761 = vpop.permute.xlu0 %1760
    %1762 = vrot.lane.b32.xlu0 %v1720, 61
    %v1763 = vpop.permute.xlu0 %1762
    %1764 = vrot.lane.b32.xlu0 %v1721, 61
    %v1765 = vpop.permute.xlu0 %1764
    %1766 = vrot.lane.b32.xlu0 %v1722, 61
    %v1767 = vpop.permute.xlu0 %1766
    %1768 = vrot.lane.b32.xlu0 %v1723, 61
    %v1769 = vpop.permute.xlu0 %1768
    %1770 = vrot.lane.b32.xlu0 %v1724, 61
    %v1771 = vpop.permute.xlu0 %1770
    %1772 = vrot.lane.b32.xlu0 %v1725, 61
    %v1773 = vpop.permute.xlu0 %1772
    %1774 = vrot.lane.b32.xlu0 %v1726, 61
    %v1775 = vpop.permute.xlu0 %1774
    %1776 = vrot.lane.b32.xlu0 %v1727, 61
    %v1777 = vpop.permute.xlu0 %1776
    %1778 = vrot.lane.b32.xlu0 %v1728, 61
    %v1779 = vpop.permute.xlu0 %1778
    %1780 = vrot.lane.b32.xlu0 %v1729, 61
    %v1781 = vpop.permute.xlu0 %1780
    %1782 = vrot.lane.b32.xlu0 %v1730, 61
    %v1783 = vpop.permute.xlu0 %1782
    %1784 = vrot.lane.b32.xlu0 %v1731, 61
    %v1785 = vpop.permute.xlu0 %1784
    %1786 = vrot.lane.b32.xlu0 %v1732, 61
    %v1787 = vpop.permute.xlu0 %1786
    %1788 = vrot.lane.b32.xlu0 %v1733, 61
    %v1789 = vpop.permute.xlu0 %1788
    %1790 = vrot.lane.b32.xlu0 %v1734, 61
    %v1791 = vpop.permute.xlu0 %1790
    %1792 = vrot.lane.b32.xlu0 %v1735, 61
    %v1793 = vpop.permute.xlu0 %1792
    %1794 = vrot.lane.b32.xlu0 %v1736, 61
    %v1795 = vpop.permute.xlu0 %1794
    %1796 = vrot.lane.b32.xlu0 %v1737, 61
    %v1797 = vpop.permute.xlu0 %1796
    %vm1798 = vcmask 498688
    %v1799 = vsel %vm1798, %v1759, %v1761
    %v1800 = vsel %vm1798, %v1761, %v1763
    %v1801 = vsel %vm1798, %v1763, %v1765
    %v1802 = vsel %vm1798, %v1765, %v1767
    %v1803 = vsel %vm1798, %v1767, %v1769
    %v1804 = vsel %vm1798, %v1769, %v1771
    %v1805 = vsel %vm1798, %v1771, %v1773
    %v1806 = vsel %vm1798, %v1773, %v1775
    %v1807 = vsel %vm1798, %v1775, %v1777
    %v1808 = vsel %vm1798, %v1777, %v1779
    %v1809 = vsel %vm1798, %v1779, %v1781
    %v1810 = vsel %vm1798, %v1781, %v1783
    %v1811 = vsel %vm1798, %v1783, %v1785
    %v1812 = vsel %vm1798, %v1785, %v1787
    %v1813 = vsel %vm1798, %v1787, %v1789
    %v1814 = vsel %vm1798, %v1789, %v1791
    %v1815 = vsel %vm1798, %v1791, %v1793
    %v1816 = vsel %vm1798, %v1793, %v1795
    %v1817 = vsel %vm1798, %v1795, %v1797
    %1837 = vst [vmem:[#allocation2 + $0x7b8] sm:$0xff] %v1799
    %1838 = vst [vmem:[#allocation2 + $0x7c0] sm:$0xff] %v1800
    %1839 = vst [vmem:[#allocation2 + $0x7c8] sm:$0xff] %v1801
    %1840 = vst [vmem:[#allocation2 + $0x7d0] sm:$0xff] %v1802
    %1841 = vst [vmem:[#allocation2 + $0x7d8] sm:$0xff] %v1803
    %1842 = vst [vmem:[#allocation2 + $0x7e0] sm:$0xff] %v1804
    %1843 = vst [vmem:[#allocation2 + $0x7e8] sm:$0xff] %v1805
    %1844 = vst [vmem:[#allocation2 + $0x7f0] sm:$0xff] %v1806
    %1845 = vst [vmem:[#allocation2 + $0x7f8] sm:$0xff] %v1807
    %1846 = vst [vmem:[#allocation2 + $0x800] sm:$0xff] %v1808
    %1847 = vst [vmem:[#allocation2 + $0x808] sm:$0xff] %v1809
    %1848 = vst [vmem:[#allocation2 + $0x810] sm:$0xff] %v1810
    %1849 = vst [vmem:[#allocation2 + $0x818] sm:$0xff] %v1811
    %1850 = vst [vmem:[#allocation2 + $0x820] sm:$0xff] %v1812
    %1851 = vst [vmem:[#allocation2 + $0x828] sm:$0xff] %v1813
    %1852 = vst [vmem:[#allocation2 + $0x830] sm:$0xff] %v1814
    %1853 = vst [vmem:[#allocation2 + $0x838] sm:$0xff] %v1815
    %1854 = vst [vmem:[#allocation2 + $0x840] sm:$0xff] %v1816
    %1855 = vst.msk [vmem:[#allocation2 + $0x848] sm:$0xff] %vm80, %v1817
    %v1856 = vld [vmem:[%s0] sm:$0xff]
    %v1857 = vld [vmem:[%s0 + $0x8] sm:$0xff]
    %v1858 = vld [vmem:[%s0 + $0x10] sm:$0xff]
    %v1859 = vld [vmem:[%s0 + $0x18] sm:$0xff]
    %v1860 = vld [vmem:[%s0 + $0x20] sm:$0xff]
    %v1861 = vld [vmem:[%s0 + $0x28] sm:$0xff]
    %v1862 = vld [vmem:[%s0 + $0x30] sm:$0xff]
    %v1863 = vld [vmem:[%s0 + $0x38] sm:$0xff]
    %v1864 = vld [vmem:[%s0 + $0x40] sm:$0xff]
    %v1865 = vld [vmem:[%s0 + $0x48] sm:$0xff]
    %v1866 = vld [vmem:[%s0 + $0x50] sm:$0xff]
    %v1867 = vld [vmem:[%s0 + $0x58] sm:$0xff]
    %v1868 = vld [vmem:[%s0 + $0x60] sm:$0xff]
    %v1869 = vld [vmem:[%s0 + $0x68] sm:$0xff]
    %v1870 = vld [vmem:[%s0 + $0x70] sm:$0xff]
    %v1871 = vld [vmem:[%s0 + $0x78] sm:$0xff]
    %v1872 = vld [vmem:[%s0 + $0x80] sm:$0xff]
    %v1873 = vld [vmem:[%s0 + $0x88] sm:$0xff]
    %v1874 = vld [vmem:[%s0 + $0x90] sm:$0xff]
    %v1875 = vld [vmem:[%s0 + $0x98] sm:$0xff]
    %1896 = vrot.lane.b32.xlu0 %v1856, 60
    %v1897 = vpop.permute.xlu0 %1896
    %1898 = vrot.lane.b32.xlu0 %v1857, 60
    %v1899 = vpop.permute.xlu0 %1898
    %1900 = vrot.lane.b32.xlu0 %v1858, 60
    %v1901 = vpop.permute.xlu0 %1900
    %1902 = vrot.lane.b32.xlu0 %v1859, 60
    %v1903 = vpop.permute.xlu0 %1902
    %1904 = vrot.lane.b32.xlu0 %v1860, 60
    %v1905 = vpop.permute.xlu0 %1904
    %1906 = vrot.lane.b32.xlu0 %v1861, 60
    %v1907 = vpop.permute.xlu0 %1906
    %1908 = vrot.lane.b32.xlu0 %v1862, 60
    %v1909 = vpop.permute.xlu0 %1908
    %1910 = vrot.lane.b32.xlu0 %v1863, 60
    %v1911 = vpop.permute.xlu0 %1910
    %1912 = vrot.lane.b32.xlu0 %v1864, 60
    %v1913 = vpop.permute.xlu0 %1912
    %1914 = vrot.lane.b32.xlu0 %v1865, 60
    %v1915 = vpop.permute.xlu0 %1914
    %1916 = vrot.lane.b32.xlu0 %v1866, 60
    %v1917 = vpop.permute.xlu0 %1916
    %1918 = vrot.lane.b32.xlu0 %v1867, 60
    %v1919 = vpop.permute.xlu0 %1918
    %1920 = vrot.lane.b32.xlu0 %v1868, 60
    %v1921 = vpop.permute.xlu0 %1920
    %1922 = vrot.lane.b32.xlu0 %v1869, 60
    %v1923 = vpop.permute.xlu0 %1922
    %1924 = vrot.lane.b32.xlu0 %v1870, 60
    %v1925 = vpop.permute.xlu0 %1924
    %1926 = vrot.lane.b32.xlu0 %v1871, 60
    %v1927 = vpop.permute.xlu0 %1926
    %1928 = vrot.lane.b32.xlu0 %v1872, 60
    %v1929 = vpop.permute.xlu0 %1928
    %1930 = vrot.lane.b32.xlu0 %v1873, 60
    %v1931 = vpop.permute.xlu0 %1930
    %1932 = vrot.lane.b32.xlu0 %v1874, 60
    %v1933 = vpop.permute.xlu0 %1932
    %1934 = vrot.lane.b32.xlu0 %v1875, 60
    %v1935 = vpop.permute.xlu0 %1934
    %vm1936 = vcmask 490496
    %v1937 = vsel %vm1936, %v1897, %v1899
    %v1938 = vsel %vm1936, %v1899, %v1901
    %v1939 = vsel %vm1936, %v1901, %v1903
    %v1940 = vsel %vm1936, %v1903, %v1905
    %v1941 = vsel %vm1936, %v1905, %v1907
    %v1942 = vsel %vm1936, %v1907, %v1909
    %v1943 = vsel %vm1936, %v1909, %v1911
    %v1944 = vsel %vm1936, %v1911, %v1913
    %v1945 = vsel %vm1936, %v1913, %v1915
    %v1946 = vsel %vm1936, %v1915, %v1917
    %v1947 = vsel %vm1936, %v1917, %v1919
    %v1948 = vsel %vm1936, %v1919, %v1921
    %v1949 = vsel %vm1936, %v1921, %v1923
    %v1950 = vsel %vm1936, %v1923, %v1925
    %v1951 = vsel %vm1936, %v1925, %v1927
    %v1952 = vsel %vm1936, %v1927, %v1929
    %v1953 = vsel %vm1936, %v1929, %v1931
    %v1954 = vsel %vm1936, %v1931, %v1933
    %v1955 = vsel %vm1936, %v1933, %v1935
    %1975 = vst [vmem:[#allocation2 + $0x850] sm:$0xff] %v1937
    %1976 = vst [vmem:[#allocation2 + $0x858] sm:$0xff] %v1938
    %1977 = vst [vmem:[#allocation2 + $0x860] sm:$0xff] %v1939
    %1978 = vst [vmem:[#allocation2 + $0x868] sm:$0xff] %v1940
    %1979 = vst [vmem:[#allocation2 + $0x870] sm:$0xff] %v1941
    %1980 = vst [vmem:[#allocation2 + $0x878] sm:$0xff] %v1942
    %1981 = vst [vmem:[#allocation2 + $0x880] sm:$0xff] %v1943
    %1982 = vst [vmem:[#allocation2 + $0x888] sm:$0xff] %v1944
    %1983 = vst [vmem:[#allocation2 + $0x890] sm:$0xff] %v1945
    %1984 = vst [vmem:[#allocation2 + $0x898] sm:$0xff] %v1946
    %1985 = vst [vmem:[#allocation2 + $0x8a0] sm:$0xff] %v1947
    %1986 = vst [vmem:[#allocation2 + $0x8a8] sm:$0xff] %v1948
    %1987 = vst [vmem:[#allocation2 + $0x8b0] sm:$0xff] %v1949
    %1988 = vst [vmem:[#allocation2 + $0x8b8] sm:$0xff] %v1950
    %1989 = vst [vmem:[#allocation2 + $0x8c0] sm:$0xff] %v1951
    %1990 = vst [vmem:[#allocation2 + $0x8c8] sm:$0xff] %v1952
    %1991 = vst [vmem:[#allocation2 + $0x8d0] sm:$0xff] %v1953
    %1992 = vst [vmem:[#allocation2 + $0x8d8] sm:$0xff] %v1954
    %1993 = vst.msk [vmem:[#allocation2 + $0x8e0] sm:$0xff] %vm80, %v1955
    %v1994 = vld [vmem:[%s0] sm:$0xff]
    %v1995 = vld [vmem:[%s0 + $0x8] sm:$0xff]
    %v1996 = vld [vmem:[%s0 + $0x10] sm:$0xff]
    %v1997 = vld [vmem:[%s0 + $0x18] sm:$0xff]
    %v1998 = vld [vmem:[%s0 + $0x20] sm:$0xff]
    %v1999 = vld [vmem:[%s0 + $0x28] sm:$0xff]
    %v2000 = vld [vmem:[%s0 + $0x30] sm:$0xff]
    %v2001 = vld [vmem:[%s0 + $0x38] sm:$0xff]
    %v2002 = vld [vmem:[%s0 + $0x40] sm:$0xff]
    %v2003 = vld [vmem:[%s0 + $0x48] sm:$0xff]
    %v2004 = vld [vmem:[%s0 + $0x50] sm:$0xff]
    %v2005 = vld [vmem:[%s0 + $0x58] sm:$0xff]
    %v2006 = vld [vmem:[%s0 + $0x60] sm:$0xff]
    %v2007 = vld [vmem:[%s0 + $0x68] sm:$0xff]
    %v2008 = vld [vmem:[%s0 + $0x70] sm:$0xff]
    %v2009 = vld [vmem:[%s0 + $0x78] sm:$0xff]
    %v2010 = vld [vmem:[%s0 + $0x80] sm:$0xff]
    %v2011 = vld [vmem:[%s0 + $0x88] sm:$0xff]
    %v2012 = vld [vmem:[%s0 + $0x90] sm:$0xff]
    %v2013 = vld [vmem:[%s0 + $0x98] sm:$0xff]
    %2034 = vrot.lane.b32.xlu0 %v1994, 32
    %v2035 = vpop.permute.xlu0 %2034
    %2036 = vrot.lane.b32.xlu0 %v1995, 32
    %v2037 = vpop.permute.xlu0 %2036
    %2038 = vrot.lane.b32.xlu0 %v1996, 32
    %v2039 = vpop.permute.xlu0 %2038
    %2040 = vrot.lane.b32.xlu0 %v1997, 32
    %v2041 = vpop.permute.xlu0 %2040
    %2042 = vrot.lane.b32.xlu0 %v1998, 32
    %v2043 = vpop.permute.xlu0 %2042
    %2044 = vrot.lane.b32.xlu0 %v1999, 32
    %v2045 = vpop.permute.xlu0 %2044
    %2046 = vrot.lane.b32.xlu0 %v2000, 32
    %v2047 = vpop.permute.xlu0 %2046
    %2048 = vrot.lane.b32.xlu0 %v2001, 32
    %v2049 = vpop.permute.xlu0 %2048
    %2050 = vrot.lane.b32.xlu0 %v2002, 32
    %v2051 = vpop.permute.xlu0 %2050
    %2052 = vrot.lane.b32.xlu0 %v2003, 32
    %v2053 = vpop.permute.xlu0 %2052
    %2054 = vrot.lane.b32.xlu0 %v2004, 32
    %v2055 = vpop.permute.xlu0 %2054
    %2056 = vrot.lane.b32.xlu0 %v2005, 32
    %v2057 = vpop.permute.xlu0 %2056
    %2058 = vrot.lane.b32.xlu0 %v2006, 32
    %v2059 = vpop.permute.xlu0 %2058
    %2060 = vrot.lane.b32.xlu0 %v2007, 32
    %v2061 = vpop.permute.xlu0 %2060
    %2062 = vrot.lane.b32.xlu0 %v2008, 32
    %v2063 = vpop.permute.xlu0 %2062
    %2064 = vrot.lane.b32.xlu0 %v2009, 32
    %v2065 = vpop.permute.xlu0 %2064
    %2066 = vrot.lane.b32.xlu0 %v2010, 32
    %v2067 = vpop.permute.xlu0 %2066
    %2068 = vrot.lane.b32.xlu0 %v2011, 32
    %v2069 = vpop.permute.xlu0 %2068
    %2070 = vrot.lane.b32.xlu0 %v2012, 32
    %v2071 = vpop.permute.xlu0 %2070
    %2072 = vrot.lane.b32.xlu0 %v2013, 32
    %v2073 = vpop.permute.xlu0 %2072
    %vm2074 = vcmask 261120
    %v2075 = vsel %vm2074, %v2035, %v2037
    %v2076 = vsel %vm2074, %v2037, %v2039
    %v2077 = vsel %vm2074, %v2039, %v2041
    %v2078 = vsel %vm2074, %v2041, %v2043
    %v2079 = vsel %vm2074, %v2043, %v2045
    %v2080 = vsel %vm2074, %v2045, %v2047
    %v2081 = vsel %vm2074, %v2047, %v2049
    %v2082 = vsel %vm2074, %v2049, %v2051
    %v2083 = vsel %vm2074, %v2051, %v2053
    %v2084 = vsel %vm2074, %v2053, %v2055
    %v2085 = vsel %vm2074, %v2055, %v2057
    %v2086 = vsel %vm2074, %v2057, %v2059
    %v2087 = vsel %vm2074, %v2059, %v2061
    %v2088 = vsel %vm2074, %v2061, %v2063
    %v2089 = vsel %vm2074, %v2063, %v2065
    %v2090 = vsel %vm2074, %v2065, %v2067
    %v2091 = vsel %vm2074, %v2067, %v2069
    %v2092 = vsel %vm2074, %v2069, %v2071
    %v2093 = vsel %vm2074, %v2071, %v2073
    %2113 = vst [vmem:[#allocation2 + $0x8e8] sm:$0xff] %v2075
    %2114 = vst [vmem:[#allocation2 + $0x8f0] sm:$0xff] %v2076
    %2115 = vst [vmem:[#allocation2 + $0x8f8] sm:$0xff] %v2077
    %2116 = vst [vmem:[#allocation2 + $0x900] sm:$0xff] %v2078
    %2117 = vst [vmem:[#allocation2 + $0x908] sm:$0xff] %v2079
    %2118 = vst [vmem:[#allocation2 + $0x910] sm:$0xff] %v2080
    %2119 = vst [vmem:[#allocation2 + $0x918] sm:$0xff] %v2081
    %2120 = vst [vmem:[#allocation2 + $0x920] sm:$0xff] %v2082
    %2121 = vst [vmem:[#allocation2 + $0x928] sm:$0xff] %v2083
    %2122 = vst [vmem:[#allocation2 + $0x930] sm:$0xff] %v2084
    %2123 = vst [vmem:[#allocation2 + $0x938] sm:$0xff] %v2085
    %2124 = vst [vmem:[#allocation2 + $0x940] sm:$0xff] %v2086
    %2125 = vst [vmem:[#allocation2 + $0x948] sm:$0xff] %v2087
    %2126 = vst [vmem:[#allocation2 + $0x950] sm:$0xff] %v2088
    %2127 = vst [vmem:[#allocation2 + $0x958] sm:$0xff] %v2089
    %2128 = vst [vmem:[#allocation2 + $0x960] sm:$0xff] %v2090
    %2129 = vst [vmem:[#allocation2 + $0x968] sm:$0xff] %v2091
    %2130 = vst [vmem:[#allocation2 + $0x970] sm:$0xff] %v2092
    %2131 = vst.msk [vmem:[#allocation2 + $0x978] sm:$0xff] %vm80, %v2093
    %v2132 = vld [vmem:[%s0] sm:$0xff]
    %v2133 = vld [vmem:[%s0 + $0x8] sm:$0xff]
    %v2134 = vld [vmem:[%s0 + $0x10] sm:$0xff]
    %v2135 = vld [vmem:[%s0 + $0x18] sm:$0xff]
    %v2136 = vld [vmem:[%s0 + $0x20] sm:$0xff]
    %v2137 = vld [vmem:[%s0 + $0x28] sm:$0xff]
    %v2138 = vld [vmem:[%s0 + $0x30] sm:$0xff]
    %v2139 = vld [vmem:[%s0 + $0x38] sm:$0xff]
    %v2140 = vld [vmem:[%s0 + $0x40] sm:$0xff]
    %v2141 = vld [vmem:[%s0 + $0x48] sm:$0xff]
    %v2142 = vld [vmem:[%s0 + $0x50] sm:$0xff]
    %v2143 = vld [vmem:[%s0 + $0x58] sm:$0xff]
    %v2144 = vld [vmem:[%s0 + $0x60] sm:$0xff]
    %v2145 = vld [vmem:[%s0 + $0x68] sm:$0xff]
    %v2146 = vld [vmem:[%s0 + $0x70] sm:$0xff]
    %v2147 = vld [vmem:[%s0 + $0x78] sm:$0xff]
    %v2148 = vld [vmem:[%s0 + $0x80] sm:$0xff]
    %v2149 = vld [vmem:[%s0 + $0x88] sm:$0xff]
    %v2150 = vld [vmem:[%s0 + $0x90] sm:$0xff]
    %v2151 = vld [vmem:[%s0 + $0x98] sm:$0xff]
    %2172 = vrot.lane.b32.xlu0 %v2132, 31
    %v2173 = vpop.permute.xlu0 %2172
    %2174 = vrot.lane.b32.xlu0 %v2133, 31
    %v2175 = vpop.permute.xlu0 %2174
    %2176 = vrot.lane.b32.xlu0 %v2134, 31
    %v2177 = vpop.permute.xlu0 %2176
    %2178 = vrot.lane.b32.xlu0 %v2135, 31
    %v2179 = vpop.permute.xlu0 %2178
    %2180 = vrot.lane.b32.xlu0 %v2136, 31
    %v2181 = vpop.permute.xlu0 %2180
    %2182 = vrot.lane.b32.xlu0 %v2137, 31
    %v2183 = vpop.permute.xlu0 %2182
    %2184 = vrot.lane.b32.xlu0 %v2138, 31
    %v2185 = vpop.permute.xlu0 %2184
    %2186 = vrot.lane.b32.xlu0 %v2139, 31
    %v2187 = vpop.permute.xlu0 %2186
    %2188 = vrot.lane.b32.xlu0 %v2140, 31
    %v2189 = vpop.permute.xlu0 %2188
    %2190 = vrot.lane.b32.xlu0 %v2141, 31
    %v2191 = vpop.permute.xlu0 %2190
    %2192 = vrot.lane.b32.xlu0 %v2142, 31
    %v2193 = vpop.permute.xlu0 %2192
    %2194 = vrot.lane.b32.xlu0 %v2143, 31
    %v2195 = vpop.permute.xlu0 %2194
    %2196 = vrot.lane.b32.xlu0 %v2144, 31
    %v2197 = vpop.permute.xlu0 %2196
    %2198 = vrot.lane.b32.xlu0 %v2145, 31
    %v2199 = vpop.permute.xlu0 %2198
    %2200 = vrot.lane.b32.xlu0 %v2146, 31
    %v2201 = vpop.permute.xlu0 %2200
    %2202 = vrot.lane.b32.xlu0 %v2147, 31
    %v2203 = vpop.permute.xlu0 %2202
    %2204 = vrot.lane.b32.xlu0 %v2148, 31
    %v2205 = vpop.permute.xlu0 %2204
    %2206 = vrot.lane.b32.xlu0 %v2149, 31
    %v2207 = vpop.permute.xlu0 %2206
    %2208 = vrot.lane.b32.xlu0 %v2150, 31
    %v2209 = vpop.permute.xlu0 %2208
    %2210 = vrot.lane.b32.xlu0 %v2151, 31
    %v2211 = vpop.permute.xlu0 %2210
    %vm2212 = vcmask 252928
    %v2213 = vsel %vm2212, %v2173, %v2175
    %v2214 = vsel %vm2212, %v2175, %v2177
    %v2215 = vsel %vm2212, %v2177, %v2179
    %v2216 = vsel %vm2212, %v2179, %v2181
    %v2217 = vsel %vm2212, %v2181, %v2183
    %v2218 = vsel %vm2212, %v2183, %v2185
    %v2219 = vsel %vm2212, %v2185, %v2187
    %v2220 = vsel %vm2212, %v2187, %v2189
    %v2221 = vsel %vm2212, %v2189, %v2191
    %v2222 = vsel %vm2212, %v2191, %v2193
    %v2223 = vsel %vm2212, %v2193, %v2195
    %v2224 = vsel %vm2212, %v2195, %v2197
    %v2225 = vsel %vm2212, %v2197, %v2199
    %v2226 = vsel %vm2212, %v2199, %v2201
    %v2227 = vsel %vm2212, %v2201, %v2203
    %v2228 = vsel %vm2212, %v2203, %v2205
    %v2229 = vsel %vm2212, %v2205, %v2207
    %v2230 = vsel %vm2212, %v2207, %v2209
    %v2231 = vsel %vm2212, %v2209, %v2211
    %2251 = vst [vmem:[#allocation2 + $0x980] sm:$0xff] %v2213
    %2252 = vst [vmem:[#allocation2 + $0x988] sm:$0xff] %v2214
    %2253 = vst [vmem:[#allocation2 + $0x990] sm:$0xff] %v2215
    %2254 = vst [vmem:[#allocation2 + $0x998] sm:$0xff] %v2216
    %2255 = vst [vmem:[#allocation2 + $0x9a0] sm:$0xff] %v2217
    %2256 = vst [vmem:[#allocation2 + $0x9a8] sm:$0xff] %v2218
    %2257 = vst [vmem:[#allocation2 + $0x9b0] sm:$0xff] %v2219
    %2258 = vst [vmem:[#allocation2 + $0x9b8] sm:$0xff] %v2220
    %2259 = vst [vmem:[#allocation2 + $0x9c0] sm:$0xff] %v2221
    %2260 = vst [vmem:[#allocation2 + $0x9c8] sm:$0xff] %v2222
    %2261 = vst [vmem:[#allocation2 + $0x9d0] sm:$0xff] %v2223
    %2262 = vst [vmem:[#allocation2 + $0x9d8] sm:$0xff] %v2224
    %2263 = vst [vmem:[#allocation2 + $0x9e0] sm:$0xff] %v2225
    %2264 = vst [vmem:[#allocation2 + $0x9e8] sm:$0xff] %v2226
    %2265 = vst [vmem:[#allocation2 + $0x9f0] sm:$0xff] %v2227
    %2266 = vst [vmem:[#allocation2 + $0x9f8] sm:$0xff] %v2228
    %2267 = vst [vmem:[#allocation2 + $0xa00] sm:$0xff] %v2229
    %2268 = vst [vmem:[#allocation2 + $0xa08] sm:$0xff] %v2230
    %2269 = vst.msk [vmem:[#allocation2 + $0xa10] sm:$0xff] %vm80, %v2231
    %v2270 = vld [vmem:[%s0] sm:$0xff]
    %v2271 = vld [vmem:[%s0 + $0x8] sm:$0xff]
    %v2272 = vld [vmem:[%s0 + $0x10] sm:$0xff]
    %v2273 = vld [vmem:[%s0 + $0x18] sm:$0xff]
    %v2274 = vld [vmem:[%s0 + $0x20] sm:$0xff]
    %v2275 = vld [vmem:[%s0 + $0x28] sm:$0xff]
    %v2276 = vld [vmem:[%s0 + $0x30] sm:$0xff]
    %v2277 = vld [vmem:[%s0 + $0x38] sm:$0xff]
    %v2278 = vld [vmem:[%s0 + $0x40] sm:$0xff]
    %v2279 = vld [vmem:[%s0 + $0x48] sm:$0xff]
    %v2280 = vld [vmem:[%s0 + $0x50] sm:$0xff]
    %v2281 = vld [vmem:[%s0 + $0x58] sm:$0xff]
    %v2282 = vld [vmem:[%s0 + $0x60] sm:$0xff]
    %v2283 = vld [vmem:[%s0 + $0x68] sm:$0xff]
    %v2284 = vld [vmem:[%s0 + $0x70] sm:$0xff]
    %v2285 = vld [vmem:[%s0 + $0x78] sm:$0xff]
    %v2286 = vld [vmem:[%s0 + $0x80] sm:$0xff]
    %v2287 = vld [vmem:[%s0 + $0x88] sm:$0xff]
    %v2288 = vld [vmem:[%s0 + $0x90] sm:$0xff]
    %v2289 = vld [vmem:[%s0 + $0x98] sm:$0xff]
    %2310 = vrot.lane.b32.xlu0 %v2270, 30
    %v2311 = vpop.permute.xlu0 %2310
    %2312 = vrot.lane.b32.xlu0 %v2271, 30
    %v2313 = vpop.permute.xlu0 %2312
    %2314 = vrot.lane.b32.xlu0 %v2272, 30
    %v2315 = vpop.permute.xlu0 %2314
    %2316 = vrot.lane.b32.xlu0 %v2273, 30
    %v2317 = vpop.permute.xlu0 %2316
    %2318 = vrot.lane.b32.xlu0 %v2274, 30
    %v2319 = vpop.permute.xlu0 %2318
    %2320 = vrot.lane.b32.xlu0 %v2275, 30
    %v2321 = vpop.permute.xlu0 %2320
    %2322 = vrot.lane.b32.xlu0 %v2276, 30
    %v2323 = vpop.permute.xlu0 %2322
    %2324 = vrot.lane.b32.xlu0 %v2277, 30
    %v2325 = vpop.permute.xlu0 %2324
    %2326 = vrot.lane.b32.xlu0 %v2278, 30
    %v2327 = vpop.permute.xlu0 %2326
    %2328 = vrot.lane.b32.xlu0 %v2279, 30
    %v2329 = vpop.permute.xlu0 %2328
    %2330 = vrot.lane.b32.xlu0 %v2280, 30
    %v2331 = vpop.permute.xlu0 %2330
    %2332 = vrot.lane.b32.xlu0 %v2281, 30
    %v2333 = vpop.permute.xlu0 %2332
    %2334 = vrot.lane.b32.xlu0 %v2282, 30
    %v2335 = vpop.permute.xlu0 %2334
    %2336 = vrot.lane.b32.xlu0 %v2283, 30
    %v2337 = vpop.permute.xlu0 %2336
    %2338 = vrot.lane.b32.xlu0 %v2284, 30
    %v2339 = vpop.permute.xlu0 %2338
    %2340 = vrot.lane.b32.xlu0 %v2285, 30
    %v2341 = vpop.permute.xlu0 %2340
    %2342 = vrot.lane.b32.xlu0 %v2286, 30
    %v2343 = vpop.permute.xlu0 %2342
    %2344 = vrot.lane.b32.xlu0 %v2287, 30
    %v2345 = vpop.permute.xlu0 %2344
    %2346 = vrot.lane.b32.xlu0 %v2288, 30
    %v2347 = vpop.permute.xlu0 %2346
    %2348 = vrot.lane.b32.xlu0 %v2289, 30
    %v2349 = vpop.permute.xlu0 %2348
    %vm2350 = vcmask 244736
    %v2351 = vsel %vm2350, %v2311, %v2313
    %v2352 = vsel %vm2350, %v2313, %v2315
    %v2353 = vsel %vm2350, %v2315, %v2317
    %v2354 = vsel %vm2350, %v2317, %v2319
    %v2355 = vsel %vm2350, %v2319, %v2321
    %v2356 = vsel %vm2350, %v2321, %v2323
    %v2357 = vsel %vm2350, %v2323, %v2325
    %v2358 = vsel %vm2350, %v2325, %v2327
    %v2359 = vsel %vm2350, %v2327, %v2329
    %v2360 = vsel %vm2350, %v2329, %v2331
    %v2361 = vsel %vm2350, %v2331, %v2333
    %v2362 = vsel %vm2350, %v2333, %v2335
    %v2363 = vsel %vm2350, %v2335, %v2337
    %v2364 = vsel %vm2350, %v2337, %v2339
    %v2365 = vsel %vm2350, %v2339, %v2341
    %v2366 = vsel %vm2350, %v2341, %v2343
    %v2367 = vsel %vm2350, %v2343, %v2345
    %v2368 = vsel %vm2350, %v2345, %v2347
    %v2369 = vsel %vm2350, %v2347, %v2349
    %2389 = vst [vmem:[#allocation2 + $0xa18] sm:$0xff] %v2351
    %2390 = vst [vmem:[#allocation2 + $0xa20] sm:$0xff] %v2352
    %2391 = vst [vmem:[#allocation2 + $0xa28] sm:$0xff] %v2353
    %2392 = vst [vmem:[#allocation2 + $0xa30] sm:$0xff] %v2354
    %2393 = vst [vmem:[#allocation2 + $0xa38] sm:$0xff] %v2355
    %2394 = vst [vmem:[#allocation2 + $0xa40] sm:$0xff] %v2356
    %2395 = vst [vmem:[#allocation2 + $0xa48] sm:$0xff] %v2357
    %2396 = vst [vmem:[#allocation2 + $0xa50] sm:$0xff] %v2358
    %2397 = vst [vmem:[#allocation2 + $0xa58] sm:$0xff] %v2359
    %2398 = vst [vmem:[#allocation2 + $0xa60] sm:$0xff] %v2360
    %2399 = vst [vmem:[#allocation2 + $0xa68] sm:$0xff] %v2361
    %2400 = vst [vmem:[#allocation2 + $0xa70] sm:$0xff] %v2362
    %2401 = vst [vmem:[#allocation2 + $0xa78] sm:$0xff] %v2363
    %2402 = vst [vmem:[#allocation2 + $0xa80] sm:$0xff] %v2364
    %2403 = vst [vmem:[#allocation2 + $0xa88] sm:$0xff] %v2365
    %2404 = vst [vmem:[#allocation2 + $0xa90] sm:$0xff] %v2366
    %2405 = vst [vmem:[#allocation2 + $0xa98] sm:$0xff] %v2367
    %2406 = vst [vmem:[#allocation2 + $0xaa0] sm:$0xff] %v2368
    %2407 = vst.msk [vmem:[#allocation2 + $0xaa8] sm:$0xff] %vm80, %v2369
    %v2408 = vld [vmem:[%s0] sm:$0xff]
    %v2409 = vld [vmem:[%s0 + $0x8] sm:$0xff]
    %v2410 = vld [vmem:[%s0 + $0x10] sm:$0xff]
    %v2411 = vld [vmem:[%s0 + $0x18] sm:$0xff]
    %v2412 = vld [vmem:[%s0 + $0x20] sm:$0xff]
    %v2413 = vld [vmem:[%s0 + $0x28] sm:$0xff]
    %v2414 = vld [vmem:[%s0 + $0x30] sm:$0xff]
    %v2415 = vld [vmem:[%s0 + $0x38] sm:$0xff]
    %v2416 = vld [vmem:[%s0 + $0x40] sm:$0xff]
    %v2417 = vld [vmem:[%s0 + $0x48] sm:$0xff]
    %v2418 = vld [vmem:[%s0 + $0x50] sm:$0xff]
    %v2419 = vld [vmem:[%s0 + $0x58] sm:$0xff]
    %v2420 = vld [vmem:[%s0 + $0x60] sm:$0xff]
    %v2421 = vld [vmem:[%s0 + $0x68] sm:$0xff]
    %v2422 = vld [vmem:[%s0 + $0x70] sm:$0xff]
    %v2423 = vld [vmem:[%s0 + $0x78] sm:$0xff]
    %v2424 = vld [vmem:[%s0 + $0x80] sm:$0xff]
    %v2425 = vld [vmem:[%s0 + $0x88] sm:$0xff]
    %v2426 = vld [vmem:[%s0 + $0x90] sm:$0xff]
    %v2427 = vld [vmem:[%s0 + $0x98] sm:$0xff]
    %2448 = vrot.lane.b32.xlu0 %v2408, 29
    %v2449 = vpop.permute.xlu0 %2448
    %2450 = vrot.lane.b32.xlu0 %v2409, 29
    %v2451 = vpop.permute.xlu0 %2450
    %2452 = vrot.lane.b32.xlu0 %v2410, 29
    %v2453 = vpop.permute.xlu0 %2452
    %2454 = vrot.lane.b32.xlu0 %v2411, 29
    %v2455 = vpop.permute.xlu0 %2454
    %2456 = vrot.lane.b32.xlu0 %v2412, 29
    %v2457 = vpop.permute.xlu0 %2456
    %2458 = vrot.lane.b32.xlu0 %v2413, 29
    %v2459 = vpop.permute.xlu0 %2458
    %2460 = vrot.lane.b32.xlu0 %v2414, 29
    %v2461 = vpop.permute.xlu0 %2460
    %2462 = vrot.lane.b32.xlu0 %v2415, 29
    %v2463 = vpop.permute.xlu0 %2462
    %2464 = vrot.lane.b32.xlu0 %v2416, 29
    %v2465 = vpop.permute.xlu0 %2464
    %2466 = vrot.lane.b32.xlu0 %v2417, 29
    %v2467 = vpop.permute.xlu0 %2466
    %2468 = vrot.lane.b32.xlu0 %v2418, 29
    %v2469 = vpop.permute.xlu0 %2468
    %2470 = vrot.lane.b32.xlu0 %v2419, 29
    %v2471 = vpop.permute.xlu0 %2470
    %2472 = vrot.lane.b32.xlu0 %v2420, 29
    %v2473 = vpop.permute.xlu0 %2472
    %2474 = vrot.lane.b32.xlu0 %v2421, 29
    %v2475 = vpop.permute.xlu0 %2474
    %2476 = vrot.lane.b32.xlu0 %v2422, 29
    %v2477 = vpop.permute.xlu0 %2476
    %2478 = vrot.lane.b32.xlu0 %v2423, 29
    %v2479 = vpop.permute.xlu0 %2478
    %2480 = vrot.lane.b32.xlu0 %v2424, 29
    %v2481 = vpop.permute.xlu0 %2480
    %2482 = vrot.lane.b32.xlu0 %v2425, 29
    %v2483 = vpop.permute.xlu0 %2482
    %2484 = vrot.lane.b32.xlu0 %v2426, 29
    %v2485 = vpop.permute.xlu0 %2484
    %2486 = vrot.lane.b32.xlu0 %v2427, 29
    %v2487 = vpop.permute.xlu0 %2486
    %vm2488 = vcmask 236544
    %v2489 = vsel %vm2488, %v2449, %v2451
    %v2490 = vsel %vm2488, %v2451, %v2453
    %v2491 = vsel %vm2488, %v2453, %v2455
    %v2492 = vsel %vm2488, %v2455, %v2457
    %v2493 = vsel %vm2488, %v2457, %v2459
    %v2494 = vsel %vm2488, %v2459, %v2461
    %v2495 = vsel %vm2488, %v2461, %v2463
    %v2496 = vsel %vm2488, %v2463, %v2465
    %v2497 = vsel %vm2488, %v2465, %v2467
    %v2498 = vsel %vm2488, %v2467, %v2469
    %v2499 = vsel %vm2488, %v2469, %v2471
    %v2500 = vsel %vm2488, %v2471, %v2473
    %v2501 = vsel %vm2488, %v2473, %v2475
    %v2502 = vsel %vm2488, %v2475, %v2477
    %v2503 = vsel %vm2488, %v2477, %v2479
    %v2504 = vsel %vm2488, %v2479, %v2481
    %v2505 = vsel %vm2488, %v2481, %v2483
    %v2506 = vsel %vm2488, %v2483, %v2485
    %v2507 = vsel %vm2488, %v2485, %v2487
    %2527 = vst [vmem:[#allocation2 + $0xab0] sm:$0xff] %v2489
    %2528 = vst [vmem:[#allocation2 + $0xab8] sm:$0xff] %v2490
    %2529 = vst [vmem:[#allocation2 + $0xac0] sm:$0xff] %v2491
    %2530 = vst [vmem:[#allocation2 + $0xac8] sm:$0xff] %v2492
    %2531 = vst [vmem:[#allocation2 + $0xad0] sm:$0xff] %v2493
    %2532 = vst [vmem:[#allocation2 + $0xad8] sm:$0xff] %v2494
    %2533 = vst [vmem:[#allocation2 + $0xae0] sm:$0xff] %v2495
    %2534 = vst [vmem:[#allocation2 + $0xae8] sm:$0xff] %v2496
    %2535 = vst [vmem:[#allocation2 + $0xaf0] sm:$0xff] %v2497
    %2536 = vst [vmem:[#allocation2 + $0xaf8] sm:$0xff] %v2498
    %2537 = vst [vmem:[#allocation2 + $0xb00] sm:$0xff] %v2499
    %2538 = vst [vmem:[#allocation2 + $0xb08] sm:$0xff] %v2500
    %2539 = vst [vmem:[#allocation2 + $0xb10] sm:$0xff] %v2501
    %2540 = vst [vmem:[#allocation2 + $0xb18] sm:$0xff] %v2502
    %2541 = vst [vmem:[#allocation2 + $0xb20] sm:$0xff] %v2503
    %2542 = vst [vmem:[#allocation2 + $0xb28] sm:$0xff] %v2504
    %2543 = vst [vmem:[#allocation2 + $0xb30] sm:$0xff] %v2505
    %2544 = vst [vmem:[#allocation2 + $0xb38] sm:$0xff] %v2506
    %2545 = vst.msk [vmem:[#allocation2 + $0xb40] sm:$0xff] %vm80, %v2507
    %v2546 = vld [vmem:[%s0] sm:$0xff]
    %v2547 = vld [vmem:[%s0 + $0x8] sm:$0xff]
    %v2548 = vld [vmem:[%s0 + $0x10] sm:$0xff]
    %v2549 = vld [vmem:[%s0 + $0x18] sm:$0xff]
    %v2550 = vld [vmem:[%s0 + $0x20] sm:$0xff]
    %v2551 = vld [vmem:[%s0 + $0x28] sm:$0xff]
    %v2552 = vld [vmem:[%s0 + $0x30] sm:$0xff]
    %v2553 = vld [vmem:[%s0 + $0x38] sm:$0xff]
    %v2554 = vld [vmem:[%s0 + $0x40] sm:$0xff]
    %v2555 = vld [vmem:[%s0 + $0x48] sm:$0xff]
    %v2556 = vld [vmem:[%s0 + $0x50] sm:$0xff]
    %v2557 = vld [vmem:[%s0 + $0x58] sm:$0xff]
    %v2558 = vld [vmem:[%s0 + $0x60] sm:$0xff]
    %v2559 = vld [vmem:[%s0 + $0x68] sm:$0xff]
    %v2560 = vld [vmem:[%s0 + $0x70] sm:$0xff]
    %v2561 = vld [vmem:[%s0 + $0x78] sm:$0xff]
    %v2562 = vld [vmem:[%s0 + $0x80] sm:$0xff]
    %v2563 = vld [vmem:[%s0 + $0x88] sm:$0xff]
    %v2564 = vld [vmem:[%s0 + $0x90] sm:$0xff]
    %v2565 = vld [vmem:[%s0 + $0x98] sm:$0xff]
    %2586 = vrot.lane.b32.xlu0 %v2546, 28
    %v2587 = vpop.permute.xlu0 %2586
    %2588 = vrot.lane.b32.xlu0 %v2547, 28
    %v2589 = vpop.permute.xlu0 %2588
    %2590 = vrot.lane.b32.xlu0 %v2548, 28
    %v2591 = vpop.permute.xlu0 %2590
    %2592 = vrot.lane.b32.xlu0 %v2549, 28
    %v2593 = vpop.permute.xlu0 %2592
    %2594 = vrot.lane.b32.xlu0 %v2550, 28
    %v2595 = vpop.permute.xlu0 %2594
    %2596 = vrot.lane.b32.xlu0 %v2551, 28
    %v2597 = vpop.permute.xlu0 %2596
    %2598 = vrot.lane.b32.xlu0 %v2552, 28
    %v2599 = vpop.permute.xlu0 %2598
    %2600 = vrot.lane.b32.xlu0 %v2553, 28
    %v2601 = vpop.permute.xlu0 %2600
    %2602 = vrot.lane.b32.xlu0 %v2554, 28
    %v2603 = vpop.permute.xlu0 %2602
    %2604 = vrot.lane.b32.xlu0 %v2555, 28
    %v2605 = vpop.permute.xlu0 %2604
    %2606 = vrot.lane.b32.xlu0 %v2556, 28
    %v2607 = vpop.permute.xlu0 %2606
    %2608 = vrot.lane.b32.xlu0 %v2557, 28
    %v2609 = vpop.permute.xlu0 %2608
    %2610 = vrot.lane.b32.xlu0 %v2558, 28
    %v2611 = vpop.permute.xlu0 %2610
    %2612 = vrot.lane.b32.xlu0 %v2559, 28
    %v2613 = vpop.permute.xlu0 %2612
    %2614 = vrot.lane.b32.xlu0 %v2560, 28
    %v2615 = vpop.permute.xlu0 %2614
    %2616 = vrot.lane.b32.xlu0 %v2561, 28
    %v2617 = vpop.permute.xlu0 %2616
    %2618 = vrot.lane.b32.xlu0 %v2562, 28
    %v2619 = vpop.permute.xlu0 %2618
    %2620 = vrot.lane.b32.xlu0 %v2563, 28
    %v2621 = vpop.permute.xlu0 %2620
    %2622 = vrot.lane.b32.xlu0 %v2564, 28
    %v2623 = vpop.permute.xlu0 %2622
    %2624 = vrot.lane.b32.xlu0 %v2565, 28
    %v2625 = vpop.permute.xlu0 %2624
    %vm2626 = vcmask 228352
    %v2627 = vsel %vm2626, %v2587, %v2589
    %v2628 = vsel %vm2626, %v2589, %v2591
    %v2629 = vsel %vm2626, %v2591, %v2593
    %v2630 = vsel %vm2626, %v2593, %v2595
    %v2631 = vsel %vm2626, %v2595, %v2597
    %v2632 = vsel %vm2626, %v2597, %v2599
    %v2633 = vsel %vm2626, %v2599, %v2601
    %v2634 = vsel %vm2626, %v2601, %v2603
    %v2635 = vsel %vm2626, %v2603, %v2605
    %v2636 = vsel %vm2626, %v2605, %v2607
    %v2637 = vsel %vm2626, %v2607, %v2609
    %v2638 = vsel %vm2626, %v2609, %v2611
    %v2639 = vsel %vm2626, %v2611, %v2613
    %v2640 = vsel %vm2626, %v2613, %v2615
    %v2641 = vsel %vm2626, %v2615, %v2617
    %v2642 = vsel %vm2626, %v2617, %v2619
    %v2643 = vsel %vm2626, %v2619, %v2621
    %v2644 = vsel %vm2626, %v2621, %v2623
    %v2645 = vsel %vm2626, %v2623, %v2625
    %2665 = vst [vmem:[#allocation2 + $0xb48] sm:$0xff] %v2627
    %2666 = vst [vmem:[#allocation2 + $0xb50] sm:$0xff] %v2628
    %2667 = vst [vmem:[#allocation2 + $0xb58] sm:$0xff] %v2629
    %2668 = vst [vmem:[#allocation2 + $0xb60] sm:$0xff] %v2630
    %2669 = vst [vmem:[#allocation2 + $0xb68] sm:$0xff] %v2631
    %2670 = vst [vmem:[#allocation2 + $0xb70] sm:$0xff] %v2632
    %2671 = vst [vmem:[#allocation2 + $0xb78] sm:$0xff] %v2633
    %2672 = vst [vmem:[#allocation2 + $0xb80] sm:$0xff] %v2634
    %2673 = vst [vmem:[#allocation2 + $0xb88] sm:$0xff] %v2635
    %2674 = vst [vmem:[#allocation2 + $0xb90] sm:$0xff] %v2636
    %2675 = vst [vmem:[#allocation2 + $0xb98] sm:$0xff] %v2637
    %2676 = vst [vmem:[#allocation2 + $0xba0] sm:$0xff] %v2638
    %2677 = vst [vmem:[#allocation2 + $0xba8] sm:$0xff] %v2639
    %2678 = vst [vmem:[#allocation2 + $0xbb0] sm:$0xff] %v2640
    %2679 = vst [vmem:[#allocation2 + $0xbb8] sm:$0xff] %v2641
    %2680 = vst [vmem:[#allocation2 + $0xbc0] sm:$0xff] %v2642
    %2681 = vst [vmem:[#allocation2 + $0xbc8] sm:$0xff] %v2643
    %2682 = vst [vmem:[#allocation2 + $0xbd0] sm:$0xff] %v2644
    %2683 = vst.msk [vmem:[#allocation2 + $0xbd8] sm:$0xff] %vm80, %v2645
    %v2684 = vld [vmem:[%s0 + $0x8] sm:$0xff]
    %v2685 = vld [vmem:[%s0 + $0x10] sm:$0xff]
    %v2686 = vld [vmem:[%s0 + $0x18] sm:$0xff]
    %v2687 = vld [vmem:[%s0 + $0x20] sm:$0xff]
    %v2688 = vld [vmem:[%s0 + $0x28] sm:$0xff]
    %v2689 = vld [vmem:[%s0 + $0x30] sm:$0xff]
    %v2690 = vld [vmem:[%s0 + $0x38] sm:$0xff]
    %v2691 = vld [vmem:[%s0 + $0x40] sm:$0xff]
    %v2692 = vld [vmem:[%s0 + $0x48] sm:$0xff]
    %v2693 = vld [vmem:[%s0 + $0x50] sm:$0xff]
    %v2694 = vld [vmem:[%s0 + $0x58] sm:$0xff]
    %v2695 = vld [vmem:[%s0 + $0x60] sm:$0xff]
    %v2696 = vld [vmem:[%s0 + $0x68] sm:$0xff]
    %v2697 = vld [vmem:[%s0 + $0x70] sm:$0xff]
    %v2698 = vld [vmem:[%s0 + $0x78] sm:$0xff]
    %v2699 = vld [vmem:[%s0 + $0x80] sm:$0xff]
    %v2700 = vld [vmem:[%s0 + $0x88] sm:$0xff]
    %v2701 = vld [vmem:[%s0 + $0x90] sm:$0xff]
    %v2702 = vld [vmem:[%s0 + $0x98] sm:$0xff]
    %2703 = vst [vmem:[#allocation2 + $0xbe0] sm:$0xff] %v2684
    %2704 = vst [vmem:[#allocation2 + $0xbe8] sm:$0xff] %v2685
    %2705 = vst [vmem:[#allocation2 + $0xbf0] sm:$0xff] %v2686
    %2706 = vst [vmem:[#allocation2 + $0xbf8] sm:$0xff] %v2687
    %2707 = vst [vmem:[#allocation2 + $0xc00] sm:$0xff] %v2688
    %2708 = vst [vmem:[#allocation2 + $0xc08] sm:$0xff] %v2689
    %2709 = vst [vmem:[#allocation2 + $0xc10] sm:$0xff] %v2690
    %2710 = vst [vmem:[#allocation2 + $0xc18] sm:$0xff] %v2691
    %2711 = vst [vmem:[#allocation2 + $0xc20] sm:$0xff] %v2692
    %2712 = vst [vmem:[#allocation2 + $0xc28] sm:$0xff] %v2693
    %2713 = vst [vmem:[#allocation2 + $0xc30] sm:$0xff] %v2694
    %2714 = vst [vmem:[#allocation2 + $0xc38] sm:$0xff] %v2695
    %2715 = vst [vmem:[#allocation2 + $0xc40] sm:$0xff] %v2696
    %2716 = vst [vmem:[#allocation2 + $0xc48] sm:$0xff] %v2697
    %2717 = vst [vmem:[#allocation2 + $0xc50] sm:$0xff] %v2698
    %2718 = vst [vmem:[#allocation2 + $0xc58] sm:$0xff] %v2699
    %2719 = vst [vmem:[#allocation2 + $0xc60] sm:$0xff] %v2700
    %2720 = vst [vmem:[#allocation2 + $0xc68] sm:$0xff] %v2701
    %2721 = vst.msk [vmem:[#allocation2 + $0xc70] sm:$0xff] %vm80, %v2702
    %v2722 = vld [vmem:[%s0 + $0x8] sm:$0xff]
    %v2723 = vld [vmem:[%s0 + $0x10] sm:$0xff]
    %v2724 = vld [vmem:[%s0 + $0x18] sm:$0xff]
    %v2725 = vld [vmem:[%s0 + $0x20] sm:$0xff]
    %v2726 = vld [vmem:[%s0 + $0x28] sm:$0xff]
    %v2727 = vld [vmem:[%s0 + $0x30] sm:$0xff]
    %v2728 = vld [vmem:[%s0 + $0x38] sm:$0xff]
    %v2729 = vld [vmem:[%s0 + $0x40] sm:$0xff]
    %v2730 = vld [vmem:[%s0 + $0x48] sm:$0xff]
    %v2731 = vld [vmem:[%s0 + $0x50] sm:$0xff]
    %v2732 = vld [vmem:[%s0 + $0x58] sm:$0xff]
    %v2733 = vld [vmem:[%s0 + $0x60] sm:$0xff]
    %v2734 = vld [vmem:[%s0 + $0x68] sm:$0xff]
    %v2735 = vld [vmem:[%s0 + $0x70] sm:$0xff]
    %v2736 = vld [vmem:[%s0 + $0x78] sm:$0xff]
    %v2737 = vld [vmem:[%s0 + $0x80] sm:$0xff]
    %v2738 = vld [vmem:[%s0 + $0x88] sm:$0xff]
    %v2739 = vld [vmem:[%s0 + $0x90] sm:$0xff]
    %v2740 = vld [vmem:[%s0 + $0x98] sm:$0xff]
    %2760 = vrot.lane.b32.xlu0 %v2722, 127
    %v2761 = vpop.permute.xlu0 %2760
    %2762 = vrot.lane.b32.xlu0 %v2723, 127
    %v2763 = vpop.permute.xlu0 %2762
    %2764 = vrot.lane.b32.xlu0 %v2724, 127
    %v2765 = vpop.permute.xlu0 %2764
    %2766 = vrot.lane.b32.xlu0 %v2725, 127
    %v2767 = vpop.permute.xlu0 %2766
    %2768 = vrot.lane.b32.xlu0 %v2726, 127
    %v2769 = vpop.permute.xlu0 %2768
    %2770 = vrot.lane.b32.xlu0 %v2727, 127
    %v2771 = vpop.permute.xlu0 %2770
    %2772 = vrot.lane.b32.xlu0 %v2728, 127
    %v2773 = vpop.permute.xlu0 %2772
    %2774 = vrot.lane.b32.xlu0 %v2729, 127
    %v2775 = vpop.permute.xlu0 %2774
    %2776 = vrot.lane.b32.xlu0 %v2730, 127
    %v2777 = vpop.permute.xlu0 %2776
    %2778 = vrot.lane.b32.xlu0 %v2731, 127
    %v2779 = vpop.permute.xlu0 %2778
    %2780 = vrot.lane.b32.xlu0 %v2732, 127
    %v2781 = vpop.permute.xlu0 %2780
    %2782 = vrot.lane.b32.xlu0 %v2733, 127
    %v2783 = vpop.permute.xlu0 %2782
    %2784 = vrot.lane.b32.xlu0 %v2734, 127
    %v2785 = vpop.permute.xlu0 %2784
    %2786 = vrot.lane.b32.xlu0 %v2735, 127
    %v2787 = vpop.permute.xlu0 %2786
    %2788 = vrot.lane.b32.xlu0 %v2736, 127
    %v2789 = vpop.permute.xlu0 %2788
    %2790 = vrot.lane.b32.xlu0 %v2737, 127
    %v2791 = vpop.permute.xlu0 %2790
    %2792 = vrot.lane.b32.xlu0 %v2738, 127
    %v2793 = vpop.permute.xlu0 %2792
    %2794 = vrot.lane.b32.xlu0 %v2739, 127
    %v2795 = vpop.permute.xlu0 %2794
    %2796 = vrot.lane.b32.xlu0 %v2740, 127
    %v2797 = vpop.permute.xlu0 %2796
    %v2798 = vsel %vm158, %v2761, %v2763
    %v2799 = vsel %vm158, %v2763, %v2765
    %v2800 = vsel %vm158, %v2765, %v2767
    %v2801 = vsel %vm158, %v2767, %v2769
    %v2802 = vsel %vm158, %v2769, %v2771
    %v2803 = vsel %vm158, %v2771, %v2773
    %v2804 = vsel %vm158, %v2773, %v2775
    %v2805 = vsel %vm158, %v2775, %v2777
    %v2806 = vsel %vm158, %v2777, %v2779
    %v2807 = vsel %vm158, %v2779, %v2781
    %v2808 = vsel %vm158, %v2781, %v2783
    %v2809 = vsel %vm158, %v2783, %v2785
    %v2810 = vsel %vm158, %v2785, %v2787
    %v2811 = vsel %vm158, %v2787, %v2789
    %v2812 = vsel %vm158, %v2789, %v2791
    %v2813 = vsel %vm158, %v2791, %v2793
    %v2814 = vsel %vm158, %v2793, %v2795
    %v2815 = vsel %vm158, %v2795, %v2797
    %2835 = vst [vmem:[#allocation2 + $0xc78] sm:$0xff] %v2798
    %2836 = vst [vmem:[#allocation2 + $0xc80] sm:$0xff] %v2799
    %2837 = vst [vmem:[#allocation2 + $0xc88] sm:$0xff] %v2800
    %2838 = vst [vmem:[#allocation2 + $0xc90] sm:$0xff] %v2801
    %2839 = vst [vmem:[#allocation2 + $0xc98] sm:$0xff] %v2802
    %2840 = vst [vmem:[#allocation2 + $0xca0] sm:$0xff] %v2803
    %2841 = vst [vmem:[#allocation2 + $0xca8] sm:$0xff] %v2804
    %2842 = vst [vmem:[#allocation2 + $0xcb0] sm:$0xff] %v2805
    %2843 = vst [vmem:[#allocation2 + $0xcb8] sm:$0xff] %v2806
    %2844 = vst [vmem:[#allocation2 + $0xcc0] sm:$0xff] %v2807
    %2845 = vst [vmem:[#allocation2 + $0xcc8] sm:$0xff] %v2808
    %2846 = vst [vmem:[#allocation2 + $0xcd0] sm:$0xff] %v2809
    %2847 = vst [vmem:[#allocation2 + $0xcd8] sm:$0xff] %v2810
    %2848 = vst [vmem:[#allocation2 + $0xce0] sm:$0xff] %v2811
    %2849 = vst [vmem:[#allocation2 + $0xce8] sm:$0xff] %v2812
    %2850 = vst [vmem:[#allocation2 + $0xcf0] sm:$0xff] %v2813
    %2851 = vst [vmem:[#allocation2 + $0xcf8] sm:$0xff] %v2814
    %2852 = vst [vmem:[#allocation2 + $0xd00] sm:$0xff] %v2815
    %2853 = vst.msk [vmem:[#allocation2 + $0xd08] sm:$0xff] %vm80, %v2797
    %v2854 = vld [vmem:[%s0 + $0x8] sm:$0xff]
    %v2855 = vld [vmem:[%s0 + $0x10] sm:$0xff]
    %v2856 = vld [vmem:[%s0 + $0x18] sm:$0xff]
    %v2857 = vld [vmem:[%s0 + $0x20] sm:$0xff]
    %v2858 = vld [vmem:[%s0 + $0x28] sm:$0xff]
    %v2859 = vld [vmem:[%s0 + $0x30] sm:$0xff]
    %v2860 = vld [vmem:[%s0 + $0x38] sm:$0xff]
    %v2861 = vld [vmem:[%s0 + $0x40] sm:$0xff]
    %v2862 = vld [vmem:[%s0 + $0x48] sm:$0xff]
    %v2863 = vld [vmem:[%s0 + $0x50] sm:$0xff]
    %v2864 = vld [vmem:[%s0 + $0x58] sm:$0xff]
    %v2865 = vld [vmem:[%s0 + $0x60] sm:$0xff]
    %v2866 = vld [vmem:[%s0 + $0x68] sm:$0xff]
    %v2867 = vld [vmem:[%s0 + $0x70] sm:$0xff]
    %v2868 = vld [vmem:[%s0 + $0x78] sm:$0xff]
    %v2869 = vld [vmem:[%s0 + $0x80] sm:$0xff]
    %v2870 = vld [vmem:[%s0 + $0x88] sm:$0xff]
    %v2871 = vld [vmem:[%s0 + $0x90] sm:$0xff]
    %v2872 = vld [vmem:[%s0 + $0x98] sm:$0xff]
    %2892 = vrot.lane.b32.xlu0 %v2854, 126
    %v2893 = vpop.permute.xlu0 %2892
    %2894 = vrot.lane.b32.xlu0 %v2855, 126
    %v2895 = vpop.permute.xlu0 %2894
    %2896 = vrot.lane.b32.xlu0 %v2856, 126
    %v2897 = vpop.permute.xlu0 %2896
    %2898 = vrot.lane.b32.xlu0 %v2857, 126
    %v2899 = vpop.permute.xlu0 %2898
    %2900 = vrot.lane.b32.xlu0 %v2858, 126
    %v2901 = vpop.permute.xlu0 %2900
    %2902 = vrot.lane.b32.xlu0 %v2859, 126
    %v2903 = vpop.permute.xlu0 %2902
    %2904 = vrot.lane.b32.xlu0 %v2860, 126
    %v2905 = vpop.permute.xlu0 %2904
    %2906 = vrot.lane.b32.xlu0 %v2861, 126
    %v2907 = vpop.permute.xlu0 %2906
    %2908 = vrot.lane.b32.xlu0 %v2862, 126
    %v2909 = vpop.permute.xlu0 %2908
    %2910 = vrot.lane.b32.xlu0 %v2863, 126
    %v2911 = vpop.permute.xlu0 %2910
    %2912 = vrot.lane.b32.xlu0 %v2864, 126
    %v2913 = vpop.permute.xlu0 %2912
    %2914 = vrot.lane.b32.xlu0 %v2865, 126
    %v2915 = vpop.permute.xlu0 %2914
    %2916 = vrot.lane.b32.xlu0 %v2866, 126
    %v2917 = vpop.permute.xlu0 %2916
    %2918 = vrot.lane.b32.xlu0 %v2867, 126
    %v2919 = vpop.permute.xlu0 %2918
    %2920 = vrot.lane.b32.xlu0 %v2868, 126
    %v2921 = vpop.permute.xlu0 %2920
    %2922 = vrot.lane.b32.xlu0 %v2869, 126
    %v2923 = vpop.permute.xlu0 %2922
    %2924 = vrot.lane.b32.xlu0 %v2870, 126
    %v2925 = vpop.permute.xlu0 %2924
    %2926 = vrot.lane.b32.xlu0 %v2871, 126
    %v2927 = vpop.permute.xlu0 %2926
    %2928 = vrot.lane.b32.xlu0 %v2872, 126
    %v2929 = vpop.permute.xlu0 %2928
    %v2930 = vsel %vm291, %v2893, %v2895
    %v2931 = vsel %vm291, %v2895, %v2897
    %v2932 = vsel %vm291, %v2897, %v2899
    %v2933 = vsel %vm291, %v2899, %v2901
    %v2934 = vsel %vm291, %v2901, %v2903
    %v2935 = vsel %vm291, %v2903, %v2905
    %v2936 = vsel %vm291, %v2905, %v2907
    %v2937 = vsel %vm291, %v2907, %v2909
    %v2938 = vsel %vm291, %v2909, %v2911
    %v2939 = vsel %vm291, %v2911, %v2913
    %v2940 = vsel %vm291, %v2913, %v2915
    %v2941 = vsel %vm291, %v2915, %v2917
    %v2942 = vsel %vm291, %v2917, %v2919
    %v2943 = vsel %vm291, %v2919, %v2921
    %v2944 = vsel %vm291, %v2921, %v2923
    %v2945 = vsel %vm291, %v2923, %v2925
    %v2946 = vsel %vm291, %v2925, %v2927
    %v2947 = vsel %vm291, %v2927, %v2929
    %2967 = vst [vmem:[#allocation2 + $0xd10] sm:$0xff] %v2930
    %2968 = vst [vmem:[#allocation2 + $0xd18] sm:$0xff] %v2931
    %2969 = vst [vmem:[#allocation2 + $0xd20] sm:$0xff] %v2932
    %2970 = vst [vmem:[#allocation2 + $0xd28] sm:$0xff] %v2933
    %2971 = vst [vmem:[#allocation2 + $0xd30] sm:$0xff] %v2934
    %2972 = vst [vmem:[#allocation2 + $0xd38] sm:$0xff] %v2935
    %2973 = vst [vmem:[#allocation2 + $0xd40] sm:$0xff] %v2936
    %2974 = vst [vmem:[#allocation2 + $0xd48] sm:$0xff] %v2937
    %2975 = vst [vmem:[#allocation2 + $0xd50] sm:$0xff] %v2938
    %2976 = vst [vmem:[#allocation2 + $0xd58] sm:$0xff] %v2939
    %2977 = vst [vmem:[#allocation2 + $0xd60] sm:$0xff] %v2940
    %2978 = vst [vmem:[#allocation2 + $0xd68] sm:$0xff] %v2941
    %2979 = vst [vmem:[#allocation2 + $0xd70] sm:$0xff] %v2942
    %2980 = vst [vmem:[#allocation2 + $0xd78] sm:$0xff] %v2943
    %2981 = vst [vmem:[#allocation2 + $0xd80] sm:$0xff] %v2944
    %2982 = vst [vmem:[#allocation2 + $0xd88] sm:$0xff] %v2945
    %2983 = vst [vmem:[#allocation2 + $0xd90] sm:$0xff] %v2946
    %2984 = vst [vmem:[#allocation2 + $0xd98] sm:$0xff] %v2947
    %2985 = vst.msk [vmem:[#allocation2 + $0xda0] sm:$0xff] %vm80, %v2929
    %v2986 = vld [vmem:[%s0 + $0x8] sm:$0xff]
    %v2987 = vld [vmem:[%s0 + $0x10] sm:$0xff]
    %v2988 = vld [vmem:[%s0 + $0x18] sm:$0xff]
    %v2989 = vld [vmem:[%s0 + $0x20] sm:$0xff]
    %v2990 = vld [vmem:[%s0 + $0x28] sm:$0xff]
    %v2991 = vld [vmem:[%s0 + $0x30] sm:$0xff]
    %v2992 = vld [vmem:[%s0 + $0x38] sm:$0xff]
    %v2993 = vld [vmem:[%s0 + $0x40] sm:$0xff]
    %v2994 = vld [vmem:[%s0 + $0x48] sm:$0xff]
    %v2995 = vld [vmem:[%s0 + $0x50] sm:$0xff]
    %v2996 = vld [vmem:[%s0 + $0x58] sm:$0xff]
    %v2997 = vld [vmem:[%s0 + $0x60] sm:$0xff]
    %v2998 = vld [vmem:[%s0 + $0x68] sm:$0xff]
    %v2999 = vld [vmem:[%s0 + $0x70] sm:$0xff]
    %v3000 = vld [vmem:[%s0 + $0x78] sm:$0xff]
    %v3001 = vld [vmem:[%s0 + $0x80] sm:$0xff]
    %v3002 = vld [vmem:[%s0 + $0x88] sm:$0xff]
    %v3003 = vld [vmem:[%s0 + $0x90] sm:$0xff]
    %v3004 = vld [vmem:[%s0 + $0x98] sm:$0xff]
    %3024 = vrot.lane.b32.xlu0 %v2986, 125
    %v3025 = vpop.permute.xlu0 %3024
    %3026 = vrot.lane.b32.xlu0 %v2987, 125
    %v3027 = vpop.permute.xlu0 %3026
    %3028 = vrot.lane.b32.xlu0 %v2988, 125
    %v3029 = vpop.permute.xlu0 %3028
    %3030 = vrot.lane.b32.xlu0 %v2989, 125
    %v3031 = vpop.permute.xlu0 %3030
    %3032 = vrot.lane.b32.xlu0 %v2990, 125
    %v3033 = vpop.permute.xlu0 %3032
    %3034 = vrot.lane.b32.xlu0 %v2991, 125
    %v3035 = vpop.permute.xlu0 %3034
    %3036 = vrot.lane.b32.xlu0 %v2992, 125
    %v3037 = vpop.permute.xlu0 %3036
    %3038 = vrot.lane.b32.xlu0 %v2993, 125
    %v3039 = vpop.permute.xlu0 %3038
    %3040 = vrot.lane.b32.xlu0 %v2994, 125
    %v3041 = vpop.permute.xlu0 %3040
    %3042 = vrot.lane.b32.xlu0 %v2995, 125
    %v3043 = vpop.permute.xlu0 %3042
    %3044 = vrot.lane.b32.xlu0 %v2996, 125
    %v3045 = vpop.permute.xlu0 %3044
    %3046 = vrot.lane.b32.xlu0 %v2997, 125
    %v3047 = vpop.permute.xlu0 %3046
    %3048 = vrot.lane.b32.xlu0 %v2998, 125
    %v3049 = vpop.permute.xlu0 %3048
    %3050 = vrot.lane.b32.xlu0 %v2999, 125
    %v3051 = vpop.permute.xlu0 %3050
    %3052 = vrot.lane.b32.xlu0 %v3000, 125
    %v3053 = vpop.permute.xlu0 %3052
    %3054 = vrot.lane.b32.xlu0 %v3001, 125
    %v3055 = vpop.permute.xlu0 %3054
    %3056 = vrot.lane.b32.xlu0 %v3002, 125
    %v3057 = vpop.permute.xlu0 %3056
    %3058 = vrot.lane.b32.xlu0 %v3003, 125
    %v3059 = vpop.permute.xlu0 %3058
    %3060 = vrot.lane.b32.xlu0 %v3004, 125
    %v3061 = vpop.permute.xlu0 %3060
    %v3062 = vsel %vm424, %v3025, %v3027
    %v3063 = vsel %vm424, %v3027, %v3029
    %v3064 = vsel %vm424, %v3029, %v3031
    %v3065 = vsel %vm424, %v3031, %v3033
    %v3066 = vsel %vm424, %v3033, %v3035
    %v3067 = vsel %vm424, %v3035, %v3037
    %v3068 = vsel %vm424, %v3037, %v3039
    %v3069 = vsel %vm424, %v3039, %v3041
    %v3070 = vsel %vm424, %v3041, %v3043
    %v3071 = vsel %vm424, %v3043, %v3045
    %v3072 = vsel %vm424, %v3045, %v3047
    %v3073 = vsel %vm424, %v3047, %v3049
    %v3074 = vsel %vm424, %v3049, %v3051
    %v3075 = vsel %vm424, %v3051, %v3053
    %v3076 = vsel %vm424, %v3053, %v3055
    %v3077 = vsel %vm424, %v3055, %v3057
    %v3078 = vsel %vm424, %v3057, %v3059
    %v3079 = vsel %vm424, %v3059, %v3061
    %3099 = vst [vmem:[#allocation2 + $0xda8] sm:$0xff] %v3062
    %3100 = vst [vmem:[#allocation2 + $0xdb0] sm:$0xff] %v3063
    %3101 = vst [vmem:[#allocation2 + $0xdb8] sm:$0xff] %v3064
    %3102 = vst [vmem:[#allocation2 + $0xdc0] sm:$0xff] %v3065
    %3103 = vst [vmem:[#allocation2 + $0xdc8] sm:$0xff] %v3066
    %3104 = vst [vmem:[#allocation2 + $0xdd0] sm:$0xff] %v3067
    %3105 = vst [vmem:[#allocation2 + $0xdd8] sm:$0xff] %v3068
    %3106 = vst [vmem:[#allocation2 + $0xde0] sm:$0xff] %v3069
    %3107 = vst [vmem:[#allocation2 + $0xde8] sm:$0xff] %v3070
    %3108 = vst [vmem:[#allocation2 + $0xdf0] sm:$0xff] %v3071
    %3109 = vst [vmem:[#allocation2 + $0xdf8] sm:$0xff] %v3072
    %3110 = vst [vmem:[#allocation2 + $0xe00] sm:$0xff] %v3073
    %3111 = vst [vmem:[#allocation2 + $0xe08] sm:$0xff] %v3074
    %3112 = vst [vmem:[#allocation2 + $0xe10] sm:$0xff] %v3075
    %3113 = vst [vmem:[#allocation2 + $0xe18] sm:$0xff] %v3076
    %3114 = vst [vmem:[#allocation2 + $0xe20] sm:$0xff] %v3077
    %3115 = vst [vmem:[#allocation2 + $0xe28] sm:$0xff] %v3078
    %3116 = vst [vmem:[#allocation2 + $0xe30] sm:$0xff] %v3079
    %3117 = vst.msk [vmem:[#allocation2 + $0xe38] sm:$0xff] %vm80, %v3061
    %v3118 = vld [vmem:[%s0 + $0x8] sm:$0xff]
    %v3119 = vld [vmem:[%s0 + $0x10] sm:$0xff]
    %v3120 = vld [vmem:[%s0 + $0x18] sm:$0xff]
    %v3121 = vld [vmem:[%s0 + $0x20] sm:$0xff]
    %v3122 = vld [vmem:[%s0 + $0x28] sm:$0xff]
    %v3123 = vld [vmem:[%s0 + $0x30] sm:$0xff]
    %v3124 = vld [vmem:[%s0 + $0x38] sm:$0xff]
    %v3125 = vld [vmem:[%s0 + $0x40] sm:$0xff]
    %v3126 = vld [vmem:[%s0 + $0x48] sm:$0xff]
    %v3127 = vld [vmem:[%s0 + $0x50] sm:$0xff]
    %v3128 = vld [vmem:[%s0 + $0x58] sm:$0xff]
    %v3129 = vld [vmem:[%s0 + $0x60] sm:$0xff]
    %v3130 = vld [vmem:[%s0 + $0x68] sm:$0xff]
    %v3131 = vld [vmem:[%s0 + $0x70] sm:$0xff]
    %v3132 = vld [vmem:[%s0 + $0x78] sm:$0xff]
    %v3133 = vld [vmem:[%s0 + $0x80] sm:$0xff]
    %v3134 = vld [vmem:[%s0 + $0x88] sm:$0xff]
    %v3135 = vld [vmem:[%s0 + $0x90] sm:$0xff]
    %v3136 = vld [vmem:[%s0 + $0x98] sm:$0xff]
    %3156 = vrot.lane.b32.xlu0 %v3118, 124
    %v3157 = vpop.permute.xlu0 %3156
    %3158 = vrot.lane.b32.xlu0 %v3119, 124
    %v3159 = vpop.permute.xlu0 %3158
    %3160 = vrot.lane.b32.xlu0 %v3120, 124
    %v3161 = vpop.permute.xlu0 %3160
    %3162 = vrot.lane.b32.xlu0 %v3121, 124
    %v3163 = vpop.permute.xlu0 %3162
    %3164 = vrot.lane.b32.xlu0 %v3122, 124
    %v3165 = vpop.permute.xlu0 %3164
    %3166 = vrot.lane.b32.xlu0 %v3123, 124
    %v3167 = vpop.permute.xlu0 %3166
    %3168 = vrot.lane.b32.xlu0 %v3124, 124
    %v3169 = vpop.permute.xlu0 %3168
    %3170 = vrot.lane.b32.xlu0 %v3125, 124
    %v3171 = vpop.permute.xlu0 %3170
    %3172 = vrot.lane.b32.xlu0 %v3126, 124
    %v3173 = vpop.permute.xlu0 %3172
    %3174 = vrot.lane.b32.xlu0 %v3127, 124
    %v3175 = vpop.permute.xlu0 %3174
    %3176 = vrot.lane.b32.xlu0 %v3128, 124
    %v3177 = vpop.permute.xlu0 %3176
    %3178 = vrot.lane.b32.xlu0 %v3129, 124
    %v3179 = vpop.permute.xlu0 %3178
    %3180 = vrot.lane.b32.xlu0 %v3130, 124
    %v3181 = vpop.permute.xlu0 %3180
    %3182 = vrot.lane.b32.xlu0 %v3131, 124
    %v3183 = vpop.permute.xlu0 %3182
    %3184 = vrot.lane.b32.xlu0 %v3132, 124
    %v3185 = vpop.permute.xlu0 %3184
    %3186 = vrot.lane.b32.xlu0 %v3133, 124
    %v3187 = vpop.permute.xlu0 %3186
    %3188 = vrot.lane.b32.xlu0 %v3134, 124
    %v3189 = vpop.permute.xlu0 %3188
    %3190 = vrot.lane.b32.xlu0 %v3135, 124
    %v3191 = vpop.permute.xlu0 %3190
    %3192 = vrot.lane.b32.xlu0 %v3136, 124
    %v3193 = vpop.permute.xlu0 %3192
    %v3194 = vsel %vm557, %v3157, %v3159
    %v3195 = vsel %vm557, %v3159, %v3161
    %v3196 = vsel %vm557, %v3161, %v3163
    %v3197 = vsel %vm557, %v3163, %v3165
    %v3198 = vsel %vm557, %v3165, %v3167
    %v3199 = vsel %vm557, %v3167, %v3169
    %v3200 = vsel %vm557, %v3169, %v3171
    %v3201 = vsel %vm557, %v3171, %v3173
    %v3202 = vsel %vm557, %v3173, %v3175
    %v3203 = vsel %vm557, %v3175, %v3177
    %v3204 = vsel %vm557, %v3177, %v3179
    %v3205 = vsel %vm557, %v3179, %v3181
    %v3206 = vsel %vm557, %v3181, %v3183
    %v3207 = vsel %vm557, %v3183, %v3185
    %v3208 = vsel %vm557, %v3185, %v3187
    %v3209 = vsel %vm557, %v3187, %v3189
    %v3210 = vsel %vm557, %v3189, %v3191
    %v3211 = vsel %vm557, %v3191, %v3193
    %3231 = vst [vmem:[#allocation2 + $0xe40] sm:$0xff] %v3194
    %3232 = vst [vmem:[#allocation2 + $0xe48] sm:$0xff] %v3195
    %3233 = vst [vmem:[#allocation2 + $0xe50] sm:$0xff] %v3196
    %3234 = vst [vmem:[#allocation2 + $0xe58] sm:$0xff] %v3197
    %3235 = vst [vmem:[#allocation2 + $0xe60] sm:$0xff] %v3198
    %3236 = vst [vmem:[#allocation2 + $0xe68] sm:$0xff] %v3199
    %3237 = vst [vmem:[#allocation2 + $0xe70] sm:$0xff] %v3200
    %3238 = vst [vmem:[#allocation2 + $0xe78] sm:$0xff] %v3201
    %3239 = vst [vmem:[#allocation2 + $0xe80] sm:$0xff] %v3202
    %3240 = vst [vmem:[#allocation2 + $0xe88] sm:$0xff] %v3203
    %3241 = vst [vmem:[#allocation2 + $0xe90] sm:$0xff] %v3204
    %3242 = vst [vmem:[#allocation2 + $0xe98] sm:$0xff] %v3205
    %3243 = vst [vmem:[#allocation2 + $0xea0] sm:$0xff] %v3206
    %3244 = vst [vmem:[#allocation2 + $0xea8] sm:$0xff] %v3207
    %3245 = vst [vmem:[#allocation2 + $0xeb0] sm:$0xff] %v3208
    %3246 = vst [vmem:[#allocation2 + $0xeb8] sm:$0xff] %v3209
    %3247 = vst [vmem:[#allocation2 + $0xec0] sm:$0xff] %v3210
    %3248 = vst [vmem:[#allocation2 + $0xec8] sm:$0xff] %v3211
    %3249 = vst.msk [vmem:[#allocation2 + $0xed0] sm:$0xff] %vm80, %v3193
    %v3250 = vld [vmem:[%s1] sm:$0xff]
    %v3251 = vld [vmem:[#allocation2] sm:$0xff]
    %v3252 = vld [vmem:[#allocation2 + $0x8] sm:$0xff]
    %v3253 = vld [vmem:[#allocation2 + $0x10] sm:$0xff]
    %v3254 = vld [vmem:[#allocation2 + $0x18] sm:$0xff]
    %v3255 = vld [vmem:[#allocation2 + $0x20] sm:$0xff]
    %v3256 = vld [vmem:[#allocation2 + $0x28] sm:$0xff]
    %v3257 = vld [vmem:[#allocation2 + $0x30] sm:$0xff]
    %v3258 = vld [vmem:[#allocation2 + $0x38] sm:$0xff]
    %v3259 = vld [vmem:[#allocation2 + $0x40] sm:$0xff]
    %v3260 = vld [vmem:[#allocation2 + $0x48] sm:$0xff]
    %v3261 = vld [vmem:[#allocation2 + $0x50] sm:$0xff]
    %v3262 = vld [vmem:[#allocation2 + $0x58] sm:$0xff]
    %v3263 = vld [vmem:[#allocation2 + $0x60] sm:$0xff]
    %v3264 = vld [vmem:[#allocation2 + $0x68] sm:$0xff]
    %v3265 = vld [vmem:[#allocation2 + $0x70] sm:$0xff]
    %v3266 = vld [vmem:[#allocation2 + $0x78] sm:$0xff]
    %v3267 = vld [vmem:[#allocation2 + $0x80] sm:$0xff]
    %v3268 = vld [vmem:[#allocation2 + $0x88] sm:$0xff]
    %v3269 = vld [vmem:[#allocation2 + $0x90] sm:$0xff]
    %v3270 = vld [vmem:[#allocation2 + $0x98] sm:$0xff]
    %v3271 = vld [vmem:[#allocation2 + $0xa0] sm:$0xff]
    %v3272 = vld [vmem:[#allocation2 + $0xa8] sm:$0xff]
    %v3273 = vld [vmem:[#allocation2 + $0xb0] sm:$0xff]
    %v3274 = vld [vmem:[#allocation2 + $0xb8] sm:$0xff]
    %v3275 = vld [vmem:[#allocation2 + $0xc0] sm:$0xff]
    %v3276 = vld [vmem:[#allocation2 + $0xc8] sm:$0xff]
    %v3277 = vld [vmem:[#allocation2 + $0xd0] sm:$0xff]
    %v3278 = vld [vmem:[#allocation2 + $0xd8] sm:$0xff]
    %v3279 = vld [vmem:[#allocation2 + $0xe0] sm:$0xff]
    %v3280 = vld [vmem:[#allocation2 + $0xe8] sm:$0xff]
    %v3281 = vld [vmem:[#allocation2 + $0xf0] sm:$0xff]
    %v3282 = vld [vmem:[#allocation2 + $0xf8] sm:$0xff]
    %v3283 = vld [vmem:[#allocation2 + $0x100] sm:$0xff]
    %v3284 = vld [vmem:[#allocation2 + $0x108] sm:$0xff]
    %v3285 = vld [vmem:[#allocation2 + $0x110] sm:$0xff]
    %v3286 = vld [vmem:[#allocation2 + $0x118] sm:$0xff]
    %v3287 = vld [vmem:[#allocation2 + $0x120] sm:$0xff]
    %v3288 = vld [vmem:[#allocation2 + $0x128] sm:$0xff]
    %v3289 = vld [vmem:[#allocation2 + $0x130] sm:$0xff]
    %v3290 = vld [vmem:[#allocation2 + $0x138] sm:$0xff]
    %v3291 = vld [vmem:[#allocation2 + $0x140] sm:$0xff]
    %v3292 = vld [vmem:[#allocation2 + $0x148] sm:$0xff]
    %v3293 = vld [vmem:[#allocation2 + $0x150] sm:$0xff]
    %v3294 = vld [vmem:[#allocation2 + $0x158] sm:$0xff]
    %v3295 = vld [vmem:[#allocation2 + $0x160] sm:$0xff]
    %v3296 = vld [vmem:[#allocation2 + $0x168] sm:$0xff]
    %v3297 = vld [vmem:[#allocation2 + $0x170] sm:$0xff]
    %v3298 = vld [vmem:[#allocation2 + $0x178] sm:$0xff]
    %v3299 = vld [vmem:[#allocation2 + $0x180] sm:$0xff]
    %v3300 = vld [vmem:[#allocation2 + $0x188] sm:$0xff]
    %v3301 = vld [vmem:[#allocation2 + $0x190] sm:$0xff]
    %v3302 = vld [vmem:[#allocation2 + $0x198] sm:$0xff]
    %v3303 = vld [vmem:[#allocation2 + $0x1a0] sm:$0xff]
    %v3304 = vld [vmem:[#allocation2 + $0x1a8] sm:$0xff]
    %v3305 = vld [vmem:[#allocation2 + $0x1b0] sm:$0xff]
    %v3306 = vld [vmem:[#allocation2 + $0x1b8] sm:$0xff]
    %v3307 = vld [vmem:[#allocation2 + $0x1c0] sm:$0xff]
    %v3308 = vld [vmem:[#allocation2 + $0x1c8] sm:$0xff]
    %v3309 = vld [vmem:[#allocation2 + $0x1d0] sm:$0xff]
    %v3310 = vld [vmem:[#allocation2 + $0x1d8] sm:$0xff]
    %v3311 = vld [vmem:[#allocation2 + $0x1e0] sm:$0xff]
    %v3312 = vld [vmem:[#allocation2 + $0x1e8] sm:$0xff]
    %v3313 = vld [vmem:[#allocation2 + $0x1f0] sm:$0xff]
    %v3314 = vld [vmem:[#allocation2 + $0x1f8] sm:$0xff]
    %v3315 = vld [vmem:[#allocation2 + $0x200] sm:$0xff]
    %v3316 = vld [vmem:[#allocation2 + $0x208] sm:$0xff]
    %v3317 = vld [vmem:[#allocation2 + $0x210] sm:$0xff]
    %v3318 = vld [vmem:[#allocation2 + $0x218] sm:$0xff]
    %v3319 = vld [vmem:[#allocation2 + $0x220] sm:$0xff]
    %v3320 = vld [vmem:[#allocation2 + $0x228] sm:$0xff]
    %v3321 = vld [vmem:[#allocation2 + $0x230] sm:$0xff]
    %v3322 = vld [vmem:[#allocation2 + $0x238] sm:$0xff]
    %v3323 = vld [vmem:[#allocation2 + $0x240] sm:$0xff]
    %v3324 = vld [vmem:[#allocation2 + $0x248] sm:$0xff]
    %v3325 = vld [vmem:[#allocation2 + $0x250] sm:$0xff]
    %v3326 = vld [vmem:[#allocation2 + $0x258] sm:$0xff]
    %v3327 = vld [vmem:[#allocation2 + $0x260] sm:$0xff]
    %v3328 = vld [vmem:[#allocation2 + $0x268] sm:$0xff]
    %v3329 = vld [vmem:[#allocation2 + $0x270] sm:$0xff]
    %v3330 = vld [vmem:[#allocation2 + $0x278] sm:$0xff]
    %v3331 = vld [vmem:[#allocation2 + $0x280] sm:$0xff]
    %v3332 = vld [vmem:[#allocation2 + $0x288] sm:$0xff]
    %v3333 = vld [vmem:[#allocation2 + $0x290] sm:$0xff]
    %v3334 = vld [vmem:[#allocation2 + $0x298] sm:$0xff]
    %v3335 = vld [vmem:[#allocation2 + $0x2a0] sm:$0xff]
    %v3336 = vld [vmem:[#allocation2 + $0x2a8] sm:$0xff]
    %v3337 = vld [vmem:[#allocation2 + $0x2b0] sm:$0xff]
    %v3338 = vld [vmem:[#allocation2 + $0x2b8] sm:$0xff]
    %v3339 = vld [vmem:[#allocation2 + $0x2c0] sm:$0xff]
    %v3340 = vld [vmem:[#allocation2 + $0x2c8] sm:$0xff]
    %v3341 = vld [vmem:[#allocation2 + $0x2d0] sm:$0xff]
    %v3342 = vld [vmem:[#allocation2 + $0x2d8] sm:$0xff]
    %v3343 = vld [vmem:[#allocation2 + $0x2e0] sm:$0xff]
    %v3344 = vld [vmem:[#allocation2 + $0x2e8] sm:$0xff]
    %v3345 = vld [vmem:[#allocation2 + $0x2f0] sm:$0xff]
    %v3346 = vld [vmem:[#allocation2 + $0x2f8] sm:$0xff]
    %v3347 = vld [vmem:[#allocation2 + $0x300] sm:$0xff]
    %v3348 = vld [vmem:[#allocation2 + $0x308] sm:$0xff]
    %v3349 = vld [vmem:[#allocation2 + $0x310] sm:$0xff]
    %v3350 = vld [vmem:[#allocation2 + $0x318] sm:$0xff]
    %v3351 = vld [vmem:[#allocation2 + $0x320] sm:$0xff]
    %v3352 = vld [vmem:[#allocation2 + $0x328] sm:$0xff]
    %v3353 = vld [vmem:[#allocation2 + $0x330] sm:$0xff]
    %v3354 = vld [vmem:[#allocation2 + $0x338] sm:$0xff]
    %v3355 = vld [vmem:[#allocation2 + $0x340] sm:$0xff]
    %v3356 = vld [vmem:[#allocation2 + $0x348] sm:$0xff]
    %v3357 = vld [vmem:[#allocation2 + $0x350] sm:$0xff]
    %v3358 = vld [vmem:[#allocation2 + $0x358] sm:$0xff]
    %v3359 = vld [vmem:[#allocation2 + $0x360] sm:$0xff]
    %v3360 = vld [vmem:[#allocation2 + $0x368] sm:$0xff]
    %v3361 = vld [vmem:[#allocation2 + $0x370] sm:$0xff]
    %v3362 = vld [vmem:[#allocation2 + $0x378] sm:$0xff]
    %v3363 = vld [vmem:[#allocation2 + $0x380] sm:$0xff]
    %v3364 = vld [vmem:[#allocation2 + $0x388] sm:$0xff]
    %v3365 = vld [vmem:[#allocation2 + $0x390] sm:$0xff]
    %v3366 = vld [vmem:[#allocation2 + $0x398] sm:$0xff]
    %v3367 = vld [vmem:[#allocation2 + $0x3a0] sm:$0xff]
    %v3368 = vld [vmem:[#allocation2 + $0x3a8] sm:$0xff]
    %v3369 = vld [vmem:[#allocation2 + $0x3b0] sm:$0xff]
    %v3370 = vld [vmem:[#allocation2 + $0x3b8] sm:$0xff]
    %v3371 = vld [vmem:[#allocation2 + $0x3c0] sm:$0xff]
    %v3372 = vld [vmem:[#allocation2 + $0x3c8] sm:$0xff]
    %v3373 = vld [vmem:[#allocation2 + $0x3d0] sm:$0xff]
    %v3374 = vld [vmem:[#allocation2 + $0x3d8] sm:$0xff]
    %v3375 = vld [vmem:[#allocation2 + $0x3e0] sm:$0xff]
    %v3376 = vld [vmem:[#allocation2 + $0x3e8] sm:$0xff]
    %v3377 = vld [vmem:[#allocation2 + $0x3f0] sm:$0xff]
    %v3378 = vld [vmem:[#allocation2 + $0x3f8] sm:$0xff]
    %v3379 = vld [vmem:[#allocation2 + $0x400] sm:$0xff]
    %v3380 = vld [vmem:[#allocation2 + $0x408] sm:$0xff]
    %v3381 = vld [vmem:[#allocation2 + $0x410] sm:$0xff]
    %v3382 = vld [vmem:[#allocation2 + $0x418] sm:$0xff]
    %v3383 = vld [vmem:[#allocation2 + $0x420] sm:$0xff]
    %v3384 = vld [vmem:[#allocation2 + $0x428] sm:$0xff]
    %v3385 = vld [vmem:[#allocation2 + $0x430] sm:$0xff]
    %v3386 = vld [vmem:[#allocation2 + $0x438] sm:$0xff]
    %v3387 = vld [vmem:[#allocation2 + $0x440] sm:$0xff]
    %v3388 = vld [vmem:[#allocation2 + $0x448] sm:$0xff]
    %v3389 = vld [vmem:[#allocation2 + $0x450] sm:$0xff]
    %v3390 = vld [vmem:[#allocation2 + $0x458] sm:$0xff]
    %v3391 = vld [vmem:[#allocation2 + $0x460] sm:$0xff]
    %v3392 = vld [vmem:[#allocation2 + $0x468] sm:$0xff]
    %v3393 = vld [vmem:[#allocation2 + $0x470] sm:$0xff]
    %v3394 = vld [vmem:[#allocation2 + $0x478] sm:$0xff]
    %v3395 = vld [vmem:[#allocation2 + $0x480] sm:$0xff]
    %v3396 = vld [vmem:[#allocation2 + $0x488] sm:$0xff]
    %v3397 = vld [vmem:[#allocation2 + $0x490] sm:$0xff]
    %v3398 = vld [vmem:[#allocation2 + $0x498] sm:$0xff]
    %v3399 = vld [vmem:[#allocation2 + $0x4a0] sm:$0xff]
    %v3400 = vld [vmem:[#allocation2 + $0x4a8] sm:$0xff]
    %v3401 = vld [vmem:[#allocation2 + $0x4b0] sm:$0xff]
    %v3402 = vld [vmem:[#allocation2 + $0x4b8] sm:$0xff]
    %v3403 = vld [vmem:[#allocation2 + $0x4c0] sm:$0xff]
    %v3404 = vld [vmem:[#allocation2 + $0x4c8] sm:$0xff]
    %v3405 = vld [vmem:[#allocation2 + $0x4d0] sm:$0xff]
    %v3406 = vld [vmem:[#allocation2 + $0x4d8] sm:$0xff]
    %v3407 = vld [vmem:[#allocation2 + $0x4e0] sm:$0xff]
    %v3408 = vld [vmem:[#allocation2 + $0x4e8] sm:$0xff]
    %v3409 = vld [vmem:[#allocation2 + $0x4f0] sm:$0xff]
    %v3410 = vld [vmem:[#allocation2 + $0x4f8] sm:$0xff]
    %v3411 = vld [vmem:[#allocation2 + $0x500] sm:$0xff]
    %v3412 = vld [vmem:[#allocation2 + $0x508] sm:$0xff]
    %v3413 = vld [vmem:[#allocation2 + $0x510] sm:$0xff]
    %v3414 = vld [vmem:[#allocation2 + $0x518] sm:$0xff]
    %v3415 = vld [vmem:[#allocation2 + $0x520] sm:$0xff]
    %v3416 = vld [vmem:[#allocation2 + $0x528] sm:$0xff]
    %v3417 = vld [vmem:[#allocation2 + $0x530] sm:$0xff]
    %v3418 = vld [vmem:[#allocation2 + $0x538] sm:$0xff]
    %v3419 = vld [vmem:[#allocation2 + $0x540] sm:$0xff]
    %v3420 = vld [vmem:[#allocation2 + $0x548] sm:$0xff]
    %v3421 = vld [vmem:[#allocation2 + $0x550] sm:$0xff]
    %v3422 = vld [vmem:[#allocation2 + $0x558] sm:$0xff]
    %v3423 = vld [vmem:[#allocation2 + $0x560] sm:$0xff]
    %v3424 = vld [vmem:[#allocation2 + $0x568] sm:$0xff]
    %v3425 = vld [vmem:[#allocation2 + $0x570] sm:$0xff]
    %v3426 = vld [vmem:[#allocation2 + $0x578] sm:$0xff]
    %v3427 = vld [vmem:[#allocation2 + $0x580] sm:$0xff]
    %v3428 = vld [vmem:[#allocation2 + $0x588] sm:$0xff]
    %v3429 = vld [vmem:[#allocation2 + $0x590] sm:$0xff]
    %v3430 = vld [vmem:[#allocation2 + $0x598] sm:$0xff]
    %v3431 = vld [vmem:[#allocation2 + $0x5a0] sm:$0xff]
    %v3432 = vld [vmem:[#allocation2 + $0x5a8] sm:$0xff]
    %v3433 = vld [vmem:[#allocation2 + $0x5b0] sm:$0xff]
    %v3434 = vld [vmem:[#allocation2 + $0x5b8] sm:$0xff]
    %v3435 = vld [vmem:[#allocation2 + $0x5c0] sm:$0xff]
    %v3436 = vld [vmem:[#allocation2 + $0x5c8] sm:$0xff]
    %v3437 = vld [vmem:[#allocation2 + $0x5d0] sm:$0xff]
    %v3438 = vld [vmem:[#allocation2 + $0x5d8] sm:$0xff]
    %v3439 = vld [vmem:[#allocation2 + $0x5e0] sm:$0xff]
    %v3440 = vld [vmem:[#allocation2 + $0x5e8] sm:$0xff]
    %v3441 = vld [vmem:[#allocation2 + $0x5f0] sm:$0xff]
    %v3442 = vld [vmem:[#allocation2 + $0x5f8] sm:$0xff]
    %v3443 = vld [vmem:[#allocation2 + $0x600] sm:$0xff]
    %v3444 = vld [vmem:[#allocation2 + $0x608] sm:$0xff]
    %v3445 = vld [vmem:[#allocation2 + $0x610] sm:$0xff]
    %v3446 = vld [vmem:[#allocation2 + $0x618] sm:$0xff]
    %v3447 = vld [vmem:[#allocation2 + $0x620] sm:$0xff]
    %v3448 = vld [vmem:[#allocation2 + $0x628] sm:$0xff]
    %v3449 = vld [vmem:[#allocation2 + $0x630] sm:$0xff]
    %v3450 = vld [vmem:[#allocation2 + $0x638] sm:$0xff]
    %v3451 = vld [vmem:[#allocation2 + $0x640] sm:$0xff]
    %v3452 = vld [vmem:[#allocation2 + $0x648] sm:$0xff]
    %v3453 = vld [vmem:[#allocation2 + $0x650] sm:$0xff]
    %v3454 = vld [vmem:[#allocation2 + $0x658] sm:$0xff]
    %v3455 = vld [vmem:[#allocation2 + $0x660] sm:$0xff]
    %v3456 = vld [vmem:[#allocation2 + $0x668] sm:$0xff]
    %v3457 = vld [vmem:[#allocation2 + $0x670] sm:$0xff]
    %v3458 = vld [vmem:[#allocation2 + $0x678] sm:$0xff]
    %v3459 = vld [vmem:[#allocation2 + $0x680] sm:$0xff]
    %v3460 = vld [vmem:[#allocation2 + $0x688] sm:$0xff]
    %v3461 = vld [vmem:[#allocation2 + $0x690] sm:$0xff]
    %v3462 = vld [vmem:[#allocation2 + $0x698] sm:$0xff]
    %v3463 = vld [vmem:[#allocation2 + $0x6a0] sm:$0xff]
    %v3464 = vld [vmem:[#allocation2 + $0x6a8] sm:$0xff]
    %v3465 = vld [vmem:[#allocation2 + $0x6b0] sm:$0xff]
    %v3466 = vld [vmem:[#allocation2 + $0x6b8] sm:$0xff]
    %v3467 = vld [vmem:[#allocation2 + $0x6c0] sm:$0xff]
    %v3468 = vld [vmem:[#allocation2 + $0x6c8] sm:$0xff]
    %v3469 = vld [vmem:[#allocation2 + $0x6d0] sm:$0xff]
    %v3470 = vld [vmem:[#allocation2 + $0x6d8] sm:$0xff]
    %v3471 = vld [vmem:[#allocation2 + $0x6e0] sm:$0xff]
    %v3472 = vld [vmem:[#allocation2 + $0x6e8] sm:$0xff]
    %v3473 = vld [vmem:[#allocation2 + $0x6f0] sm:$0xff]
    %v3474 = vld [vmem:[#allocation2 + $0x6f8] sm:$0xff]
    %v3475 = vld [vmem:[#allocation2 + $0x700] sm:$0xff]
    %v3476 = vld [vmem:[#allocation2 + $0x708] sm:$0xff]
    %v3477 = vld [vmem:[#allocation2 + $0x710] sm:$0xff]
    %v3478 = vld [vmem:[#allocation2 + $0x718] sm:$0xff]
    %v3479 = vld [vmem:[#allocation2 + $0x720] sm:$0xff]
    %v3480 = vld [vmem:[#allocation2 + $0x728] sm:$0xff]
    %v3481 = vld [vmem:[#allocation2 + $0x730] sm:$0xff]
    %v3482 = vld [vmem:[#allocation2 + $0x738] sm:$0xff]
    %v3483 = vld [vmem:[#allocation2 + $0x740] sm:$0xff]
    %v3484 = vld [vmem:[#allocation2 + $0x748] sm:$0xff]
    %v3485 = vld [vmem:[#allocation2 + $0x750] sm:$0xff]
    %v3486 = vld [vmem:[#allocation2 + $0x758] sm:$0xff]
    %v3487 = vld [vmem:[#allocation2 + $0x760] sm:$0xff]
    %v3488 = vld [vmem:[#allocation2 + $0x768] sm:$0xff]
    %v3489 = vld [vmem:[#allocation2 + $0x770] sm:$0xff]
    %v3490 = vld [vmem:[#allocation2 + $0x778] sm:$0xff]
    %v3491 = vld [vmem:[#allocation2 + $0x780] sm:$0xff]
    %v3492 = vld [vmem:[#allocation2 + $0x788] sm:$0xff]
    %v3493 = vld [vmem:[#allocation2 + $0x790] sm:$0xff]
    %v3494 = vld [vmem:[#allocation2 + $0x798] sm:$0xff]
    %v3495 = vld [vmem:[#allocation2 + $0x7a0] sm:$0xff]
    %v3496 = vld [vmem:[#allocation2 + $0x7a8] sm:$0xff]
    %v3497 = vld [vmem:[#allocation2 + $0x7b0] sm:$0xff]
    %v3498 = vld [vmem:[#allocation2 + $0x7b8] sm:$0xff]
    %v3499 = vld [vmem:[#allocation2 + $0x7c0] sm:$0xff]
    %v3500 = vld [vmem:[#allocation2 + $0x7c8] sm:$0xff]
    %v3501 = vld [vmem:[#allocation2 + $0x7d0] sm:$0xff]
    %v3502 = vld [vmem:[#allocation2 + $0x7d8] sm:$0xff]
    %v3503 = vld [vmem:[#allocation2 + $0x7e0] sm:$0xff]
    %v3504 = vld [vmem:[#allocation2 + $0x7e8] sm:$0xff]
    %v3505 = vld [vmem:[#allocation2 + $0x7f0] sm:$0xff]
    %v3506 = vld [vmem:[#allocation2 + $0x7f8] sm:$0xff]
    %v3507 = vld [vmem:[#allocation2 + $0x800] sm:$0xff]
    %v3508 = vld [vmem:[#allocation2 + $0x808] sm:$0xff]
    %v3509 = vld [vmem:[#allocation2 + $0x810] sm:$0xff]
    %v3510 = vld [vmem:[#allocation2 + $0x818] sm:$0xff]
    %v3511 = vld [vmem:[#allocation2 + $0x820] sm:$0xff]
    %v3512 = vld [vmem:[#allocation2 + $0x828] sm:$0xff]
    %v3513 = vld [vmem:[#allocation2 + $0x830] sm:$0xff]
    %v3514 = vld [vmem:[#allocation2 + $0x838] sm:$0xff]
    %v3515 = vld [vmem:[#allocation2 + $0x840] sm:$0xff]
    %v3516 = vld [vmem:[#allocation2 + $0x848] sm:$0xff]
    %v3517 = vld [vmem:[#allocation2 + $0x850] sm:$0xff]
    %v3518 = vld [vmem:[#allocation2 + $0x858] sm:$0xff]
    %v3519 = vld [vmem:[#allocation2 + $0x860] sm:$0xff]
    %v3520 = vld [vmem:[#allocation2 + $0x868] sm:$0xff]
    %v3521 = vld [vmem:[#allocation2 + $0x870] sm:$0xff]
    %v3522 = vld [vmem:[#allocation2 + $0x878] sm:$0xff]
    %v3523 = vld [vmem:[#allocation2 + $0x880] sm:$0xff]
    %v3524 = vld [vmem:[#allocation2 + $0x888] sm:$0xff]
    %v3525 = vld [vmem:[#allocation2 + $0x890] sm:$0xff]
    %v3526 = vld [vmem:[#allocation2 + $0x898] sm:$0xff]
    %v3527 = vld [vmem:[#allocation2 + $0x8a0] sm:$0xff]
    %v3528 = vld [vmem:[#allocation2 + $0x8a8] sm:$0xff]
    %v3529 = vld [vmem:[#allocation2 + $0x8b0] sm:$0xff]
    %v3530 = vld [vmem:[#allocation2 + $0x8b8] sm:$0xff]
    %v3531 = vld [vmem:[#allocation2 + $0x8c0] sm:$0xff]
    %v3532 = vld [vmem:[#allocation2 + $0x8c8] sm:$0xff]
    %v3533 = vld [vmem:[#allocation2 + $0x8d0] sm:$0xff]
    %v3534 = vld [vmem:[#allocation2 + $0x8d8] sm:$0xff]
    %v3535 = vld [vmem:[#allocation2 + $0x8e0] sm:$0xff]
    %v3536 = vld [vmem:[#allocation2 + $0x8e8] sm:$0xff]
    %v3537 = vld [vmem:[#allocation2 + $0x8f0] sm:$0xff]
    %v3538 = vld [vmem:[#allocation2 + $0x8f8] sm:$0xff]
    %v3539 = vld [vmem:[#allocation2 + $0x900] sm:$0xff]
    %v3540 = vld [vmem:[#allocation2 + $0x908] sm:$0xff]
    %v3541 = vld [vmem:[#allocation2 + $0x910] sm:$0xff]
    %v3542 = vld [vmem:[#allocation2 + $0x918] sm:$0xff]
    %v3543 = vld [vmem:[#allocation2 + $0x920] sm:$0xff]
    %v3544 = vld [vmem:[#allocation2 + $0x928] sm:$0xff]
    %v3545 = vld [vmem:[#allocation2 + $0x930] sm:$0xff]
    %v3546 = vld [vmem:[#allocation2 + $0x938] sm:$0xff]
    %v3547 = vld [vmem:[#allocation2 + $0x940] sm:$0xff]
    %v3548 = vld [vmem:[#allocation2 + $0x948] sm:$0xff]
    %v3549 = vld [vmem:[#allocation2 + $0x950] sm:$0xff]
    %v3550 = vld [vmem:[#allocation2 + $0x958] sm:$0xff]
    %v3551 = vld [vmem:[#allocation2 + $0x960] sm:$0xff]
    %v3552 = vld [vmem:[#allocation2 + $0x968] sm:$0xff]
    %v3553 = vld [vmem:[#allocation2 + $0x970] sm:$0xff]
    %v3554 = vld [vmem:[#allocation2 + $0x978] sm:$0xff]
    %v3555 = vld [vmem:[#allocation2 + $0x980] sm:$0xff]
    %v3556 = vld [vmem:[#allocation2 + $0x988] sm:$0xff]
    %v3557 = vld [vmem:[#allocation2 + $0x990] sm:$0xff]
    %v3558 = vld [vmem:[#allocation2 + $0x998] sm:$0xff]
    %v3559 = vld [vmem:[#allocation2 + $0x9a0] sm:$0xff]
    %v3560 = vld [vmem:[#allocation2 + $0x9a8] sm:$0xff]
    %v3561 = vld [vmem:[#allocation2 + $0x9b0] sm:$0xff]
    %v3562 = vld [vmem:[#allocation2 + $0x9b8] sm:$0xff]
    %v3563 = vld [vmem:[#allocation2 + $0x9c0] sm:$0xff]
    %v3564 = vld [vmem:[#allocation2 + $0x9c8] sm:$0xff]
    %v3565 = vld [vmem:[#allocation2 + $0x9d0] sm:$0xff]
    %v3566 = vld [vmem:[#allocation2 + $0x9d8] sm:$0xff]
    %v3567 = vld [vmem:[#allocation2 + $0x9e0] sm:$0xff]
    %v3568 = vld [vmem:[#allocation2 + $0x9e8] sm:$0xff]
    %v3569 = vld [vmem:[#allocation2 + $0x9f0] sm:$0xff]
    %v3570 = vld [vmem:[#allocation2 + $0x9f8] sm:$0xff]
    %v3571 = vld [vmem:[#allocation2 + $0xa00] sm:$0xff]
    %v3572 = vld [vmem:[#allocation2 + $0xa08] sm:$0xff]
    %v3573 = vld [vmem:[#allocation2 + $0xa10] sm:$0xff]
    %v3574 = vld [vmem:[#allocation2 + $0xa18] sm:$0xff]
    %v3575 = vld [vmem:[#allocation2 + $0xa20] sm:$0xff]
    %v3576 = vld [vmem:[#allocation2 + $0xa28] sm:$0xff]
    %v3577 = vld [vmem:[#allocation2 + $0xa30] sm:$0xff]
    %v3578 = vld [vmem:[#allocation2 + $0xa38] sm:$0xff]
    %v3579 = vld [vmem:[#allocation2 + $0xa40] sm:$0xff]
    %v3580 = vld [vmem:[#allocation2 + $0xa48] sm:$0xff]
    %v3581 = vld [vmem:[#allocation2 + $0xa50] sm:$0xff]
    %v3582 = vld [vmem:[#allocation2 + $0xa58] sm:$0xff]
    %v3583 = vld [vmem:[#allocation2 + $0xa60] sm:$0xff]
    %v3584 = vld [vmem:[#allocation2 + $0xa68] sm:$0xff]
    %v3585 = vld [vmem:[#allocation2 + $0xa70] sm:$0xff]
    %v3586 = vld [vmem:[#allocation2 + $0xa78] sm:$0xff]
    %v3587 = vld [vmem:[#allocation2 + $0xa80] sm:$0xff]
    %v3588 = vld [vmem:[#allocation2 + $0xa88] sm:$0xff]
    %v3589 = vld [vmem:[#allocation2 + $0xa90] sm:$0xff]
    %v3590 = vld [vmem:[#allocation2 + $0xa98] sm:$0xff]
    %v3591 = vld [vmem:[#allocation2 + $0xaa0] sm:$0xff]
    %v3592 = vld [vmem:[#allocation2 + $0xaa8] sm:$0xff]
    %v3593 = vld [vmem:[#allocation2 + $0xab0] sm:$0xff]
    %v3594 = vld [vmem:[#allocation2 + $0xab8] sm:$0xff]
    %v3595 = vld [vmem:[#allocation2 + $0xac0] sm:$0xff]
    %v3596 = vld [vmem:[#allocation2 + $0xac8] sm:$0xff]
    %v3597 = vld [vmem:[#allocation2 + $0xad0] sm:$0xff]
    %v3598 = vld [vmem:[#allocation2 + $0xad8] sm:$0xff]
    %v3599 = vld [vmem:[#allocation2 + $0xae0] sm:$0xff]
    %v3600 = vld [vmem:[#allocation2 + $0xae8] sm:$0xff]
    %v3601 = vld [vmem:[#allocation2 + $0xaf0] sm:$0xff]
    %v3602 = vld [vmem:[#allocation2 + $0xaf8] sm:$0xff]
    %v3603 = vld [vmem:[#allocation2 + $0xb00] sm:$0xff]
    %v3604 = vld [vmem:[#allocation2 + $0xb08] sm:$0xff]
    %v3605 = vld [vmem:[#allocation2 + $0xb10] sm:$0xff]
    %v3606 = vld [vmem:[#allocation2 + $0xb18] sm:$0xff]
    %v3607 = vld [vmem:[#allocation2 + $0xb20] sm:$0xff]
    %v3608 = vld [vmem:[#allocation2 + $0xb28] sm:$0xff]
    %v3609 = vld [vmem:[#allocation2 + $0xb30] sm:$0xff]
    %v3610 = vld [vmem:[#allocation2 + $0xb38] sm:$0xff]
    %v3611 = vld [vmem:[#allocation2 + $0xb40] sm:$0xff]
    %v3612 = vld [vmem:[#allocation2 + $0xb48] sm:$0xff]
    %v3613 = vld [vmem:[#allocation2 + $0xb50] sm:$0xff]
    %v3614 = vld [vmem:[#allocation2 + $0xb58] sm:$0xff]
    %v3615 = vld [vmem:[#allocation2 + $0xb60] sm:$0xff]
    %v3616 = vld [vmem:[#allocation2 + $0xb68] sm:$0xff]
    %v3617 = vld [vmem:[#allocation2 + $0xb70] sm:$0xff]
    %v3618 = vld [vmem:[#allocation2 + $0xb78] sm:$0xff]
    %v3619 = vld [vmem:[#allocation2 + $0xb80] sm:$0xff]
    %v3620 = vld [vmem:[#allocation2 + $0xb88] sm:$0xff]
    %v3621 = vld [vmem:[#allocation2 + $0xb90] sm:$0xff]
    %v3622 = vld [vmem:[#allocation2 + $0xb98] sm:$0xff]
    %v3623 = vld [vmem:[#allocation2 + $0xba0] sm:$0xff]
    %v3624 = vld [vmem:[#allocation2 + $0xba8] sm:$0xff]
    %v3625 = vld [vmem:[#allocation2 + $0xbb0] sm:$0xff]
    %v3626 = vld [vmem:[#allocation2 + $0xbb8] sm:$0xff]
    %v3627 = vld [vmem:[#allocation2 + $0xbc0] sm:$0xff]
    %v3628 = vld [vmem:[#allocation2 + $0xbc8] sm:$0xff]
    %v3629 = vld [vmem:[#allocation2 + $0xbd0] sm:$0xff]
    %v3630 = vld [vmem:[#allocation2 + $0xbd8] sm:$0xff]
    %v3631 = vld [vmem:[#allocation2 + $0xbe0] sm:$0xff]
    %v3632 = vld [vmem:[#allocation2 + $0xbe8] sm:$0xff]
    %v3633 = vld [vmem:[#allocation2 + $0xbf0] sm:$0xff]
    %v3634 = vld [vmem:[#allocation2 + $0xbf8] sm:$0xff]
    %v3635 = vld [vmem:[#allocation2 + $0xc00] sm:$0xff]
    %v3636 = vld [vmem:[#allocation2 + $0xc08] sm:$0xff]
    %v3637 = vld [vmem:[#allocation2 + $0xc10] sm:$0xff]
    %v3638 = vld [vmem:[#allocation2 + $0xc18] sm:$0xff]
    %v3639 = vld [vmem:[#allocation2 + $0xc20] sm:$0xff]
    %v3640 = vld [vmem:[#allocation2 + $0xc28] sm:$0xff]
    %v3641 = vld [vmem:[#allocation2 + $0xc30] sm:$0xff]
    %v3642 = vld [vmem:[#allocation2 + $0xc38] sm:$0xff]
    %v3643 = vld [vmem:[#allocation2 + $0xc40] sm:$0xff]
    %v3644 = vld [vmem:[#allocation2 + $0xc48] sm:$0xff]
    %v3645 = vld [vmem:[#allocation2 + $0xc50] sm:$0xff]
    %v3646 = vld [vmem:[#allocation2 + $0xc58] sm:$0xff]
    %v3647 = vld [vmem:[#allocation2 + $0xc60] sm:$0xff]
    %v3648 = vld [vmem:[#allocation2 + $0xc68] sm:$0xff]
    %v3649 = vld [vmem:[#allocation2 + $0xc70] sm:$0xff]
    %v3650 = vld [vmem:[#allocation2 + $0xc78] sm:$0xff]
    %v3651 = vld [vmem:[#allocation2 + $0xc80] sm:$0xff]
    %v3652 = vld [vmem:[#allocation2 + $0xc88] sm:$0xff]
    %v3653 = vld [vmem:[#allocation2 + $0xc90] sm:$0xff]
    %v3654 = vld [vmem:[#allocation2 + $0xc98] sm:$0xff]
    %v3655 = vld [vmem:[#allocation2 + $0xca0] sm:$0xff]
    %v3656 = vld [vmem:[#allocation2 + $0xca8] sm:$0xff]
    %v3657 = vld [vmem:[#allocation2 + $0xcb0] sm:$0xff]
    %v3658 = vld [vmem:[#allocation2 + $0xcb8] sm:$0xff]
    %v3659 = vld [vmem:[#allocation2 + $0xcc0] sm:$0xff]
    %v3660 = vld [vmem:[#allocation2 + $0xcc8] sm:$0xff]
    %v3661 = vld [vmem:[#allocation2 + $0xcd0] sm:$0xff]
    %v3662 = vld [vmem:[#allocation2 + $0xcd8] sm:$0xff]
    %v3663 = vld [vmem:[#allocation2 + $0xce0] sm:$0xff]
    %v3664 = vld [vmem:[#allocation2 + $0xce8] sm:$0xff]
    %v3665 = vld [vmem:[#allocation2 + $0xcf0] sm:$0xff]
    %v3666 = vld [vmem:[#allocation2 + $0xcf8] sm:$0xff]
    %v3667 = vld [vmem:[#allocation2 + $0xd00] sm:$0xff]
    %v3668 = vld [vmem:[#allocation2 + $0xd08] sm:$0xff]
    %v3669 = vld [vmem:[#allocation2 + $0xd10] sm:$0xff]
    %v3670 = vld [vmem:[#allocation2 + $0xd18] sm:$0xff]
    %v3671 = vld [vmem:[#allocation2 + $0xd20] sm:$0xff]
    %v3672 = vld [vmem:[#allocation2 + $0xd28] sm:$0xff]
    %v3673 = vld [vmem:[#allocation2 + $0xd30] sm:$0xff]
    %v3674 = vld [vmem:[#allocation2 + $0xd38] sm:$0xff]
    %v3675 = vld [vmem:[#allocation2 + $0xd40] sm:$0xff]
    %v3676 = vld [vmem:[#allocation2 + $0xd48] sm:$0xff]
    %v3677 = vld [vmem:[#allocation2 + $0xd50] sm:$0xff]
    %v3678 = vld [vmem:[#allocation2 + $0xd58] sm:$0xff]
    %v3679 = vld [vmem:[#allocation2 + $0xd60] sm:$0xff]
    %v3680 = vld [vmem:[#allocation2 + $0xd68] sm:$0xff]
    %v3681 = vld [vmem:[#allocation2 + $0xd70] sm:$0xff]
    %v3682 = vld [vmem:[#allocation2 + $0xd78] sm:$0xff]
    %v3683 = vld [vmem:[#allocation2 + $0xd80] sm:$0xff]
    %v3684 = vld [vmem:[#allocation2 + $0xd88] sm:$0xff]
    %v3685 = vld [vmem:[#allocation2 + $0xd90] sm:$0xff]
    %v3686 = vld [vmem:[#allocation2 + $0xd98] sm:$0xff]
    %v3687 = vld [vmem:[#allocation2 + $0xda0] sm:$0xff]
    %v3688 = vld [vmem:[#allocation2 + $0xda8] sm:$0xff]
    %v3689 = vld [vmem:[#allocation2 + $0xdb0] sm:$0xff]
    %v3690 = vld [vmem:[#allocation2 + $0xdb8] sm:$0xff]
    %v3691 = vld [vmem:[#allocation2 + $0xdc0] sm:$0xff]
    %v3692 = vld [vmem:[#allocation2 + $0xdc8] sm:$0xff]
    %v3693 = vld [vmem:[#allocation2 + $0xdd0] sm:$0xff]
    %v3694 = vld [vmem:[#allocation2 + $0xdd8] sm:$0xff]
    %v3695 = vld [vmem:[#allocation2 + $0xde0] sm:$0xff]
    %v3696 = vld [vmem:[#allocation2 + $0xde8] sm:$0xff]
    %v3697 = vld [vmem:[#allocation2 + $0xdf0] sm:$0xff]
    %v3698 = vld [vmem:[#allocation2 + $0xdf8] sm:$0xff]
    %v3699 = vld [vmem:[#allocation2 + $0xe00] sm:$0xff]
    %v3700 = vld [vmem:[#allocation2 + $0xe08] sm:$0xff]
    %v3701 = vld [vmem:[#allocation2 + $0xe10] sm:$0xff]
    %v3702 = vld [vmem:[#allocation2 + $0xe18] sm:$0xff]
    %v3703 = vld [vmem:[#allocation2 + $0xe20] sm:$0xff]
    %v3704 = vld [vmem:[#allocation2 + $0xe28] sm:$0xff]
    %v3705 = vld [vmem:[#allocation2 + $0xe30] sm:$0xff]
    %v3706 = vld [vmem:[#allocation2 + $0xe38] sm:$0xff]
    %v3707 = vld [vmem:[#allocation2 + $0xe40] sm:$0xff]
    %v3708 = vld [vmem:[#allocation2 + $0xe48] sm:$0xff]
    %v3709 = vld [vmem:[#allocation2 + $0xe50] sm:$0xff]
    %v3710 = vld [vmem:[#allocation2 + $0xe58] sm:$0xff]
    %v3711 = vld [vmem:[#allocation2 + $0xe60] sm:$0xff]
    %v3712 = vld [vmem:[#allocation2 + $0xe68] sm:$0xff]
    %v3713 = vld [vmem:[#allocation2 + $0xe70] sm:$0xff]
    %v3714 = vld [vmem:[#allocation2 + $0xe78] sm:$0xff]
    %v3715 = vld [vmem:[#allocation2 + $0xe80] sm:$0xff]
    %v3716 = vld [vmem:[#allocation2 + $0xe88] sm:$0xff]
    %v3717 = vld [vmem:[#allocation2 + $0xe90] sm:$0xff]
    %v3718 = vld [vmem:[#allocation2 + $0xe98] sm:$0xff]
    %v3719 = vld [vmem:[#allocation2 + $0xea0] sm:$0xff]
    %v3720 = vld [vmem:[#allocation2 + $0xea8] sm:$0xff]
    %v3721 = vld [vmem:[#allocation2 + $0xeb0] sm:$0xff]
    %v3722 = vld [vmem:[#allocation2 + $0xeb8] sm:$0xff]
    %v3723 = vld [vmem:[#allocation2 + $0xec0] sm:$0xff]
    %v3724 = vld [vmem:[#allocation2 + $0xec8] sm:$0xff]
    %v3725 = vld [vmem:[#allocation2 + $0xed0] sm:$0xff]
    %v3726 = vpack.c.bf16 %v3270, %v3251
    %v3727 = vpack.c.bf16 %v3271, %v3252
    %v3728 = vpack.c.bf16 %v3272, %v3253
    %v3729 = vpack.c.bf16 %v3273, %v3254
    %v3730 = vpack.c.bf16 %v3274, %v3255
    %v3731 = vpack.c.bf16 %v3275, %v3256
    %v3732 = vpack.c.bf16 %v3276, %v3257
    %v3733 = vpack.c.bf16 %v3277, %v3258
    %v3734 = vpack.c.bf16 %v3278, %v3259
    %v3735 = vpack.c.bf16 %v3279, %v3260
    %v3736 = vpack.c.bf16 %v3280, %v3261
    %v3737 = vpack.c.bf16 %v3281, %v3262
    %v3738 = vpack.c.bf16 %v3282, %v3263
    %v3739 = vpack.c.bf16 %v3283, %v3264
    %v3740 = vpack.c.bf16 %v3284, %v3265
    %v3741 = vpack.c.bf16 %v3285, %v3266
    %v3742 = vpack.c.bf16 %v3286, %v3267
    %v3743 = vpack.c.bf16 %v3287, %v3268
    %v3744 = vpack.c.bf16 %v3288, %v3269
    %v3745 = vpack.c.bf16 %v3308, %v3289
    %v3746 = vpack.c.bf16 %v3309, %v3290
    %v3747 = vpack.c.bf16 %v3310, %v3291
    %v3748 = vpack.c.bf16 %v3311, %v3292
    %v3749 = vpack.c.bf16 %v3312, %v3293
    %v3750 = vpack.c.bf16 %v3313, %v3294
    %v3751 = vpack.c.bf16 %v3314, %v3295
    %v3752 = vpack.c.bf16 %v3315, %v3296
    %v3753 = vpack.c.bf16 %v3316, %v3297
    %v3754 = vpack.c.bf16 %v3317, %v3298
    %v3755 = vpack.c.bf16 %v3318, %v3299
    %v3756 = vpack.c.bf16 %v3319, %v3300
    %v3757 = vpack.c.bf16 %v3320, %v3301
    %v3758 = vpack.c.bf16 %v3321, %v3302
    %v3759 = vpack.c.bf16 %v3322, %v3303
    %v3760 = vpack.c.bf16 %v3323, %v3304
    %v3761 = vpack.c.bf16 %v3324, %v3305
    %v3762 = vpack.c.bf16 %v3325, %v3306
    %v3763 = vpack.c.bf16 %v3326, %v3307
    %v3764 = vpack.c.bf16 %v3346, %v3327
    %v3765 = vpack.c.bf16 %v3347, %v3328
    %v3766 = vpack.c.bf16 %v3348, %v3329
    %v3767 = vpack.c.bf16 %v3349, %v3330
    %v3768 = vpack.c.bf16 %v3350, %v3331
    %v3769 = vpack.c.bf16 %v3351, %v3332
    %v3770 = vpack.c.bf16 %v3352, %v3333
    %v3771 = vpack.c.bf16 %v3353, %v3334
    %v3772 = vpack.c.bf16 %v3354, %v3335
    %v3773 = vpack.c.bf16 %v3355, %v3336
    %v3774 = vpack.c.bf16 %v3356, %v3337
    %v3775 = vpack.c.bf16 %v3357, %v3338
    %v3776 = vpack.c.bf16 %v3358, %v3339
    %v3777 = vpack.c.bf16 %v3359, %v3340
    %v3778 = vpack.c.bf16 %v3360, %v3341
    %v3779 = vpack.c.bf16 %v3361, %v3342
    %v3780 = vpack.c.bf16 %v3362, %v3343
    %v3781 = vpack.c.bf16 %v3363, %v3344
    %v3782 = vpack.c.bf16 %v3364, %v3345
    %v3783 = vpack.c.bf16 %v3384, %v3365
    %v3784 = vpack.c.bf16 %v3385, %v3366
    %v3785 = vpack.c.bf16 %v3386, %v3367
    %v3786 = vpack.c.bf16 %v3387, %v3368
    %v3787 = vpack.c.bf16 %v3388, %v3369
    %v3788 = vpack.c.bf16 %v3389, %v3370
    %v3789 = vpack.c.bf16 %v3390, %v3371
    %v3790 = vpack.c.bf16 %v3391, %v3372
    %v3791 = vpack.c.bf16 %v3392, %v3373
    %v3792 = vpack.c.bf16 %v3393, %v3374
    %v3793 = vpack.c.bf16 %v3394, %v3375
    %v3794 = vpack.c.bf16 %v3395, %v3376
    %v3795 = vpack.c.bf16 %v3396, %v3377
    %v3796 = vpack.c.bf16 %v3397, %v3378
    %v3797 = vpack.c.bf16 %v3398, %v3379
    %v3798 = vpack.c.bf16 %v3399, %v3380
    %v3799 = vpack.c.bf16 %v3400, %v3381
    %v3800 = vpack.c.bf16 %v3401, %v3382
    %v3801 = vpack.c.bf16 %v3402, %v3383
    %v3802 = vpack.c.bf16 %v3422, %v3403
    %v3803 = vpack.c.bf16 %v3423, %v3404
    %v3804 = vpack.c.bf16 %v3424, %v3405
    %v3805 = vpack.c.bf16 %v3425, %v3406
    %v3806 = vpack.c.bf16 %v3426, %v3407
    %v3807 = vpack.c.bf16 %v3427, %v3408
    %v3808 = vpack.c.bf16 %v3428, %v3409
    %v3809 = vpack.c.bf16 %v3429, %v3410
    %v3810 = vpack.c.bf16 %v3430, %v3411
    %v3811 = vpack.c.bf16 %v3431, %v3412
    %v3812 = vpack.c.bf16 %v3432, %v3413
    %v3813 = vpack.c.bf16 %v3433, %v3414
    %v3814 = vpack.c.bf16 %v3434, %v3415
    %v3815 = vpack.c.bf16 %v3435, %v3416
    %v3816 = vpack.c.bf16 %v3436, %v3417
    %v3817 = vpack.c.bf16 %v3437, %v3418
    %v3818 = vpack.c.bf16 %v3438, %v3419
    %v3819 = vpack.c.bf16 %v3439, %v3420
    %v3820 = vpack.c.bf16 %v3440, %v3421
    %v3821 = vpack.c.bf16 %v3460, %v3441
    %v3822 = vpack.c.bf16 %v3461, %v3442
    %v3823 = vpack.c.bf16 %v3462, %v3443
    %v3824 = vpack.c.bf16 %v3463, %v3444
    %v3825 = vpack.c.bf16 %v3464, %v3445
    %v3826 = vpack.c.bf16 %v3465, %v3446
    %v3827 = vpack.c.bf16 %v3466, %v3447
    %v3828 = vpack.c.bf16 %v3467, %v3448
    %v3829 = vpack.c.bf16 %v3468, %v3449
    %v3830 = vpack.c.bf16 %v3469, %v3450
    %v3831 = vpack.c.bf16 %v3470, %v3451
    %v3832 = vpack.c.bf16 %v3471, %v3452
    %v3833 = vpack.c.bf16 %v3472, %v3453
    %v3834 = vpack.c.bf16 %v3473, %v3454
    %v3835 = vpack.c.bf16 %v3474, %v3455
    %v3836 = vpack.c.bf16 %v3475, %v3456
    %v3837 = vpack.c.bf16 %v3476, %v3457
    %v3838 = vpack.c.bf16 %v3477, %v3458
    %v3839 = vpack.c.bf16 %v3478, %v3459
    %v3840 = vpack.c.bf16 %v3498, %v3479
    %v3841 = vpack.c.bf16 %v3499, %v3480
    %v3842 = vpack.c.bf16 %v3500, %v3481
    %v3843 = vpack.c.bf16 %v3501, %v3482
    %v3844 = vpack.c.bf16 %v3502, %v3483
    %v3845 = vpack.c.bf16 %v3503, %v3484
    %v3846 = vpack.c.bf16 %v3504, %v3485
    %v3847 = vpack.c.bf16 %v3505, %v3486
    %v3848 = vpack.c.bf16 %v3506, %v3487
    %v3849 = vpack.c.bf16 %v3507, %v3488
    %v3850 = vpack.c.bf16 %v3508, %v3489
    %v3851 = vpack.c.bf16 %v3509, %v3490
    %v3852 = vpack.c.bf16 %v3510, %v3491
    %v3853 = vpack.c.bf16 %v3511, %v3492
    %v3854 = vpack.c.bf16 %v3512, %v3493
    %v3855 = vpack.c.bf16 %v3513, %v3494
    %v3856 = vpack.c.bf16 %v3514, %v3495
    %v3857 = vpack.c.bf16 %v3515, %v3496
    %v3858 = vpack.c.bf16 %v3516, %v3497
    %v3859 = vpack.c.bf16 %v3536, %v3517
    %v3860 = vpack.c.bf16 %v3537, %v3518
    %v3861 = vpack.c.bf16 %v3538, %v3519
    %v3862 = vpack.c.bf16 %v3539, %v3520
    %v3863 = vpack.c.bf16 %v3540, %v3521
    %v3864 = vpack.c.bf16 %v3541, %v3522
    %v3865 = vpack.c.bf16 %v3542, %v3523
    %v3866 = vpack.c.bf16 %v3543, %v3524
    %v3867 = vpack.c.bf16 %v3544, %v3525
    %v3868 = vpack.c.bf16 %v3545, %v3526
    %v3869 = vpack.c.bf16 %v3546, %v3527
    %v3870 = vpack.c.bf16 %v3547, %v3528
    %v3871 = vpack.c.bf16 %v3548, %v3529
    %v3872 = vpack.c.bf16 %v3549, %v3530
    %v3873 = vpack.c.bf16 %v3550, %v3531
    %v3874 = vpack.c.bf16 %v3551, %v3532
    %v3875 = vpack.c.bf16 %v3552, %v3533
    %v3876 = vpack.c.bf16 %v3553, %v3534
    %v3877 = vpack.c.bf16 %v3554, %v3535
    %v3878 = vpack.c.bf16 %v3574, %v3555
    %v3879 = vpack.c.bf16 %v3575, %v3556
    %v3880 = vpack.c.bf16 %v3576, %v3557
    %v3881 = vpack.c.bf16 %v3577, %v3558
    %v3882 = vpack.c.bf16 %v3578, %v3559
    %v3883 = vpack.c.bf16 %v3579, %v3560
    %v3884 = vpack.c.bf16 %v3580, %v3561
    %v3885 = vpack.c.bf16 %v3581, %v3562
    %v3886 = vpack.c.bf16 %v3582, %v3563
    %v3887 = vpack.c.bf16 %v3583, %v3564
    %v3888 = vpack.c.bf16 %v3584, %v3565
    %v3889 = vpack.c.bf16 %v3585, %v3566
    %v3890 = vpack.c.bf16 %v3586, %v3567
    %v3891 = vpack.c.bf16 %v3587, %v3568
    %v3892 = vpack.c.bf16 %v3588, %v3569
    %v3893 = vpack.c.bf16 %v3589, %v3570
    %v3894 = vpack.c.bf16 %v3590, %v3571
    %v3895 = vpack.c.bf16 %v3591, %v3572
    %v3896 = vpack.c.bf16 %v3592, %v3573
    %v3897 = vpack.c.bf16 %v3612, %v3593
    %v3898 = vpack.c.bf16 %v3613, %v3594
    %v3899 = vpack.c.bf16 %v3614, %v3595
    %v3900 = vpack.c.bf16 %v3615, %v3596
    %v3901 = vpack.c.bf16 %v3616, %v3597
    %v3902 = vpack.c.bf16 %v3617, %v3598
    %v3903 = vpack.c.bf16 %v3618, %v3599
    %v3904 = vpack.c.bf16 %v3619, %v3600
    %v3905 = vpack.c.bf16 %v3620, %v3601
    %v3906 = vpack.c.bf16 %v3621, %v3602
    %v3907 = vpack.c.bf16 %v3622, %v3603
    %v3908 = vpack.c.bf16 %v3623, %v3604
    %v3909 = vpack.c.bf16 %v3624, %v3605
    %v3910 = vpack.c.bf16 %v3625, %v3606
    %v3911 = vpack.c.bf16 %v3626, %v3607
    %v3912 = vpack.c.bf16 %v3627, %v3608
    %v3913 = vpack.c.bf16 %v3628, %v3609
    %v3914 = vpack.c.bf16 %v3629, %v3610
    %v3915 = vpack.c.bf16 %v3630, %v3611
    %v3916 = vpack.c.bf16 %v3650, %v3631
    %v3917 = vpack.c.bf16 %v3651, %v3632
    %v3918 = vpack.c.bf16 %v3652, %v3633
    %v3919 = vpack.c.bf16 %v3653, %v3634
    %v3920 = vpack.c.bf16 %v3654, %v3635
    %v3921 = vpack.c.bf16 %v3655, %v3636
    %v3922 = vpack.c.bf16 %v3656, %v3637
    %v3923 = vpack.c.bf16 %v3657, %v3638
    %v3924 = vpack.c.bf16 %v3658, %v3639
    %v3925 = vpack.c.bf16 %v3659, %v3640
    %v3926 = vpack.c.bf16 %v3660, %v3641
    %v3927 = vpack.c.bf16 %v3661, %v3642
    %v3928 = vpack.c.bf16 %v3662, %v3643
    %v3929 = vpack.c.bf16 %v3663, %v3644
    %v3930 = vpack.c.bf16 %v3664, %v3645
    %v3931 = vpack.c.bf16 %v3665, %v3646
    %v3932 = vpack.c.bf16 %v3666, %v3647
    %v3933 = vpack.c.bf16 %v3667, %v3648
    %v3934 = vpack.c.bf16 %v3668, %v3649
    %v3935 = vpack.c.bf16 %v3688, %v3669
    %v3936 = vpack.c.bf16 %v3689, %v3670
    %v3937 = vpack.c.bf16 %v3690, %v3671
    %v3938 = vpack.c.bf16 %v3691, %v3672
    %v3939 = vpack.c.bf16 %v3692, %v3673
    %v3940 = vpack.c.bf16 %v3693, %v3674
    %v3941 = vpack.c.bf16 %v3694, %v3675
    %v3942 = vpack.c.bf16 %v3695, %v3676
    %v3943 = vpack.c.bf16 %v3696, %v3677
    %v3944 = vpack.c.bf16 %v3697, %v3678
    %v3945 = vpack.c.bf16 %v3698, %v3679
    %v3946 = vpack.c.bf16 %v3699, %v3680
    %v3947 = vpack.c.bf16 %v3700, %v3681
    %v3948 = vpack.c.bf16 %v3701, %v3682
    %v3949 = vpack.c.bf16 %v3702, %v3683
    %v3950 = vpack.c.bf16 %v3703, %v3684
    %v3951 = vpack.c.bf16 %v3704, %v3685
    %v3952 = vpack.c.bf16 %v3705, %v3686
    %v3953 = vpack.c.bf16 %v3706, %v3687
    %v3954 = vpack.c.bf16 %v3707, %v3707
    %v3955 = vpack.c.bf16 %v3708, %v3708
    %v3956 = vpack.c.bf16 %v3709, %v3709
    %v3957 = vpack.c.bf16 %v3710, %v3710
    %v3958 = vpack.c.bf16 %v3711, %v3711
    %v3959 = vpack.c.bf16 %v3712, %v3712
    %v3960 = vpack.c.bf16 %v3713, %v3713
    %v3961 = vpack.c.bf16 %v3714, %v3714
    %v3962 = vpack.c.bf16 %v3715, %v3715
    %v3963 = vpack.c.bf16 %v3716, %v3716
    %v3964 = vpack.c.bf16 %v3717, %v3717
    %v3965 = vpack.c.bf16 %v3718, %v3718
    %v3966 = vpack.c.bf16 %v3719, %v3719
    %v3967 = vpack.c.bf16 %v3720, %v3720
    %v3968 = vpack.c.bf16 %v3721, %v3721
    %v3969 = vpack.c.bf16 %v3722, %v3722
    %v3970 = vpack.c.bf16 %v3723, %v3723
    %v3971 = vpack.c.bf16 %v3724, %v3724
    %v3972 = vpack.c.bf16 %v3725, %v3725
    %v3973 = vld [vmem:[%s2] sm:$0xff]
    %3975 = vset.pattern.permute.xlu0 0
    %3976 = vperm.xlu0 %3975, %v3973
    %v3977 = vpop.permute.xlu0 %3976
    %v3980 = vunpack.c.l.b16 %v3250
    %v3981 = vunpack.c.h.b16 %v3250
    %v3982 = vpack.c.b16 %v3980, %v3980
    %v3983 = vpack.c.b16 %v3981, %v3981
    %vm3985 = vcmask 588800
    %v3987 = vsel %vm3985, %v3983, 0
    %vm3989 = vcmask 1043456
    %v3991 = vsel %vm3989, %v3954, 0
    %v3994 = vsel %vm3989, %v3955, 0
    %v3997 = vsel %vm3989, %v3956, 0
    %v4000 = vsel %vm3989, %v3957, 0
    %v4003 = vsel %vm3989, %v3958, 0
    %v4006 = vsel %vm3989, %v3959, 0
    %v4009 = vsel %vm3989, %v3960, 0
    %v4012 = vsel %vm3989, %v3961, 0
    %v4015 = vsel %vm3989, %v3962, 0
    %v4018 = vsel %vm3989, %v3963, 0
    %v4021 = vsel %vm3989, %v3964, 0
    %v4024 = vsel %vm3989, %v3965, 0
    %v4027 = vsel %vm3989, %v3966, 0
    %v4030 = vsel %vm3989, %v3967, 0
    %v4033 = vsel %vm3989, %v3968, 0
    %v4036 = vsel %vm3989, %v3969, 0
    %v4039 = vsel %vm3989, %v3970, 0
    %v4042 = vsel %vm3989, %v3971, 0
    %v4045 = vsel %vm3989, %v3972, 0
    %4047 = vmatprep.subr.bf16.mxu0 %v3727
    %4048 = vmatpush1.bf16.msra.mxu0 %v3726
    %4049 = vmatprep.subr.bf16.mxu0 %v3746
    %4050 = vmatpush1.bf16.msra.mxu0 %v3745
    %4051 = vmatprep.subr.bf16.mxu0 %v3765
    %4052 = vmatpush1.bf16.msra.mxu0 %v3764
    %4053 = vmatprep.subr.bf16.mxu0 %v3784
    %4054 = vmatpush1.bf16.msra.mxu0 %v3783
    %4055 = vmatprep.subr.bf16.mxu0 %v3803
    %4056 = vmatpush1.bf16.msra.mxu0 %v3802
    %4057 = vmatprep.subr.bf16.mxu0 %v3822
    %4058 = vmatpush1.bf16.msra.mxu0 %v3821
    %4059 = vmatprep.subr.bf16.mxu0 %v3841
    %4060 = vmatpush1.bf16.msra.mxu0 %v3840
    %4061 = vmatprep.subr.bf16.mxu0 %v3860
    %4062 = vmatpush1.bf16.msra.mxu0 %v3859
    %4063 = vmatprep.subr.bf16.mxu0 %v3879
    %4064 = vmatpush1.bf16.msra.mxu0 %v3878
    %4065 = vmatprep.subr.bf16.mxu0 %v3898
    %4066 = vmatpush1.bf16.msra.mxu0 %v3897
    %4067 = vmatprep.subr.bf16.mxu0 %v3917
    %4068 = vmatpush1.bf16.msra.mxu0 %v3916
    %4069 = vmatprep.subr.bf16.mxu0 %v3936
    %4070 = vmatpush1.bf16.msra.mxu0 %v3935
    %4071 = vmatprep.subr.bf16.mxu0 %v3994
    %4072 = vmatpush1.bf16.msra.mxu0 %v3991
    %4073 = vmatprep.subr.bf16.mxu0 0
    %4074 = vmatpush1.bf16.msra.mxu0 0
    %4075 = vmatprep.subr.bf16.mxu0 0
    %4076 = vmatpush1.bf16.msra.mxu0 0
    %4077 = vmatprep.subr.bf16.mxu0 0
    %4078 = vmatpush1.bf16.msra.mxu0 0
    %4079 = vmatprep.mubr.bf16.mxu0 %v3987
    %4080 = vmatmul.mubr.bf16.gmra.mrb[0].mxu0 %v3982
    %v4081 = vpop.f32.mrb[0].mxu0
    %v4082 = vadd.f32 %v3977, %v4081
    %v4083 = vpop.f32.mrb[0].mxu0
    %v4084 = vadd.f32 %v3977, %v4083
    %v4085 = vpop.f32.mrb[0].mxu0
    %v4086 = vpop.f32.mrb[0].mxu0
    %4087 = vdwg.mxu0
    %4088 = vmatprep.subr.bf16.mxu0 %v3729
    %4089 = vmatpush1.bf16.msra.mxu0 %v3728
    %4090 = vmatprep.subr.bf16.mxu0 %v3748
    %4091 = vmatpush1.bf16.msra.mxu0 %v3747
    %4092 = vmatprep.subr.bf16.mxu0 %v3767
    %4093 = vmatpush1.bf16.msra.mxu0 %v3766
    %4094 = vmatprep.subr.bf16.mxu0 %v3786
    %4095 = vmatpush1.bf16.msra.mxu0 %v3785
    %4096 = vmatprep.subr.bf16.mxu0 %v3805
    %4097 = vmatpush1.bf16.msra.mxu0 %v3804
    %4098 = vmatprep.subr.bf16.mxu0 %v3824
    %4099 = vmatpush1.bf16.msra.mxu0 %v3823
    %4100 = vmatprep.subr.bf16.mxu0 %v3843
    %4101 = vmatpush1.bf16.msra.mxu0 %v3842
    %4102 = vmatprep.subr.bf16.mxu0 %v3862
    %4103 = vmatpush1.bf16.msra.mxu0 %v3861
    %4104 = vmatprep.subr.bf16.mxu0 %v3881
    %4105 = vmatpush1.bf16.msra.mxu0 %v3880
    %4106 = vmatprep.subr.bf16.mxu0 %v3900
    %4107 = vmatpush1.bf16.msra.mxu0 %v3899
    %4108 = vmatprep.subr.bf16.mxu0 %v3919
    %4109 = vmatpush1.bf16.msra.mxu0 %v3918
    %4110 = vmatprep.subr.bf16.mxu0 %v3938
    %4111 = vmatpush1.bf16.msra.mxu0 %v3937
    %4112 = vmatprep.subr.bf16.mxu0 %v4000
    %4113 = vmatpush1.bf16.msra.mxu0 %v3997
    %4114 = vmatprep.subr.bf16.mxu0 0
    %4115 = vmatpush1.bf16.msra.mxu0 0
    %4116 = vmatprep.subr.bf16.mxu0 0
    %4117 = vmatpush1.bf16.msra.mxu0 0
    %4118 = vmatprep.subr.bf16.mxu0 0
    %4119 = vmatpush1.bf16.msra.mxu0 0
    %4120 = vmatprep.mubr.bf16.mxu0 %v3987
    %4121 = vmatmul.mubr.bf16.gmra.mrb[0].mxu0 %v3982
    %v4122 = vpop.f32.mrb[0].mxu0
    %v4123 = vadd.f32 %v3977, %v4122
    %v4124 = vpop.f32.mrb[0].mxu0
    %v4125 = vadd.f32 %v3977, %v4124
    %v4126 = vpop.f32.mrb[0].mxu0
    %v4127 = vpop.f32.mrb[0].mxu0
    %4128 = vdwg.mxu0
    %4129 = vmatprep.subr.bf16.mxu0 %v3731
    %4130 = vmatpush1.bf16.msra.mxu0 %v3730
    %4131 = vmatprep.subr.bf16.mxu0 %v3750
    %4132 = vmatpush1.bf16.msra.mxu0 %v3749
    %4133 = vmatprep.subr.bf16.mxu0 %v3769
    %4134 = vmatpush1.bf16.msra.mxu0 %v3768
    %4135 = vmatprep.subr.bf16.mxu0 %v3788
    %4136 = vmatpush1.bf16.msra.mxu0 %v3787
    %4137 = vmatprep.subr.bf16.mxu0 %v3807
    %4138 = vmatpush1.bf16.msra.mxu0 %v3806
    %4139 = vmatprep.subr.bf16.mxu0 %v3826
    %4140 = vmatpush1.bf16.msra.mxu0 %v3825
    %4141 = vmatprep.subr.bf16.mxu0 %v3845
    %4142 = vmatpush1.bf16.msra.mxu0 %v3844
    %4143 = vmatprep.subr.bf16.mxu0 %v3864
    %4144 = vmatpush1.bf16.msra.mxu0 %v3863
    %4145 = vmatprep.subr.bf16.mxu0 %v3883
    %4146 = vmatpush1.bf16.msra.mxu0 %v3882
    %4147 = vmatprep.subr.bf16.mxu0 %v3902
    %4148 = vmatpush1.bf16.msra.mxu0 %v3901
    %4149 = vmatprep.subr.bf16.mxu0 %v3921
    %4150 = vmatpush1.bf16.msra.mxu0 %v3920
    %4151 = vmatprep.subr.bf16.mxu0 %v3940
    %4152 = vmatpush1.bf16.msra.mxu0 %v3939
    %4153 = vmatprep.subr.bf16.mxu0 %v4006
    %4154 = vmatpush1.bf16.msra.mxu0 %v4003
    %4155 = vmatprep.subr.bf16.mxu0 0
    %4156 = vmatpush1.bf16.msra.mxu0 0
    %4157 = vmatprep.subr.bf16.mxu0 0
    %4158 = vmatpush1.bf16.msra.mxu0 0
    %4159 = vmatprep.subr.bf16.mxu0 0
    %4160 = vmatpush1.bf16.msra.mxu0 0
    %4161 = vmatprep.mubr.bf16.mxu0 %v3987
    %4162 = vmatmul.mubr.bf16.gmra.mrb[0].mxu0 %v3982
    %v4163 = vpop.f32.mrb[0].mxu0
    %v4164 = vadd.f32 %v3977, %v4163
    %v4165 = vpop.f32.mrb[0].mxu0
    %v4166 = vadd.f32 %v3977, %v4165
    %v4167 = vpop.f32.mrb[0].mxu0
    %v4168 = vpop.f32.mrb[0].mxu0
    %4169 = vdwg.mxu0
    %4170 = vmatprep.subr.bf16.mxu0 %v3733
    %4171 = vmatpush1.bf16.msra.mxu0 %v3732
    %4172 = vmatprep.subr.bf16.mxu0 %v3752
    %4173 = vmatpush1.bf16.msra.mxu0 %v3751
    %4174 = vmatprep.subr.bf16.mxu0 %v3771
    %4175 = vmatpush1.bf16.msra.mxu0 %v3770
    %4176 = vmatprep.subr.bf16.mxu0 %v3790
    %4177 = vmatpush1.bf16.msra.mxu0 %v3789
    %4178 = vmatprep.subr.bf16.mxu0 %v3809
    %4179 = vmatpush1.bf16.msra.mxu0 %v3808
    %4180 = vmatprep.subr.bf16.mxu0 %v3828
    %4181 = vmatpush1.bf16.msra.mxu0 %v3827
    %4182 = vmatprep.subr.bf16.mxu0 %v3847
    %4183 = vmatpush1.bf16.msra.mxu0 %v3846
    %4184 = vmatprep.subr.bf16.mxu0 %v3866
    %4185 = vmatpush1.bf16.msra.mxu0 %v3865
    %4186 = vmatprep.subr.bf16.mxu0 %v3885
    %4187 = vmatpush1.bf16.msra.mxu0 %v3884
    %4188 = vmatprep.subr.bf16.mxu0 %v3904
    %4189 = vmatpush1.bf16.msra.mxu0 %v3903
    %4190 = vmatprep.subr.bf16.mxu0 %v3923
    %4191 = vmatpush1.bf16.msra.mxu0 %v3922
    %4192 = vmatprep.subr.bf16.mxu0 %v3942
    %4193 = vmatpush1.bf16.msra.mxu0 %v3941
    %4194 = vmatprep.subr.bf16.mxu0 %v4012
    %4195 = vmatpush1.bf16.msra.mxu0 %v4009
    %4196 = vmatprep.subr.bf16.mxu0 0
    %4197 = vmatpush1.bf16.msra.mxu0 0
    %4198 = vmatprep.subr.bf16.mxu0 0
    %4199 = vmatpush1.bf16.msra.mxu0 0
    %4200 = vmatprep.subr.bf16.mxu0 0
    %4201 = vmatpush1.bf16.msra.mxu0 0
    %4202 = vmatprep.mubr.bf16.mxu0 %v3987
    %4203 = vmatmul.mubr.bf16.gmra.mrb[0].mxu0 %v3982
    %v4204 = vpop.f32.mrb[0].mxu0
    %v4205 = vadd.f32 %v3977, %v4204
    %v4206 = vpop.f32.mrb[0].mxu0
    %v4207 = vadd.f32 %v3977, %v4206
    %v4208 = vpop.f32.mrb[0].mxu0
    %v4209 = vpop.f32.mrb[0].mxu0
    %4210 = vdwg.mxu0
    %4211 = vmatprep.subr.bf16.mxu0 %v3735
    %4212 = vmatpush1.bf16.msra.mxu0 %v3734
    %4213 = vmatprep.subr.bf16.mxu0 %v3754
    %4214 = vmatpush1.bf16.msra.mxu0 %v3753
    %4215 = vmatprep.subr.bf16.mxu0 %v3773
    %4216 = vmatpush1.bf16.msra.mxu0 %v3772
    %4217 = vmatprep.subr.bf16.mxu0 %v3792
    %4218 = vmatpush1.bf16.msra.mxu0 %v3791
    %4219 = vmatprep.subr.bf16.mxu0 %v3811
    %4220 = vmatpush1.bf16.msra.mxu0 %v3810
    %4221 = vmatprep.subr.bf16.mxu0 %v3830
    %4222 = vmatpush1.bf16.msra.mxu0 %v3829
    %4223 = vmatprep.subr.bf16.mxu0 %v3849
    %4224 = vmatpush1.bf16.msra.mxu0 %v3848
    %4225 = vmatprep.subr.bf16.mxu0 %v3868
    %4226 = vmatpush1.bf16.msra.mxu0 %v3867
    %4227 = vmatprep.subr.bf16.mxu0 %v3887
    %4228 = vmatpush1.bf16.msra.mxu0 %v3886
    %4229 = vmatprep.subr.bf16.mxu0 %v3906
    %4230 = vmatpush1.bf16.msra.mxu0 %v3905
    %4231 = vmatprep.subr.bf16.mxu0 %v3925
    %4232 = vmatpush1.bf16.msra.mxu0 %v3924
    %4233 = vmatprep.subr.bf16.mxu0 %v3944
    %4234 = vmatpush1.bf16.msra.mxu0 %v3943
    %4235 = vmatprep.subr.bf16.mxu0 %v4018
    %4236 = vmatpush1.bf16.msra.mxu0 %v4015
    %4237 = vmatprep.subr.bf16.mxu0 0
    %4238 = vmatpush1.bf16.msra.mxu0 0
    %4239 = vmatprep.subr.bf16.mxu0 0
    %4240 = vmatpush1.bf16.msra.mxu0 0
    %4241 = vmatprep.subr.bf16.mxu0 0
    %4242 = vmatpush1.bf16.msra.mxu0 0
    %4243 = vmatprep.mubr.bf16.mxu0 %v3987
    %4244 = vmatmul.mubr.bf16.gmra.mrb[0].mxu0 %v3982
    %v4245 = vpop.f32.mrb[0].mxu0
    %v4246 = vadd.f32 %v3977, %v4245
    %v4247 = vpop.f32.mrb[0].mxu0
    %v4248 = vadd.f32 %v3977, %v4247
    %v4249 = vpop.f32.mrb[0].mxu0
    %v4250 = vpop.f32.mrb[0].mxu0
    %4251 = vdwg.mxu0
    %4252 = vmatprep.subr.bf16.mxu0 %v3737
    %4253 = vmatpush1.bf16.msra.mxu0 %v3736
    %4254 = vmatprep.subr.bf16.mxu0 %v3756
    %4255 = vmatpush1.bf16.msra.mxu0 %v3755
    %4256 = vmatprep.subr.bf16.mxu0 %v3775
    %4257 = vmatpush1.bf16.msra.mxu0 %v3774
    %4258 = vmatprep.subr.bf16.mxu0 %v3794
    %4259 = vmatpush1.bf16.msra.mxu0 %v3793
    %4260 = vmatprep.subr.bf16.mxu0 %v3813
    %4261 = vmatpush1.bf16.msra.mxu0 %v3812
    %4262 = vmatprep.subr.bf16.mxu0 %v3832
    %4263 = vmatpush1.bf16.msra.mxu0 %v3831
    %4264 = vmatprep.subr.bf16.mxu0 %v3851
    %4265 = vmatpush1.bf16.msra.mxu0 %v3850
    %4266 = vmatprep.subr.bf16.mxu0 %v3870
    %4267 = vmatpush1.bf16.msra.mxu0 %v3869
    %4268 = vmatprep.subr.bf16.mxu0 %v3889
    %4269 = vmatpush1.bf16.msra.mxu0 %v3888
    %4270 = vmatprep.subr.bf16.mxu0 %v3908
    %4271 = vmatpush1.bf16.msra.mxu0 %v3907
    %4272 = vmatprep.subr.bf16.mxu0 %v3927
    %4273 = vmatpush1.bf16.msra.mxu0 %v3926
    %4274 = vmatprep.subr.bf16.mxu0 %v3946
    %4275 = vmatpush1.bf16.msra.mxu0 %v3945
    %4276 = vmatprep.subr.bf16.mxu0 %v4024
    %4277 = vmatpush1.bf16.msra.mxu0 %v4021
    %4278 = vmatprep.subr.bf16.mxu0 0
    %4279 = vmatpush1.bf16.msra.mxu0 0
    %4280 = vmatprep.subr.bf16.mxu0 0
    %4281 = vmatpush1.bf16.msra.mxu0 0
    %4282 = vmatprep.subr.bf16.mxu0 0
    %4283 = vmatpush1.bf16.msra.mxu0 0
    %4284 = vmatprep.mubr.bf16.mxu0 %v3987
    %4285 = vmatmul.mubr.bf16.gmra.mrb[0].mxu0 %v3982
    %v4286 = vpop.f32.mrb[0].mxu0
    %v4287 = vadd.f32 %v3977, %v4286
    %v4288 = vpop.f32.mrb[0].mxu0
    %v4289 = vadd.f32 %v3977, %v4288
    %v4290 = vpop.f32.mrb[0].mxu0
    %v4291 = vpop.f32.mrb[0].mxu0
    %4292 = vdwg.mxu0
    %4293 = vmatprep.subr.bf16.mxu0 %v3739
    %4294 = vmatpush1.bf16.msra.mxu0 %v3738
    %4295 = vmatprep.subr.bf16.mxu0 %v3758
    %4296 = vmatpush1.bf16.msra.mxu0 %v3757
    %4297 = vmatprep.subr.bf16.mxu0 %v3777
    %4298 = vmatpush1.bf16.msra.mxu0 %v3776
    %4299 = vmatprep.subr.bf16.mxu0 %v3796
    %4300 = vmatpush1.bf16.msra.mxu0 %v3795
    %4301 = vmatprep.subr.bf16.mxu0 %v3815
    %4302 = vmatpush1.bf16.msra.mxu0 %v3814
    %4303 = vmatprep.subr.bf16.mxu0 %v3834
    %4304 = vmatpush1.bf16.msra.mxu0 %v3833
    %4305 = vmatprep.subr.bf16.mxu0 %v3853
    %4306 = vmatpush1.bf16.msra.mxu0 %v3852
    %4307 = vmatprep.subr.bf16.mxu0 %v3872
    %4308 = vmatpush1.bf16.msra.mxu0 %v3871
    %4309 = vmatprep.subr.bf16.mxu0 %v3891
    %4310 = vmatpush1.bf16.msra.mxu0 %v3890
    %4311 = vmatprep.subr.bf16.mxu0 %v3910
    %4312 = vmatpush1.bf16.msra.mxu0 %v3909
    %4313 = vmatprep.subr.bf16.mxu0 %v3929
    %4314 = vmatpush1.bf16.msra.mxu0 %v3928
    %4315 = vmatprep.subr.bf16.mxu0 %v3948
    %4316 = vmatpush1.bf16.msra.mxu0 %v3947
    %4317 = vmatprep.subr.bf16.mxu0 %v4030
    %4318 = vmatpush1.bf16.msra.mxu0 %v4027
    %4319 = vmatprep.subr.bf16.mxu0 0
    %4320 = vmatpush1.bf16.msra.mxu0 0
    %4321 = vmatprep.subr.bf16.mxu0 0
    %4322 = vmatpush1.bf16.msra.mxu0 0
    %4323 = vmatprep.subr.bf16.mxu0 0
    %4324 = vmatpush1.bf16.msra.mxu0 0
    %4325 = vmatprep.mubr.bf16.mxu0 %v3987
    %4326 = vmatmul.mubr.bf16.gmra.mrb[0].mxu0 %v3982
    %v4327 = vpop.f32.mrb[0].mxu0
    %v4328 = vadd.f32 %v3977, %v4327
    %v4329 = vpop.f32.mrb[0].mxu0
    %v4330 = vadd.f32 %v3977, %v4329
    %v4331 = vpop.f32.mrb[0].mxu0
    %v4332 = vpop.f32.mrb[0].mxu0
    %4333 = vdwg.mxu0
    %4334 = vmatprep.subr.bf16.mxu0 %v3741
    %4335 = vmatpush1.bf16.msra.mxu0 %v3740
    %4336 = vmatprep.subr.bf16.mxu0 %v3760
    %4337 = vmatpush1.bf16.msra.mxu0 %v3759
    %4338 = vmatprep.subr.bf16.mxu0 %v3779
    %4339 = vmatpush1.bf16.msra.mxu0 %v3778
    %4340 = vmatprep.subr.bf16.mxu0 %v3798
    %4341 = vmatpush1.bf16.msra.mxu0 %v3797
    %4342 = vmatprep.subr.bf16.mxu0 %v3817
    %4343 = vmatpush1.bf16.msra.mxu0 %v3816
    %4344 = vmatprep.subr.bf16.mxu0 %v3836
    %4345 = vmatpush1.bf16.msra.mxu0 %v3835
    %4346 = vmatprep.subr.bf16.mxu0 %v3855
    %4347 = vmatpush1.bf16.msra.mxu0 %v3854
    %4348 = vmatprep.subr.bf16.mxu0 %v3874
    %4349 = vmatpush1.bf16.msra.mxu0 %v3873
    %4350 = vmatprep.subr.bf16.mxu0 %v3893
    %4351 = vmatpush1.bf16.msra.mxu0 %v3892
    %4352 = vmatprep.subr.bf16.mxu0 %v3912
    %4353 = vmatpush1.bf16.msra.mxu0 %v3911
    %4354 = vmatprep.subr.bf16.mxu0 %v3931
    %4355 = vmatpush1.bf16.msra.mxu0 %v3930
    %4356 = vmatprep.subr.bf16.mxu0 %v3950
    %4357 = vmatpush1.bf16.msra.mxu0 %v3949
    %4358 = vmatprep.subr.bf16.mxu0 %v4036
    %4359 = vmatpush1.bf16.msra.mxu0 %v4033
    %4360 = vmatprep.subr.bf16.mxu0 0
    %4361 = vmatpush1.bf16.msra.mxu0 0
    %4362 = vmatprep.subr.bf16.mxu0 0
    %4363 = vmatpush1.bf16.msra.mxu0 0
    %4364 = vmatprep.subr.bf16.mxu0 0
    %4365 = vmatpush1.bf16.msra.mxu0 0
    %4366 = vmatprep.mubr.bf16.mxu0 %v3987
    %4367 = vmatmul.mubr.bf16.gmra.mrb[0].mxu0 %v3982
    %v4368 = vpop.f32.mrb[0].mxu0
    %v4369 = vadd.f32 %v3977, %v4368
    %v4370 = vpop.f32.mrb[0].mxu0
    %v4371 = vadd.f32 %v3977, %v4370
    %v4372 = vpop.f32.mrb[0].mxu0
    %v4373 = vpop.f32.mrb[0].mxu0
    %4374 = vdwg.mxu0
    %4375 = vmatprep.subr.bf16.mxu0 %v3743
    %4376 = vmatpush1.bf16.msra.mxu0 %v3742
    %4377 = vmatprep.subr.bf16.mxu0 %v3762
    %4378 = vmatpush1.bf16.msra.mxu0 %v3761
    %4379 = vmatprep.subr.bf16.mxu0 %v3781
    %4380 = vmatpush1.bf16.msra.mxu0 %v3780
    %4381 = vmatprep.subr.bf16.mxu0 %v3800
    %4382 = vmatpush1.bf16.msra.mxu0 %v3799
    %4383 = vmatprep.subr.bf16.mxu0 %v3819
    %4384 = vmatpush1.bf16.msra.mxu0 %v3818
    %4385 = vmatprep.subr.bf16.mxu0 %v3838
    %4386 = vmatpush1.bf16.msra.mxu0 %v3837
    %4387 = vmatprep.subr.bf16.mxu0 %v3857
    %4388 = vmatpush1.bf16.msra.mxu0 %v3856
    %4389 = vmatprep.subr.bf16.mxu0 %v3876
    %4390 = vmatpush1.bf16.msra.mxu0 %v3875
    %4391 = vmatprep.subr.bf16.mxu0 %v3895
    %4392 = vmatpush1.bf16.msra.mxu0 %v3894
    %4393 = vmatprep.subr.bf16.mxu0 %v3914
    %4394 = vmatpush1.bf16.msra.mxu0 %v3913
    %4395 = vmatprep.subr.bf16.mxu0 %v3933
    %4396 = vmatpush1.bf16.msra.mxu0 %v3932
    %4397 = vmatprep.subr.bf16.mxu0 %v3952
    %4398 = vmatpush1.bf16.msra.mxu0 %v3951
    %4399 = vmatprep.subr.bf16.mxu0 %v4042
    %4400 = vmatpush1.bf16.msra.mxu0 %v4039
    %4401 = vmatprep.subr.bf16.mxu0 0
    %4402 = vmatpush1.bf16.msra.mxu0 0
    %4403 = vmatprep.subr.bf16.mxu0 0
    %4404 = vmatpush1.bf16.msra.mxu0 0
    %4405 = vmatprep.subr.bf16.mxu0 0
    %4406 = vmatpush1.bf16.msra.mxu0 0
    %4407 = vmatprep.mubr.bf16.mxu0 %v3987
    %4408 = vmatmul.mubr.bf16.gmra.mrb[0].mxu0 %v3982
    %v4409 = vpop.f32.mrb[0].mxu0
    %v4410 = vadd.f32 %v3977, %v4409
    %v4411 = vpop.f32.mrb[0].mxu0
    %v4412 = vadd.f32 %v3977, %v4411
    %v4413 = vpop.f32.mrb[0].mxu0
    %v4414 = vpop.f32.mrb[0].mxu0
    %4415 = vdwg.mxu0
    %4416 = vmatprep.subr.bf16.mxu0 0
    %4417 = vmatpush1.bf16.msra.mxu0 %v3744
    %4418 = vmatprep.subr.bf16.mxu0 0
    %4419 = vmatpush1.bf16.msra.mxu0 %v3763
    %4420 = vmatprep.subr.bf16.mxu0 0
    %4421 = vmatpush1.bf16.msra.mxu0 %v3782
    %4422 = vmatprep.subr.bf16.mxu0 0
    %4423 = vmatpush1.bf16.msra.mxu0 %v3801
    %4424 = vmatprep.subr.bf16.mxu0 0
    %4425 = vmatpush1.bf16.msra.mxu0 %v3820
    %4426 = vmatprep.subr.bf16.mxu0 0
    %4427 = vmatpush1.bf16.msra.mxu0 %v3839
    %4428 = vmatprep.subr.bf16.mxu0 0
    %4429 = vmatpush1.bf16.msra.mxu0 %v3858
    %4430 = vmatprep.subr.bf16.mxu0 0
    %4431 = vmatpush1.bf16.msra.mxu0 %v3877
    %4432 = vmatprep.subr.bf16.mxu0 0
    %4433 = vmatpush1.bf16.msra.mxu0 %v3896
    %4434 = vmatprep.subr.bf16.mxu0 0
    %4435 = vmatpush1.bf16.msra.mxu0 %v3915
    %4436 = vmatprep.subr.bf16.mxu0 0
    %4437 = vmatpush1.bf16.msra.mxu0 %v3934
    %4438 = vmatprep.subr.bf16.mxu0 0
    %4439 = vmatpush1.bf16.msra.mxu0 %v3953
    %4440 = vmatprep.subr.bf16.mxu0 0
    %4441 = vmatpush1.bf16.msra.mxu0 %v4045
    %4442 = vmatprep.subr.bf16.mxu0 0
    %4443 = vmatpush1.bf16.msra.mxu0 0
    %4444 = vmatprep.subr.bf16.mxu0 0
    %4445 = vmatpush1.bf16.msra.mxu0 0
    %4446 = vmatprep.subr.bf16.mxu0 0
    %4447 = vmatpush1.bf16.msra.mxu0 0
    %4448 = vmatprep.mubr.bf16.mxu0 %v3987
    %4449 = vmatmul.mubr.bf16.gmra.mrb[0].mxu0 %v3982
    %v4450 = vpop.f32.mrb[0].mxu0
    %v4451 = vadd.f32 %v3977, %v4450
    %v4452 = vpop.f32.mrb[0].mxu0
    %v4453 = vpop.f32.mrb[0].mxu0
    %v4454 = vpop.f32.mrb[0].mxu0
    %4455 = vdwg.mxu0
    %v4456 = vmax.f32 %v4082, 0.0
    %v4457 = vmax.f32 %v4084, 0.0
    %v4458 = vmax.f32 %v4123, 0.0
    %v4459 = vmax.f32 %v4125, 0.0
    %v4460 = vmax.f32 %v4164, 0.0
    %v4461 = vmax.f32 %v4166, 0.0
    %v4462 = vmax.f32 %v4205, 0.0
    %v4463 = vmax.f32 %v4207, 0.0
    %v4464 = vmax.f32 %v4246, 0.0
    %v4465 = vmax.f32 %v4248, 0.0
    %v4466 = vmax.f32 %v4287, 0.0
    %v4467 = vmax.f32 %v4289, 0.0
    %v4468 = vmax.f32 %v4328, 0.0
    %v4469 = vmax.f32 %v4330, 0.0
    %v4470 = vmax.f32 %v4369, 0.0
    %v4471 = vmax.f32 %v4371, 0.0
    %v4472 = vmax.f32 %v4410, 0.0
    %v4473 = vmax.f32 %v4412, 0.0
    %v4474 = vmax.f32 %v4451, 0.0
    %4494 = vrot.lane.b32.xlu0 %v4456, 127
    %v4495 = vpop.permute.xlu0 %4494
    %4496 = vrot.lane.b32.xlu0 %v4457, 127
    %v4497 = vpop.permute.xlu0 %4496
    %4498 = vrot.lane.b32.xlu0 %v4458, 127
    %v4499 = vpop.permute.xlu0 %4498
    %4500 = vrot.lane.b32.xlu0 %v4459, 127
    %v4501 = vpop.permute.xlu0 %4500
    %4502 = vrot.lane.b32.xlu0 %v4460, 127
    %v4503 = vpop.permute.xlu0 %4502
    %4504 = vrot.lane.b32.xlu0 %v4461, 127
    %v4505 = vpop.permute.xlu0 %4504
    %4506 = vrot.lane.b32.xlu0 %v4462, 127
    %v4507 = vpop.permute.xlu0 %4506
    %4508 = vrot.lane.b32.xlu0 %v4463, 127
    %v4509 = vpop.permute.xlu0 %4508
    %4510 = vrot.lane.b32.xlu0 %v4464, 127
    %v4511 = vpop.permute.xlu0 %4510
    %4512 = vrot.lane.b32.xlu0 %v4465, 127
    %v4513 = vpop.permute.xlu0 %4512
    %4514 = vrot.lane.b32.xlu0 %v4466, 127
    %v4515 = vpop.permute.xlu0 %4514
    %4516 = vrot.lane.b32.xlu0 %v4467, 127
    %v4517 = vpop.permute.xlu0 %4516
    %4518 = vrot.lane.b32.xlu0 %v4468, 127
    %v4519 = vpop.permute.xlu0 %4518
    %4520 = vrot.lane.b32.xlu0 %v4469, 127
    %v4521 = vpop.permute.xlu0 %4520
    %4522 = vrot.lane.b32.xlu0 %v4470, 127
    %v4523 = vpop.permute.xlu0 %4522
    %4524 = vrot.lane.b32.xlu0 %v4471, 127
    %v4525 = vpop.permute.xlu0 %4524
    %4526 = vrot.lane.b32.xlu0 %v4472, 127
    %v4527 = vpop.permute.xlu0 %4526
    %4528 = vrot.lane.b32.xlu0 %v4473, 127
    %v4529 = vpop.permute.xlu0 %4528
    %4530 = vrot.lane.b32.xlu0 %v4474, 127
    %v4531 = vpop.permute.xlu0 %4530
    %v4532 = vsel %vm158, %v4495, %v4497
    %v4533 = vsel %vm158, %v4497, %v4499
    %v4534 = vsel %vm158, %v4499, %v4501
    %v4535 = vsel %vm158, %v4501, %v4503
    %v4536 = vsel %vm158, %v4503, %v4505
    %v4537 = vsel %vm158, %v4505, %v4507
    %v4538 = vsel %vm158, %v4507, %v4509
    %v4539 = vsel %vm158, %v4509, %v4511
    %v4540 = vsel %vm158, %v4511, %v4513
    %v4541 = vsel %vm158, %v4513, %v4515
    %v4542 = vsel %vm158, %v4515, %v4517
    %v4543 = vsel %vm158, %v4517, %v4519
    %v4544 = vsel %vm158, %v4519, %v4521
    %v4545 = vsel %vm158, %v4521, %v4523
    %v4546 = vsel %vm158, %v4523, %v4525
    %v4547 = vsel %vm158, %v4525, %v4527
    %v4548 = vsel %vm158, %v4527, %v4529
    %v4549 = vsel %vm158, %v4529, %v4531
    %v4569 = vmax.f32 %v4456, %v4532
    %v4570 = vmax.f32 %v4457, %v4533
    %v4571 = vmax.f32 %v4458, %v4534
    %v4572 = vmax.f32 %v4459, %v4535
    %v4573 = vmax.f32 %v4460, %v4536
    %v4574 = vmax.f32 %v4461, %v4537
    %v4575 = vmax.f32 %v4462, %v4538
    %v4576 = vmax.f32 %v4463, %v4539
    %v4577 = vmax.f32 %v4464, %v4540
    %v4578 = vmax.f32 %v4465, %v4541
    %v4579 = vmax.f32 %v4466, %v4542
    %v4580 = vmax.f32 %v4467, %v4543
    %v4581 = vmax.f32 %v4468, %v4544
    %v4582 = vmax.f32 %v4469, %v4545
    %v4583 = vmax.f32 %v4470, %v4546
    %v4584 = vmax.f32 %v4471, %v4547
    %v4585 = vmax.f32 %v4472, %v4548
    %v4586 = vmax.f32 %v4473, %v4549
    %v4587 = vmax.f32 %v4474, %v4531
    %4607 = vrot.lane.b32.xlu0 %v4569, 96
    %v4608 = vpop.permute.xlu0 %4607
    %4609 = vrot.lane.b32.xlu0 %v4570, 96
    %v4610 = vpop.permute.xlu0 %4609
    %4611 = vrot.lane.b32.xlu0 %v4571, 96
    %v4612 = vpop.permute.xlu0 %4611
    %4613 = vrot.lane.b32.xlu0 %v4572, 96
    %v4614 = vpop.permute.xlu0 %4613
    %4615 = vrot.lane.b32.xlu0 %v4573, 96
    %v4616 = vpop.permute.xlu0 %4615
    %4617 = vrot.lane.b32.xlu0 %v4574, 96
    %v4618 = vpop.permute.xlu0 %4617
    %4619 = vrot.lane.b32.xlu0 %v4575, 96
    %v4620 = vpop.permute.xlu0 %4619
    %4621 = vrot.lane.b32.xlu0 %v4576, 96
    %v4622 = vpop.permute.xlu0 %4621
    %4623 = vrot.lane.b32.xlu0 %v4577, 96
    %v4624 = vpop.permute.xlu0 %4623
    %4625 = vrot.lane.b32.xlu0 %v4578, 96
    %v4626 = vpop.permute.xlu0 %4625
    %4627 = vrot.lane.b32.xlu0 %v4579, 96
    %v4628 = vpop.permute.xlu0 %4627
    %4629 = vrot.lane.b32.xlu0 %v4580, 96
    %v4630 = vpop.permute.xlu0 %4629
    %4631 = vrot.lane.b32.xlu0 %v4581, 96
    %v4632 = vpop.permute.xlu0 %4631
    %4633 = vrot.lane.b32.xlu0 %v4582, 96
    %v4634 = vpop.permute.xlu0 %4633
    %4635 = vrot.lane.b32.xlu0 %v4583, 96
    %v4636 = vpop.permute.xlu0 %4635
    %4637 = vrot.lane.b32.xlu0 %v4584, 96
    %v4638 = vpop.permute.xlu0 %4637
    %4639 = vrot.lane.b32.xlu0 %v4585, 96
    %v4640 = vpop.permute.xlu0 %4639
    %4641 = vrot.lane.b32.xlu0 %v4586, 96
    %v4642 = vpop.permute.xlu0 %4641
    %4643 = vrot.lane.b32.xlu0 %v4587, 96
    %v4644 = vpop.permute.xlu0 %4643
    %v4645 = vsel %vm694, %v4608, %v4610
    %v4646 = vsel %vm694, %v4610, %v4612
    %v4647 = vsel %vm694, %v4612, %v4614
    %v4648 = vsel %vm694, %v4614, %v4616
    %v4649 = vsel %vm694, %v4616, %v4618
    %v4650 = vsel %vm694, %v4618, %v4620
    %v4651 = vsel %vm694, %v4620, %v4622
    %v4652 = vsel %vm694, %v4622, %v4624
    %v4653 = vsel %vm694, %v4624, %v4626
    %v4654 = vsel %vm694, %v4626, %v4628
    %v4655 = vsel %vm694, %v4628, %v4630
    %v4656 = vsel %vm694, %v4630, %v4632
    %v4657 = vsel %vm694, %v4632, %v4634
    %v4658 = vsel %vm694, %v4634, %v4636
    %v4659 = vsel %vm694, %v4636, %v4638
    %v4660 = vsel %vm694, %v4638, %v4640
    %v4661 = vsel %vm694, %v4640, %v4642
    %v4662 = vsel %vm694, %v4642, %v4644
    %v4682 = vmax.f32 %v4569, %v4645
    %v4683 = vmax.f32 %v4570, %v4646
    %v4684 = vmax.f32 %v4571, %v4647
    %v4685 = vmax.f32 %v4572, %v4648
    %v4686 = vmax.f32 %v4573, %v4649
    %v4687 = vmax.f32 %v4574, %v4650
    %v4688 = vmax.f32 %v4575, %v4651
    %v4689 = vmax.f32 %v4576, %v4652
    %v4690 = vmax.f32 %v4577, %v4653
    %v4691 = vmax.f32 %v4578, %v4654
    %v4692 = vmax.f32 %v4579, %v4655
    %v4693 = vmax.f32 %v4580, %v4656
    %v4694 = vmax.f32 %v4581, %v4657
    %v4695 = vmax.f32 %v4582, %v4658
    %v4696 = vmax.f32 %v4583, %v4659
    %v4697 = vmax.f32 %v4584, %v4660
    %v4698 = vmax.f32 %v4585, %v4661
    %v4699 = vmax.f32 %v4586, %v4662
    %v4700 = vmax.f32 %v4587, %v4644
    %4701 = vst [vmem:[#allocation3] sm:$0xff] %v4682
    %4702 = vst [vmem:[#allocation3 + $0x8] sm:$0xff] %v4683
    %4703 = vst [vmem:[#allocation3 + $0x10] sm:$0xff] %v4684
    %4704 = vst [vmem:[#allocation3 + $0x18] sm:$0xff] %v4685
    %4705 = vst [vmem:[#allocation3 + $0x20] sm:$0xff] %v4686
    %4706 = vst [vmem:[#allocation3 + $0x28] sm:$0xff] %v4687
    %4707 = vst [vmem:[#allocation3 + $0x30] sm:$0xff] %v4688
    %4708 = vst [vmem:[#allocation3 + $0x38] sm:$0xff] %v4689
    %4709 = vst [vmem:[#allocation3 + $0x40] sm:$0xff] %v4690
    %4710 = vst [vmem:[#allocation3 + $0x48] sm:$0xff] %v4691
    %4711 = vst [vmem:[#allocation3 + $0x50] sm:$0xff] %v4692
    %4712 = vst [vmem:[#allocation3 + $0x58] sm:$0xff] %v4693
    %4713 = vst [vmem:[#allocation3 + $0x60] sm:$0xff] %v4694
    %4714 = vst [vmem:[#allocation3 + $0x68] sm:$0xff] %v4695
    %4715 = vst [vmem:[#allocation3 + $0x70] sm:$0xff] %v4696
    %4716 = vst [vmem:[#allocation3 + $0x78] sm:$0xff] %v4697
    %vm4717 = vcmask 539648
    %4718 = vst.msk [vmem:[#allocation3 + $0x80] sm:$0xff] %vm4717, %v4698
    %4736 = vrot.lane.b32.xlu0 %v4682, 126
    %v4737 = vpop.permute.xlu0 %4736
    %4738 = vrot.lane.b32.xlu0 %v4683, 126
    %v4739 = vpop.permute.xlu0 %4738
    %4740 = vrot.lane.b32.xlu0 %v4684, 126
    %v4741 = vpop.permute.xlu0 %4740
    %4742 = vrot.lane.b32.xlu0 %v4685, 126
    %v4743 = vpop.permute.xlu0 %4742
    %4744 = vrot.lane.b32.xlu0 %v4686, 126
    %v4745 = vpop.permute.xlu0 %4744
    %4746 = vrot.lane.b32.xlu0 %v4687, 126
    %v4747 = vpop.permute.xlu0 %4746
    %4748 = vrot.lane.b32.xlu0 %v4688, 126
    %v4749 = vpop.permute.xlu0 %4748
    %4750 = vrot.lane.b32.xlu0 %v4689, 126
    %v4751 = vpop.permute.xlu0 %4750
    %4752 = vrot.lane.b32.xlu0 %v4690, 126
    %v4753 = vpop.permute.xlu0 %4752
    %4754 = vrot.lane.b32.xlu0 %v4691, 126
    %v4755 = vpop.permute.xlu0 %4754
    %4756 = vrot.lane.b32.xlu0 %v4692, 126
    %v4757 = vpop.permute.xlu0 %4756
    %4758 = vrot.lane.b32.xlu0 %v4693, 126
    %v4759 = vpop.permute.xlu0 %4758
    %4760 = vrot.lane.b32.xlu0 %v4694, 126
    %v4761 = vpop.permute.xlu0 %4760
    %4762 = vrot.lane.b32.xlu0 %v4695, 126
    %v4763 = vpop.permute.xlu0 %4762
    %4764 = vrot.lane.b32.xlu0 %v4696, 126
    %v4765 = vpop.permute.xlu0 %4764
    %4766 = vrot.lane.b32.xlu0 %v4697, 126
    %v4767 = vpop.permute.xlu0 %4766
    %4768 = vrot.lane.b32.xlu0 %v4698, 126
    %v4769 = vpop.permute.xlu0 %4768
    %v4770 = vsel %vm291, %v4737, %v4739
    %v4771 = vsel %vm291, %v4739, %v4741
    %v4772 = vsel %vm291, %v4741, %v4743
    %v4773 = vsel %vm291, %v4743, %v4745
    %v4774 = vsel %vm291, %v4745, %v4747
    %v4775 = vsel %vm291, %v4747, %v4749
    %v4776 = vsel %vm291, %v4749, %v4751
    %v4777 = vsel %vm291, %v4751, %v4753
    %v4778 = vsel %vm291, %v4753, %v4755
    %v4779 = vsel %vm291, %v4755, %v4757
    %v4780 = vsel %vm291, %v4757, %v4759
    %v4781 = vsel %vm291, %v4759, %v4761
    %v4782 = vsel %vm291, %v4761, %v4763
    %v4783 = vsel %vm291, %v4763, %v4765
    %v4784 = vsel %vm291, %v4765, %v4767
    %v4785 = vsel %vm291, %v4767, %v4769
    %4803 = vst [vmem:[#allocation3 + $0x88] sm:$0xff] %v4770
    %4804 = vst [vmem:[#allocation3 + $0x90] sm:$0xff] %v4771
    %4805 = vst [vmem:[#allocation3 + $0x98] sm:$0xff] %v4772
    %4806 = vst [vmem:[#allocation3 + $0xa0] sm:$0xff] %v4773
    %4807 = vst [vmem:[#allocation3 + $0xa8] sm:$0xff] %v4774
    %4808 = vst [vmem:[#allocation3 + $0xb0] sm:$0xff] %v4775
    %4809 = vst [vmem:[#allocation3 + $0xb8] sm:$0xff] %v4776
    %4810 = vst [vmem:[#allocation3 + $0xc0] sm:$0xff] %v4777
    %4811 = vst [vmem:[#allocation3 + $0xc8] sm:$0xff] %v4778
    %4812 = vst [vmem:[#allocation3 + $0xd0] sm:$0xff] %v4779
    %4813 = vst [vmem:[#allocation3 + $0xd8] sm:$0xff] %v4780
    %4814 = vst [vmem:[#allocation3 + $0xe0] sm:$0xff] %v4781
    %4815 = vst [vmem:[#allocation3 + $0xe8] sm:$0xff] %v4782
    %4816 = vst [vmem:[#allocation3 + $0xf0] sm:$0xff] %v4783
    %4817 = vst [vmem:[#allocation3 + $0xf8] sm:$0xff] %v4784
    %4818 = vst [vmem:[#allocation3 + $0x100] sm:$0xff] %v4785
    %4819 = vst.msk [vmem:[#allocation3 + $0x108] sm:$0xff] %vm4717, %v4769
    %4820 = vrot.lane.b32.xlu0 %v4682, 124
    %v4821 = vpop.permute.xlu0 %4820
    %4822 = vrot.lane.b32.xlu0 %v4683, 124
    %v4823 = vpop.permute.xlu0 %4822
    %4824 = vrot.lane.b32.xlu0 %v4684, 124
    %v4825 = vpop.permute.xlu0 %4824
    %4826 = vrot.lane.b32.xlu0 %v4685, 124
    %v4827 = vpop.permute.xlu0 %4826
    %4828 = vrot.lane.b32.xlu0 %v4686, 124
    %v4829 = vpop.permute.xlu0 %4828
    %4830 = vrot.lane.b32.xlu0 %v4687, 124
    %v4831 = vpop.permute.xlu0 %4830
    %4832 = vrot.lane.b32.xlu0 %v4688, 124
    %v4833 = vpop.permute.xlu0 %4832
    %4834 = vrot.lane.b32.xlu0 %v4689, 124
    %v4835 = vpop.permute.xlu0 %4834
    %4836 = vrot.lane.b32.xlu0 %v4690, 124
    %v4837 = vpop.permute.xlu0 %4836
    %4838 = vrot.lane.b32.xlu0 %v4691, 124
    %v4839 = vpop.permute.xlu0 %4838
    %4840 = vrot.lane.b32.xlu0 %v4692, 124
    %v4841 = vpop.permute.xlu0 %4840
    %4842 = vrot.lane.b32.xlu0 %v4693, 124
    %v4843 = vpop.permute.xlu0 %4842
    %4844 = vrot.lane.b32.xlu0 %v4694, 124
    %v4845 = vpop.permute.xlu0 %4844
    %4846 = vrot.lane.b32.xlu0 %v4695, 124
    %v4847 = vpop.permute.xlu0 %4846
    %4848 = vrot.lane.b32.xlu0 %v4696, 124
    %v4849 = vpop.permute.xlu0 %4848
    %4850 = vrot.lane.b32.xlu0 %v4697, 124
    %v4851 = vpop.permute.xlu0 %4850
    %4852 = vrot.lane.b32.xlu0 %v4698, 124
    %v4853 = vpop.permute.xlu0 %4852
    %v4854 = vsel %vm557, %v4821, %v4823
    %v4855 = vsel %vm557, %v4823, %v4825
    %v4856 = vsel %vm557, %v4825, %v4827
    %v4857 = vsel %vm557, %v4827, %v4829
    %v4858 = vsel %vm557, %v4829, %v4831
    %v4859 = vsel %vm557, %v4831, %v4833
    %v4860 = vsel %vm557, %v4833, %v4835
    %v4861 = vsel %vm557, %v4835, %v4837
    %v4862 = vsel %vm557, %v4837, %v4839
    %v4863 = vsel %vm557, %v4839, %v4841
    %v4864 = vsel %vm557, %v4841, %v4843
    %v4865 = vsel %vm557, %v4843, %v4845
    %v4866 = vsel %vm557, %v4845, %v4847
    %v4867 = vsel %vm557, %v4847, %v4849
    %v4868 = vsel %vm557, %v4849, %v4851
    %v4869 = vsel %vm557, %v4851, %v4853
    %4887 = vst [vmem:[#allocation3 + $0x110] sm:$0xff] %v4854
    %4888 = vst [vmem:[#allocation3 + $0x118] sm:$0xff] %v4855
    %4889 = vst [vmem:[#allocation3 + $0x120] sm:$0xff] %v4856
    %4890 = vst [vmem:[#allocation3 + $0x128] sm:$0xff] %v4857
    %4891 = vst [vmem:[#allocation3 + $0x130] sm:$0xff] %v4858
    %4892 = vst [vmem:[#allocation3 + $0x138] sm:$0xff] %v4859
    %4893 = vst [vmem:[#allocation3 + $0x140] sm:$0xff] %v4860
    %4894 = vst [vmem:[#allocation3 + $0x148] sm:$0xff] %v4861
    %4895 = vst [vmem:[#allocation3 + $0x150] sm:$0xff] %v4862
    %4896 = vst [vmem:[#allocation3 + $0x158] sm:$0xff] %v4863
    %4897 = vst [vmem:[#allocation3 + $0x160] sm:$0xff] %v4864
    %4898 = vst [vmem:[#allocation3 + $0x168] sm:$0xff] %v4865
    %4899 = vst [vmem:[#allocation3 + $0x170] sm:$0xff] %v4866
    %4900 = vst [vmem:[#allocation3 + $0x178] sm:$0xff] %v4867
    %4901 = vst [vmem:[#allocation3 + $0x180] sm:$0xff] %v4868
    %4902 = vst [vmem:[#allocation3 + $0x188] sm:$0xff] %v4869
    %4903 = vst.msk [vmem:[#allocation3 + $0x190] sm:$0xff] %vm4717, %v4853
    %4904 = vrot.lane.b32.xlu0 %v4682, 122
    %v4905 = vpop.permute.xlu0 %4904
    %4906 = vrot.lane.b32.xlu0 %v4683, 122
    %v4907 = vpop.permute.xlu0 %4906
    %4908 = vrot.lane.b32.xlu0 %v4684, 122
    %v4909 = vpop.permute.xlu0 %4908
    %4910 = vrot.lane.b32.xlu0 %v4685, 122
    %v4911 = vpop.permute.xlu0 %4910
    %4912 = vrot.lane.b32.xlu0 %v4686, 122
    %v4913 = vpop.permute.xlu0 %4912
    %4914 = vrot.lane.b32.xlu0 %v4687, 122
    %v4915 = vpop.permute.xlu0 %4914
    %4916 = vrot.lane.b32.xlu0 %v4688, 122
    %v4917 = vpop.permute.xlu0 %4916
    %4918 = vrot.lane.b32.xlu0 %v4689, 122
    %v4919 = vpop.permute.xlu0 %4918
    %4920 = vrot.lane.b32.xlu0 %v4690, 122
    %v4921 = vpop.permute.xlu0 %4920
    %4922 = vrot.lane.b32.xlu0 %v4691, 122
    %v4923 = vpop.permute.xlu0 %4922
    %4924 = vrot.lane.b32.xlu0 %v4692, 122
    %v4925 = vpop.permute.xlu0 %4924
    %4926 = vrot.lane.b32.xlu0 %v4693, 122
    %v4927 = vpop.permute.xlu0 %4926
    %4928 = vrot.lane.b32.xlu0 %v4694, 122
    %v4929 = vpop.permute.xlu0 %4928
    %4930 = vrot.lane.b32.xlu0 %v4695, 122
    %v4931 = vpop.permute.xlu0 %4930
    %4932 = vrot.lane.b32.xlu0 %v4696, 122
    %v4933 = vpop.permute.xlu0 %4932
    %4934 = vrot.lane.b32.xlu0 %v4697, 122
    %v4935 = vpop.permute.xlu0 %4934
    %4936 = vrot.lane.b32.xlu0 %v4698, 122
    %v4937 = vpop.permute.xlu0 %4936
    %vm4938 = vcmask 998400
    %v4939 = vsel %vm4938, %v4905, %v4907
    %v4940 = vsel %vm4938, %v4907, %v4909
    %v4941 = vsel %vm4938, %v4909, %v4911
    %v4942 = vsel %vm4938, %v4911, %v4913
    %v4943 = vsel %vm4938, %v4913, %v4915
    %v4944 = vsel %vm4938, %v4915, %v4917
    %v4945 = vsel %vm4938, %v4917, %v4919
    %v4946 = vsel %vm4938, %v4919, %v4921
    %v4947 = vsel %vm4938, %v4921, %v4923
    %v4948 = vsel %vm4938, %v4923, %v4925
    %v4949 = vsel %vm4938, %v4925, %v4927
    %v4950 = vsel %vm4938, %v4927, %v4929
    %v4951 = vsel %vm4938, %v4929, %v4931
    %v4952 = vsel %vm4938, %v4931, %v4933
    %v4953 = vsel %vm4938, %v4933, %v4935
    %v4954 = vsel %vm4938, %v4935, %v4937
    %4972 = vst [vmem:[#allocation3 + $0x198] sm:$0xff] %v4939
    %4973 = vst [vmem:[#allocation3 + $0x1a0] sm:$0xff] %v4940
    %4974 = vst [vmem:[#allocation3 + $0x1a8] sm:$0xff] %v4941
    %4975 = vst [vmem:[#allocation3 + $0x1b0] sm:$0xff] %v4942
    %4976 = vst [vmem:[#allocation3 + $0x1b8] sm:$0xff] %v4943
    %4977 = vst [vmem:[#allocation3 + $0x1c0] sm:$0xff] %v4944
    %4978 = vst [vmem:[#allocation3 + $0x1c8] sm:$0xff] %v4945
    %4979 = vst [vmem:[#allocation3 + $0x1d0] sm:$0xff] %v4946
    %4980 = vst [vmem:[#allocation3 + $0x1d8] sm:$0xff] %v4947
    %4981 = vst [vmem:[#allocation3 + $0x1e0] sm:$0xff] %v4948
    %4982 = vst [vmem:[#allocation3 + $0x1e8] sm:$0xff] %v4949
    %4983 = vst [vmem:[#allocation3 + $0x1f0] sm:$0xff] %v4950
    %4984 = vst [vmem:[#allocation3 + $0x1f8] sm:$0xff] %v4951
    %4985 = vst [vmem:[#allocation3 + $0x200] sm:$0xff] %v4952
    %4986 = vst [vmem:[#allocation3 + $0x208] sm:$0xff] %v4953
    %4987 = vst [vmem:[#allocation3 + $0x210] sm:$0xff] %v4954
    %4988 = vst.msk [vmem:[#allocation3 + $0x218] sm:$0xff] %vm4717, %v4937
    %4989 = vrot.lane.b32.xlu0 %v4682, 120
    %v4990 = vpop.permute.xlu0 %4989
    %4991 = vrot.lane.b32.xlu0 %v4683, 120
    %v4992 = vpop.permute.xlu0 %4991
    %4993 = vrot.lane.b32.xlu0 %v4684, 120
    %v4994 = vpop.permute.xlu0 %4993
    %4995 = vrot.lane.b32.xlu0 %v4685, 120
    %v4996 = vpop.permute.xlu0 %4995
    %4997 = vrot.lane.b32.xlu0 %v4686, 120
    %v4998 = vpop.permute.xlu0 %4997
    %4999 = vrot.lane.b32.xlu0 %v4687, 120
    %v5000 = vpop.permute.xlu0 %4999
    %5001 = vrot.lane.b32.xlu0 %v4688, 120
    %v5002 = vpop.permute.xlu0 %5001
    %5003 = vrot.lane.b32.xlu0 %v4689, 120
    %v5004 = vpop.permute.xlu0 %5003
    %5005 = vrot.lane.b32.xlu0 %v4690, 120
    %v5006 = vpop.permute.xlu0 %5005
    %5007 = vrot.lane.b32.xlu0 %v4691, 120
    %v5008 = vpop.permute.xlu0 %5007
    %5009 = vrot.lane.b32.xlu0 %v4692, 120
    %v5010 = vpop.permute.xlu0 %5009
    %5011 = vrot.lane.b32.xlu0 %v4693, 120
    %v5012 = vpop.permute.xlu0 %5011
    %5013 = vrot.lane.b32.xlu0 %v4694, 120
    %v5014 = vpop.permute.xlu0 %5013
    %5015 = vrot.lane.b32.xlu0 %v4695, 120
    %v5016 = vpop.permute.xlu0 %5015
    %5017 = vrot.lane.b32.xlu0 %v4696, 120
    %v5018 = vpop.permute.xlu0 %5017
    %5019 = vrot.lane.b32.xlu0 %v4697, 120
    %v5020 = vpop.permute.xlu0 %5019
    %5021 = vrot.lane.b32.xlu0 %v4698, 120
    %v5022 = vpop.permute.xlu0 %5021
    %vm5023 = vcmask 982016
    %v5024 = vsel %vm5023, %v4990, %v4992
    %v5025 = vsel %vm5023, %v4992, %v4994
    %v5026 = vsel %vm5023, %v4994, %v4996
    %v5027 = vsel %vm5023, %v4996, %v4998
    %v5028 = vsel %vm5023, %v4998, %v5000
    %v5029 = vsel %vm5023, %v5000, %v5002
    %v5030 = vsel %vm5023, %v5002, %v5004
    %v5031 = vsel %vm5023, %v5004, %v5006
    %v5032 = vsel %vm5023, %v5006, %v5008
    %v5033 = vsel %vm5023, %v5008, %v5010
    %v5034 = vsel %vm5023, %v5010, %v5012
    %v5035 = vsel %vm5023, %v5012, %v5014
    %v5036 = vsel %vm5023, %v5014, %v5016
    %v5037 = vsel %vm5023, %v5016, %v5018
    %v5038 = vsel %vm5023, %v5018, %v5020
    %v5039 = vsel %vm5023, %v5020, %v5022
    %5057 = vst [vmem:[#allocation3 + $0x220] sm:$0xff] %v5024
    %5058 = vst [vmem:[#allocation3 + $0x228] sm:$0xff] %v5025
    %5059 = vst [vmem:[#allocation3 + $0x230] sm:$0xff] %v5026
    %5060 = vst [vmem:[#allocation3 + $0x238] sm:$0xff] %v5027
    %5061 = vst [vmem:[#allocation3 + $0x240] sm:$0xff] %v5028
    %5062 = vst [vmem:[#allocation3 + $0x248] sm:$0xff] %v5029
    %5063 = vst [vmem:[#allocation3 + $0x250] sm:$0xff] %v5030
    %5064 = vst [vmem:[#allocation3 + $0x258] sm:$0xff] %v5031
    %5065 = vst [vmem:[#allocation3 + $0x260] sm:$0xff] %v5032
    %5066 = vst [vmem:[#allocation3 + $0x268] sm:$0xff] %v5033
    %5067 = vst [vmem:[#allocation3 + $0x270] sm:$0xff] %v5034
    %5068 = vst [vmem:[#allocation3 + $0x278] sm:$0xff] %v5035
    %5069 = vst [vmem:[#allocation3 + $0x280] sm:$0xff] %v5036
    %5070 = vst [vmem:[#allocation3 + $0x288] sm:$0xff] %v5037
    %5071 = vst [vmem:[#allocation3 + $0x290] sm:$0xff] %v5038
    %5072 = vst [vmem:[#allocation3 + $0x298] sm:$0xff] %v5039
    %5073 = vst.msk [vmem:[#allocation3 + $0x2a0] sm:$0xff] %vm4717, %v5022
    %5075 = vrot.lane.b32.xlu0 %v4682, 64
    %v5076 = vpop.permute.xlu0 %5075
    %5077 = vrot.lane.b32.xlu0 %v4683, 64
    %v5078 = vpop.permute.xlu0 %5077
    %5079 = vrot.lane.b32.xlu0 %v4684, 64
    %v5080 = vpop.permute.xlu0 %5079
    %5081 = vrot.lane.b32.xlu0 %v4685, 64
    %v5082 = vpop.permute.xlu0 %5081
    %5083 = vrot.lane.b32.xlu0 %v4686, 64
    %v5084 = vpop.permute.xlu0 %5083
    %5085 = vrot.lane.b32.xlu0 %v4687, 64
    %v5086 = vpop.permute.xlu0 %5085
    %5087 = vrot.lane.b32.xlu0 %v4688, 64
    %v5088 = vpop.permute.xlu0 %5087
    %5089 = vrot.lane.b32.xlu0 %v4689, 64
    %v5090 = vpop.permute.xlu0 %5089
    %5091 = vrot.lane.b32.xlu0 %v4690, 64
    %v5092 = vpop.permute.xlu0 %5091
    %5093 = vrot.lane.b32.xlu0 %v4691, 64
    %v5094 = vpop.permute.xlu0 %5093
    %5095 = vrot.lane.b32.xlu0 %v4692, 64
    %v5096 = vpop.permute.xlu0 %5095
    %5097 = vrot.lane.b32.xlu0 %v4693, 64
    %v5098 = vpop.permute.xlu0 %5097
    %5099 = vrot.lane.b32.xlu0 %v4694, 64
    %v5100 = vpop.permute.xlu0 %5099
    %5101 = vrot.lane.b32.xlu0 %v4695, 64
    %v5102 = vpop.permute.xlu0 %5101
    %5103 = vrot.lane.b32.xlu0 %v4696, 64
    %v5104 = vpop.permute.xlu0 %5103
    %5105 = vrot.lane.b32.xlu0 %v4697, 64
    %v5106 = vpop.permute.xlu0 %5105
    %5107 = vrot.lane.b32.xlu0 %v4698, 64
    %v5108 = vpop.permute.xlu0 %5107
    %5109 = vrot.lane.b32.xlu0 %v4699, 64
    %v5110 = vpop.permute.xlu0 %5109
    %v5111 = vsel %vm1384, %v5076, %v5078
    %v5112 = vsel %vm1384, %v5078, %v5080
    %v5113 = vsel %vm1384, %v5080, %v5082
    %v5114 = vsel %vm1384, %v5082, %v5084
    %v5115 = vsel %vm1384, %v5084, %v5086
    %v5116 = vsel %vm1384, %v5086, %v5088
    %v5117 = vsel %vm1384, %v5088, %v5090
    %v5118 = vsel %vm1384, %v5090, %v5092
    %v5119 = vsel %vm1384, %v5092, %v5094
    %v5120 = vsel %vm1384, %v5094, %v5096
    %v5121 = vsel %vm1384, %v5096, %v5098
    %v5122 = vsel %vm1384, %v5098, %v5100
    %v5123 = vsel %vm1384, %v5100, %v5102
    %v5124 = vsel %vm1384, %v5102, %v5104
    %v5125 = vsel %vm1384, %v5104, %v5106
    %v5126 = vsel %vm1384, %v5106, %v5108
    %v5127 = vsel %vm1384, %v5108, %v5110
    %5145 = vst [vmem:[#allocation3 + $0x2a8] sm:$0xff] %v5111
    %5146 = vst [vmem:[#allocation3 + $0x2b0] sm:$0xff] %v5112
    %5147 = vst [vmem:[#allocation3 + $0x2b8] sm:$0xff] %v5113
    %5148 = vst [vmem:[#allocation3 + $0x2c0] sm:$0xff] %v5114
    %5149 = vst [vmem:[#allocation3 + $0x2c8] sm:$0xff] %v5115
    %5150 = vst [vmem:[#allocation3 + $0x2d0] sm:$0xff] %v5116
    %5151 = vst [vmem:[#allocation3 + $0x2d8] sm:$0xff] %v5117
    %5152 = vst [vmem:[#allocation3 + $0x2e0] sm:$0xff] %v5118
    %5153 = vst [vmem:[#allocation3 + $0x2e8] sm:$0xff] %v5119
    %5154 = vst [vmem:[#allocation3 + $0x2f0] sm:$0xff] %v5120
    %5155 = vst [vmem:[#allocation3 + $0x2f8] sm:$0xff] %v5121
    %5156 = vst [vmem:[#allocation3 + $0x300] sm:$0xff] %v5122
    %5157 = vst [vmem:[#allocation3 + $0x308] sm:$0xff] %v5123
    %5158 = vst [vmem:[#allocation3 + $0x310] sm:$0xff] %v5124
    %5159 = vst [vmem:[#allocation3 + $0x318] sm:$0xff] %v5125
    %5160 = vst [vmem:[#allocation3 + $0x320] sm:$0xff] %v5126
    %5161 = vst.msk [vmem:[#allocation3 + $0x328] sm:$0xff] %vm4717, %v5127
    %5162 = vrot.lane.b32.xlu0 %v4682, 62
    %v5163 = vpop.permute.xlu0 %5162
    %5164 = vrot.lane.b32.xlu0 %v4683, 62
    %v5165 = vpop.permute.xlu0 %5164
    %5166 = vrot.lane.b32.xlu0 %v4684, 62
    %v5167 = vpop.permute.xlu0 %5166
    %5168 = vrot.lane.b32.xlu0 %v4685, 62
    %v5169 = vpop.permute.xlu0 %5168
    %5170 = vrot.lane.b32.xlu0 %v4686, 62
    %v5171 = vpop.permute.xlu0 %5170
    %5172 = vrot.lane.b32.xlu0 %v4687, 62
    %v5173 = vpop.permute.xlu0 %5172
    %5174 = vrot.lane.b32.xlu0 %v4688, 62
    %v5175 = vpop.permute.xlu0 %5174
    %5176 = vrot.lane.b32.xlu0 %v4689, 62
    %v5177 = vpop.permute.xlu0 %5176
    %5178 = vrot.lane.b32.xlu0 %v4690, 62
    %v5179 = vpop.permute.xlu0 %5178
    %5180 = vrot.lane.b32.xlu0 %v4691, 62
    %v5181 = vpop.permute.xlu0 %5180
    %5182 = vrot.lane.b32.xlu0 %v4692, 62
    %v5183 = vpop.permute.xlu0 %5182
    %5184 = vrot.lane.b32.xlu0 %v4693, 62
    %v5185 = vpop.permute.xlu0 %5184
    %5186 = vrot.lane.b32.xlu0 %v4694, 62
    %v5187 = vpop.permute.xlu0 %5186
    %5188 = vrot.lane.b32.xlu0 %v4695, 62
    %v5189 = vpop.permute.xlu0 %5188
    %5190 = vrot.lane.b32.xlu0 %v4696, 62
    %v5191 = vpop.permute.xlu0 %5190
    %5192 = vrot.lane.b32.xlu0 %v4697, 62
    %v5193 = vpop.permute.xlu0 %5192
    %5194 = vrot.lane.b32.xlu0 %v4698, 62
    %v5195 = vpop.permute.xlu0 %5194
    %5196 = vrot.lane.b32.xlu0 %v4699, 62
    %v5197 = vpop.permute.xlu0 %5196
    %v5198 = vsel %vm1660, %v5163, %v5165
    %v5199 = vsel %vm1660, %v5165, %v5167
    %v5200 = vsel %vm1660, %v5167, %v5169
    %v5201 = vsel %vm1660, %v5169, %v5171
    %v5202 = vsel %vm1660, %v5171, %v5173
    %v5203 = vsel %vm1660, %v5173, %v5175
    %v5204 = vsel %vm1660, %v5175, %v5177
    %v5205 = vsel %vm1660, %v5177, %v5179
    %v5206 = vsel %vm1660, %v5179, %v5181
    %v5207 = vsel %vm1660, %v5181, %v5183
    %v5208 = vsel %vm1660, %v5183, %v5185
    %v5209 = vsel %vm1660, %v5185, %v5187
    %v5210 = vsel %vm1660, %v5187, %v5189
    %v5211 = vsel %vm1660, %v5189, %v5191
    %v5212 = vsel %vm1660, %v5191, %v5193
    %v5213 = vsel %vm1660, %v5193, %v5195
    %v5214 = vsel %vm1660, %v5195, %v5197
    %5232 = vst [vmem:[#allocation3 + $0x330] sm:$0xff] %v5198
    %5233 = vst [vmem:[#allocation3 + $0x338] sm:$0xff] %v5199
    %5234 = vst [vmem:[#allocation3 + $0x340] sm:$0xff] %v5200
    %5235 = vst [vmem:[#allocation3 + $0x348] sm:$0xff] %v5201
    %5236 = vst [vmem:[#allocation3 + $0x350] sm:$0xff] %v5202
    %5237 = vst [vmem:[#allocation3 + $0x358] sm:$0xff] %v5203
    %5238 = vst [vmem:[#allocation3 + $0x360] sm:$0xff] %v5204
    %5239 = vst [vmem:[#allocation3 + $0x368] sm:$0xff] %v5205
    %5240 = vst [vmem:[#allocation3 + $0x370] sm:$0xff] %v5206
    %5241 = vst [vmem:[#allocation3 + $0x378] sm:$0xff] %v5207
    %5242 = vst [vmem:[#allocation3 + $0x380] sm:$0xff] %v5208
    %5243 = vst [vmem:[#allocation3 + $0x388] sm:$0xff] %v5209
    %5244 = vst [vmem:[#allocation3 + $0x390] sm:$0xff] %v5210
    %5245 = vst [vmem:[#allocation3 + $0x398] sm:$0xff] %v5211
    %5246 = vst [vmem:[#allocation3 + $0x3a0] sm:$0xff] %v5212
    %5247 = vst [vmem:[#allocation3 + $0x3a8] sm:$0xff] %v5213
    %5248 = vst.msk [vmem:[#allocation3 + $0x3b0] sm:$0xff] %vm4717, %v5214
    %5249 = vrot.lane.b32.xlu0 %v4682, 60
    %v5250 = vpop.permute.xlu0 %5249
    %5251 = vrot.lane.b32.xlu0 %v4683, 60
    %v5252 = vpop.permute.xlu0 %5251
    %5253 = vrot.lane.b32.xlu0 %v4684, 60
    %v5254 = vpop.permute.xlu0 %5253
    %5255 = vrot.lane.b32.xlu0 %v4685, 60
    %v5256 = vpop.permute.xlu0 %5255
    %5257 = vrot.lane.b32.xlu0 %v4686, 60
    %v5258 = vpop.permute.xlu0 %5257
    %5259 = vrot.lane.b32.xlu0 %v4687, 60
    %v5260 = vpop.permute.xlu0 %5259
    %5261 = vrot.lane.b32.xlu0 %v4688, 60
    %v5262 = vpop.permute.xlu0 %5261
    %5263 = vrot.lane.b32.xlu0 %v4689, 60
    %v5264 = vpop.permute.xlu0 %5263
    %5265 = vrot.lane.b32.xlu0 %v4690, 60
    %v5266 = vpop.permute.xlu0 %5265
    %5267 = vrot.lane.b32.xlu0 %v4691, 60
    %v5268 = vpop.permute.xlu0 %5267
    %5269 = vrot.lane.b32.xlu0 %v4692, 60
    %v5270 = vpop.permute.xlu0 %5269
    %5271 = vrot.lane.b32.xlu0 %v4693, 60
    %v5272 = vpop.permute.xlu0 %5271
    %5273 = vrot.lane.b32.xlu0 %v4694, 60
    %v5274 = vpop.permute.xlu0 %5273
    %5275 = vrot.lane.b32.xlu0 %v4695, 60
    %v5276 = vpop.permute.xlu0 %5275
    %5277 = vrot.lane.b32.xlu0 %v4696, 60
    %v5278 = vpop.permute.xlu0 %5277
    %5279 = vrot.lane.b32.xlu0 %v4697, 60
    %v5280 = vpop.permute.xlu0 %5279
    %5281 = vrot.lane.b32.xlu0 %v4698, 60
    %v5282 = vpop.permute.xlu0 %5281
    %5283 = vrot.lane.b32.xlu0 %v4699, 60
    %v5284 = vpop.permute.xlu0 %5283
    %v5285 = vsel %vm1936, %v5250, %v5252
    %v5286 = vsel %vm1936, %v5252, %v5254
    %v5287 = vsel %vm1936, %v5254, %v5256
    %v5288 = vsel %vm1936, %v5256, %v5258
    %v5289 = vsel %vm1936, %v5258, %v5260
    %v5290 = vsel %vm1936, %v5260, %v5262
    %v5291 = vsel %vm1936, %v5262, %v5264
    %v5292 = vsel %vm1936, %v5264, %v5266
    %v5293 = vsel %vm1936, %v5266, %v5268
    %v5294 = vsel %vm1936, %v5268, %v5270
    %v5295 = vsel %vm1936, %v5270, %v5272
    %v5296 = vsel %vm1936, %v5272, %v5274
    %v5297 = vsel %vm1936, %v5274, %v5276
    %v5298 = vsel %vm1936, %v5276, %v5278
    %v5299 = vsel %vm1936, %v5278, %v5280
    %v5300 = vsel %vm1936, %v5280, %v5282
    %v5301 = vsel %vm1936, %v5282, %v5284
    %5319 = vst [vmem:[#allocation3 + $0x3b8] sm:$0xff] %v5285
    %5320 = vst [vmem:[#allocation3 + $0x3c0] sm:$0xff] %v5286
    %5321 = vst [vmem:[#allocation3 + $0x3c8] sm:$0xff] %v5287
    %5322 = vst [vmem:[#allocation3 + $0x3d0] sm:$0xff] %v5288
    %5323 = vst [vmem:[#allocation3 + $0x3d8] sm:$0xff] %v5289
    %5324 = vst [vmem:[#allocation3 + $0x3e0] sm:$0xff] %v5290
    %5325 = vst [vmem:[#allocation3 + $0x3e8] sm:$0xff] %v5291
    %5326 = vst [vmem:[#allocation3 + $0x3f0] sm:$0xff] %v5292
    %5327 = vst [vmem:[#allocation3 + $0x3f8] sm:$0xff] %v5293
    %5328 = vst [vmem:[#allocation3 + $0x400] sm:$0xff] %v5294
    %5329 = vst [vmem:[#allocation3 + $0x408] sm:$0xff] %v5295
    %5330 = vst [vmem:[#allocation3 + $0x410] sm:$0xff] %v5296
    %5331 = vst [vmem:[#allocation3 + $0x418] sm:$0xff] %v5297
    %5332 = vst [vmem:[#allocation3 + $0x420] sm:$0xff] %v5298
    %5333 = vst [vmem:[#allocation3 + $0x428] sm:$0xff] %v5299
    %5334 = vst [vmem:[#allocation3 + $0x430] sm:$0xff] %v5300
    %5335 = vst.msk [vmem:[#allocation3 + $0x438] sm:$0xff] %vm4717, %v5301
    %5336 = vrot.lane.b32.xlu0 %v4682, 58
    %v5337 = vpop.permute.xlu0 %5336
    %5338 = vrot.lane.b32.xlu0 %v4683, 58
    %v5339 = vpop.permute.xlu0 %5338
    %5340 = vrot.lane.b32.xlu0 %v4684, 58
    %v5341 = vpop.permute.xlu0 %5340
    %5342 = vrot.lane.b32.xlu0 %v4685, 58
    %v5343 = vpop.permute.xlu0 %5342
    %5344 = vrot.lane.b32.xlu0 %v4686, 58
    %v5345 = vpop.permute.xlu0 %5344
    %5346 = vrot.lane.b32.xlu0 %v4687, 58
    %v5347 = vpop.permute.xlu0 %5346
    %5348 = vrot.lane.b32.xlu0 %v4688, 58
    %v5349 = vpop.permute.xlu0 %5348
    %5350 = vrot.lane.b32.xlu0 %v4689, 58
    %v5351 = vpop.permute.xlu0 %5350
    %5352 = vrot.lane.b32.xlu0 %v4690, 58
    %v5353 = vpop.permute.xlu0 %5352
    %5354 = vrot.lane.b32.xlu0 %v4691, 58
    %v5355 = vpop.permute.xlu0 %5354
    %5356 = vrot.lane.b32.xlu0 %v4692, 58
    %v5357 = vpop.permute.xlu0 %5356
    %5358 = vrot.lane.b32.xlu0 %v4693, 58
    %v5359 = vpop.permute.xlu0 %5358
    %5360 = vrot.lane.b32.xlu0 %v4694, 58
    %v5361 = vpop.permute.xlu0 %5360
    %5362 = vrot.lane.b32.xlu0 %v4695, 58
    %v5363 = vpop.permute.xlu0 %5362
    %5364 = vrot.lane.b32.xlu0 %v4696, 58
    %v5365 = vpop.permute.xlu0 %5364
    %5366 = vrot.lane.b32.xlu0 %v4697, 58
    %v5367 = vpop.permute.xlu0 %5366
    %5368 = vrot.lane.b32.xlu0 %v4698, 58
    %v5369 = vpop.permute.xlu0 %5368
    %5370 = vrot.lane.b32.xlu0 %v4699, 58
    %v5371 = vpop.permute.xlu0 %5370
    %vm5372 = vcmask 474112
    %v5373 = vsel %vm5372, %v5337, %v5339
    %v5374 = vsel %vm5372, %v5339, %v5341
    %v5375 = vsel %vm5372, %v5341, %v5343
    %v5376 = vsel %vm5372, %v5343, %v5345
    %v5377 = vsel %vm5372, %v5345, %v5347
    %v5378 = vsel %vm5372, %v5347, %v5349
    %v5379 = vsel %vm5372, %v5349, %v5351
    %v5380 = vsel %vm5372, %v5351, %v5353
    %v5381 = vsel %vm5372, %v5353, %v5355
    %v5382 = vsel %vm5372, %v5355, %v5357
    %v5383 = vsel %vm5372, %v5357, %v5359
    %v5384 = vsel %vm5372, %v5359, %v5361
    %v5385 = vsel %vm5372, %v5361, %v5363
    %v5386 = vsel %vm5372, %v5363, %v5365
    %v5387 = vsel %vm5372, %v5365, %v5367
    %v5388 = vsel %vm5372, %v5367, %v5369
    %v5389 = vsel %vm5372, %v5369, %v5371
    %5407 = vst [vmem:[#allocation3 + $0x440] sm:$0xff] %v5373
    %5408 = vst [vmem:[#allocation3 + $0x448] sm:$0xff] %v5374
    %5409 = vst [vmem:[#allocation3 + $0x450] sm:$0xff] %v5375
    %5410 = vst [vmem:[#allocation3 + $0x458] sm:$0xff] %v5376
    %5411 = vst [vmem:[#allocation3 + $0x460] sm:$0xff] %v5377
    %5412 = vst [vmem:[#allocation3 + $0x468] sm:$0xff] %v5378
    %5413 = vst [vmem:[#allocation3 + $0x470] sm:$0xff] %v5379
    %5414 = vst [vmem:[#allocation3 + $0x478] sm:$0xff] %v5380
    %5415 = vst [vmem:[#allocation3 + $0x480] sm:$0xff] %v5381
    %5416 = vst [vmem:[#allocation3 + $0x488] sm:$0xff] %v5382
    %5417 = vst [vmem:[#allocation3 + $0x490] sm:$0xff] %v5383
    %5418 = vst [vmem:[#allocation3 + $0x498] sm:$0xff] %v5384
    %5419 = vst [vmem:[#allocation3 + $0x4a0] sm:$0xff] %v5385
    %5420 = vst [vmem:[#allocation3 + $0x4a8] sm:$0xff] %v5386
    %5421 = vst [vmem:[#allocation3 + $0x4b0] sm:$0xff] %v5387
    %5422 = vst [vmem:[#allocation3 + $0x4b8] sm:$0xff] %v5388
    %5423 = vst.msk [vmem:[#allocation3 + $0x4c0] sm:$0xff] %vm4717, %v5389
    %5424 = vrot.lane.b32.xlu0 %v4682, 56
    %v5425 = vpop.permute.xlu0 %5424
    %5426 = vrot.lane.b32.xlu0 %v4683, 56
    %v5427 = vpop.permute.xlu0 %5426
    %5428 = vrot.lane.b32.xlu0 %v4684, 56
    %v5429 = vpop.permute.xlu0 %5428
    %5430 = vrot.lane.b32.xlu0 %v4685, 56
    %v5431 = vpop.permute.xlu0 %5430
    %5432 = vrot.lane.b32.xlu0 %v4686, 56
    %v5433 = vpop.permute.xlu0 %5432
    %5434 = vrot.lane.b32.xlu0 %v4687, 56
    %v5435 = vpop.permute.xlu0 %5434
    %5436 = vrot.lane.b32.xlu0 %v4688, 56
    %v5437 = vpop.permute.xlu0 %5436
    %5438 = vrot.lane.b32.xlu0 %v4689, 56
    %v5439 = vpop.permute.xlu0 %5438
    %5440 = vrot.lane.b32.xlu0 %v4690, 56
    %v5441 = vpop.permute.xlu0 %5440
    %5442 = vrot.lane.b32.xlu0 %v4691, 56
    %v5443 = vpop.permute.xlu0 %5442
    %5444 = vrot.lane.b32.xlu0 %v4692, 56
    %v5445 = vpop.permute.xlu0 %5444
    %5446 = vrot.lane.b32.xlu0 %v4693, 56
    %v5447 = vpop.permute.xlu0 %5446
    %5448 = vrot.lane.b32.xlu0 %v4694, 56
    %v5449 = vpop.permute.xlu0 %5448
    %5450 = vrot.lane.b32.xlu0 %v4695, 56
    %v5451 = vpop.permute.xlu0 %5450
    %5452 = vrot.lane.b32.xlu0 %v4696, 56
    %v5453 = vpop.permute.xlu0 %5452
    %5454 = vrot.lane.b32.xlu0 %v4697, 56
    %v5455 = vpop.permute.xlu0 %5454
    %5456 = vrot.lane.b32.xlu0 %v4698, 56
    %v5457 = vpop.permute.xlu0 %5456
    %5458 = vrot.lane.b32.xlu0 %v4699, 56
    %v5459 = vpop.permute.xlu0 %5458
    %vm5460 = vcmask 457728
    %v5461 = vsel %vm5460, %v5425, %v5427
    %v5462 = vsel %vm5460, %v5427, %v5429
    %v5463 = vsel %vm5460, %v5429, %v5431
    %v5464 = vsel %vm5460, %v5431, %v5433
    %v5465 = vsel %vm5460, %v5433, %v5435
    %v5466 = vsel %vm5460, %v5435, %v5437
    %v5467 = vsel %vm5460, %v5437, %v5439
    %v5468 = vsel %vm5460, %v5439, %v5441
    %v5469 = vsel %vm5460, %v5441, %v5443
    %v5470 = vsel %vm5460, %v5443, %v5445
    %v5471 = vsel %vm5460, %v5445, %v5447
    %v5472 = vsel %vm5460, %v5447, %v5449
    %v5473 = vsel %vm5460, %v5449, %v5451
    %v5474 = vsel %vm5460, %v5451, %v5453
    %v5475 = vsel %vm5460, %v5453, %v5455
    %v5476 = vsel %vm5460, %v5455, %v5457
    %v5477 = vsel %vm5460, %v5457, %v5459
    %5495 = vst [vmem:[#allocation3 + $0x4c8] sm:$0xff] %v5461
    %5496 = vst [vmem:[#allocation3 + $0x4d0] sm:$0xff] %v5462
    %5497 = vst [vmem:[#allocation3 + $0x4d8] sm:$0xff] %v5463
    %5498 = vst [vmem:[#allocation3 + $0x4e0] sm:$0xff] %v5464
    %5499 = vst [vmem:[#allocation3 + $0x4e8] sm:$0xff] %v5465
    %5500 = vst [vmem:[#allocation3 + $0x4f0] sm:$0xff] %v5466
    %5501 = vst [vmem:[#allocation3 + $0x4f8] sm:$0xff] %v5467
    %5502 = vst [vmem:[#allocation3 + $0x500] sm:$0xff] %v5468
    %5503 = vst [vmem:[#allocation3 + $0x508] sm:$0xff] %v5469
    %5504 = vst [vmem:[#allocation3 + $0x510] sm:$0xff] %v5470
    %5505 = vst [vmem:[#allocation3 + $0x518] sm:$0xff] %v5471
    %5506 = vst [vmem:[#allocation3 + $0x520] sm:$0xff] %v5472
    %5507 = vst [vmem:[#allocation3 + $0x528] sm:$0xff] %v5473
    %5508 = vst [vmem:[#allocation3 + $0x530] sm:$0xff] %v5474
    %5509 = vst [vmem:[#allocation3 + $0x538] sm:$0xff] %v5475
    %5510 = vst [vmem:[#allocation3 + $0x540] sm:$0xff] %v5476
    %5511 = vst.msk [vmem:[#allocation3 + $0x548] sm:$0xff] %vm4717, %v5477
    %5512 = vst [vmem:[#allocation3 + $0x550] sm:$0xff] %v4683
    %5513 = vst [vmem:[#allocation3 + $0x558] sm:$0xff] %v4684
    %5514 = vst [vmem:[#allocation3 + $0x560] sm:$0xff] %v4685
    %5515 = vst [vmem:[#allocation3 + $0x568] sm:$0xff] %v4686
    %5516 = vst [vmem:[#allocation3 + $0x570] sm:$0xff] %v4687
    %5517 = vst [vmem:[#allocation3 + $0x578] sm:$0xff] %v4688
    %5518 = vst [vmem:[#allocation3 + $0x580] sm:$0xff] %v4689
    %5519 = vst [vmem:[#allocation3 + $0x588] sm:$0xff] %v4690
    %5520 = vst [vmem:[#allocation3 + $0x590] sm:$0xff] %v4691
    %5521 = vst [vmem:[#allocation3 + $0x598] sm:$0xff] %v4692
    %5522 = vst [vmem:[#allocation3 + $0x5a0] sm:$0xff] %v4693
    %5523 = vst [vmem:[#allocation3 + $0x5a8] sm:$0xff] %v4694
    %5524 = vst [vmem:[#allocation3 + $0x5b0] sm:$0xff] %v4695
    %5525 = vst [vmem:[#allocation3 + $0x5b8] sm:$0xff] %v4696
    %5526 = vst [vmem:[#allocation3 + $0x5c0] sm:$0xff] %v4697
    %5527 = vst [vmem:[#allocation3 + $0x5c8] sm:$0xff] %v4698
    %5528 = vst.msk [vmem:[#allocation3 + $0x5d0] sm:$0xff] %vm4717, %v4699
    %5529 = vrot.lane.b32.xlu0 %v4699, 126
    %v5530 = vpop.permute.xlu0 %5529
    %v5531 = vsel %vm291, %v4769, %v5530
    %5534 = vst [vmem:[#allocation3 + $0x5d8] sm:$0xff] %v4771
    %5535 = vst [vmem:[#allocation3 + $0x5e0] sm:$0xff] %v4772
    %5536 = vst [vmem:[#allocation3 + $0x5e8] sm:$0xff] %v4773
    %5537 = vst [vmem:[#allocation3 + $0x5f0] sm:$0xff] %v4774
    %5538 = vst [vmem:[#allocation3 + $0x5f8] sm:$0xff] %v4775
    %5539 = vst [vmem:[#allocation3 + $0x600] sm:$0xff] %v4776
    %5540 = vst [vmem:[#allocation3 + $0x608] sm:$0xff] %v4777
    %5541 = vst [vmem:[#allocation3 + $0x610] sm:$0xff] %v4778
    %5542 = vst [vmem:[#allocation3 + $0x618] sm:$0xff] %v4779
    %5543 = vst [vmem:[#allocation3 + $0x620] sm:$0xff] %v4780
    %5544 = vst [vmem:[#allocation3 + $0x628] sm:$0xff] %v4781
    %5545 = vst [vmem:[#allocation3 + $0x630] sm:$0xff] %v4782
    %5546 = vst [vmem:[#allocation3 + $0x638] sm:$0xff] %v4783
    %5547 = vst [vmem:[#allocation3 + $0x640] sm:$0xff] %v4784
    %5548 = vst [vmem:[#allocation3 + $0x648] sm:$0xff] %v4785
    %5549 = vst [vmem:[#allocation3 + $0x650] sm:$0xff] %v5531
    %5550 = vst.msk [vmem:[#allocation3 + $0x658] sm:$0xff] %vm4717, %v5530
    %5551 = vrot.lane.b32.xlu0 %v4699, 124
    %v5552 = vpop.permute.xlu0 %5551
    %v5553 = vsel %vm557, %v4853, %v5552
    %5556 = vst [vmem:[#allocation3 + $0x660] sm:$0xff] %v4855
    %5557 = vst [vmem:[#allocation3 + $0x668] sm:$0xff] %v4856
    %5558 = vst [vmem:[#allocation3 + $0x670] sm:$0xff] %v4857
    %5559 = vst [vmem:[#allocation3 + $0x678] sm:$0xff] %v4858
    %5560 = vst [vmem:[#allocation3 + $0x680] sm:$0xff] %v4859
    %5561 = vst [vmem:[#allocation3 + $0x688] sm:$0xff] %v4860
    %5562 = vst [vmem:[#allocation3 + $0x690] sm:$0xff] %v4861
    %5563 = vst [vmem:[#allocation3 + $0x698] sm:$0xff] %v4862
    %5564 = vst [vmem:[#allocation3 + $0x6a0] sm:$0xff] %v4863
    %5565 = vst [vmem:[#allocation3 + $0x6a8] sm:$0xff] %v4864
    %5566 = vst [vmem:[#allocation3 + $0x6b0] sm:$0xff] %v4865
    %5567 = vst [vmem:[#allocation3 + $0x6b8] sm:$0xff] %v4866
    %5568 = vst [vmem:[#allocation3 + $0x6c0] sm:$0xff] %v4867
    %5569 = vst [vmem:[#allocation3 + $0x6c8] sm:$0xff] %v4868
    %5570 = vst [vmem:[#allocation3 + $0x6d0] sm:$0xff] %v4869
    %5571 = vst [vmem:[#allocation3 + $0x6d8] sm:$0xff] %v5553
    %5572 = vst.msk [vmem:[#allocation3 + $0x6e0] sm:$0xff] %vm4717, %v5552
    %5573 = vrot.lane.b32.xlu0 %v4699, 122
    %v5574 = vpop.permute.xlu0 %5573
    %v5575 = vsel %vm4938, %v4937, %v5574
    %5578 = vst [vmem:[#allocation3 + $0x6e8] sm:$0xff] %v4940
    %5579 = vst [vmem:[#allocation3 + $0x6f0] sm:$0xff] %v4941
    %5580 = vst [vmem:[#allocation3 + $0x6f8] sm:$0xff] %v4942
    %5581 = vst [vmem:[#allocation3 + $0x700] sm:$0xff] %v4943
    %5582 = vst [vmem:[#allocation3 + $0x708] sm:$0xff] %v4944
    %5583 = vst [vmem:[#allocation3 + $0x710] sm:$0xff] %v4945
    %5584 = vst [vmem:[#allocation3 + $0x718] sm:$0xff] %v4946
    %5585 = vst [vmem:[#allocation3 + $0x720] sm:$0xff] %v4947
    %5586 = vst [vmem:[#allocation3 + $0x728] sm:$0xff] %v4948
    %5587 = vst [vmem:[#allocation3 + $0x730] sm:$0xff] %v4949
    %5588 = vst [vmem:[#allocation3 + $0x738] sm:$0xff] %v4950
    %5589 = vst [vmem:[#allocation3 + $0x740] sm:$0xff] %v4951
    %5590 = vst [vmem:[#allocation3 + $0x748] sm:$0xff] %v4952
    %5591 = vst [vmem:[#allocation3 + $0x750] sm:$0xff] %v4953
    %5592 = vst [vmem:[#allocation3 + $0x758] sm:$0xff] %v4954
    %5593 = vst [vmem:[#allocation3 + $0x760] sm:$0xff] %v5575
    %5594 = vst.msk [vmem:[#allocation3 + $0x768] sm:$0xff] %vm4717, %v5574
    %5595 = vrot.lane.b32.xlu0 %v4699, 120
    %v5596 = vpop.permute.xlu0 %5595
    %v5597 = vsel %vm5023, %v5022, %v5596
    %5600 = vst [vmem:[#allocation3 + $0x770] sm:$0xff] %v5025
    %5601 = vst [vmem:[#allocation3 + $0x778] sm:$0xff] %v5026
    %5602 = vst [vmem:[#allocation3 + $0x780] sm:$0xff] %v5027
    %5603 = vst [vmem:[#allocation3 + $0x788] sm:$0xff] %v5028
    %5604 = vst [vmem:[#allocation3 + $0x790] sm:$0xff] %v5029
    %5605 = vst [vmem:[#allocation3 + $0x798] sm:$0xff] %v5030
    %5606 = vst [vmem:[#allocation3 + $0x7a0] sm:$0xff] %v5031
    %5607 = vst [vmem:[#allocation3 + $0x7a8] sm:$0xff] %v5032
    %5608 = vst [vmem:[#allocation3 + $0x7b0] sm:$0xff] %v5033
    %5609 = vst [vmem:[#allocation3 + $0x7b8] sm:$0xff] %v5034
    %5610 = vst [vmem:[#allocation3 + $0x7c0] sm:$0xff] %v5035
    %5611 = vst [vmem:[#allocation3 + $0x7c8] sm:$0xff] %v5036
    %5612 = vst [vmem:[#allocation3 + $0x7d0] sm:$0xff] %v5037
    %5613 = vst [vmem:[#allocation3 + $0x7d8] sm:$0xff] %v5038
    %5614 = vst [vmem:[#allocation3 + $0x7e0] sm:$0xff] %v5039
    %5615 = vst [vmem:[#allocation3 + $0x7e8] sm:$0xff] %v5597
    %5616 = vst.msk [vmem:[#allocation3 + $0x7f0] sm:$0xff] %vm4717, %v5596
    %5618 = vrot.lane.b32.xlu0 %v4700, 64
    %v5619 = vpop.permute.xlu0 %5618
    %v5620 = vsel %vm1384, %v5110, %v5619
    %5622 = vst [vmem:[#allocation3 + $0x7f8] sm:$0xff] %v5112
    %5623 = vst [vmem:[#allocation3 + $0x800] sm:$0xff] %v5113
    %5624 = vst [vmem:[#allocation3 + $0x808] sm:$0xff] %v5114
    %5625 = vst [vmem:[#allocation3 + $0x810] sm:$0xff] %v5115
    %5626 = vst [vmem:[#allocation3 + $0x818] sm:$0xff] %v5116
    %5627 = vst [vmem:[#allocation3 + $0x820] sm:$0xff] %v5117
    %5628 = vst [vmem:[#allocation3 + $0x828] sm:$0xff] %v5118
    %5629 = vst [vmem:[#allocation3 + $0x830] sm:$0xff] %v5119
    %5630 = vst [vmem:[#allocation3 + $0x838] sm:$0xff] %v5120
    %5631 = vst [vmem:[#allocation3 + $0x840] sm:$0xff] %v5121
    %5632 = vst [vmem:[#allocation3 + $0x848] sm:$0xff] %v5122
    %5633 = vst [vmem:[#allocation3 + $0x850] sm:$0xff] %v5123
    %5634 = vst [vmem:[#allocation3 + $0x858] sm:$0xff] %v5124
    %5635 = vst [vmem:[#allocation3 + $0x860] sm:$0xff] %v5125
    %5636 = vst [vmem:[#allocation3 + $0x868] sm:$0xff] %v5126
    %5637 = vst [vmem:[#allocation3 + $0x870] sm:$0xff] %v5127
    %5638 = vst.msk [vmem:[#allocation3 + $0x878] sm:$0xff] %vm4717, %v5620
    %5639 = vrot.lane.b32.xlu0 %v4700, 62
    %v5640 = vpop.permute.xlu0 %5639
    %v5641 = vsel %vm1660, %v5197, %v5640
    %5643 = vst [vmem:[#allocation3 + $0x880] sm:$0xff] %v5199
    %5644 = vst [vmem:[#allocation3 + $0x888] sm:$0xff] %v5200
    %5645 = vst [vmem:[#allocation3 + $0x890] sm:$0xff] %v5201
    %5646 = vst [vmem:[#allocation3 + $0x898] sm:$0xff] %v5202
    %5647 = vst [vmem:[#allocation3 + $0x8a0] sm:$0xff] %v5203
    %5648 = vst [vmem:[#allocation3 + $0x8a8] sm:$0xff] %v5204
    %5649 = vst [vmem:[#allocation3 + $0x8b0] sm:$0xff] %v5205
    %5650 = vst [vmem:[#allocation3 + $0x8b8] sm:$0xff] %v5206
    %5651 = vst [vmem:[#allocation3 + $0x8c0] sm:$0xff] %v5207
    %5652 = vst [vmem:[#allocation3 + $0x8c8] sm:$0xff] %v5208
    %5653 = vst [vmem:[#allocation3 + $0x8d0] sm:$0xff] %v5209
    %5654 = vst [vmem:[#allocation3 + $0x8d8] sm:$0xff] %v5210
    %5655 = vst [vmem:[#allocation3 + $0x8e0] sm:$0xff] %v5211
    %5656 = vst [vmem:[#allocation3 + $0x8e8] sm:$0xff] %v5212
    %5657 = vst [vmem:[#allocation3 + $0x8f0] sm:$0xff] %v5213
    %5658 = vst [vmem:[#allocation3 + $0x8f8] sm:$0xff] %v5214
    %5659 = vst.msk [vmem:[#allocation3 + $0x900] sm:$0xff] %vm4717, %v5641
    %5660 = vrot.lane.b32.xlu0 %v4700, 60
    %v5661 = vpop.permute.xlu0 %5660
    %v5662 = vsel %vm1936, %v5284, %v5661
    %5664 = vst [vmem:[#allocation3 + $0x908] sm:$0xff] %v5286
    %5665 = vst [vmem:[#allocation3 + $0x910] sm:$0xff] %v5287
    %5666 = vst [vmem:[#allocation3 + $0x918] sm:$0xff] %v5288
    %5667 = vst [vmem:[#allocation3 + $0x920] sm:$0xff] %v5289
    %5668 = vst [vmem:[#allocation3 + $0x928] sm:$0xff] %v5290
    %5669 = vst [vmem:[#allocation3 + $0x930] sm:$0xff] %v5291
    %5670 = vst [vmem:[#allocation3 + $0x938] sm:$0xff] %v5292
    %5671 = vst [vmem:[#allocation3 + $0x940] sm:$0xff] %v5293
    %5672 = vst [vmem:[#allocation3 + $0x948] sm:$0xff] %v5294
    %5673 = vst [vmem:[#allocation3 + $0x950] sm:$0xff] %v5295
    %5674 = vst [vmem:[#allocation3 + $0x958] sm:$0xff] %v5296
    %5675 = vst [vmem:[#allocation3 + $0x960] sm:$0xff] %v5297
    %5676 = vst [vmem:[#allocation3 + $0x968] sm:$0xff] %v5298
    %5677 = vst [vmem:[#allocation3 + $0x970] sm:$0xff] %v5299
    %5678 = vst [vmem:[#allocation3 + $0x978] sm:$0xff] %v5300
    %5679 = vst [vmem:[#allocation3 + $0x980] sm:$0xff] %v5301
    %5680 = vst.msk [vmem:[#allocation3 + $0x988] sm:$0xff] %vm4717, %v5662
    %5681 = vrot.lane.b32.xlu0 %v4700, 58
    %v5682 = vpop.permute.xlu0 %5681
    %v5683 = vsel %vm5372, %v5371, %v5682
    %5685 = vst [vmem:[#allocation3 + $0x990] sm:$0xff] %v5374
    %5686 = vst [vmem:[#allocation3 + $0x998] sm:$0xff] %v5375
    %5687 = vst [vmem:[#allocation3 + $0x9a0] sm:$0xff] %v5376
    %5688 = vst [vmem:[#allocation3 + $0x9a8] sm:$0xff] %v5377
    %5689 = vst [vmem:[#allocation3 + $0x9b0] sm:$0xff] %v5378
    %5690 = vst [vmem:[#allocation3 + $0x9b8] sm:$0xff] %v5379
    %5691 = vst [vmem:[#allocation3 + $0x9c0] sm:$0xff] %v5380
    %5692 = vst [vmem:[#allocation3 + $0x9c8] sm:$0xff] %v5381
    %5693 = vst [vmem:[#allocation3 + $0x9d0] sm:$0xff] %v5382
    %5694 = vst [vmem:[#allocation3 + $0x9d8] sm:$0xff] %v5383
    %5695 = vst [vmem:[#allocation3 + $0x9e0] sm:$0xff] %v5384
    %5696 = vst [vmem:[#allocation3 + $0x9e8] sm:$0xff] %v5385
    %5697 = vst [vmem:[#allocation3 + $0x9f0] sm:$0xff] %v5386
    %5698 = vst [vmem:[#allocation3 + $0x9f8] sm:$0xff] %v5387
    %5699 = vst [vmem:[#allocation3 + $0xa00] sm:$0xff] %v5388
    %5700 = vst [vmem:[#allocation3 + $0xa08] sm:$0xff] %v5389
    %5701 = vst.msk [vmem:[#allocation3 + $0xa10] sm:$0xff] %vm4717, %v5683
    %5702 = vrot.lane.b32.xlu0 %v4700, 56
    %v5703 = vpop.permute.xlu0 %5702
    %v5704 = vsel %vm5460, %v5459, %v5703
    %5706 = vst [vmem:[#allocation3 + $0xa18] sm:$0xff] %v5462
    %5707 = vst [vmem:[#allocation3 + $0xa20] sm:$0xff] %v5463
    %5708 = vst [vmem:[#allocation3 + $0xa28] sm:$0xff] %v5464
    %5709 = vst [vmem:[#allocation3 + $0xa30] sm:$0xff] %v5465
    %5710 = vst [vmem:[#allocation3 + $0xa38] sm:$0xff] %v5466
    %5711 = vst [vmem:[#allocation3 + $0xa40] sm:$0xff] %v5467
    %5712 = vst [vmem:[#allocation3 + $0xa48] sm:$0xff] %v5468
    %5713 = vst [vmem:[#allocation3 + $0xa50] sm:$0xff] %v5469
    %5714 = vst [vmem:[#allocation3 + $0xa58] sm:$0xff] %v5470
    %5715 = vst [vmem:[#allocation3 + $0xa60] sm:$0xff] %v5471
    %5716 = vst [vmem:[#allocation3 + $0xa68] sm:$0xff] %v5472
    %5717 = vst [vmem:[#allocation3 + $0xa70] sm:$0xff] %v5473
    %5718 = vst [vmem:[#allocation3 + $0xa78] sm:$0xff] %v5474
    %5719 = vst [vmem:[#allocation3 + $0xa80] sm:$0xff] %v5475
    %5720 = vst [vmem:[#allocation3 + $0xa88] sm:$0xff] %v5476
    %5721 = vst [vmem:[#allocation3 + $0xa90] sm:$0xff] %v5477
    %5722 = vst.msk [vmem:[#allocation3 + $0xa98] sm:$0xff] %vm4717, %v5704
    %5723 = vst [vmem:[#allocation3 + $0xaa0] sm:$0xff] %v4684
    %5724 = vst [vmem:[#allocation3 + $0xaa8] sm:$0xff] %v4685
    %5725 = vst [vmem:[#allocation3 + $0xab0] sm:$0xff] %v4686
    %5726 = vst [vmem:[#allocation3 + $0xab8] sm:$0xff] %v4687
    %5727 = vst [vmem:[#allocation3 + $0xac0] sm:$0xff] %v4688
    %5728 = vst [vmem:[#allocation3 + $0xac8] sm:$0xff] %v4689
    %5729 = vst [vmem:[#allocation3 + $0xad0] sm:$0xff] %v4690
    %5730 = vst [vmem:[#allocation3 + $0xad8] sm:$0xff] %v4691
    %5731 = vst [vmem:[#allocation3 + $0xae0] sm:$0xff] %v4692
    %5732 = vst [vmem:[#allocation3 + $0xae8] sm:$0xff] %v4693
    %5733 = vst [vmem:[#allocation3 + $0xaf0] sm:$0xff] %v4694
    %5734 = vst [vmem:[#allocation3 + $0xaf8] sm:$0xff] %v4695
    %5735 = vst [vmem:[#allocation3 + $0xb00] sm:$0xff] %v4696
    %5736 = vst [vmem:[#allocation3 + $0xb08] sm:$0xff] %v4697
    %5737 = vst [vmem:[#allocation3 + $0xb10] sm:$0xff] %v4698
    %5738 = vst [vmem:[#allocation3 + $0xb18] sm:$0xff] %v4699
    %5739 = vst.msk [vmem:[#allocation3 + $0xb20] sm:$0xff] %vm4717, %v4700
    %5740 = vrot.lane.b32.xlu0 %v4700, 126
    %v5741 = vpop.permute.xlu0 %5740
    %v5742 = vsel %vm291, %v5530, %v5741
    %5745 = vst [vmem:[#allocation3 + $0xb28] sm:$0xff] %v4772
    %5746 = vst [vmem:[#allocation3 + $0xb30] sm:$0xff] %v4773
    %5747 = vst [vmem:[#allocation3 + $0xb38] sm:$0xff] %v4774
    %5748 = vst [vmem:[#allocation3 + $0xb40] sm:$0xff] %v4775
    %5749 = vst [vmem:[#allocation3 + $0xb48] sm:$0xff] %v4776
    %5750 = vst [vmem:[#allocation3 + $0xb50] sm:$0xff] %v4777
    %5751 = vst [vmem:[#allocation3 + $0xb58] sm:$0xff] %v4778
    %5752 = vst [vmem:[#allocation3 + $0xb60] sm:$0xff] %v4779
    %5753 = vst [vmem:[#allocation3 + $0xb68] sm:$0xff] %v4780
    %5754 = vst [vmem:[#allocation3 + $0xb70] sm:$0xff] %v4781
    %5755 = vst [vmem:[#allocation3 + $0xb78] sm:$0xff] %v4782
    %5756 = vst [vmem:[#allocation3 + $0xb80] sm:$0xff] %v4783
    %5757 = vst [vmem:[#allocation3 + $0xb88] sm:$0xff] %v4784
    %5758 = vst [vmem:[#allocation3 + $0xb90] sm:$0xff] %v4785
    %5759 = vst [vmem:[#allocation3 + $0xb98] sm:$0xff] %v5531
    %5760 = vst [vmem:[#allocation3 + $0xba0] sm:$0xff] %v5742
    %5761 = vst.msk [vmem:[#allocation3 + $0xba8] sm:$0xff] %vm4717, %v5741
    %5762 = vrot.lane.b32.xlu0 %v4700, 124
    %v5763 = vpop.permute.xlu0 %5762
    %v5764 = vsel %vm557, %v5552, %v5763
    %5767 = vst [vmem:[#allocation3 + $0xbb0] sm:$0xff] %v4856
    %5768 = vst [vmem:[#allocation3 + $0xbb8] sm:$0xff] %v4857
    %5769 = vst [vmem:[#allocation3 + $0xbc0] sm:$0xff] %v4858
    %5770 = vst [vmem:[#allocation3 + $0xbc8] sm:$0xff] %v4859
    %5771 = vst [vmem:[#allocation3 + $0xbd0] sm:$0xff] %v4860
    %5772 = vst [vmem:[#allocation3 + $0xbd8] sm:$0xff] %v4861
    %5773 = vst [vmem:[#allocation3 + $0xbe0] sm:$0xff] %v4862
    %5774 = vst [vmem:[#allocation3 + $0xbe8] sm:$0xff] %v4863
    %5775 = vst [vmem:[#allocation3 + $0xbf0] sm:$0xff] %v4864
    %5776 = vst [vmem:[#allocation3 + $0xbf8] sm:$0xff] %v4865
    %5777 = vst [vmem:[#allocation3 + $0xc00] sm:$0xff] %v4866
    %5778 = vst [vmem:[#allocation3 + $0xc08] sm:$0xff] %v4867
    %5779 = vst [vmem:[#allocation3 + $0xc10] sm:$0xff] %v4868
    %5780 = vst [vmem:[#allocation3 + $0xc18] sm:$0xff] %v4869
    %5781 = vst [vmem:[#allocation3 + $0xc20] sm:$0xff] %v5553
    %5782 = vst [vmem:[#allocation3 + $0xc28] sm:$0xff] %v5764
    %5783 = vst.msk [vmem:[#allocation3 + $0xc30] sm:$0xff] %vm4717, %v5763
    %5784 = vrot.lane.b32.xlu0 %v4700, 122
    %v5785 = vpop.permute.xlu0 %5784
    %v5786 = vsel %vm4938, %v5574, %v5785
    %5789 = vst [vmem:[#allocation3 + $0xc38] sm:$0xff] %v4941
    %5790 = vst [vmem:[#allocation3 + $0xc40] sm:$0xff] %v4942
    %5791 = vst [vmem:[#allocation3 + $0xc48] sm:$0xff] %v4943
    %5792 = vst [vmem:[#allocation3 + $0xc50] sm:$0xff] %v4944
    %5793 = vst [vmem:[#allocation3 + $0xc58] sm:$0xff] %v4945
    %5794 = vst [vmem:[#allocation3 + $0xc60] sm:$0xff] %v4946
    %5795 = vst [vmem:[#allocation3 + $0xc68] sm:$0xff] %v4947
    %5796 = vst [vmem:[#allocation3 + $0xc70] sm:$0xff] %v4948
    %5797 = vst [vmem:[#allocation3 + $0xc78] sm:$0xff] %v4949
    %5798 = vst [vmem:[#allocation3 + $0xc80] sm:$0xff] %v4950
    %5799 = vst [vmem:[#allocation3 + $0xc88] sm:$0xff] %v4951
    %5800 = vst [vmem:[#allocation3 + $0xc90] sm:$0xff] %v4952
    %5801 = vst [vmem:[#allocation3 + $0xc98] sm:$0xff] %v4953
    %5802 = vst [vmem:[#allocation3 + $0xca0] sm:$0xff] %v4954
    %5803 = vst [vmem:[#allocation3 + $0xca8] sm:$0xff] %v5575
    %5804 = vst [vmem:[#allocation3 + $0xcb0] sm:$0xff] %v5786
    %5805 = vst.msk [vmem:[#allocation3 + $0xcb8] sm:$0xff] %vm4717, %v5785
    %5806 = vrot.lane.b32.xlu0 %v4700, 120
    %v5807 = vpop.permute.xlu0 %5806
    %v5808 = vsel %vm5023, %v5596, %v5807
    %5811 = vst [vmem:[#allocation3 + $0xcc0] sm:$0xff] %v5026
    %5812 = vst [vmem:[#allocation3 + $0xcc8] sm:$0xff] %v5027
    %5813 = vst [vmem:[#allocation3 + $0xcd0] sm:$0xff] %v5028
    %5814 = vst [vmem:[#allocation3 + $0xcd8] sm:$0xff] %v5029
    %5815 = vst [vmem:[#allocation3 + $0xce0] sm:$0xff] %v5030
    %5816 = vst [vmem:[#allocation3 + $0xce8] sm:$0xff] %v5031
    %5817 = vst [vmem:[#allocation3 + $0xcf0] sm:$0xff] %v5032
    %5818 = vst [vmem:[#allocation3 + $0xcf8] sm:$0xff] %v5033
    %5819 = vst [vmem:[#allocation3 + $0xd00] sm:$0xff] %v5034
    %5820 = vst [vmem:[#allocation3 + $0xd08] sm:$0xff] %v5035
    %5821 = vst [vmem:[#allocation3 + $0xd10] sm:$0xff] %v5036
    %5822 = vst [vmem:[#allocation3 + $0xd18] sm:$0xff] %v5037
    %5823 = vst [vmem:[#allocation3 + $0xd20] sm:$0xff] %v5038
    %5824 = vst [vmem:[#allocation3 + $0xd28] sm:$0xff] %v5039
    %5825 = vst [vmem:[#allocation3 + $0xd30] sm:$0xff] %v5597
    %5826 = vst [vmem:[#allocation3 + $0xd38] sm:$0xff] %v5808
    %5827 = vst.msk [vmem:[#allocation3 + $0xd40] sm:$0xff] %vm4717, %v5807
    %v5828 = vld [vmem:[%s3] sm:$0xff]
    %v5829 = vld [vmem:[%s3 + $0x8] sm:$0xff]
    %v5830 = vld [vmem:[#allocation3] sm:$0xff]
    %v5831 = vld [vmem:[#allocation3 + $0x8] sm:$0xff]
    %v5832 = vld [vmem:[#allocation3 + $0x10] sm:$0xff]
    %v5833 = vld [vmem:[#allocation3 + $0x18] sm:$0xff]
    %v5834 = vld [vmem:[#allocation3 + $0x20] sm:$0xff]
    %v5835 = vld [vmem:[#allocation3 + $0x28] sm:$0xff]
    %v5836 = vld [vmem:[#allocation3 + $0x30] sm:$0xff]
    %v5837 = vld [vmem:[#allocation3 + $0x38] sm:$0xff]
    %v5838 = vld [vmem:[#allocation3 + $0x40] sm:$0xff]
    %v5839 = vld [vmem:[#allocation3 + $0x48] sm:$0xff]
    %v5840 = vld [vmem:[#allocation3 + $0x50] sm:$0xff]
    %v5841 = vld [vmem:[#allocation3 + $0x58] sm:$0xff]
    %v5842 = vld [vmem:[#allocation3 + $0x60] sm:$0xff]
    %v5843 = vld [vmem:[#allocation3 + $0x68] sm:$0xff]
    %v5844 = vld [vmem:[#allocation3 + $0x70] sm:$0xff]
    %v5845 = vld [vmem:[#allocation3 + $0x78] sm:$0xff]
    %v5846 = vld [vmem:[#allocation3 + $0x88] sm:$0xff]
    %v5847 = vld [vmem:[#allocation3 + $0x90] sm:$0xff]
    %v5848 = vld [vmem:[#allocation3 + $0x98] sm:$0xff]
    %v5849 = vld [vmem:[#allocation3 + $0xa0] sm:$0xff]
    %v5850 = vld [vmem:[#allocation3 + $0xa8] sm:$0xff]
    %v5851 = vld [vmem:[#allocation3 + $0xb0] sm:$0xff]
    %v5852 = vld [vmem:[#allocation3 + $0xb8] sm:$0xff]
    %v5853 = vld [vmem:[#allocation3 + $0xc0] sm:$0xff]
    %v5854 = vld [vmem:[#allocation3 + $0xc8] sm:$0xff]
    %v5855 = vld [vmem:[#allocation3 + $0xd0] sm:$0xff]
    %v5856 = vld [vmem:[#allocation3 + $0xd8] sm:$0xff]
    %v5857 = vld [vmem:[#allocation3 + $0xe0] sm:$0xff]
    %v5858 = vld [vmem:[#allocation3 + $0xe8] sm:$0xff]
    %v5859 = vld [vmem:[#allocation3 + $0xf0] sm:$0xff]
    %v5860 = vld [vmem:[#allocation3 + $0xf8] sm:$0xff]
    %v5861 = vld [vmem:[#allocation3 + $0x100] sm:$0xff]
    %v5862 = vld [vmem:[#allocation3 + $0x110] sm:$0xff]
    %v5863 = vld [vmem:[#allocation3 + $0x118] sm:$0xff]
    %v5864 = vld [vmem:[#allocation3 + $0x120] sm:$0xff]
    %v5865 = vld [vmem:[#allocation3 + $0x128] sm:$0xff]
    %v5866 = vld [vmem:[#allocation3 + $0x130] sm:$0xff]
    %v5867 = vld [vmem:[#allocation3 + $0x138] sm:$0xff]
    %v5868 = vld [vmem:[#allocation3 + $0x140] sm:$0xff]
    %v5869 = vld [vmem:[#allocation3 + $0x148] sm:$0xff]
    %v5870 = vld [vmem:[#allocation3 + $0x150] sm:$0xff]
    %v5871 = vld [vmem:[#allocation3 + $0x158] sm:$0xff]
    %v5872 = vld [vmem:[#allocation3 + $0x160] sm:$0xff]
    %v5873 = vld [vmem:[#allocation3 + $0x168] sm:$0xff]
    %v5874 = vld [vmem:[#allocation3 + $0x170] sm:$0xff]
    %v5875 = vld [vmem:[#allocation3 + $0x178] sm:$0xff]
    %v5876 = vld [vmem:[#allocation3 + $0x180] sm:$0xff]
    %v5877 = vld [vmem:[#allocation3 + $0x188] sm:$0xff]
    %v5878 = vld [vmem:[#allocation3 + $0x198] sm:$0xff]
    %v5879 = vld [vmem:[#allocation3 + $0x1a0] sm:$0xff]
    %v5880 = vld [vmem:[#allocation3 + $0x1a8] sm:$0xff]
    %v5881 = vld [vmem:[#allocation3 + $0x1b0] sm:$0xff]
    %v5882 = vld [vmem:[#allocation3 + $0x1b8] sm:$0xff]
    %v5883 = vld [vmem:[#allocation3 + $0x1c0] sm:$0xff]
    %v5884 = vld [vmem:[#allocation3 + $0x1c8] sm:$0xff]
    %v5885 = vld [vmem:[#allocation3 + $0x1d0] sm:$0xff]
    %v5886 = vld [vmem:[#allocation3 + $0x1d8] sm:$0xff]
    %v5887 = vld [vmem:[#allocation3 + $0x1e0] sm:$0xff]
    %v5888 = vld [vmem:[#allocation3 + $0x1e8] sm:$0xff]
    %v5889 = vld [vmem:[#allocation3 + $0x1f0] sm:$0xff]
    %v5890 = vld [vmem:[#allocation3 + $0x1f8] sm:$0xff]
    %v5891 = vld [vmem:[#allocation3 + $0x200] sm:$0xff]
    %v5892 = vld [vmem:[#allocation3 + $0x208] sm:$0xff]
    %v5893 = vld [vmem:[#allocation3 + $0x210] sm:$0xff]
    %v5894 = vld [vmem:[#allocation3 + $0x220] sm:$0xff]
    %v5895 = vld [vmem:[#allocation3 + $0x228] sm:$0xff]
    %v5896 = vld [vmem:[#allocation3 + $0x230] sm:$0xff]
    %v5897 = vld [vmem:[#allocation3 + $0x238] sm:$0xff]
    %v5898 = vld [vmem:[#allocation3 + $0x240] sm:$0xff]
    %v5899 = vld [vmem:[#allocation3 + $0x248] sm:$0xff]
    %v5900 = vld [vmem:[#allocation3 + $0x250] sm:$0xff]
    %v5901 = vld [vmem:[#allocation3 + $0x258] sm:$0xff]
    %v5902 = vld [vmem:[#allocation3 + $0x260] sm:$0xff]
    %v5903 = vld [vmem:[#allocation3 + $0x268] sm:$0xff]
    %v5904 = vld [vmem:[#allocation3 + $0x270] sm:$0xff]
    %v5905 = vld [vmem:[#allocation3 + $0x278] sm:$0xff]
    %v5906 = vld [vmem:[#allocation3 + $0x280] sm:$0xff]
    %v5907 = vld [vmem:[#allocation3 + $0x288] sm:$0xff]
    %v5908 = vld [vmem:[#allocation3 + $0x290] sm:$0xff]
    %v5909 = vld [vmem:[#allocation3 + $0x298] sm:$0xff]
    %v5910 = vld [vmem:[#allocation3 + $0x2a8] sm:$0xff]
    %v5911 = vld [vmem:[#allocation3 + $0x2b0] sm:$0xff]
    %v5912 = vld [vmem:[#allocation3 + $0x2b8] sm:$0xff]
    %v5913 = vld [vmem:[#allocation3 + $0x2c0] sm:$0xff]
    %v5914 = vld [vmem:[#allocation3 + $0x2c8] sm:$0xff]
    %v5915 = vld [vmem:[#allocation3 + $0x2d0] sm:$0xff]
    %v5916 = vld [vmem:[#allocation3 + $0x2d8] sm:$0xff]
    %v5917 = vld [vmem:[#allocation3 + $0x2e0] sm:$0xff]
    %v5918 = vld [vmem:[#allocation3 + $0x2e8] sm:$0xff]
    %v5919 = vld [vmem:[#allocation3 + $0x2f0] sm:$0xff]
    %v5920 = vld [vmem:[#allocation3 + $0x2f8] sm:$0xff]
    %v5921 = vld [vmem:[#allocation3 + $0x300] sm:$0xff]
    %v5922 = vld [vmem:[#allocation3 + $0x308] sm:$0xff]
    %v5923 = vld [vmem:[#allocation3 + $0x310] sm:$0xff]
    %v5924 = vld [vmem:[#allocation3 + $0x318] sm:$0xff]
    %v5925 = vld [vmem:[#allocation3 + $0x320] sm:$0xff]
    %v5926 = vld [vmem:[#allocation3 + $0x330] sm:$0xff]
    %v5927 = vld [vmem:[#allocation3 + $0x338] sm:$0xff]
    %v5928 = vld [vmem:[#allocation3 + $0x340] sm:$0xff]
    %v5929 = vld [vmem:[#allocation3 + $0x348] sm:$0xff]
    %v5930 = vld [vmem:[#allocation3 + $0x350] sm:$0xff]
    %v5931 = vld [vmem:[#allocation3 + $0x358] sm:$0xff]
    %v5932 = vld [vmem:[#allocation3 + $0x360] sm:$0xff]
    %v5933 = vld [vmem:[#allocation3 + $0x368] sm:$0xff]
    %v5934 = vld [vmem:[#allocation3 + $0x370] sm:$0xff]
    %v5935 = vld [vmem:[#allocation3 + $0x378] sm:$0xff]
    %v5936 = vld [vmem:[#allocation3 + $0x380] sm:$0xff]
    %v5937 = vld [vmem:[#allocation3 + $0x388] sm:$0xff]
    %v5938 = vld [vmem:[#allocation3 + $0x390] sm:$0xff]
    %v5939 = vld [vmem:[#allocation3 + $0x398] sm:$0xff]
    %v5940 = vld [vmem:[#allocation3 + $0x3a0] sm:$0xff]
    %v5941 = vld [vmem:[#allocation3 + $0x3a8] sm:$0xff]
    %v5942 = vld [vmem:[#allocation3 + $0x3b8] sm:$0xff]
    %v5943 = vld [vmem:[#allocation3 + $0x3c0] sm:$0xff]
    %v5944 = vld [vmem:[#allocation3 + $0x3c8] sm:$0xff]
    %v5945 = vld [vmem:[#allocation3 + $0x3d0] sm:$0xff]
    %v5946 = vld [vmem:[#allocation3 + $0x3d8] sm:$0xff]
    %v5947 = vld [vmem:[#allocation3 + $0x3e0] sm:$0xff]
    %v5948 = vld [vmem:[#allocation3 + $0x3e8] sm:$0xff]
    %v5949 = vld [vmem:[#allocation3 + $0x3f0] sm:$0xff]
    %v5950 = vld [vmem:[#allocation3 + $0x3f8] sm:$0xff]
    %v5951 = vld [vmem:[#allocation3 + $0x400] sm:$0xff]
    %v5952 = vld [vmem:[#allocation3 + $0x408] sm:$0xff]
    %v5953 = vld [vmem:[#allocation3 + $0x410] sm:$0xff]
    %v5954 = vld [vmem:[#allocation3 + $0x418] sm:$0xff]
    %v5955 = vld [vmem:[#allocation3 + $0x420] sm:$0xff]
    %v5956 = vld [vmem:[#allocation3 + $0x428] sm:$0xff]
    %v5957 = vld [vmem:[#allocation3 + $0x430] sm:$0xff]
    %v5958 = vld [vmem:[#allocation3 + $0x440] sm:$0xff]
    %v5959 = vld [vmem:[#allocation3 + $0x448] sm:$0xff]
    %v5960 = vld [vmem:[#allocation3 + $0x450] sm:$0xff]
    %v5961 = vld [vmem:[#allocation3 + $0x458] sm:$0xff]
    %v5962 = vld [vmem:[#allocation3 + $0x460] sm:$0xff]
    %v5963 = vld [vmem:[#allocation3 + $0x468] sm:$0xff]
    %v5964 = vld [vmem:[#allocation3 + $0x470] sm:$0xff]
    %v5965 = vld [vmem:[#allocation3 + $0x478] sm:$0xff]
    %v5966 = vld [vmem:[#allocation3 + $0x480] sm:$0xff]
    %v5967 = vld [vmem:[#allocation3 + $0x488] sm:$0xff]
    %v5968 = vld [vmem:[#allocation3 + $0x490] sm:$0xff]
    %v5969 = vld [vmem:[#allocation3 + $0x498] sm:$0xff]
    %v5970 = vld [vmem:[#allocation3 + $0x4a0] sm:$0xff]
    %v5971 = vld [vmem:[#allocation3 + $0x4a8] sm:$0xff]
    %v5972 = vld [vmem:[#allocation3 + $0x4b0] sm:$0xff]
    %v5973 = vld [vmem:[#allocation3 + $0x4b8] sm:$0xff]
    %v5974 = vld [vmem:[#allocation3 + $0x4c8] sm:$0xff]
    %v5975 = vld [vmem:[#allocation3 + $0x4d0] sm:$0xff]
    %v5976 = vld [vmem:[#allocation3 + $0x4d8] sm:$0xff]
    %v5977 = vld [vmem:[#allocation3 + $0x4e0] sm:$0xff]
    %v5978 = vld [vmem:[#allocation3 + $0x4e8] sm:$0xff]
    %v5979 = vld [vmem:[#allocation3 + $0x4f0] sm:$0xff]
    %v5980 = vld [vmem:[#allocation3 + $0x4f8] sm:$0xff]
    %v5981 = vld [vmem:[#allocation3 + $0x500] sm:$0xff]
    %v5982 = vld [vmem:[#allocation3 + $0x508] sm:$0xff]
    %v5983 = vld [vmem:[#allocation3 + $0x510] sm:$0xff]
    %v5984 = vld [vmem:[#allocation3 + $0x518] sm:$0xff]
    %v5985 = vld [vmem:[#allocation3 + $0x520] sm:$0xff]
    %v5986 = vld [vmem:[#allocation3 + $0x528] sm:$0xff]
    %v5987 = vld [vmem:[#allocation3 + $0x530] sm:$0xff]
    %v5988 = vld [vmem:[#allocation3 + $0x538] sm:$0xff]
    %v5989 = vld [vmem:[#allocation3 + $0x540] sm:$0xff]
    %v5990 = vld [vmem:[#allocation3 + $0x550] sm:$0xff]
    %v5991 = vld [vmem:[#allocation3 + $0x558] sm:$0xff]
    %v5992 = vld [vmem:[#allocation3 + $0x560] sm:$0xff]
    %v5993 = vld [vmem:[#allocation3 + $0x568] sm:$0xff]
    %v5994 = vld [vmem:[#allocation3 + $0x570] sm:$0xff]
    %v5995 = vld [vmem:[#allocation3 + $0x578] sm:$0xff]
    %v5996 = vld [vmem:[#allocation3 + $0x580] sm:$0xff]
    %v5997 = vld [vmem:[#allocation3 + $0x588] sm:$0xff]
    %v5998 = vld [vmem:[#allocation3 + $0x590] sm:$0xff]
    %v5999 = vld [vmem:[#allocation3 + $0x598] sm:$0xff]
    %v6000 = vld [vmem:[#allocation3 + $0x5a0] sm:$0xff]
    %v6001 = vld [vmem:[#allocation3 + $0x5a8] sm:$0xff]
    %v6002 = vld [vmem:[#allocation3 + $0x5b0] sm:$0xff]
    %v6003 = vld [vmem:[#allocation3 + $0x5b8] sm:$0xff]
    %v6004 = vld [vmem:[#allocation3 + $0x5c0] sm:$0xff]
    %v6005 = vld [vmem:[#allocation3 + $0x5c8] sm:$0xff]
    %v6006 = vld [vmem:[#allocation3 + $0x5d8] sm:$0xff]
    %v6007 = vld [vmem:[#allocation3 + $0x5e0] sm:$0xff]
    %v6008 = vld [vmem:[#allocation3 + $0x5e8] sm:$0xff]
    %v6009 = vld [vmem:[#allocation3 + $0x5f0] sm:$0xff]
    %v6010 = vld [vmem:[#allocation3 + $0x5f8] sm:$0xff]
    %v6011 = vld [vmem:[#allocation3 + $0x600] sm:$0xff]
    %v6012 = vld [vmem:[#allocation3 + $0x608] sm:$0xff]
    %v6013 = vld [vmem:[#allocation3 + $0x610] sm:$0xff]
    %v6014 = vld [vmem:[#allocation3 + $0x618] sm:$0xff]
    %v6015 = vld [vmem:[#allocation3 + $0x620] sm:$0xff]
    %v6016 = vld [vmem:[#allocation3 + $0x628] sm:$0xff]
    %v6017 = vld [vmem:[#allocation3 + $0x630] sm:$0xff]
    %v6018 = vld [vmem:[#allocation3 + $0x638] sm:$0xff]
    %v6019 = vld [vmem:[#allocation3 + $0x640] sm:$0xff]
    %v6020 = vld [vmem:[#allocation3 + $0x648] sm:$0xff]
    %v6021 = vld [vmem:[#allocation3 + $0x650] sm:$0xff]
    %v6022 = vld [vmem:[#allocation3 + $0x660] sm:$0xff]
    %v6023 = vld [vmem:[#allocation3 + $0x668] sm:$0xff]
    %v6024 = vld [vmem:[#allocation3 + $0x670] sm:$0xff]
    %v6025 = vld [vmem:[#allocation3 + $0x678] sm:$0xff]
    %v6026 = vld [vmem:[#allocation3 + $0x680] sm:$0xff]
    %v6027 = vld [vmem:[#allocation3 + $0x688] sm:$0xff]
    %v6028 = vld [vmem:[#allocation3 + $0x690] sm:$0xff]
    %v6029 = vld [vmem:[#allocation3 + $0x698] sm:$0xff]
    %v6030 = vld [vmem:[#allocation3 + $0x6a0] sm:$0xff]
    %v6031 = vld [vmem:[#allocation3 + $0x6a8] sm:$0xff]
    %v6032 = vld [vmem:[#allocation3 + $0x6b0] sm:$0xff]
    %v6033 = vld [vmem:[#allocation3 + $0x6b8] sm:$0xff]
    %v6034 = vld [vmem:[#allocation3 + $0x6c0] sm:$0xff]
    %v6035 = vld [vmem:[#allocation3 + $0x6c8] sm:$0xff]
    %v6036 = vld [vmem:[#allocation3 + $0x6d0] sm:$0xff]
    %v6037 = vld [vmem:[#allocation3 + $0x6d8] sm:$0xff]
    %v6038 = vld [vmem:[#allocation3 + $0x6e8] sm:$0xff]
    %v6039 = vld [vmem:[#allocation3 + $0x6f0] sm:$0xff]
    %v6040 = vld [vmem:[#allocation3 + $0x6f8] sm:$0xff]
    %v6041 = vld [vmem:[#allocation3 + $0x700] sm:$0xff]
    %v6042 = vld [vmem:[#allocation3 + $0x708] sm:$0xff]
    %v6043 = vld [vmem:[#allocation3 + $0x710] sm:$0xff]
    %v6044 = vld [vmem:[#allocation3 + $0x718] sm:$0xff]
    %v6045 = vld [vmem:[#allocation3 + $0x720] sm:$0xff]
    %v6046 = vld [vmem:[#allocation3 + $0x728] sm:$0xff]
    %v6047 = vld [vmem:[#allocation3 + $0x730] sm:$0xff]
    %v6048 = vld [vmem:[#allocation3 + $0x738] sm:$0xff]
    %v6049 = vld [vmem:[#allocation3 + $0x740] sm:$0xff]
    %v6050 = vld [vmem:[#allocation3 + $0x748] sm:$0xff]
    %v6051 = vld [vmem:[#allocation3 + $0x750] sm:$0xff]
    %v6052 = vld [vmem:[#allocation3 + $0x758] sm:$0xff]
    %v6053 = vld [vmem:[#allocation3 + $0x760] sm:$0xff]
    %v6054 = vld [vmem:[#allocation3 + $0x770] sm:$0xff]
    %v6055 = vld [vmem:[#allocation3 + $0x778] sm:$0xff]
    %v6056 = vld [vmem:[#allocation3 + $0x780] sm:$0xff]
    %v6057 = vld [vmem:[#allocation3 + $0x788] sm:$0xff]
    %v6058 = vld [vmem:[#allocation3 + $0x790] sm:$0xff]
    %v6059 = vld [vmem:[#allocation3 + $0x798] sm:$0xff]
    %v6060 = vld [vmem:[#allocation3 + $0x7a0] sm:$0xff]
    %v6061 = vld [vmem:[#allocation3 + $0x7a8] sm:$0xff]
    %v6062 = vld [vmem:[#allocation3 + $0x7b0] sm:$0xff]
    %v6063 = vld [vmem:[#allocation3 + $0x7b8] sm:$0xff]
    %v6064 = vld [vmem:[#allocation3 + $0x7c0] sm:$0xff]
    %v6065 = vld [vmem:[#allocation3 + $0x7c8] sm:$0xff]
    %v6066 = vld [vmem:[#allocation3 + $0x7d0] sm:$0xff]
    %v6067 = vld [vmem:[#allocation3 + $0x7d8] sm:$0xff]
    %v6068 = vld [vmem:[#allocation3 + $0x7e0] sm:$0xff]
    %v6069 = vld [vmem:[#allocation3 + $0x7e8] sm:$0xff]
    %v6070 = vld [vmem:[#allocation3 + $0x7f8] sm:$0xff]
    %v6071 = vld [vmem:[#allocation3 + $0x800] sm:$0xff]
    %v6072 = vld [vmem:[#allocation3 + $0x808] sm:$0xff]
    %v6073 = vld [vmem:[#allocation3 + $0x810] sm:$0xff]
    %v6074 = vld [vmem:[#allocation3 + $0x818] sm:$0xff]
    %v6075 = vld [vmem:[#allocation3 + $0x820] sm:$0xff]
    %v6076 = vld [vmem:[#allocation3 + $0x828] sm:$0xff]
    %v6077 = vld [vmem:[#allocation3 + $0x830] sm:$0xff]
    %v6078 = vld [vmem:[#allocation3 + $0x838] sm:$0xff]
    %v6079 = vld [vmem:[#allocation3 + $0x840] sm:$0xff]
    %v6080 = vld [vmem:[#allocation3 + $0x848] sm:$0xff]
    %v6081 = vld [vmem:[#allocation3 + $0x850] sm:$0xff]
    %v6082 = vld [vmem:[#allocation3 + $0x858] sm:$0xff]
    %v6083 = vld [vmem:[#allocation3 + $0x860] sm:$0xff]
    %v6084 = vld [vmem:[#allocation3 + $0x868] sm:$0xff]
    %v6085 = vld [vmem:[#allocation3 + $0x870] sm:$0xff]
    %v6086 = vld [vmem:[#allocation3 + $0x880] sm:$0xff]
    %v6087 = vld [vmem:[#allocation3 + $0x888] sm:$0xff]
    %v6088 = vld [vmem:[#allocation3 + $0x890] sm:$0xff]
    %v6089 = vld [vmem:[#allocation3 + $0x898] sm:$0xff]
    %v6090 = vld [vmem:[#allocation3 + $0x8a0] sm:$0xff]
    %v6091 = vld [vmem:[#allocation3 + $0x8a8] sm:$0xff]
    %v6092 = vld [vmem:[#allocation3 + $0x8b0] sm:$0xff]
    %v6093 = vld [vmem:[#allocation3 + $0x8b8] sm:$0xff]
    %v6094 = vld [vmem:[#allocation3 + $0x8c0] sm:$0xff]
    %v6095 = vld [vmem:[#allocation3 + $0x8c8] sm:$0xff]
    %v6096 = vld [vmem:[#allocation3 + $0x8d0] sm:$0xff]
    %v6097 = vld [vmem:[#allocation3 + $0x8d8] sm:$0xff]
    %v6098 = vld [vmem:[#allocation3 + $0x8e0] sm:$0xff]
    %v6099 = vld [vmem:[#allocation3 + $0x8e8] sm:$0xff]
    %v6100 = vld [vmem:[#allocation3 + $0x8f0] sm:$0xff]
    %v6101 = vld [vmem:[#allocation3 + $0x8f8] sm:$0xff]
    %v6102 = vld [vmem:[#allocation3 + $0x908] sm:$0xff]
    %v6103 = vld [vmem:[#allocation3 + $0x910] sm:$0xff]
    %v6104 = vld [vmem:[#allocation3 + $0x918] sm:$0xff]
    %v6105 = vld [vmem:[#allocation3 + $0x920] sm:$0xff]
    %v6106 = vld [vmem:[#allocation3 + $0x928] sm:$0xff]
    %v6107 = vld [vmem:[#allocation3 + $0x930] sm:$0xff]
    %v6108 = vld [vmem:[#allocation3 + $0x938] sm:$0xff]
    %v6109 = vld [vmem:[#allocation3 + $0x940] sm:$0xff]
    %v6110 = vld [vmem:[#allocation3 + $0x948] sm:$0xff]
    %v6111 = vld [vmem:[#allocation3 + $0x950] sm:$0xff]
    %v6112 = vld [vmem:[#allocation3 + $0x958] sm:$0xff]
    %v6113 = vld [vmem:[#allocation3 + $0x960] sm:$0xff]
    %v6114 = vld [vmem:[#allocation3 + $0x968] sm:$0xff]
    %v6115 = vld [vmem:[#allocation3 + $0x970] sm:$0xff]
    %v6116 = vld [vmem:[#allocation3 + $0x978] sm:$0xff]
    %v6117 = vld [vmem:[#allocation3 + $0x980] sm:$0xff]
    %v6118 = vld [vmem:[#allocation3 + $0x990] sm:$0xff]
    %v6119 = vld [vmem:[#allocation3 + $0x998] sm:$0xff]
    %v6120 = vld [vmem:[#allocation3 + $0x9a0] sm:$0xff]
    %v6121 = vld [vmem:[#allocation3 + $0x9a8] sm:$0xff]
    %v6122 = vld [vmem:[#allocation3 + $0x9b0] sm:$0xff]
    %v6123 = vld [vmem:[#allocation3 + $0x9b8] sm:$0xff]
    %v6124 = vld [vmem:[#allocation3 + $0x9c0] sm:$0xff]
    %v6125 = vld [vmem:[#allocation3 + $0x9c8] sm:$0xff]
    %v6126 = vld [vmem:[#allocation3 + $0x9d0] sm:$0xff]
    %v6127 = vld [vmem:[#allocation3 + $0x9d8] sm:$0xff]
    %v6128 = vld [vmem:[#allocation3 + $0x9e0] sm:$0xff]
    %v6129 = vld [vmem:[#allocation3 + $0x9e8] sm:$0xff]
    %v6130 = vld [vmem:[#allocation3 + $0x9f0] sm:$0xff]
    %v6131 = vld [vmem:[#allocation3 + $0x9f8] sm:$0xff]
    %v6132 = vld [vmem:[#allocation3 + $0xa00] sm:$0xff]
    %v6133 = vld [vmem:[#allocation3 + $0xa08] sm:$0xff]
    %v6134 = vld [vmem:[#allocation3 + $0xa18] sm:$0xff]
    %v6135 = vld [vmem:[#allocation3 + $0xa20] sm:$0xff]
    %v6136 = vld [vmem:[#allocation3 + $0xa28] sm:$0xff]
    %v6137 = vld [vmem:[#allocation3 + $0xa30] sm:$0xff]
    %v6138 = vld [vmem:[#allocation3 + $0xa38] sm:$0xff]
    %v6139 = vld [vmem:[#allocation3 + $0xa40] sm:$0xff]
    %v6140 = vld [vmem:[#allocation3 + $0xa48] sm:$0xff]
    %v6141 = vld [vmem:[#allocation3 + $0xa50] sm:$0xff]
    %v6142 = vld [vmem:[#allocation3 + $0xa58] sm:$0xff]
    %v6143 = vld [vmem:[#allocation3 + $0xa60] sm:$0xff]
    %v6144 = vld [vmem:[#allocation3 + $0xa68] sm:$0xff]
    %v6145 = vld [vmem:[#allocation3 + $0xa70] sm:$0xff]
    %v6146 = vld [vmem:[#allocation3 + $0xa78] sm:$0xff]
    %v6147 = vld [vmem:[#allocation3 + $0xa80] sm:$0xff]
    %v6148 = vld [vmem:[#allocation3 + $0xa88] sm:$0xff]
    %v6149 = vld [vmem:[#allocation3 + $0xa90] sm:$0xff]
    %v6150 = vld [vmem:[#allocation3 + $0xaa0] sm:$0xff]
    %v6151 = vld [vmem:[#allocation3 + $0xaa8] sm:$0xff]
    %v6152 = vld [vmem:[#allocation3 + $0xab0] sm:$0xff]
    %v6153 = vld [vmem:[#allocation3 + $0xab8] sm:$0xff]
    %v6154 = vld [vmem:[#allocation3 + $0xac0] sm:$0xff]
    %v6155 = vld [vmem:[#allocation3 + $0xac8] sm:$0xff]
    %v6156 = vld [vmem:[#allocation3 + $0xad0] sm:$0xff]
    %v6157 = vld [vmem:[#allocation3 + $0xad8] sm:$0xff]
    %v6158 = vld [vmem:[#allocation3 + $0xae0] sm:$0xff]
    %v6159 = vld [vmem:[#allocation3 + $0xae8] sm:$0xff]
    %v6160 = vld [vmem:[#allocation3 + $0xaf0] sm:$0xff]
    %v6161 = vld [vmem:[#allocation3 + $0xaf8] sm:$0xff]
    %v6162 = vld [vmem:[#allocation3 + $0xb00] sm:$0xff]
    %v6163 = vld [vmem:[#allocation3 + $0xb08] sm:$0xff]
    %v6164 = vld [vmem:[#allocation3 + $0xb10] sm:$0xff]
    %v6165 = vld [vmem:[#allocation3 + $0xb18] sm:$0xff]
    %v6166 = vld [vmem:[#allocation3 + $0xb28] sm:$0xff]
    %v6167 = vld [vmem:[#allocation3 + $0xb30] sm:$0xff]
    %v6168 = vld [vmem:[#allocation3 + $0xb38] sm:$0xff]
    %v6169 = vld [vmem:[#allocation3 + $0xb40] sm:$0xff]
    %v6170 = vld [vmem:[#allocation3 + $0xb48] sm:$0xff]
    %v6171 = vld [vmem:[#allocation3 + $0xb50] sm:$0xff]
    %v6172 = vld [vmem:[#allocation3 + $0xb58] sm:$0xff]
    %v6173 = vld [vmem:[#allocation3 + $0xb60] sm:$0xff]
    %v6174 = vld [vmem:[#allocation3 + $0xb68] sm:$0xff]
    %v6175 = vld [vmem:[#allocation3 + $0xb70] sm:$0xff]
    %v6176 = vld [vmem:[#allocation3 + $0xb78] sm:$0xff]
    %v6177 = vld [vmem:[#allocation3 + $0xb80] sm:$0xff]
    %v6178 = vld [vmem:[#allocation3 + $0xb88] sm:$0xff]
    %v6179 = vld [vmem:[#allocation3 + $0xb90] sm:$0xff]
    %v6180 = vld [vmem:[#allocation3 + $0xb98] sm:$0xff]
    %v6181 = vld [vmem:[#allocation3 + $0xba0] sm:$0xff]
    %v6182 = vld [vmem:[#allocation3 + $0xbb0] sm:$0xff]
    %v6183 = vld [vmem:[#allocation3 + $0xbb8] sm:$0xff]
    %v6184 = vld [vmem:[#allocation3 + $0xbc0] sm:$0xff]
    %v6185 = vld [vmem:[#allocation3 + $0xbc8] sm:$0xff]
    %v6186 = vld [vmem:[#allocation3 + $0xbd0] sm:$0xff]
    %v6187 = vld [vmem:[#allocation3 + $0xbd8] sm:$0xff]
    %v6188 = vld [vmem:[#allocation3 + $0xbe0] sm:$0xff]
    %v6189 = vld [vmem:[#allocation3 + $0xbe8] sm:$0xff]
    %v6190 = vld [vmem:[#allocation3 + $0xbf0] sm:$0xff]
    %v6191 = vld [vmem:[#allocation3 + $0xbf8] sm:$0xff]
    %v6192 = vld [vmem:[#allocation3 + $0xc00] sm:$0xff]
    %v6193 = vld [vmem:[#allocation3 + $0xc08] sm:$0xff]
    %v6194 = vld [vmem:[#allocation3 + $0xc10] sm:$0xff]
    %v6195 = vld [vmem:[#allocation3 + $0xc18] sm:$0xff]
    %v6196 = vld [vmem:[#allocation3 + $0xc20] sm:$0xff]
    %v6197 = vld [vmem:[#allocation3 + $0xc28] sm:$0xff]
    %v6198 = vld [vmem:[#allocation3 + $0xc38] sm:$0xff]
    %v6199 = vld [vmem:[#allocation3 + $0xc40] sm:$0xff]
    %v6200 = vld [vmem:[#allocation3 + $0xc48] sm:$0xff]
    %v6201 = vld [vmem:[#allocation3 + $0xc50] sm:$0xff]
    %v6202 = vld [vmem:[#allocation3 + $0xc58] sm:$0xff]
    %v6203 = vld [vmem:[#allocation3 + $0xc60] sm:$0xff]
    %v6204 = vld [vmem:[#allocation3 + $0xc68] sm:$0xff]
    %v6205 = vld [vmem:[#allocation3 + $0xc70] sm:$0xff]
    %v6206 = vld [vmem:[#allocation3 + $0xc78] sm:$0xff]
    %v6207 = vld [vmem:[#allocation3 + $0xc80] sm:$0xff]
    %v6208 = vld [vmem:[#allocation3 + $0xc88] sm:$0xff]
    %v6209 = vld [vmem:[#allocation3 + $0xc90] sm:$0xff]
    %v6210 = vld [vmem:[#allocation3 + $0xc98] sm:$0xff]
    %v6211 = vld [vmem:[#allocation3 + $0xca0] sm:$0xff]
    %v6212 = vld [vmem:[#allocation3 + $0xca8] sm:$0xff]
    %v6213 = vld [vmem:[#allocation3 + $0xcb0] sm:$0xff]
    %v6214 = vld [vmem:[#allocation3 + $0xcc0] sm:$0xff]
    %v6215 = vld [vmem:[#allocation3 + $0xcc8] sm:$0xff]
    %v6216 = vld [vmem:[#allocation3 + $0xcd0] sm:$0xff]
    %v6217 = vld [vmem:[#allocation3 + $0xcd8] sm:$0xff]
    %v6218 = vld [vmem:[#allocation3 + $0xce0] sm:$0xff]
    %v6219 = vld [vmem:[#allocation3 + $0xce8] sm:$0xff]
    %v6220 = vld [vmem:[#allocation3 + $0xcf0] sm:$0xff]
    %v6221 = vld [vmem:[#allocation3 + $0xcf8] sm:$0xff]
    %v6222 = vld [vmem:[#allocation3 + $0xd00] sm:$0xff]
    %v6223 = vld [vmem:[#allocation3 + $0xd08] sm:$0xff]
    %v6224 = vld [vmem:[#allocation3 + $0xd10] sm:$0xff]
    %v6225 = vld [vmem:[#allocation3 + $0xd18] sm:$0xff]
    %v6226 = vld [vmem:[#allocation3 + $0xd20] sm:$0xff]
    %v6227 = vld [vmem:[#allocation3 + $0xd28] sm:$0xff]
    %v6228 = vld [vmem:[#allocation3 + $0xd30] sm:$0xff]
    %v6229 = vld [vmem:[#allocation3 + $0xd38] sm:$0xff]
    %v6230 = vpack.c.bf16 %v5846, %v5830
    %v6231 = vpack.c.bf16 %v5847, %v5831
    %v6232 = vpack.c.bf16 %v5848, %v5832
    %v6233 = vpack.c.bf16 %v5849, %v5833
    %v6234 = vpack.c.bf16 %v5850, %v5834
    %v6235 = vpack.c.bf16 %v5851, %v5835
    %v6236 = vpack.c.bf16 %v5852, %v5836
    %v6237 = vpack.c.bf16 %v5853, %v5837
    %v6238 = vpack.c.bf16 %v5854, %v5838
    %v6239 = vpack.c.bf16 %v5855, %v5839
    %v6240 = vpack.c.bf16 %v5856, %v5840
    %v6241 = vpack.c.bf16 %v5857, %v5841
    %v6242 = vpack.c.bf16 %v5858, %v5842
    %v6243 = vpack.c.bf16 %v5859, %v5843
    %v6244 = vpack.c.bf16 %v5860, %v5844
    %v6245 = vpack.c.bf16 %v5861, %v5845
    %v6246 = vpack.c.bf16 %v5878, %v5862
    %v6247 = vpack.c.bf16 %v5879, %v5863
    %v6248 = vpack.c.bf16 %v5880, %v5864
    %v6249 = vpack.c.bf16 %v5881, %v5865
    %v6250 = vpack.c.bf16 %v5882, %v5866
    %v6251 = vpack.c.bf16 %v5883, %v5867
    %v6252 = vpack.c.bf16 %v5884, %v5868
    %v6253 = vpack.c.bf16 %v5885, %v5869
    %v6254 = vpack.c.bf16 %v5886, %v5870
    %v6255 = vpack.c.bf16 %v5887, %v5871
    %v6256 = vpack.c.bf16 %v5888, %v5872
    %v6257 = vpack.c.bf16 %v5889, %v5873
    %v6258 = vpack.c.bf16 %v5890, %v5874
    %v6259 = vpack.c.bf16 %v5891, %v5875
    %v6260 = vpack.c.bf16 %v5892, %v5876
    %v6261 = vpack.c.bf16 %v5893, %v5877
    %v6262 = vpack.c.bf16 %v5910, %v5894
    %v6263 = vpack.c.bf16 %v5911, %v5895
    %v6264 = vpack.c.bf16 %v5912, %v5896
    %v6265 = vpack.c.bf16 %v5913, %v5897
    %v6266 = vpack.c.bf16 %v5914, %v5898
    %v6267 = vpack.c.bf16 %v5915, %v5899
    %v6268 = vpack.c.bf16 %v5916, %v5900
    %v6269 = vpack.c.bf16 %v5917, %v5901
    %v6270 = vpack.c.bf16 %v5918, %v5902
    %v6271 = vpack.c.bf16 %v5919, %v5903
    %v6272 = vpack.c.bf16 %v5920, %v5904
    %v6273 = vpack.c.bf16 %v5921, %v5905
    %v6274 = vpack.c.bf16 %v5922, %v5906
    %v6275 = vpack.c.bf16 %v5923, %v5907
    %v6276 = vpack.c.bf16 %v5924, %v5908
    %v6277 = vpack.c.bf16 %v5925, %v5909
    %v6278 = vpack.c.bf16 %v5942, %v5926
    %v6279 = vpack.c.bf16 %v5943, %v5927
    %v6280 = vpack.c.bf16 %v5944, %v5928
    %v6281 = vpack.c.bf16 %v5945, %v5929
    %v6282 = vpack.c.bf16 %v5946, %v5930
    %v6283 = vpack.c.bf16 %v5947, %v5931
    %v6284 = vpack.c.bf16 %v5948, %v5932
    %v6285 = vpack.c.bf16 %v5949, %v5933
    %v6286 = vpack.c.bf16 %v5950, %v5934
    %v6287 = vpack.c.bf16 %v5951, %v5935
    %v6288 = vpack.c.bf16 %v5952, %v5936
    %v6289 = vpack.c.bf16 %v5953, %v5937
    %v6290 = vpack.c.bf16 %v5954, %v5938
    %v6291 = vpack.c.bf16 %v5955, %v5939
    %v6292 = vpack.c.bf16 %v5956, %v5940
    %v6293 = vpack.c.bf16 %v5957, %v5941
    %v6294 = vpack.c.bf16 %v5974, %v5958
    %v6295 = vpack.c.bf16 %v5975, %v5959
    %v6296 = vpack.c.bf16 %v5976, %v5960
    %v6297 = vpack.c.bf16 %v5977, %v5961
    %v6298 = vpack.c.bf16 %v5978, %v5962
    %v6299 = vpack.c.bf16 %v5979, %v5963
    %v6300 = vpack.c.bf16 %v5980, %v5964
    %v6301 = vpack.c.bf16 %v5981, %v5965
    %v6302 = vpack.c.bf16 %v5982, %v5966
    %v6303 = vpack.c.bf16 %v5983, %v5967
    %v6304 = vpack.c.bf16 %v5984, %v5968
    %v6305 = vpack.c.bf16 %v5985, %v5969
    %v6306 = vpack.c.bf16 %v5986, %v5970
    %v6307 = vpack.c.bf16 %v5987, %v5971
    %v6308 = vpack.c.bf16 %v5988, %v5972
    %v6309 = vpack.c.bf16 %v5989, %v5973
    %v6310 = vpack.c.bf16 %v6006, %v5990
    %v6311 = vpack.c.bf16 %v6007, %v5991
    %v6312 = vpack.c.bf16 %v6008, %v5992
    %v6313 = vpack.c.bf16 %v6009, %v5993
    %v6314 = vpack.c.bf16 %v6010, %v5994
    %v6315 = vpack.c.bf16 %v6011, %v5995
    %v6316 = vpack.c.bf16 %v6012, %v5996
    %v6317 = vpack.c.bf16 %v6013, %v5997
    %v6318 = vpack.c.bf16 %v6014, %v5998
    %v6319 = vpack.c.bf16 %v6015, %v5999
    %v6320 = vpack.c.bf16 %v6016, %v6000
    %v6321 = vpack.c.bf16 %v6017, %v6001
    %v6322 = vpack.c.bf16 %v6018, %v6002
    %v6323 = vpack.c.bf16 %v6019, %v6003
    %v6324 = vpack.c.bf16 %v6020, %v6004
    %v6325 = vpack.c.bf16 %v6021, %v6005
    %v6326 = vpack.c.bf16 %v6038, %v6022
    %v6327 = vpack.c.bf16 %v6039, %v6023
    %v6328 = vpack.c.bf16 %v6040, %v6024
    %v6329 = vpack.c.bf16 %v6041, %v6025
    %v6330 = vpack.c.bf16 %v6042, %v6026
    %v6331 = vpack.c.bf16 %v6043, %v6027
    %v6332 = vpack.c.bf16 %v6044, %v6028
    %v6333 = vpack.c.bf16 %v6045, %v6029
    %v6334 = vpack.c.bf16 %v6046, %v6030
    %v6335 = vpack.c.bf16 %v6047, %v6031
    %v6336 = vpack.c.bf16 %v6048, %v6032
    %v6337 = vpack.c.bf16 %v6049, %v6033
    %v6338 = vpack.c.bf16 %v6050, %v6034
    %v6339 = vpack.c.bf16 %v6051, %v6035
    %v6340 = vpack.c.bf16 %v6052, %v6036
    %v6341 = vpack.c.bf16 %v6053, %v6037
    %v6342 = vpack.c.bf16 %v6070, %v6054
    %v6343 = vpack.c.bf16 %v6071, %v6055
    %v6344 = vpack.c.bf16 %v6072, %v6056
    %v6345 = vpack.c.bf16 %v6073, %v6057
    %v6346 = vpack.c.bf16 %v6074, %v6058
    %v6347 = vpack.c.bf16 %v6075, %v6059
    %v6348 = vpack.c.bf16 %v6076, %v6060
    %v6349 = vpack.c.bf16 %v6077, %v6061
    %v6350 = vpack.c.bf16 %v6078, %v6062
    %v6351 = vpack.c.bf16 %v6079, %v6063
    %v6352 = vpack.c.bf16 %v6080, %v6064
    %v6353 = vpack.c.bf16 %v6081, %v6065
    %v6354 = vpack.c.bf16 %v6082, %v6066
    %v6355 = vpack.c.bf16 %v6083, %v6067
    %v6356 = vpack.c.bf16 %v6084, %v6068
    %v6357 = vpack.c.bf16 %v6085, %v6069
    %v6358 = vpack.c.bf16 %v6102, %v6086
    %v6359 = vpack.c.bf16 %v6103, %v6087
    %v6360 = vpack.c.bf16 %v6104, %v6088
    %v6361 = vpack.c.bf16 %v6105, %v6089
    %v6362 = vpack.c.bf16 %v6106, %v6090
    %v6363 = vpack.c.bf16 %v6107, %v6091
    %v6364 = vpack.c.bf16 %v6108, %v6092
    %v6365 = vpack.c.bf16 %v6109, %v6093
    %v6366 = vpack.c.bf16 %v6110, %v6094
    %v6367 = vpack.c.bf16 %v6111, %v6095
    %v6368 = vpack.c.bf16 %v6112, %v6096
    %v6369 = vpack.c.bf16 %v6113, %v6097
    %v6370 = vpack.c.bf16 %v6114, %v6098
    %v6371 = vpack.c.bf16 %v6115, %v6099
    %v6372 = vpack.c.bf16 %v6116, %v6100
    %v6373 = vpack.c.bf16 %v6117, %v6101
    %v6374 = vpack.c.bf16 %v6134, %v6118
    %v6375 = vpack.c.bf16 %v6135, %v6119
    %v6376 = vpack.c.bf16 %v6136, %v6120
    %v6377 = vpack.c.bf16 %v6137, %v6121
    %v6378 = vpack.c.bf16 %v6138, %v6122
    %v6379 = vpack.c.bf16 %v6139, %v6123
    %v6380 = vpack.c.bf16 %v6140, %v6124
    %v6381 = vpack.c.bf16 %v6141, %v6125
    %v6382 = vpack.c.bf16 %v6142, %v6126
    %v6383 = vpack.c.bf16 %v6143, %v6127
    %v6384 = vpack.c.bf16 %v6144, %v6128
    %v6385 = vpack.c.bf16 %v6145, %v6129
    %v6386 = vpack.c.bf16 %v6146, %v6130
    %v6387 = vpack.c.bf16 %v6147, %v6131
    %v6388 = vpack.c.bf16 %v6148, %v6132
    %v6389 = vpack.c.bf16 %v6149, %v6133
    %v6390 = vpack.c.bf16 %v6166, %v6150
    %v6391 = vpack.c.bf16 %v6167, %v6151
    %v6392 = vpack.c.bf16 %v6168, %v6152
    %v6393 = vpack.c.bf16 %v6169, %v6153
    %v6394 = vpack.c.bf16 %v6170, %v6154
    %v6395 = vpack.c.bf16 %v6171, %v6155
    %v6396 = vpack.c.bf16 %v6172, %v6156
    %v6397 = vpack.c.bf16 %v6173, %v6157
    %v6398 = vpack.c.bf16 %v6174, %v6158
    %v6399 = vpack.c.bf16 %v6175, %v6159
    %v6400 = vpack.c.bf16 %v6176, %v6160
    %v6401 = vpack.c.bf16 %v6177, %v6161
    %v6402 = vpack.c.bf16 %v6178, %v6162
    %v6403 = vpack.c.bf16 %v6179, %v6163
    %v6404 = vpack.c.bf16 %v6180, %v6164
    %v6405 = vpack.c.bf16 %v6181, %v6165
    %v6406 = vpack.c.bf16 %v6198, %v6182
    %v6407 = vpack.c.bf16 %v6199, %v6183
    %v6408 = vpack.c.bf16 %v6200, %v6184
    %v6409 = vpack.c.bf16 %v6201, %v6185
    %v6410 = vpack.c.bf16 %v6202, %v6186
    %v6411 = vpack.c.bf16 %v6203, %v6187
    %v6412 = vpack.c.bf16 %v6204, %v6188
    %v6413 = vpack.c.bf16 %v6205, %v6189
    %v6414 = vpack.c.bf16 %v6206, %v6190
    %v6415 = vpack.c.bf16 %v6207, %v6191
    %v6416 = vpack.c.bf16 %v6208, %v6192
    %v6417 = vpack.c.bf16 %v6209, %v6193
    %v6418 = vpack.c.bf16 %v6210, %v6194
    %v6419 = vpack.c.bf16 %v6211, %v6195
    %v6420 = vpack.c.bf16 %v6212, %v6196
    %v6421 = vpack.c.bf16 %v6213, %v6197
    %v6422 = vpack.c.bf16 %v6214, %v6214
    %v6423 = vpack.c.bf16 %v6215, %v6215
    %v6424 = vpack.c.bf16 %v6216, %v6216
    %v6425 = vpack.c.bf16 %v6217, %v6217
    %v6426 = vpack.c.bf16 %v6218, %v6218
    %v6427 = vpack.c.bf16 %v6219, %v6219
    %v6428 = vpack.c.bf16 %v6220, %v6220
    %v6429 = vpack.c.bf16 %v6221, %v6221
    %v6430 = vpack.c.bf16 %v6222, %v6222
    %v6431 = vpack.c.bf16 %v6223, %v6223
    %v6432 = vpack.c.bf16 %v6224, %v6224
    %v6433 = vpack.c.bf16 %v6225, %v6225
    %v6434 = vpack.c.bf16 %v6226, %v6226
    %v6435 = vpack.c.bf16 %v6227, %v6227
    %v6436 = vpack.c.bf16 %v6228, %v6228
    %v6437 = vpack.c.bf16 %v6229, %v6229
    %v6438 = vld [vmem:[%s4] sm:$0xff]
    %v6439 = vld [vmem:[%s4 + $0x8] sm:$0xff]
    %6441 = vset.pattern.permute.xlu0 0
    %6442 = vperm.xlu0 %6441, %v6438
    %v6443 = vpop.permute.xlu0 %6442
    %6446 = vset.pattern.permute.xlu0 0
    %6447 = vperm.xlu0 %6446, %v6439
    %v6448 = vpop.permute.xlu0 %6447
    %v6452 = vunpack.c.l.b16 %v5828
    %v6453 = vunpack.c.h.b16 %v5828
    %v6454 = vunpack.c.l.b16 %v5829
    %v6455 = vunpack.c.h.b16 %v5829
    %v6456 = vpack.c.b16 %v6454, %v6452
    %v6457 = vpack.c.b16 %v6455, %v6453
    %v6460 = vsel %vm3985, %v6457, 0
    %v6463 = vsel %vm3989, %v6422, 0
    %v6466 = vsel %vm3989, %v6423, 0
    %v6469 = vsel %vm3989, %v6424, 0
    %v6472 = vsel %vm3989, %v6425, 0
    %v6475 = vsel %vm3989, %v6426, 0
    %v6478 = vsel %vm3989, %v6427, 0
    %v6481 = vsel %vm3989, %v6428, 0
    %v6484 = vsel %vm3989, %v6429, 0
    %v6487 = vsel %vm3989, %v6430, 0
    %v6490 = vsel %vm3989, %v6431, 0
    %v6493 = vsel %vm3989, %v6432, 0
    %v6496 = vsel %vm3989, %v6433, 0
    %v6499 = vsel %vm3989, %v6434, 0
    %v6502 = vsel %vm3989, %v6435, 0
    %v6505 = vsel %vm3989, %v6436, 0
    %v6508 = vsel %vm3989, %v6437, 0
    %6510 = vmatprep.subr.bf16.mxu0 %v6231
    %6511 = vmatpush1.bf16.msra.mxu0 %v6230
    %6512 = vmatprep.subr.bf16.mxu0 %v6247
    %6513 = vmatpush1.bf16.msra.mxu0 %v6246
    %6514 = vmatprep.subr.bf16.mxu0 %v6263
    %6515 = vmatpush1.bf16.msra.mxu0 %v6262
    %6516 = vmatprep.subr.bf16.mxu0 %v6279
    %6517 = vmatpush1.bf16.msra.mxu0 %v6278
    %6518 = vmatprep.subr.bf16.mxu0 %v6295
    %6519 = vmatpush1.bf16.msra.mxu0 %v6294
    %6520 = vmatprep.subr.bf16.mxu0 %v6311
    %6521 = vmatpush1.bf16.msra.mxu0 %v6310
    %6522 = vmatprep.subr.bf16.mxu0 %v6327
    %6523 = vmatpush1.bf16.msra.mxu0 %v6326
    %6524 = vmatprep.subr.bf16.mxu0 %v6343
    %6525 = vmatpush1.bf16.msra.mxu0 %v6342
    %6526 = vmatprep.subr.bf16.mxu0 %v6359
    %6527 = vmatpush1.bf16.msra.mxu0 %v6358
    %6528 = vmatprep.subr.bf16.mxu0 %v6375
    %6529 = vmatpush1.bf16.msra.mxu0 %v6374
    %6530 = vmatprep.subr.bf16.mxu0 %v6391
    %6531 = vmatpush1.bf16.msra.mxu0 %v6390
    %6532 = vmatprep.subr.bf16.mxu0 %v6407
    %6533 = vmatpush1.bf16.msra.mxu0 %v6406
    %6534 = vmatprep.subr.bf16.mxu0 %v6466
    %6535 = vmatpush1.bf16.msra.mxu0 %v6463
    %6536 = vmatprep.subr.bf16.mxu0 0
    %6537 = vmatpush1.bf16.msra.mxu0 0
    %6538 = vmatprep.subr.bf16.mxu0 0
    %6539 = vmatpush1.bf16.msra.mxu0 0
    %6540 = vmatprep.subr.bf16.mxu0 0
    %6541 = vmatpush1.bf16.msra.mxu0 0
    %6542 = vmatprep.mubr.bf16.mxu0 %v6460
    %6543 = vmatmul.mubr.bf16.gmra.mrb[0].mxu0 %v6456
    %v6544 = vpop.f32.mrb[0].mxu0
    %v6545 = vadd.f32 %v6443, %v6544
    %v6546 = vpop.f32.mrb[0].mxu0
    %v6547 = vadd.f32 %v6443, %v6546
    %v6548 = vpop.f32.mrb[0].mxu0
    %v6549 = vadd.f32 %v6448, %v6548
    %v6550 = vpop.f32.mrb[0].mxu0
    %v6551 = vadd.f32 %v6448, %v6550
    %6552 = vdwg.mxu0
    %6553 = vmatprep.subr.bf16.mxu0 %v6233
    %6554 = vmatpush1.bf16.msra.mxu0 %v6232
    %6555 = vmatprep.subr.bf16.mxu0 %v6249
    %6556 = vmatpush1.bf16.msra.mxu0 %v6248
    %6557 = vmatprep.subr.bf16.mxu0 %v6265
    %6558 = vmatpush1.bf16.msra.mxu0 %v6264
    %6559 = vmatprep.subr.bf16.mxu0 %v6281
    %6560 = vmatpush1.bf16.msra.mxu0 %v6280
    %6561 = vmatprep.subr.bf16.mxu0 %v6297
    %6562 = vmatpush1.bf16.msra.mxu0 %v6296
    %6563 = vmatprep.subr.bf16.mxu0 %v6313
    %6564 = vmatpush1.bf16.msra.mxu0 %v6312
    %6565 = vmatprep.subr.bf16.mxu0 %v6329
    %6566 = vmatpush1.bf16.msra.mxu0 %v6328
    %6567 = vmatprep.subr.bf16.mxu0 %v6345
    %6568 = vmatpush1.bf16.msra.mxu0 %v6344
    %6569 = vmatprep.subr.bf16.mxu0 %v6361
    %6570 = vmatpush1.bf16.msra.mxu0 %v6360
    %6571 = vmatprep.subr.bf16.mxu0 %v6377
    %6572 = vmatpush1.bf16.msra.mxu0 %v6376
    %6573 = vmatprep.subr.bf16.mxu0 %v6393
    %6574 = vmatpush1.bf16.msra.mxu0 %v6392
    %6575 = vmatprep.subr.bf16.mxu0 %v6409
    %6576 = vmatpush1.bf16.msra.mxu0 %v6408
    %6577 = vmatprep.subr.bf16.mxu0 %v6472
    %6578 = vmatpush1.bf16.msra.mxu0 %v6469
    %6579 = vmatprep.subr.bf16.mxu0 0
    %6580 = vmatpush1.bf16.msra.mxu0 0
    %6581 = vmatprep.subr.bf16.mxu0 0
    %6582 = vmatpush1.bf16.msra.mxu0 0
    %6583 = vmatprep.subr.bf16.mxu0 0
    %6584 = vmatpush1.bf16.msra.mxu0 0
    %6585 = vmatprep.mubr.bf16.mxu0 %v6460
    %6586 = vmatmul.mubr.bf16.gmra.mrb[0].mxu0 %v6456
    %v6587 = vpop.f32.mrb[0].mxu0
    %v6588 = vadd.f32 %v6443, %v6587
    %v6589 = vpop.f32.mrb[0].mxu0
    %v6590 = vadd.f32 %v6443, %v6589
    %v6591 = vpop.f32.mrb[0].mxu0
    %v6592 = vadd.f32 %v6448, %v6591
    %v6593 = vpop.f32.mrb[0].mxu0
    %v6594 = vadd.f32 %v6448, %v6593
    %6595 = vdwg.mxu0
    %6596 = vmatprep.subr.bf16.mxu0 %v6235
    %6597 = vmatpush1.bf16.msra.mxu0 %v6234
    %6598 = vmatprep.subr.bf16.mxu0 %v6251
    %6599 = vmatpush1.bf16.msra.mxu0 %v6250
    %6600 = vmatprep.subr.bf16.mxu0 %v6267
    %6601 = vmatpush1.bf16.msra.mxu0 %v6266
    %6602 = vmatprep.subr.bf16.mxu0 %v6283
    %6603 = vmatpush1.bf16.msra.mxu0 %v6282
    %6604 = vmatprep.subr.bf16.mxu0 %v6299
    %6605 = vmatpush1.bf16.msra.mxu0 %v6298
    %6606 = vmatprep.subr.bf16.mxu0 %v6315
    %6607 = vmatpush1.bf16.msra.mxu0 %v6314
    %6608 = vmatprep.subr.bf16.mxu0 %v6331
    %6609 = vmatpush1.bf16.msra.mxu0 %v6330
    %6610 = vmatprep.subr.bf16.mxu0 %v6347
    %6611 = vmatpush1.bf16.msra.mxu0 %v6346
    %6612 = vmatprep.subr.bf16.mxu0 %v6363
    %6613 = vmatpush1.bf16.msra.mxu0 %v6362
    %6614 = vmatprep.subr.bf16.mxu0 %v6379
    %6615 = vmatpush1.bf16.msra.mxu0 %v6378
    %6616 = vmatprep.subr.bf16.mxu0 %v6395
    %6617 = vmatpush1.bf16.msra.mxu0 %v6394
    %6618 = vmatprep.subr.bf16.mxu0 %v6411
    %6619 = vmatpush1.bf16.msra.mxu0 %v6410
    %6620 = vmatprep.subr.bf16.mxu0 %v6478
    %6621 = vmatpush1.bf16.msra.mxu0 %v6475
    %6622 = vmatprep.subr.bf16.mxu0 0
    %6623 = vmatpush1.bf16.msra.mxu0 0
    %6624 = vmatprep.subr.bf16.mxu0 0
    %6625 = vmatpush1.bf16.msra.mxu0 0
    %6626 = vmatprep.subr.bf16.mxu0 0
    %6627 = vmatpush1.bf16.msra.mxu0 0
    %6628 = vmatprep.mubr.bf16.mxu0 %v6460
    %6629 = vmatmul.mubr.bf16.gmra.mrb[0].mxu0 %v6456
    %v6630 = vpop.f32.mrb[0].mxu0
    %v6631 = vadd.f32 %v6443, %v6630
    %v6632 = vpop.f32.mrb[0].mxu0
    %v6633 = vadd.f32 %v6443, %v6632
    %v6634 = vpop.f32.mrb[0].mxu0
    %v6635 = vadd.f32 %v6448, %v6634
    %v6636 = vpop.f32.mrb[0].mxu0
    %v6637 = vadd.f32 %v6448, %v6636
    %6638 = vdwg.mxu0
    %6639 = vmatprep.subr.bf16.mxu0 %v6237
    %6640 = vmatpush1.bf16.msra.mxu0 %v6236
    %6641 = vmatprep.subr.bf16.mxu0 %v6253
    %6642 = vmatpush1.bf16.msra.mxu0 %v6252
    %6643 = vmatprep.subr.bf16.mxu0 %v6269
    %6644 = vmatpush1.bf16.msra.mxu0 %v6268
    %6645 = vmatprep.subr.bf16.mxu0 %v6285
    %6646 = vmatpush1.bf16.msra.mxu0 %v6284
    %6647 = vmatprep.subr.bf16.mxu0 %v6301
    %6648 = vmatpush1.bf16.msra.mxu0 %v6300
    %6649 = vmatprep.subr.bf16.mxu0 %v6317
    %6650 = vmatpush1.bf16.msra.mxu0 %v6316
    %6651 = vmatprep.subr.bf16.mxu0 %v6333
    %6652 = vmatpush1.bf16.msra.mxu0 %v6332
    %6653 = vmatprep.subr.bf16.mxu0 %v6349
    %6654 = vmatpush1.bf16.msra.mxu0 %v6348
    %6655 = vmatprep.subr.bf16.mxu0 %v6365
    %6656 = vmatpush1.bf16.msra.mxu0 %v6364
    %6657 = vmatprep.subr.bf16.mxu0 %v6381
    %6658 = vmatpush1.bf16.msra.mxu0 %v6380
    %6659 = vmatprep.subr.bf16.mxu0 %v6397
    %6660 = vmatpush1.bf16.msra.mxu0 %v6396
    %6661 = vmatprep.subr.bf16.mxu0 %v6413
    %6662 = vmatpush1.bf16.msra.mxu0 %v6412
    %6663 = vmatprep.subr.bf16.mxu0 %v6484
    %6664 = vmatpush1.bf16.msra.mxu0 %v6481
    %6665 = vmatprep.subr.bf16.mxu0 0
    %6666 = vmatpush1.bf16.msra.mxu0 0
    %6667 = vmatprep.subr.bf16.mxu0 0
    %6668 = vmatpush1.bf16.msra.mxu0 0
    %6669 = vmatprep.subr.bf16.mxu0 0
    %6670 = vmatpush1.bf16.msra.mxu0 0
    %6671 = vmatprep.mubr.bf16.mxu0 %v6460
    %6672 = vmatmul.mubr.bf16.gmra.mrb[0].mxu0 %v6456
    %v6673 = vpop.f32.mrb[0].mxu0
    %v6674 = vadd.f32 %v6443, %v6673
    %v6675 = vpop.f32.mrb[0].mxu0
    %v6676 = vpop.f32.mrb[0].mxu0
    %v6677 = vadd.f32 %v6448, %v6676
    %v6678 = vpop.f32.mrb[0].mxu0
    %6679 = vdwg.mxu0
    %6680 = vmatprep.subr.bf16.mxu0 %v6239
    %6681 = vmatpush1.bf16.msra.mxu0 %v6238
    %6682 = vmatprep.subr.bf16.mxu0 %v6255
    %6683 = vmatpush1.bf16.msra.mxu0 %v6254
    %6684 = vmatprep.subr.bf16.mxu0 %v6271
    %6685 = vmatpush1.bf16.msra.mxu0 %v6270
    %6686 = vmatprep.subr.bf16.mxu0 %v6287
    %6687 = vmatpush1.bf16.msra.mxu0 %v6286
    %6688 = vmatprep.subr.bf16.mxu0 %v6303
    %6689 = vmatpush1.bf16.msra.mxu0 %v6302
    %6690 = vmatprep.subr.bf16.mxu0 %v6319
    %6691 = vmatpush1.bf16.msra.mxu0 %v6318
    %6692 = vmatprep.subr.bf16.mxu0 %v6335
    %6693 = vmatpush1.bf16.msra.mxu0 %v6334
    %6694 = vmatprep.subr.bf16.mxu0 %v6351
    %6695 = vmatpush1.bf16.msra.mxu0 %v6350
    %6696 = vmatprep.subr.bf16.mxu0 %v6367
    %6697 = vmatpush1.bf16.msra.mxu0 %v6366
    %6698 = vmatprep.subr.bf16.mxu0 %v6383
    %6699 = vmatpush1.bf16.msra.mxu0 %v6382
    %6700 = vmatprep.subr.bf16.mxu0 %v6399
    %6701 = vmatpush1.bf16.msra.mxu0 %v6398
    %6702 = vmatprep.subr.bf16.mxu0 %v6415
    %6703 = vmatpush1.bf16.msra.mxu0 %v6414
    %6704 = vmatprep.subr.bf16.mxu0 %v6490
    %6705 = vmatpush1.bf16.msra.mxu0 %v6487
    %6706 = vmatprep.subr.bf16.mxu0 0
    %6707 = vmatpush1.bf16.msra.mxu0 0
    %6708 = vmatprep.subr.bf16.mxu0 0
    %6709 = vmatpush1.bf16.msra.mxu0 0
    %6710 = vmatprep.subr.bf16.mxu0 0
    %6711 = vmatpush1.bf16.msra.mxu0 0
    %6712 = vmatprep.mubr.bf16.mxu0 %v6460
    %6713 = vmatmul.mubr.bf16.gmra.mrb[0].mxu0 %v6456
    %v6714 = vpop.f32.mrb[0].mxu0
    %v6715 = vadd.f32 %v6443, %v6714
    %v6716 = vpop.f32.mrb[0].mxu0
    %v6717 = vadd.f32 %v6443, %v6716
    %v6718 = vpop.f32.mrb[0].mxu0
    %v6719 = vadd.f32 %v6448, %v6718
    %v6720 = vpop.f32.mrb[0].mxu0
    %v6721 = vadd.f32 %v6448, %v6720
    %6722 = vdwg.mxu0
    %6723 = vmatprep.subr.bf16.mxu0 %v6241
    %6724 = vmatpush1.bf16.msra.mxu0 %v6240
    %6725 = vmatprep.subr.bf16.mxu0 %v6257
    %6726 = vmatpush1.bf16.msra.mxu0 %v6256
    %6727 = vmatprep.subr.bf16.mxu0 %v6273
    %6728 = vmatpush1.bf16.msra.mxu0 %v6272
    %6729 = vmatprep.subr.bf16.mxu0 %v6289
    %6730 = vmatpush1.bf16.msra.mxu0 %v6288
    %6731 = vmatprep.subr.bf16.mxu0 %v6305
    %6732 = vmatpush1.bf16.msra.mxu0 %v6304
    %6733 = vmatprep.subr.bf16.mxu0 %v6321
    %6734 = vmatpush1.bf16.msra.mxu0 %v6320
    %6735 = vmatprep.subr.bf16.mxu0 %v6337
    %6736 = vmatpush1.bf16.msra.mxu0 %v6336
    %6737 = vmatprep.subr.bf16.mxu0 %v6353
    %6738 = vmatpush1.bf16.msra.mxu0 %v6352
    %6739 = vmatprep.subr.bf16.mxu0 %v6369
    %6740 = vmatpush1.bf16.msra.mxu0 %v6368
    %6741 = vmatprep.subr.bf16.mxu0 %v6385
    %6742 = vmatpush1.bf16.msra.mxu0 %v6384
    %6743 = vmatprep.subr.bf16.mxu0 %v6401
    %6744 = vmatpush1.bf16.msra.mxu0 %v6400
    %6745 = vmatprep.subr.bf16.mxu0 %v6417
    %6746 = vmatpush1.bf16.msra.mxu0 %v6416
    %6747 = vmatprep.subr.bf16.mxu0 %v6496
    %6748 = vmatpush1.bf16.msra.mxu0 %v6493
    %6749 = vmatprep.subr.bf16.mxu0 0
    %6750 = vmatpush1.bf16.msra.mxu0 0
    %6751 = vmatprep.subr.bf16.mxu0 0
    %6752 = vmatpush1.bf16.msra.mxu0 0
    %6753 = vmatprep.subr.bf16.mxu0 0
    %6754 = vmatpush1.bf16.msra.mxu0 0
    %6755 = vmatprep.mubr.bf16.mxu0 %v6460
    %6756 = vmatmul.mubr.bf16.gmra.mrb[0].mxu0 %v6456
    %v6757 = vpop.f32.mrb[0].mxu0
    %v6758 = vadd.f32 %v6443, %v6757
    %v6759 = vpop.f32.mrb[0].mxu0
    %v6760 = vadd.f32 %v6443, %v6759
    %v6761 = vpop.f32.mrb[0].mxu0
    %v6762 = vadd.f32 %v6448, %v6761
    %v6763 = vpop.f32.mrb[0].mxu0
    %v6764 = vadd.f32 %v6448, %v6763
    %6765 = vdwg.mxu0
    %6766 = vmatprep.subr.bf16.mxu0 %v6243
    %6767 = vmatpush1.bf16.msra.mxu0 %v6242
    %6768 = vmatprep.subr.bf16.mxu0 %v6259
    %6769 = vmatpush1.bf16.msra.mxu0 %v6258
    %6770 = vmatprep.subr.bf16.mxu0 %v6275
    %6771 = vmatpush1.bf16.msra.mxu0 %v6274
    %6772 = vmatprep.subr.bf16.mxu0 %v6291
    %6773 = vmatpush1.bf16.msra.mxu0 %v6290
    %6774 = vmatprep.subr.bf16.mxu0 %v6307
    %6775 = vmatpush1.bf16.msra.mxu0 %v6306
    %6776 = vmatprep.subr.bf16.mxu0 %v6323
    %6777 = vmatpush1.bf16.msra.mxu0 %v6322
    %6778 = vmatprep.subr.bf16.mxu0 %v6339
    %6779 = vmatpush1.bf16.msra.mxu0 %v6338
    %6780 = vmatprep.subr.bf16.mxu0 %v6355
    %6781 = vmatpush1.bf16.msra.mxu0 %v6354
    %6782 = vmatprep.subr.bf16.mxu0 %v6371
    %6783 = vmatpush1.bf16.msra.mxu0 %v6370
    %6784 = vmatprep.subr.bf16.mxu0 %v6387
    %6785 = vmatpush1.bf16.msra.mxu0 %v6386
    %6786 = vmatprep.subr.bf16.mxu0 %v6403
    %6787 = vmatpush1.bf16.msra.mxu0 %v6402
    %6788 = vmatprep.subr.bf16.mxu0 %v6419
    %6789 = vmatpush1.bf16.msra.mxu0 %v6418
    %6790 = vmatprep.subr.bf16.mxu0 %v6502
    %6791 = vmatpush1.bf16.msra.mxu0 %v6499
    %6792 = vmatprep.subr.bf16.mxu0 0
    %6793 = vmatpush1.bf16.msra.mxu0 0
    %6794 = vmatprep.subr.bf16.mxu0 0
    %6795 = vmatpush1.bf16.msra.mxu0 0
    %6796 = vmatprep.subr.bf16.mxu0 0
    %6797 = vmatpush1.bf16.msra.mxu0 0
    %6798 = vmatprep.mubr.bf16.mxu0 %v6460
    %6799 = vmatmul.mubr.bf16.gmra.mrb[0].mxu0 %v6456
    %v6800 = vpop.f32.mrb[0].mxu0
    %v6801 = vadd.f32 %v6443, %v6800
    %v6802 = vpop.f32.mrb[0].mxu0
    %v6803 = vadd.f32 %v6443, %v6802
    %v6804 = vpop.f32.mrb[0].mxu0
    %v6805 = vadd.f32 %v6448, %v6804
    %v6806 = vpop.f32.mrb[0].mxu0
    %v6807 = vadd.f32 %v6448, %v6806
    %6808 = vdwg.mxu0
    %6809 = vmatprep.subr.bf16.mxu0 %v6245
    %6810 = vmatpush1.bf16.msra.mxu0 %v6244
    %6811 = vmatprep.subr.bf16.mxu0 %v6261
    %6812 = vmatpush1.bf16.msra.mxu0 %v6260
    %6813 = vmatprep.subr.bf16.mxu0 %v6277
    %6814 = vmatpush1.bf16.msra.mxu0 %v6276
    %6815 = vmatprep.subr.bf16.mxu0 %v6293
    %6816 = vmatpush1.bf16.msra.mxu0 %v6292
    %6817 = vmatprep.subr.bf16.mxu0 %v6309
    %6818 = vmatpush1.bf16.msra.mxu0 %v6308
    %6819 = vmatprep.subr.bf16.mxu0 %v6325
    %6820 = vmatpush1.bf16.msra.mxu0 %v6324
    %6821 = vmatprep.subr.bf16.mxu0 %v6341
    %6822 = vmatpush1.bf16.msra.mxu0 %v6340
    %6823 = vmatprep.subr.bf16.mxu0 %v6357
    %6824 = vmatpush1.bf16.msra.mxu0 %v6356
    %6825 = vmatprep.subr.bf16.mxu0 %v6373
    %6826 = vmatpush1.bf16.msra.mxu0 %v6372
    %6827 = vmatprep.subr.bf16.mxu0 %v6389
    %6828 = vmatpush1.bf16.msra.mxu0 %v6388
    %6829 = vmatprep.subr.bf16.mxu0 %v6405
    %6830 = vmatpush1.bf16.msra.mxu0 %v6404
    %6831 = vmatprep.subr.bf16.mxu0 %v6421
    %6832 = vmatpush1.bf16.msra.mxu0 %v6420
    %6833 = vmatprep.subr.bf16.mxu0 %v6508
    %6834 = vmatpush1.bf16.msra.mxu0 %v6505
    %6835 = vmatprep.subr.bf16.mxu0 0
    %6836 = vmatpush1.bf16.msra.mxu0 0
    %6837 = vmatprep.subr.bf16.mxu0 0
    %6838 = vmatpush1.bf16.msra.mxu0 0
    %6839 = vmatprep.subr.bf16.mxu0 0
    %6840 = vmatpush1.bf16.msra.mxu0 0
    %6841 = vmatprep.mubr.bf16.mxu0 %v6460
    %6842 = vmatmul.mubr.bf16.gmra.mrb[0].mxu0 %v6456
    %v6843 = vpop.f32.mrb[0].mxu0
    %v6844 = vadd.f32 %v6443, %v6843
    %v6845 = vpop.f32.mrb[0].mxu0
    %v6846 = vpop.f32.mrb[0].mxu0
    %v6847 = vadd.f32 %v6448, %v6846
    %v6848 = vpop.f32.mrb[0].mxu0
    %6849 = vdwg.mxu0
    %v6850 = vmax.f32 %v6545, 0.0
    %v6851 = vmax.f32 %v6547, 0.0
    %v6852 = vmax.f32 %v6588, 0.0
    %v6853 = vmax.f32 %v6590, 0.0
    %v6854 = vmax.f32 %v6631, 0.0
    %v6855 = vmax.f32 %v6633, 0.0
    %v6856 = vmax.f32 %v6674, 0.0
    %v6857 = vmax.f32 %v6715, 0.0
    %v6858 = vmax.f32 %v6717, 0.0
    %v6859 = vmax.f32 %v6758, 0.0
    %v6860 = vmax.f32 %v6760, 0.0
    %v6861 = vmax.f32 %v6801, 0.0
    %v6862 = vmax.f32 %v6803, 0.0
    %v6863 = vmax.f32 %v6844, 0.0
    %v6864 = vmax.f32 %v6549, 0.0
    %v6865 = vmax.f32 %v6551, 0.0
    %v6866 = vmax.f32 %v6592, 0.0
    %v6867 = vmax.f32 %v6594, 0.0
    %v6868 = vmax.f32 %v6635, 0.0
    %v6869 = vmax.f32 %v6637, 0.0
    %v6870 = vmax.f32 %v6677, 0.0
    %v6871 = vmax.f32 %v6719, 0.0
    %v6872 = vmax.f32 %v6721, 0.0
    %v6873 = vmax.f32 %v6762, 0.0
    %v6874 = vmax.f32 %v6764, 0.0
    %v6875 = vmax.f32 %v6805, 0.0
    %v6876 = vmax.f32 %v6807, 0.0
    %v6877 = vmax.f32 %v6847, 0.0
    %6906 = vrot.lane.b32.xlu0 %v6850, 126
    %v6907 = vpop.permute.xlu0 %6906
    %6908 = vrot.lane.b32.xlu0 %v6851, 126
    %v6909 = vpop.permute.xlu0 %6908
    %6910 = vrot.lane.b32.xlu0 %v6852, 126
    %v6911 = vpop.permute.xlu0 %6910
    %6912 = vrot.lane.b32.xlu0 %v6853, 126
    %v6913 = vpop.permute.xlu0 %6912
    %6914 = vrot.lane.b32.xlu0 %v6854, 126
    %v6915 = vpop.permute.xlu0 %6914
    %6916 = vrot.lane.b32.xlu0 %v6855, 126
    %v6917 = vpop.permute.xlu0 %6916
    %6918 = vrot.lane.b32.xlu0 %v6856, 126
    %v6919 = vpop.permute.xlu0 %6918
    %6920 = vrot.lane.b32.xlu0 %v6857, 126
    %v6921 = vpop.permute.xlu0 %6920
    %6922 = vrot.lane.b32.xlu0 %v6858, 126
    %v6923 = vpop.permute.xlu0 %6922
    %6924 = vrot.lane.b32.xlu0 %v6859, 126
    %v6925 = vpop.permute.xlu0 %6924
    %6926 = vrot.lane.b32.xlu0 %v6860, 126
    %v6927 = vpop.permute.xlu0 %6926
    %6928 = vrot.lane.b32.xlu0 %v6861, 126
    %v6929 = vpop.permute.xlu0 %6928
    %6930 = vrot.lane.b32.xlu0 %v6862, 126
    %v6931 = vpop.permute.xlu0 %6930
    %6932 = vrot.lane.b32.xlu0 %v6863, 126
    %v6933 = vpop.permute.xlu0 %6932
    %6934 = vrot.lane.b32.xlu0 %v6864, 126
    %v6935 = vpop.permute.xlu0 %6934
    %6936 = vrot.lane.b32.xlu0 %v6865, 126
    %v6937 = vpop.permute.xlu0 %6936
    %6938 = vrot.lane.b32.xlu0 %v6866, 126
    %v6939 = vpop.permute.xlu0 %6938
    %6940 = vrot.lane.b32.xlu0 %v6867, 126
    %v6941 = vpop.permute.xlu0 %6940
    %6942 = vrot.lane.b32.xlu0 %v6868, 126
    %v6943 = vpop.permute.xlu0 %6942
    %6944 = vrot.lane.b32.xlu0 %v6869, 126
    %v6945 = vpop.permute.xlu0 %6944
    %6946 = vrot.lane.b32.xlu0 %v6870, 126
    %v6947 = vpop.permute.xlu0 %6946
    %6948 = vrot.lane.b32.xlu0 %v6871, 126
    %v6949 = vpop.permute.xlu0 %6948
    %6950 = vrot.lane.b32.xlu0 %v6872, 126
    %v6951 = vpop.permute.xlu0 %6950
    %6952 = vrot.lane.b32.xlu0 %v6873, 126
    %v6953 = vpop.permute.xlu0 %6952
    %6954 = vrot.lane.b32.xlu0 %v6874, 126
    %v6955 = vpop.permute.xlu0 %6954
    %6956 = vrot.lane.b32.xlu0 %v6875, 126
    %v6957 = vpop.permute.xlu0 %6956
    %6958 = vrot.lane.b32.xlu0 %v6876, 126
    %v6959 = vpop.permute.xlu0 %6958
    %6960 = vrot.lane.b32.xlu0 %v6877, 126
    %v6961 = vpop.permute.xlu0 %6960
    %v6962 = vsel %vm291, %v6907, %v6909
    %v6963 = vsel %vm291, %v6909, %v6911
    %v6964 = vsel %vm291, %v6911, %v6913
    %v6965 = vsel %vm291, %v6913, %v6915
    %v6966 = vsel %vm291, %v6915, %v6917
    %v6967 = vsel %vm291, %v6917, %v6919
    %v6968 = vsel %vm291, %v6921, %v6923
    %v6969 = vsel %vm291, %v6923, %v6925
    %v6970 = vsel %vm291, %v6925, %v6927
    %v6971 = vsel %vm291, %v6927, %v6929
    %v6972 = vsel %vm291, %v6929, %v6931
    %v6973 = vsel %vm291, %v6931, %v6933
    %v6974 = vsel %vm291, %v6935, %v6937
    %v6975 = vsel %vm291, %v6937, %v6939
    %v6976 = vsel %vm291, %v6939, %v6941
    %v6977 = vsel %vm291, %v6941, %v6943
    %v6978 = vsel %vm291, %v6943, %v6945
    %v6979 = vsel %vm291, %v6945, %v6947
    %v6980 = vsel %vm291, %v6949, %v6951
    %v6981 = vsel %vm291, %v6951, %v6953
    %v6982 = vsel %vm291, %v6953, %v6955
    %v6983 = vsel %vm291, %v6955, %v6957
    %v6984 = vsel %vm291, %v6957, %v6959
    %v6985 = vsel %vm291, %v6959, %v6961
    %v7010 = vmax.f32 %v6850, %v6962
    %v7011 = vmax.f32 %v6851, %v6963
    %v7012 = vmax.f32 %v6852, %v6964
    %v7013 = vmax.f32 %v6853, %v6965
    %v7014 = vmax.f32 %v6854, %v6966
    %v7015 = vmax.f32 %v6855, %v6967
    %v7016 = vmax.f32 %v6857, %v6968
    %v7017 = vmax.f32 %v6858, %v6969
    %v7018 = vmax.f32 %v6859, %v6970
    %v7019 = vmax.f32 %v6860, %v6971
    %v7020 = vmax.f32 %v6861, %v6972
    %v7021 = vmax.f32 %v6862, %v6973
    %v7022 = vmax.f32 %v6864, %v6974
    %v7023 = vmax.f32 %v6865, %v6975
    %v7024 = vmax.f32 %v6866, %v6976
    %v7025 = vmax.f32 %v6867, %v6977
    %v7026 = vmax.f32 %v6868, %v6978
    %v7027 = vmax.f32 %v6869, %v6979
    %v7028 = vmax.f32 %v6871, %v6980
    %v7029 = vmax.f32 %v6872, %v6981
    %v7030 = vmax.f32 %v6873, %v6982
    %v7031 = vmax.f32 %v6874, %v6983
    %v7032 = vmax.f32 %v6875, %v6984
    %v7033 = vmax.f32 %v6876, %v6985
    %7058 = vrot.lane.b32.xlu0 %v7010, 64
    %v7059 = vpop.permute.xlu0 %7058
    %7060 = vrot.lane.b32.xlu0 %v7011, 64
    %v7061 = vpop.permute.xlu0 %7060
    %7062 = vrot.lane.b32.xlu0 %v7012, 64
    %v7063 = vpop.permute.xlu0 %7062
    %7064 = vrot.lane.b32.xlu0 %v7013, 64
    %v7065 = vpop.permute.xlu0 %7064
    %7066 = vrot.lane.b32.xlu0 %v7014, 64
    %v7067 = vpop.permute.xlu0 %7066
    %7068 = vrot.lane.b32.xlu0 %v7015, 64
    %v7069 = vpop.permute.xlu0 %7068
    %7070 = vrot.lane.b32.xlu0 %v7016, 64
    %v7071 = vpop.permute.xlu0 %7070
    %7072 = vrot.lane.b32.xlu0 %v7017, 64
    %v7073 = vpop.permute.xlu0 %7072
    %7074 = vrot.lane.b32.xlu0 %v7018, 64
    %v7075 = vpop.permute.xlu0 %7074
    %7076 = vrot.lane.b32.xlu0 %v7019, 64
    %v7077 = vpop.permute.xlu0 %7076
    %7078 = vrot.lane.b32.xlu0 %v7020, 64
    %v7079 = vpop.permute.xlu0 %7078
    %7080 = vrot.lane.b32.xlu0 %v7021, 64
    %v7081 = vpop.permute.xlu0 %7080
    %7082 = vrot.lane.b32.xlu0 %v7022, 64
    %v7083 = vpop.permute.xlu0 %7082
    %7084 = vrot.lane.b32.xlu0 %v7023, 64
    %v7085 = vpop.permute.xlu0 %7084
    %7086 = vrot.lane.b32.xlu0 %v7024, 64
    %v7087 = vpop.permute.xlu0 %7086
    %7088 = vrot.lane.b32.xlu0 %v7025, 64
    %v7089 = vpop.permute.xlu0 %7088
    %7090 = vrot.lane.b32.xlu0 %v7026, 64
    %v7091 = vpop.permute.xlu0 %7090
    %7092 = vrot.lane.b32.xlu0 %v7027, 64
    %v7093 = vpop.permute.xlu0 %7092
    %7094 = vrot.lane.b32.xlu0 %v7028, 64
    %v7095 = vpop.permute.xlu0 %7094
    %7096 = vrot.lane.b32.xlu0 %v7029, 64
    %v7097 = vpop.permute.xlu0 %7096
    %7098 = vrot.lane.b32.xlu0 %v7030, 64
    %v7099 = vpop.permute.xlu0 %7098
    %7100 = vrot.lane.b32.xlu0 %v7031, 64
    %v7101 = vpop.permute.xlu0 %7100
    %7102 = vrot.lane.b32.xlu0 %v7032, 64
    %v7103 = vpop.permute.xlu0 %7102
    %7104 = vrot.lane.b32.xlu0 %v7033, 64
    %v7105 = vpop.permute.xlu0 %7104
    %v7106 = vsel %vm1384, %v7059, %v7061
    %v7107 = vsel %vm1384, %v7061, %v7063
    %v7108 = vsel %vm1384, %v7063, %v7065
    %v7109 = vsel %vm1384, %v7065, %v7067
    %v7110 = vsel %vm1384, %v7067, %v7069
    %v7111 = vsel %vm1384, %v7071, %v7073
    %v7112 = vsel %vm1384, %v7073, %v7075
    %v7113 = vsel %vm1384, %v7075, %v7077
    %v7114 = vsel %vm1384, %v7077, %v7079
    %v7115 = vsel %vm1384, %v7079, %v7081
    %v7116 = vsel %vm1384, %v7083, %v7085
    %v7117 = vsel %vm1384, %v7085, %v7087
    %v7118 = vsel %vm1384, %v7087, %v7089
    %v7119 = vsel %vm1384, %v7089, %v7091
    %v7120 = vsel %vm1384, %v7091, %v7093
    %v7121 = vsel %vm1384, %v7095, %v7097
    %v7122 = vsel %vm1384, %v7097, %v7099
    %v7123 = vsel %vm1384, %v7099, %v7101
    %v7124 = vsel %vm1384, %v7101, %v7103
    %v7125 = vsel %vm1384, %v7103, %v7105
    %v7146 = vmax.f32 %v7010, %v7106
    %v7147 = vmax.f32 %v7011, %v7107
    %v7148 = vmax.f32 %v7012, %v7108
    %v7149 = vmax.f32 %v7013, %v7109
    %v7150 = vmax.f32 %v7014, %v7110
    %v7151 = vmax.f32 %v7016, %v7111
    %v7152 = vmax.f32 %v7017, %v7112
    %v7153 = vmax.f32 %v7018, %v7113
    %v7154 = vmax.f32 %v7019, %v7114
    %v7155 = vmax.f32 %v7020, %v7115
    %v7156 = vmax.f32 %v7022, %v7116
    %v7157 = vmax.f32 %v7023, %v7117
    %v7158 = vmax.f32 %v7024, %v7118
    %v7159 = vmax.f32 %v7025, %v7119
    %v7160 = vmax.f32 %v7026, %v7120
    %v7161 = vmax.f32 %v7028, %v7121
    %v7162 = vmax.f32 %v7029, %v7122
    %v7163 = vmax.f32 %v7030, %v7123
    %v7164 = vmax.f32 %v7031, %v7124
    %v7165 = vmax.f32 %v7032, %v7125
    %v7166 = vld [vmem:[%s5] sm:$0xff]
    %v7167 = vld [vmem:[%s5 + $0x8] sm:$0xff]
    %v7168 = vld [vmem:[%s5 + $0x10] sm:$0xff]
    %v7169 = vld [vmem:[%s5 + $0x18] sm:$0xff]
    %v7170 = vld [vmem:[%s5 + $0x20] sm:$0xff]
    %v7171 = vld [vmem:[%s5 + $0x28] sm:$0xff]
    %v7172 = vld [vmem:[%s5 + $0x30] sm:$0xff]
    %v7173 = vld [vmem:[%s5 + $0x38] sm:$0xff]
    %v7174 = vld [vmem:[%s5 + $0x40] sm:$0xff]
    %v7175 = vld [vmem:[%s5 + $0x48] sm:$0xff]
    %v7176 = vld [vmem:[%s5 + $0x50] sm:$0xff]
    %v7177 = vld [vmem:[%s5 + $0x58] sm:$0xff]
    %v7178 = vld [vmem:[%s5 + $0x60] sm:$0xff]
    %v7179 = vld [vmem:[%s5 + $0x68] sm:$0xff]
    %v7180 = vld [vmem:[%s5 + $0x70] sm:$0xff]
    %v7181 = vld [vmem:[%s5 + $0x78] sm:$0xff]
    %v7182 = vld [vmem:[%s5 + $0x80] sm:$0xff]
    %v7183 = vld [vmem:[%s5 + $0x88] sm:$0xff]
    %v7184 = vld [vmem:[%s5 + $0x90] sm:$0xff]
    %v7185 = vld [vmem:[%s5 + $0x98] sm:$0xff]
    %v7186 = vld [vmem:[%s5 + $0xa0] sm:$0xff]
    %v7187 = vld [vmem:[%s5 + $0xa8] sm:$0xff]
    %v7188 = vld [vmem:[%s5 + $0xb0] sm:$0xff]
    %v7189 = vld [vmem:[%s5 + $0xb8] sm:$0xff]
    %v7190 = vld [vmem:[%s5 + $0xc0] sm:$0xff]
    %v7191 = vld [vmem:[%s5 + $0xc8] sm:$0xff]
    %v7192 = vld [vmem:[%s5 + $0xd0] sm:$0xff]
    %v7193 = vld [vmem:[%s5 + $0xd8] sm:$0xff]
    %v7194 = vld [vmem:[%s5 + $0xe0] sm:$0xff]
    %v7195 = vld [vmem:[%s5 + $0xe8] sm:$0xff]
    %v7196 = vld [vmem:[%s5 + $0xf0] sm:$0xff]
    %v7197 = vld [vmem:[%s5 + $0xf8] sm:$0xff]
    %v7198 = vld [vmem:[%s5 + $0x100] sm:$0xff]
    %v7199 = vld [vmem:[%s5 + $0x108] sm:$0xff]
    %v7200 = vld [vmem:[%s5 + $0x110] sm:$0xff]
    %v7201 = vld [vmem:[%s5 + $0x118] sm:$0xff]
    %v7202 = vld [vmem:[%s5 + $0x120] sm:$0xff]
    %v7203 = vld [vmem:[%s5 + $0x128] sm:$0xff]
    %v7204 = vld [vmem:[%s5 + $0x130] sm:$0xff]
    %v7205 = vld [vmem:[%s5 + $0x138] sm:$0xff]
    %v7206 = vld [vmem:[%s5 + $0x140] sm:$0xff]
    %v7207 = vld [vmem:[%s5 + $0x148] sm:$0xff]
    %v7208 = vld [vmem:[%s5 + $0x150] sm:$0xff]
    %v7209 = vld [vmem:[%s5 + $0x158] sm:$0xff]
    %v7210 = vld [vmem:[%s5 + $0x160] sm:$0xff]
    %v7211 = vld [vmem:[%s5 + $0x168] sm:$0xff]
    %v7212 = vld [vmem:[%s5 + $0x170] sm:$0xff]
    %v7213 = vld [vmem:[%s5 + $0x178] sm:$0xff]
    %v7214 = vld [vmem:[%s5 + $0x180] sm:$0xff]
    %v7215 = vld [vmem:[%s5 + $0x188] sm:$0xff]
    %v7216 = vld [vmem:[%s5 + $0x190] sm:$0xff]
    %v7217 = vld [vmem:[%s5 + $0x198] sm:$0xff]
    %v7218 = vld [vmem:[%s5 + $0x1a0] sm:$0xff]
    %v7219 = vld [vmem:[%s5 + $0x1a8] sm:$0xff]
    %v7220 = vld [vmem:[%s5 + $0x1b0] sm:$0xff]
    %v7221 = vld [vmem:[%s5 + $0x1b8] sm:$0xff]
    %v7222 = vld [vmem:[%s5 + $0x1c0] sm:$0xff]
    %v7223 = vld [vmem:[%s5 + $0x1c8] sm:$0xff]
    %v7224 = vld [vmem:[%s5 + $0x1d0] sm:$0xff]
    %v7225 = vld [vmem:[%s5 + $0x1d8] sm:$0xff]
    %v7226 = vld [vmem:[%s5 + $0x1e0] sm:$0xff]
    %v7227 = vld [vmem:[%s5 + $0x1e8] sm:$0xff]
    %v7228 = vld [vmem:[%s5 + $0x1f0] sm:$0xff]
    %v7229 = vld [vmem:[%s5 + $0x1f8] sm:$0xff]
    %v7230 = vld [vmem:[%s5 + $0x200] sm:$0xff]
    %v7231 = vld [vmem:[%s5 + $0x208] sm:$0xff]
    %v7232 = vld [vmem:[%s5 + $0x210] sm:$0xff]
    %v7233 = vld [vmem:[%s5 + $0x218] sm:$0xff]
    %v7234 = vld [vmem:[%s5 + $0x220] sm:$0xff]
    %v7235 = vld [vmem:[%s5 + $0x228] sm:$0xff]
    %v7236 = vld [vmem:[%s5 + $0x230] sm:$0xff]
    %v7237 = vld [vmem:[%s5 + $0x238] sm:$0xff]
    %v7238 = vld [vmem:[%s5 + $0x240] sm:$0xff]
    %v7239 = vld [vmem:[%s5 + $0x248] sm:$0xff]
    %v7240 = vld [vmem:[%s5 + $0x250] sm:$0xff]
    %v7241 = vld [vmem:[%s5 + $0x258] sm:$0xff]
    %v7242 = vld [vmem:[%s5 + $0x260] sm:$0xff]
    %v7243 = vld [vmem:[%s5 + $0x268] sm:$0xff]
    %v7244 = vld [vmem:[%s5 + $0x270] sm:$0xff]
    %v7245 = vld [vmem:[%s5 + $0x278] sm:$0xff]
    %7246 = vmatprep.subr.mxu0 0.0
    %7247 = vmatpush1.msra.mxu0 %v7166
    %7248 = vmatprep.subr.mxu0 0.0
    %7249 = vmatpush1.msra.mxu0 %v7167
    %7250 = vmatprep.subr.mxu0 0.0
    %7251 = vmatpush1.msra.mxu0 %v7168
    %7252 = vmatprep.subr.mxu0 0.0
    %7253 = vmatpush1.msra.mxu0 %v7169
    %7254 = vmatprep.subr.mxu0 0.0
    %7255 = vmatpush1.msra.mxu0 %v7170
    %7256 = vmatprep.subr.mxu0 0.0
    %7257 = vmatpush1.msra.mxu0 %v7171
    %7258 = vmatprep.subr.mxu0 0.0
    %7259 = vmatpush1.msra.mxu0 %v7172
    %7260 = vmatprep.subr.mxu0 0.0
    %7261 = vmatpush1.msra.mxu0 %v7173
    %7262 = vmatprep.subr.mxu0 0.0
    %7263 = vmatpush1.msra.mxu0 %v7174
    %7264 = vmatprep.subr.mxu0 0.0
    %7265 = vmatpush1.msra.mxu0 %v7175
    %7266 = vmatprep.subr.mxu0 0.0
    %7267 = vmatpush1.msra.mxu0 %v7176
    %7268 = vmatprep.subr.mxu0 0.0
    %7269 = vmatpush1.msra.mxu0 %v7177
    %7270 = vmatprep.subr.mxu0 0.0
    %7271 = vmatpush1.msra.mxu0 %v7178
    %7272 = vmatprep.subr.mxu0 0.0
    %7273 = vmatpush1.msra.mxu0 %v7179
    %7274 = vmatprep.subr.mxu0 0.0
    %7275 = vmatpush1.msra.mxu0 %v7180
    %7276 = vmatprep.subr.mxu0 0.0
    %7277 = vmatpush1.msra.mxu0 %v7181
    %7278 = vmatprep.subr.mxu0 0.0
    %7279 = vmatpush1.msra.mxu0 %v7182
    %7280 = vmatprep.subr.mxu0 0.0
    %7281 = vmatpush1.msra.mxu0 %v7183
    %7282 = vmatprep.subr.mxu0 0.0
    %7283 = vmatpush1.msra.mxu0 %v7184
    %7284 = vmatprep.subr.mxu0 0.0
    %7285 = vmatpush1.msra.mxu0 %v7185
    %7286 = vmatprep.subr.mxu0 0.0
    %7287 = vmatpush1.msra.mxu0 %v7186
    %7288 = vmatprep.subr.mxu0 0.0
    %7289 = vmatpush1.msra.mxu0 %v7187
    %7290 = vmatprep.subr.mxu0 0.0
    %7291 = vmatpush1.msra.mxu0 %v7188
    %7292 = vmatprep.subr.mxu0 0.0
    %7293 = vmatpush1.msra.mxu0 %v7189
    %7294 = vmatprep.subr.mxu0 0.0
    %7295 = vmatpush1.msra.mxu0 %v7190
    %7296 = vmatprep.subr.mxu0 0.0
    %7297 = vmatpush1.msra.mxu0 %v7191
    %7298 = vmatprep.subr.mxu0 0.0
    %7299 = vmatpush1.msra.mxu0 %v7192
    %7300 = vmatprep.subr.mxu0 0.0
    %7301 = vmatpush1.msra.mxu0 %v7193
    %7302 = vmatprep.subr.mxu0 0.0
    %7303 = vmatpush1.msra.mxu0 %v7194
    %7304 = vmatprep.subr.mxu0 0.0
    %7305 = vmatpush1.msra.mxu0 %v7195
    %7306 = vmatprep.subr.mxu0 0.0
    %7307 = vmatpush1.msra.mxu0 %v7196
    %7308 = vmatprep.subr.mxu0 0.0
    %7309 = vmatpush1.msra.mxu0 %v7197
    %7310 = vmatprep.mubr.f32.mxu0 %v7147
    %7311 = vmatmul.mubr.f32.gmra.mrb[0].mxu0 %v7146
    %v7312 = vpop.f32.mrb[0].mxu0
    %v7313 = vadd.f32 0.0, %v7312
    %v7314 = vpop.f32.mrb[0].mxu0
    %7315 = vmatprep.mubr.f32.mxu0 %v7157
    %7316 = vmatmul.mubr.f32.gmra.mrb[0].mxu0 %v7156
    %v7317 = vpop.f32.mrb[0].mxu0
    %v7318 = vadd.f32 0.0, %v7317
    %v7319 = vpop.f32.mrb[0].mxu0
    %7320 = vdwg.mxu0
    %7321 = vmatprep.subr.mxu0 0.0
    %7322 = vmatpush1.msra.mxu0 %v7198
    %7323 = vmatprep.subr.mxu0 0.0
    %7324 = vmatpush1.msra.mxu0 %v7199
    %7325 = vmatprep.subr.mxu0 0.0
    %7326 = vmatpush1.msra.mxu0 %v7200
    %7327 = vmatprep.subr.mxu0 0.0
    %7328 = vmatpush1.msra.mxu0 %v7201
    %7329 = vmatprep.subr.mxu0 0.0
    %7330 = vmatpush1.msra.mxu0 %v7202
    %7331 = vmatprep.subr.mxu0 0.0
    %7332 = vmatpush1.msra.mxu0 %v7203
    %7333 = vmatprep.subr.mxu0 0.0
    %7334 = vmatpush1.msra.mxu0 %v7204
    %7335 = vmatprep.subr.mxu0 0.0
    %7336 = vmatpush1.msra.mxu0 %v7205
    %7337 = vmatprep.subr.mxu0 0.0
    %7338 = vmatpush1.msra.mxu0 %v7206
    %7339 = vmatprep.subr.mxu0 0.0
    %7340 = vmatpush1.msra.mxu0 %v7207
    %7341 = vmatprep.subr.mxu0 0.0
    %7342 = vmatpush1.msra.mxu0 %v7208
    %7343 = vmatprep.subr.mxu0 0.0
    %7344 = vmatpush1.msra.mxu0 %v7209
    %7345 = vmatprep.subr.mxu0 0.0
    %7346 = vmatpush1.msra.mxu0 %v7210
    %7347 = vmatprep.subr.mxu0 0.0
    %7348 = vmatpush1.msra.mxu0 %v7211
    %7349 = vmatprep.subr.mxu0 0.0
    %7350 = vmatpush1.msra.mxu0 %v7212
    %7351 = vmatprep.subr.mxu0 0.0
    %7352 = vmatpush1.msra.mxu0 %v7213
    %7353 = vmatprep.subr.mxu0 0.0
    %7354 = vmatpush1.msra.mxu0 %v7214
    %7355 = vmatprep.subr.mxu0 0.0
    %7356 = vmatpush1.msra.mxu0 %v7215
    %7357 = vmatprep.subr.mxu0 0.0
    %7358 = vmatpush1.msra.mxu0 %v7216
    %7359 = vmatprep.subr.mxu0 0.0
    %7360 = vmatpush1.msra.mxu0 %v7217
    %7361 = vmatprep.subr.mxu0 0.0
    %7362 = vmatpush1.msra.mxu0 %v7218
    %7363 = vmatprep.subr.mxu0 0.0
    %7364 = vmatpush1.msra.mxu0 %v7219
    %7365 = vmatprep.subr.mxu0 0.0
    %7366 = vmatpush1.msra.mxu0 %v7220
    %7367 = vmatprep.subr.mxu0 0.0
    %7368 = vmatpush1.msra.mxu0 %v7221
    %7369 = vmatprep.subr.mxu0 0.0
    %7370 = vmatpush1.msra.mxu0 %v7222
    %7371 = vmatprep.subr.mxu0 0.0
    %7372 = vmatpush1.msra.mxu0 %v7223
    %7373 = vmatprep.subr.mxu0 0.0
    %7374 = vmatpush1.msra.mxu0 %v7224
    %7375 = vmatprep.subr.mxu0 0.0
    %7376 = vmatpush1.msra.mxu0 %v7225
    %7377 = vmatprep.subr.mxu0 0.0
    %7378 = vmatpush1.msra.mxu0 %v7226
    %7379 = vmatprep.subr.mxu0 0.0
    %7380 = vmatpush1.msra.mxu0 %v7227
    %7381 = vmatprep.subr.mxu0 0.0
    %7382 = vmatpush1.msra.mxu0 %v7228
    %7383 = vmatprep.subr.mxu0 0.0
    %7384 = vmatpush1.msra.mxu0 %v7229
    %7385 = vmatprep.mubr.f32.mxu0 %v7149
    %7386 = vmatmul.mubr.f32.gmra.mrb[0].mxu0 %v7148
    %v7387 = vpop.f32.mrb[0].mxu0
    %v7388 = vadd.f32 %v7313, %v7387
    %v7389 = vpop.f32.mrb[0].mxu0
    %7390 = vmatprep.mubr.f32.mxu0 %v7159
    %7391 = vmatmul.mubr.f32.gmra.mrb[0].mxu0 %v7158
    %v7392 = vpop.f32.mrb[0].mxu0
    %v7393 = vadd.f32 %v7318, %v7392
    %v7394 = vpop.f32.mrb[0].mxu0
    %7395 = vdwg.mxu0
    %7396 = vmatprep.subr.mxu0 0.0
    %7397 = vmatpush1.msra.mxu0 %v7230
    %7398 = vmatprep.subr.mxu0 0.0
    %7399 = vmatpush1.msra.mxu0 %v7231
    %7400 = vmatprep.subr.mxu0 0.0
    %7401 = vmatpush1.msra.mxu0 %v7232
    %7402 = vmatprep.subr.mxu0 0.0
    %7403 = vmatpush1.msra.mxu0 %v7233
    %7404 = vmatprep.subr.mxu0 0.0
    %7405 = vmatpush1.msra.mxu0 %v7234
    %7406 = vmatprep.subr.mxu0 0.0
    %7407 = vmatpush1.msra.mxu0 %v7235
    %7408 = vmatprep.subr.mxu0 0.0
    %7409 = vmatpush1.msra.mxu0 %v7236
    %7410 = vmatprep.subr.mxu0 0.0
    %7411 = vmatpush1.msra.mxu0 %v7237
    %7412 = vmatprep.subr.mxu0 0.0
    %7413 = vmatpush1.msra.mxu0 %v7238
    %7414 = vmatprep.subr.mxu0 0.0
    %7415 = vmatpush1.msra.mxu0 %v7239
    %7416 = vmatprep.subr.mxu0 0.0
    %7417 = vmatpush1.msra.mxu0 %v7240
    %7418 = vmatprep.subr.mxu0 0.0
    %7419 = vmatpush1.msra.mxu0 %v7241
    %7420 = vmatprep.subr.mxu0 0.0
    %7421 = vmatpush1.msra.mxu0 %v7242
    %7422 = vmatprep.subr.mxu0 0.0
    %7423 = vmatpush1.msra.mxu0 %v7243
    %7424 = vmatprep.subr.mxu0 0.0
    %7425 = vmatpush1.msra.mxu0 %v7244
    %7426 = vmatprep.subr.mxu0 0.0
    %7427 = vmatpush1.msra.mxu0 %v7245
    %7428 = vmatprep.subr.mxu0 0.0
    %7429 = vmatpush1.msra.mxu0 0.0
    %7430 = vmatprep.subr.mxu0 0.0
    %7431 = vmatpush1.msra.mxu0 0.0
    %7432 = vmatprep.subr.mxu0 0.0
    %7433 = vmatpush1.msra.mxu0 0.0
    %7434 = vmatprep.subr.mxu0 0.0
    %7435 = vmatpush1.msra.mxu0 0.0
    %7436 = vmatprep.subr.mxu0 0.0
    %7437 = vmatpush1.msra.mxu0 0.0
    %7438 = vmatprep.subr.mxu0 0.0
    %7439 = vmatpush1.msra.mxu0 0.0
    %7440 = vmatprep.subr.mxu0 0.0
    %7441 = vmatpush1.msra.mxu0 0.0
    %7442 = vmatprep.subr.mxu0 0.0
    %7443 = vmatpush1.msra.mxu0 0.0
    %7444 = vmatprep.subr.mxu0 0.0
    %7445 = vmatpush1.msra.mxu0 0.0
    %7446 = vmatprep.subr.mxu0 0.0
    %7447 = vmatpush1.msra.mxu0 0.0
    %7448 = vmatprep.subr.mxu0 0.0
    %7449 = vmatpush1.msra.mxu0 0.0
    %7450 = vmatprep.subr.mxu0 0.0
    %7451 = vmatpush1.msra.mxu0 0.0
    %7452 = vmatprep.subr.mxu0 0.0
    %7453 = vmatpush1.msra.mxu0 0.0
    %7454 = vmatprep.subr.mxu0 0.0
    %7455 = vmatpush1.msra.mxu0 0.0
    %7456 = vmatprep.subr.mxu0 0.0
    %7457 = vmatpush1.msra.mxu0 0.0
    %7458 = vmatprep.subr.mxu0 0.0
    %7459 = vmatpush1.msra.mxu0 0.0
    %7460 = vmatprep.mubr.f32.mxu0 0.0
    %7461 = vmatmul.mubr.f32.gmra.mrb[0].mxu0 %v7150
    %v7462 = vpop.f32.mrb[0].mxu0
    %v7463 = vadd.f32 %v7388, %v7462
    %v7464 = vpop.f32.mrb[0].mxu0
    %7465 = vmatprep.mubr.f32.mxu0 0.0
    %7466 = vmatmul.mubr.f32.gmra.mrb[0].mxu0 %v7160
    %v7467 = vpop.f32.mrb[0].mxu0
    %v7468 = vadd.f32 %v7393, %v7467
    %v7469 = vpop.f32.mrb[0].mxu0
    %7470 = vdwg.mxu0
    %vm7471 = vcmask 253952
    %7472 = vst.msk [vmem:[#allocation4] sm:$0x1] %vm7471, %v7463
    %v7475 = vunpack.c.l.s4 1983009808
    %v7476 = vunpack.c.0.s8 %v7475
    %v7477 = vlaneseq
    %v7478 = vshrl.u32 %v7477, 7
    %v7479 = vsub.s32 %v7476, %v7478
    %v7480 = vrot.slane %v7463, %v7479
    %v7481 = vrot.slane %v7480, 7
    %v7482 = vrot.slane %v7481, 2
    %7483 = vrot.lane.b32.xlu0 %v7482, 32
    %v7484 = vpop.permute.xlu0 %7483
    %vm7486 = vcmask 516352
    %7487 = vst.msk [vmem:[#allocation4] sm:$0x1] %vm7486, %v7484
    %v7488 = vcombine.high %v7480, %v7480
    %7489 = vrot.lane.b32.xlu0 %v7488, 64
    %v7490 = vpop.permute.xlu0 %7489
    %vm7492 = vcmask 778752
    %7493 = vst.msk [vmem:[#allocation4] sm:$0x1] %vm7492, %v7490
    %v7494 = vrot.slane %v7488, 7
    %v7495 = vrot.slane %v7494, 2
    %7496 = vrot.lane.b32.xlu0 %v7495, 96
    %v7497 = vpop.permute.xlu0 %7496
    %vm7499 = vcmask 1041152
    %7500 = vst.msk [vmem:[#allocation4] sm:$0x1] %vm7499, %v7497
    %v7501 = vcombine.high %v7463, %v7463
    %v7503 = vunpack.c.l.s4 1983009808
    %v7504 = vunpack.c.0.s8 %v7503
    %v7505 = vlaneseq
    %v7506 = vshrl.u32 %v7505, 7
    %v7507 = vsub.s32 %v7504, %v7506
    %v7508 = vrot.slane %v7501, %v7507
    %7510 = vst.msk [vmem:[#allocation4 + $0x2] sm:$0x1] %vm7471, %v7508
    %v7511 = vrot.slane %v7508, 7
    %v7512 = vrot.slane %v7511, 2
    %7513 = vrot.lane.b32.xlu0 %v7512, 32
    %v7514 = vpop.permute.xlu0 %7513
    %7516 = vst.msk [vmem:[#allocation4 + $0x2] sm:$0x1] %vm7486, %v7514
    %v7517 = vcombine.high %v7508, %v7508
    %7518 = vrot.lane.b32.xlu0 %v7517, 64
    %v7519 = vpop.permute.xlu0 %7518
    %7521 = vst.msk [vmem:[#allocation4 + $0x2] sm:$0x1] %vm7492, %v7519
    %v7522 = vrot.slane %v7517, 7
    %v7523 = vrot.slane %v7522, 2
    %7524 = vrot.lane.b32.xlu0 %v7523, 96
    %v7525 = vpop.permute.xlu0 %7524
    %7527 = vst.msk [vmem:[#allocation4 + $0x2] sm:$0x1] %vm7499, %v7525
    %7528 = vst.msk [vmem:[#allocation4 + $0x4] sm:$0x1] %vm7471, %v7468
    %v7531 = vunpack.c.l.s4 1983009808
    %v7532 = vunpack.c.0.s8 %v7531
    %v7533 = vlaneseq
    %v7534 = vshrl.u32 %v7533, 7
    %v7535 = vsub.s32 %v7532, %v7534
    %v7536 = vrot.slane %v7468, %v7535
    %v7537 = vrot.slane %v7536, 7
    %v7538 = vrot.slane %v7537, 2
    %7539 = vrot.lane.b32.xlu0 %v7538, 32
    %v7540 = vpop.permute.xlu0 %7539
    %7542 = vst.msk [vmem:[#allocation4 + $0x4] sm:$0x1] %vm7486, %v7540
    %v7543 = vcombine.high %v7536, %v7536
    %7544 = vrot.lane.b32.xlu0 %v7543, 64
    %v7545 = vpop.permute.xlu0 %7544
    %7547 = vst.msk [vmem:[#allocation4 + $0x4] sm:$0x1] %vm7492, %v7545
    %v7548 = vrot.slane %v7543, 7
    %v7549 = vrot.slane %v7548, 2
    %7550 = vrot.lane.b32.xlu0 %v7549, 96
    %v7551 = vpop.permute.xlu0 %7550
    %7553 = vst.msk [vmem:[#allocation4 + $0x4] sm:$0x1] %vm7499, %v7551
    %v7554 = vcombine.high %v7468, %v7468
    %v7556 = vunpack.c.l.s4 1983009808
    %v7557 = vunpack.c.0.s8 %v7556
    %v7558 = vlaneseq
    %v7559 = vshrl.u32 %v7558, 7
    %v7560 = vsub.s32 %v7557, %v7559
    %v7561 = vrot.slane %v7554, %v7560
    %7563 = vst.msk [vmem:[#allocation4 + $0x6] sm:$0x1] %vm7471, %v7561
    %v7564 = vrot.slane %v7561, 7
    %v7565 = vrot.slane %v7564, 2
    %7566 = vrot.lane.b32.xlu0 %v7565, 32
    %v7567 = vpop.permute.xlu0 %7566
    %7569 = vst.msk [vmem:[#allocation4 + $0x6] sm:$0x1] %vm7486, %v7567
    %v7570 = vcombine.high %v7561, %v7561
    %7571 = vrot.lane.b32.xlu0 %v7570, 64
    %v7572 = vpop.permute.xlu0 %7571
    %7574 = vst.msk [vmem:[#allocation4 + $0x6] sm:$0x1] %vm7492, %v7572
    %v7575 = vrot.slane %v7570, 7
    %v7576 = vrot.slane %v7575, 2
    %7577 = vrot.lane.b32.xlu0 %v7576, 96
    %v7578 = vpop.permute.xlu0 %7577
    %7580 = vst.msk [vmem:[#allocation4 + $0x6] sm:$0x1] %vm7499, %v7578
    %7581 = vmatprep.subr.mxu0 0.0
    %7582 = vmatpush1.msra.mxu0 %v7166
    %7583 = vmatprep.subr.mxu0 0.0
    %7584 = vmatpush1.msra.mxu0 %v7167
    %7585 = vmatprep.subr.mxu0 0.0
    %7586 = vmatpush1.msra.mxu0 %v7168
    %7587 = vmatprep.subr.mxu0 0.0
    %7588 = vmatpush1.msra.mxu0 %v7169
    %7589 = vmatprep.subr.mxu0 0.0
    %7590 = vmatpush1.msra.mxu0 %v7170
    %7591 = vmatprep.subr.mxu0 0.0
    %7592 = vmatpush1.msra.mxu0 %v7171
    %7593 = vmatprep.subr.mxu0 0.0
    %7594 = vmatpush1.msra.mxu0 %v7172
    %7595 = vmatprep.subr.mxu0 0.0
    %7596 = vmatpush1.msra.mxu0 %v7173
    %7597 = vmatprep.subr.mxu0 0.0
    %7598 = vmatpush1.msra.mxu0 %v7174
    %7599 = vmatprep.subr.mxu0 0.0
    %7600 = vmatpush1.msra.mxu0 %v7175
    %7601 = vmatprep.subr.mxu0 0.0
    %7602 = vmatpush1.msra.mxu0 %v7176
    %7603 = vmatprep.subr.mxu0 0.0
    %7604 = vmatpush1.msra.mxu0 %v7177
    %7605 = vmatprep.subr.mxu0 0.0
    %7606 = vmatpush1.msra.mxu0 %v7178
    %7607 = vmatprep.subr.mxu0 0.0
    %7608 = vmatpush1.msra.mxu0 %v7179
    %7609 = vmatprep.subr.mxu0 0.0
    %7610 = vmatpush1.msra.mxu0 %v7180
    %7611 = vmatprep.subr.mxu0 0.0
    %7612 = vmatpush1.msra.mxu0 %v7181
    %7613 = vmatprep.subr.mxu0 0.0
    %7614 = vmatpush1.msra.mxu0 %v7182
    %7615 = vmatprep.subr.mxu0 0.0
    %7616 = vmatpush1.msra.mxu0 %v7183
    %7617 = vmatprep.subr.mxu0 0.0
    %7618 = vmatpush1.msra.mxu0 %v7184
    %7619 = vmatprep.subr.mxu0 0.0
    %7620 = vmatpush1.msra.mxu0 %v7185
    %7621 = vmatprep.subr.mxu0 0.0
    %7622 = vmatpush1.msra.mxu0 %v7186
    %7623 = vmatprep.subr.mxu0 0.0
    %7624 = vmatpush1.msra.mxu0 %v7187
    %7625 = vmatprep.subr.mxu0 0.0
    %7626 = vmatpush1.msra.mxu0 %v7188
    %7627 = vmatprep.subr.mxu0 0.0
    %7628 = vmatpush1.msra.mxu0 %v7189
    %7629 = vmatprep.subr.mxu0 0.0
    %7630 = vmatpush1.msra.mxu0 %v7190
    %7631 = vmatprep.subr.mxu0 0.0
    %7632 = vmatpush1.msra.mxu0 %v7191
    %7633 = vmatprep.subr.mxu0 0.0
    %7634 = vmatpush1.msra.mxu0 %v7192
    %7635 = vmatprep.subr.mxu0 0.0
    %7636 = vmatpush1.msra.mxu0 %v7193
    %7637 = vmatprep.subr.mxu0 0.0
    %7638 = vmatpush1.msra.mxu0 %v7194
    %7639 = vmatprep.subr.mxu0 0.0
    %7640 = vmatpush1.msra.mxu0 %v7195
    %7641 = vmatprep.subr.mxu0 0.0
    %7642 = vmatpush1.msra.mxu0 %v7196
    %7643 = vmatprep.subr.mxu0 0.0
    %7644 = vmatpush1.msra.mxu0 %v7197
    %7645 = vmatprep.mubr.f32.mxu0 %v7152
    %7646 = vmatmul.mubr.f32.gmra.mrb[0].mxu0 %v7151
    %v7647 = vpop.f32.mrb[0].mxu0
    %v7648 = vadd.f32 0.0, %v7647
    %v7649 = vpop.f32.mrb[0].mxu0
    %7650 = vmatprep.mubr.f32.mxu0 %v7162
    %7651 = vmatmul.mubr.f32.gmra.mrb[0].mxu0 %v7161
    %v7652 = vpop.f32.mrb[0].mxu0
    %v7653 = vadd.f32 0.0, %v7652
    %v7654 = vpop.f32.mrb[0].mxu0
    %7655 = vdwg.mxu0
    %7656 = vmatprep.subr.mxu0 0.0
    %7657 = vmatpush1.msra.mxu0 %v7198
    %7658 = vmatprep.subr.mxu0 0.0
    %7659 = vmatpush1.msra.mxu0 %v7199
    %7660 = vmatprep.subr.mxu0 0.0
    %7661 = vmatpush1.msra.mxu0 %v7200
    %7662 = vmatprep.subr.mxu0 0.0
    %7663 = vmatpush1.msra.mxu0 %v7201
    %7664 = vmatprep.subr.mxu0 0.0
    %7665 = vmatpush1.msra.mxu0 %v7202
    %7666 = vmatprep.subr.mxu0 0.0
    %7667 = vmatpush1.msra.mxu0 %v7203
    %7668 = vmatprep.subr.mxu0 0.0
    %7669 = vmatpush1.msra.mxu0 %v7204
    %7670 = vmatprep.subr.mxu0 0.0
    %7671 = vmatpush1.msra.mxu0 %v7205
    %7672 = vmatprep.subr.mxu0 0.0
    %7673 = vmatpush1.msra.mxu0 %v7206
    %7674 = vmatprep.subr.mxu0 0.0
    %7675 = vmatpush1.msra.mxu0 %v7207
    %7676 = vmatprep.subr.mxu0 0.0
    %7677 = vmatpush1.msra.mxu0 %v7208
    %7678 = vmatprep.subr.mxu0 0.0
    %7679 = vmatpush1.msra.mxu0 %v7209
    %7680 = vmatprep.subr.mxu0 0.0
    %7681 = vmatpush1.msra.mxu0 %v7210
    %7682 = vmatprep.subr.mxu0 0.0
    %7683 = vmatpush1.msra.mxu0 %v7211
    %7684 = vmatprep.subr.mxu0 0.0
    %7685 = vmatpush1.msra.mxu0 %v7212
    %7686 = vmatprep.subr.mxu0 0.0
    %7687 = vmatpush1.msra.mxu0 %v7213
    %7688 = vmatprep.subr.mxu0 0.0
    %7689 = vmatpush1.msra.mxu0 %v7214
    %7690 = vmatprep.subr.mxu0 0.0
    %7691 = vmatpush1.msra.mxu0 %v7215
    %7692 = vmatprep.subr.mxu0 0.0
    %7693 = vmatpush1.msra.mxu0 %v7216
    %7694 = vmatprep.subr.mxu0 0.0
    %7695 = vmatpush1.msra.mxu0 %v7217
    %7696 = vmatprep.subr.mxu0 0.0
    %7697 = vmatpush1.msra.mxu0 %v7218
    %7698 = vmatprep.subr.mxu0 0.0
    %7699 = vmatpush1.msra.mxu0 %v7219
    %7700 = vmatprep.subr.mxu0 0.0
    %7701 = vmatpush1.msra.mxu0 %v7220
    %7702 = vmatprep.subr.mxu0 0.0
    %7703 = vmatpush1.msra.mxu0 %v7221
    %7704 = vmatprep.subr.mxu0 0.0
    %7705 = vmatpush1.msra.mxu0 %v7222
    %7706 = vmatprep.subr.mxu0 0.0
    %7707 = vmatpush1.msra.mxu0 %v7223
    %7708 = vmatprep.subr.mxu0 0.0
    %7709 = vmatpush1.msra.mxu0 %v7224
    %7710 = vmatprep.subr.mxu0 0.0
    %7711 = vmatpush1.msra.mxu0 %v7225
    %7712 = vmatprep.subr.mxu0 0.0
    %7713 = vmatpush1.msra.mxu0 %v7226
    %7714 = vmatprep.subr.mxu0 0.0
    %7715 = vmatpush1.msra.mxu0 %v7227
    %7716 = vmatprep.subr.mxu0 0.0
    %7717 = vmatpush1.msra.mxu0 %v7228
    %7718 = vmatprep.subr.mxu0 0.0
    %7719 = vmatpush1.msra.mxu0 %v7229
    %7720 = vmatprep.mubr.f32.mxu0 %v7154
    %7721 = vmatmul.mubr.f32.gmra.mrb[0].mxu0 %v7153
    %v7722 = vpop.f32.mrb[0].mxu0
    %v7723 = vadd.f32 %v7648, %v7722
    %v7724 = vpop.f32.mrb[0].mxu0
    %7725 = vmatprep.mubr.f32.mxu0 %v7164
    %7726 = vmatmul.mubr.f32.gmra.mrb[0].mxu0 %v7163
    %v7727 = vpop.f32.mrb[0].mxu0
    %v7728 = vadd.f32 %v7653, %v7727
    %v7729 = vpop.f32.mrb[0].mxu0
    %7730 = vdwg.mxu0
    %7731 = vmatprep.subr.mxu0 0.0
    %7732 = vmatpush1.msra.mxu0 %v7230
    %7733 = vmatprep.subr.mxu0 0.0
    %7734 = vmatpush1.msra.mxu0 %v7231
    %7735 = vmatprep.subr.mxu0 0.0
    %7736 = vmatpush1.msra.mxu0 %v7232
    %7737 = vmatprep.subr.mxu0 0.0
    %7738 = vmatpush1.msra.mxu0 %v7233
    %7739 = vmatprep.subr.mxu0 0.0
    %7740 = vmatpush1.msra.mxu0 %v7234
    %7741 = vmatprep.subr.mxu0 0.0
    %7742 = vmatpush1.msra.mxu0 %v7235
    %7743 = vmatprep.subr.mxu0 0.0
    %7744 = vmatpush1.msra.mxu0 %v7236
    %7745 = vmatprep.subr.mxu0 0.0
    %7746 = vmatpush1.msra.mxu0 %v7237
    %7747 = vmatprep.subr.mxu0 0.0
    %7748 = vmatpush1.msra.mxu0 %v7238
    %7749 = vmatprep.subr.mxu0 0.0
    %7750 = vmatpush1.msra.mxu0 %v7239
    %7751 = vmatprep.subr.mxu0 0.0
    %7752 = vmatpush1.msra.mxu0 %v7240
    %7753 = vmatprep.subr.mxu0 0.0
    %7754 = vmatpush1.msra.mxu0 %v7241
    %7755 = vmatprep.subr.mxu0 0.0
    %7756 = vmatpush1.msra.mxu0 %v7242
    %7757 = vmatprep.subr.mxu0 0.0
    %7758 = vmatpush1.msra.mxu0 %v7243
    %7759 = vmatprep.subr.mxu0 0.0
    %7760 = vmatpush1.msra.mxu0 %v7244
    %7761 = vmatprep.subr.mxu0 0.0
    %7762 = vmatpush1.msra.mxu0 %v7245
    %7763 = vmatprep.subr.mxu0 0.0
    %7764 = vmatpush1.msra.mxu0 0.0
    %7765 = vmatprep.subr.mxu0 0.0
    %7766 = vmatpush1.msra.mxu0 0.0
    %7767 = vmatprep.subr.mxu0 0.0
    %7768 = vmatpush1.msra.mxu0 0.0
    %7769 = vmatprep.subr.mxu0 0.0
    %7770 = vmatpush1.msra.mxu0 0.0
    %7771 = vmatprep.subr.mxu0 0.0
    %7772 = vmatpush1.msra.mxu0 0.0
    %7773 = vmatprep.subr.mxu0 0.0
    %7774 = vmatpush1.msra.mxu0 0.0
    %7775 = vmatprep.subr.mxu0 0.0
    %7776 = vmatpush1.msra.mxu0 0.0
    %7777 = vmatprep.subr.mxu0 0.0
    %7778 = vmatpush1.msra.mxu0 0.0
    %7779 = vmatprep.subr.mxu0 0.0
    %7780 = vmatpush1.msra.mxu0 0.0
    %7781 = vmatprep.subr.mxu0 0.0
    %7782 = vmatpush1.msra.mxu0 0.0
    %7783 = vmatprep.subr.mxu0 0.0
    %7784 = vmatpush1.msra.mxu0 0.0
    %7785 = vmatprep.subr.mxu0 0.0
    %7786 = vmatpush1.msra.mxu0 0.0
    %7787 = vmatprep.subr.mxu0 0.0
    %7788 = vmatpush1.msra.mxu0 0.0
    %7789 = vmatprep.subr.mxu0 0.0
    %7790 = vmatpush1.msra.mxu0 0.0
    %7791 = vmatprep.subr.mxu0 0.0
    %7792 = vmatpush1.msra.mxu0 0.0
    %7793 = vmatprep.subr.mxu0 0.0
    %7794 = vmatpush1.msra.mxu0 0.0
    %7795 = vmatprep.mubr.f32.mxu0 0.0
    %7796 = vmatmul.mubr.f32.gmra.mrb[0].mxu0 %v7155
    %v7797 = vpop.f32.mrb[0].mxu0
    %v7798 = vadd.f32 %v7723, %v7797
    %v7799 = vpop.f32.mrb[0].mxu0
    %7800 = vmatprep.mubr.f32.mxu0 0.0
    %7801 = vmatmul.mubr.f32.gmra.mrb[0].mxu0 %v7165
    %v7802 = vpop.f32.mrb[0].mxu0
    %v7803 = vadd.f32 %v7728, %v7802
    %v7804 = vpop.f32.mrb[0].mxu0
    %7805 = vdwg.mxu0
    %7806 = vst.msk [vmem:[#allocation4 + $0x1] sm:$0x1] %vm7471, %v7798
    %v7809 = vunpack.c.l.s4 1983009808
    %v7810 = vunpack.c.0.s8 %v7809
    %v7811 = vlaneseq
    %v7812 = vshrl.u32 %v7811, 7
    %v7813 = vsub.s32 %v7810, %v7812
    %v7814 = vrot.slane %v7798, %v7813
    %v7815 = vrot.slane %v7814, 7
    %v7816 = vrot.slane %v7815, 2
    %7817 = vrot.lane.b32.xlu0 %v7816, 32
    %v7818 = vpop.permute.xlu0 %7817
    %7820 = vst.msk [vmem:[#allocation4 + $0x1] sm:$0x1] %vm7486, %v7818
    %v7821 = vcombine.high %v7814, %v7814
    %7822 = vrot.lane.b32.xlu0 %v7821, 64
    %v7823 = vpop.permute.xlu0 %7822
    %7825 = vst.msk [vmem:[#allocation4 + $0x1] sm:$0x1] %vm7492, %v7823
    %v7826 = vrot.slane %v7821, 7
    %v7827 = vrot.slane %v7826, 2
    %7828 = vrot.lane.b32.xlu0 %v7827, 96
    %v7829 = vpop.permute.xlu0 %7828
    %7831 = vst.msk [vmem:[#allocation4 + $0x1] sm:$0x1] %vm7499, %v7829
    %v7832 = vcombine.high %v7798, %v7798
    %v7834 = vunpack.c.l.s4 1983009808
    %v7835 = vunpack.c.0.s8 %v7834
    %v7836 = vlaneseq
    %v7837 = vshrl.u32 %v7836, 7
    %v7838 = vsub.s32 %v7835, %v7837
    %v7839 = vrot.slane %v7832, %v7838
    %7841 = vst.msk [vmem:[#allocation4 + $0x3] sm:$0x1] %vm7471, %v7839
    %v7842 = vrot.slane %v7839, 7
    %v7843 = vrot.slane %v7842, 2
    %7844 = vrot.lane.b32.xlu0 %v7843, 32
    %v7845 = vpop.permute.xlu0 %7844
    %7847 = vst.msk [vmem:[#allocation4 + $0x3] sm:$0x1] %vm7486, %v7845
    %v7848 = vcombine.high %v7839, %v7839
    %7849 = vrot.lane.b32.xlu0 %v7848, 64
    %v7850 = vpop.permute.xlu0 %7849
    %7852 = vst.msk [vmem:[#allocation4 + $0x3] sm:$0x1] %vm7492, %v7850
    %v7853 = vrot.slane %v7848, 7
    %v7854 = vrot.slane %v7853, 2
    %7855 = vrot.lane.b32.xlu0 %v7854, 96
    %v7856 = vpop.permute.xlu0 %7855
    %7858 = vst.msk [vmem:[#allocation4 + $0x3] sm:$0x1] %vm7499, %v7856
    %7859 = vst.msk [vmem:[#allocation4 + $0x5] sm:$0x1] %vm7471, %v7803
    %v7862 = vunpack.c.l.s4 1983009808
    %v7863 = vunpack.c.0.s8 %v7862
    %v7864 = vlaneseq
    %v7865 = vshrl.u32 %v7864, 7
    %v7866 = vsub.s32 %v7863, %v7865
    %v7867 = vrot.slane %v7803, %v7866
    %v7868 = vrot.slane %v7867, 7
    %v7869 = vrot.slane %v7868, 2
    %7870 = vrot.lane.b32.xlu0 %v7869, 32
    %v7871 = vpop.permute.xlu0 %7870
    %7873 = vst.msk [vmem:[#allocation4 + $0x5] sm:$0x1] %vm7486, %v7871
    %v7874 = vcombine.high %v7867, %v7867
    %7875 = vrot.lane.b32.xlu0 %v7874, 64
    %v7876 = vpop.permute.xlu0 %7875
    %7878 = vst.msk [vmem:[#allocation4 + $0x5] sm:$0x1] %vm7492, %v7876
    %v7879 = vrot.slane %v7874, 7
    %v7880 = vrot.slane %v7879, 2
    %7881 = vrot.lane.b32.xlu0 %v7880, 96
    %v7882 = vpop.permute.xlu0 %7881
    %7884 = vst.msk [vmem:[#allocation4 + $0x5] sm:$0x1] %vm7499, %v7882
    %v7885 = vcombine.high %v7803, %v7803
    %v7887 = vunpack.c.l.s4 1983009808
    %v7888 = vunpack.c.0.s8 %v7887
    %v7889 = vlaneseq
    %v7890 = vshrl.u32 %v7889, 7
    %v7891 = vsub.s32 %v7888, %v7890
    %v7892 = vrot.slane %v7885, %v7891
    %7894 = vst.msk [vmem:[#allocation4 + $0x7] sm:$0x1] %vm7471, %v7892
    %v7895 = vrot.slane %v7892, 7
    %v7896 = vrot.slane %v7895, 2
    %7897 = vrot.lane.b32.xlu0 %v7896, 32
    %v7898 = vpop.permute.xlu0 %7897
    %7900 = vst.msk [vmem:[#allocation4 + $0x7] sm:$0x1] %vm7486, %v7898
    %v7901 = vcombine.high %v7892, %v7892
    %7902 = vrot.lane.b32.xlu0 %v7901, 64
    %v7903 = vpop.permute.xlu0 %7902
    %7905 = vst.msk [vmem:[#allocation4 + $0x7] sm:$0x1] %vm7492, %v7903
    %v7906 = vrot.slane %v7901, 7
    %v7907 = vrot.slane %v7906, 2
    %7908 = vrot.lane.b32.xlu0 %v7907, 96
    %v7909 = vpop.permute.xlu0 %7908
    %7911 = vst.msk [vmem:[#allocation4 + $0x7] sm:$0x1] %vm7499, %v7909
    %v7912 = vld [vmem:[#allocation4] sm:$0xff]
    %v7914 = vcombine.high %v7912, %v7912
    %v7916 = vunpack.c.l.s4 1983009808
    %v7917 = vunpack.c.0.s8 %v7916
    %v7918 = vlaneseq
    %v7919 = vshrl.u32 %v7918, 7
    %v7920 = vsub.s32 %v7917, %v7919
    %v7921 = vrot.slane %v7912, %v7920
    %v7923 = vunpack.c.l.s4 1983009808
    %v7924 = vunpack.c.0.s8 %v7923
    %v7925 = vlaneseq
    %v7926 = vshrl.u32 %v7925, 7
    %v7927 = vsub.s32 %v7924, %v7926
    %v7928 = vrot.slane %v7914, %v7927
    %v7929 = vcombine.high %v7921, %v7921
    %v7930 = vcombine.high %v7928, %v7928
    %v7935 = vpack.c.bf16 %v7921, %v7921
    %v7936 = vpack.c.bf16 %v7929, %v7929
    %v7937 = vpack.c.bf16 %v7928, %v7928
    %v7938 = vpack.c.bf16 %v7930, %v7930
    %v7939 = vld [vmem:[%s6] sm:$0xf]
    %v7940 = vld [vmem:[%s6 + $0x4] sm:$0xf]
    %v7941 = vld [vmem:[%s6 + $0x8] sm:$0xf]
    %v7942 = vld [vmem:[%s6 + $0xc] sm:$0xf]
    %v7943 = vld [vmem:[%s6 + $0x10] sm:$0xf]
    %v7944 = vld [vmem:[%s6 + $0x14] sm:$0xf]
    %v7945 = vld [vmem:[%s6 + $0x18] sm:$0xf]
    %v7946 = vld [vmem:[%s6 + $0x1c] sm:$0xf]
    %v7947 = vld [vmem:[%s6 + $0x20] sm:$0xf]
    %v7948 = vld [vmem:[%s6 + $0x24] sm:$0xf]
    %v7949 = vld [vmem:[%s6 + $0x28] sm:$0xf]
    %v7950 = vld [vmem:[%s6 + $0x2c] sm:$0xf]
    %v7951 = vld [vmem:[%s6 + $0x30] sm:$0xf]
    %v7952 = vld [vmem:[%s6 + $0x34] sm:$0xf]
    %v7953 = vld [vmem:[%s6 + $0x38] sm:$0xf]
    %v7954 = vld [vmem:[%s6 + $0x3c] sm:$0xf]
    %v7955 = vld [vmem:[%s6 + $0x40] sm:$0xf]
    %v7956 = vld [vmem:[%s6 + $0x44] sm:$0xf]
    %v7957 = vld [vmem:[%s6 + $0x48] sm:$0xf]
    %v7958 = vld [vmem:[%s6 + $0x4c] sm:$0xf]
    %v7959 = vld [vmem:[%s6 + $0x50] sm:$0xf]
    %v7960 = vld [vmem:[%s6 + $0x54] sm:$0xf]
    %v7961 = vld [vmem:[%s6 + $0x58] sm:$0xf]
    %v7962 = vld [vmem:[%s6 + $0x5c] sm:$0xf]
    %v7963 = vld [vmem:[%s6 + $0x60] sm:$0xf]
    %v7964 = vld [vmem:[%s6 + $0x64] sm:$0xf]
    %v7965 = vld [vmem:[%s6 + $0x68] sm:$0xf]
    %v7966 = vld [vmem:[%s6 + $0x6c] sm:$0xf]
    %v7967 = vld [vmem:[%s6 + $0x70] sm:$0xf]
    %v7968 = vld [vmem:[%s6 + $0x74] sm:$0xf]
    %v7969 = vld [vmem:[%s6 + $0x78] sm:$0xf]
    %v7970 = vld [vmem:[%s6 + $0x7c] sm:$0xf]
    %v7971 = vld [vmem:[%s6 + $0x80] sm:$0xf]
    %v7972 = vld [vmem:[%s6 + $0x84] sm:$0xf]
    %v7973 = vld [vmem:[%s6 + $0x88] sm:$0xf]
    %v7974 = vld [vmem:[%s6 + $0x8c] sm:$0xf]
    %v7975 = vld [vmem:[%s6 + $0x90] sm:$0xf]
    %v7976 = vld [vmem:[%s6 + $0x94] sm:$0xf]
    %v7977 = vld [vmem:[%s6 + $0x98] sm:$0xf]
    %v7978 = vld [vmem:[%s6 + $0x9c] sm:$0xf]
    %v7979 = vld [vmem:[%s6 + $0xa0] sm:$0xf]
    %v7980 = vld [vmem:[%s6 + $0xa4] sm:$0xf]
    %v7981 = vld [vmem:[%s6 + $0xa8] sm:$0xf]
    %v7982 = vld [vmem:[%s6 + $0xac] sm:$0xf]
    %v7983 = vld [vmem:[%s6 + $0xb0] sm:$0xf]
    %v7984 = vld [vmem:[%s6 + $0xb4] sm:$0xf]
    %v7985 = vld [vmem:[%s6 + $0xb8] sm:$0xf]
    %v7986 = vld [vmem:[%s6 + $0xbc] sm:$0xf]
    %v7987 = vld [vmem:[%s6 + $0xc0] sm:$0xf]
    %v7988 = vld [vmem:[%s6 + $0xc4] sm:$0xf]
    %v7989 = vld [vmem:[%s6 + $0xc8] sm:$0xf]
    %v7990 = vld [vmem:[%s6 + $0xcc] sm:$0xf]
    %v7991 = vld [vmem:[%s6 + $0xd0] sm:$0xf]
    %v7992 = vld [vmem:[%s6 + $0xd4] sm:$0xf]
    %v7993 = vld [vmem:[%s6 + $0xd8] sm:$0xf]
    %v7994 = vld [vmem:[%s6 + $0xdc] sm:$0xf]
    %v7995 = vld [vmem:[%s6 + $0xe0] sm:$0xf]
    %v7996 = vld [vmem:[%s6 + $0xe4] sm:$0xf]
    %v7997 = vld [vmem:[%s6 + $0xe8] sm:$0xf]
    %v7998 = vld [vmem:[%s6 + $0xec] sm:$0xf]
    %v7999 = vld [vmem:[%s6 + $0xf0] sm:$0xf]
    %v8000 = vld [vmem:[%s6 + $0xf4] sm:$0xf]
    %v8001 = vld [vmem:[%s6 + $0xf8] sm:$0xf]
    %v8002 = vld [vmem:[%s6 + $0xfc] sm:$0xf]
    %v8003 = vld [vmem:[%s7] sm:$0x1]
    %v8005 = vlaneseq
    %v8006 = vshrl.u32 %v8005, 7
    %v8007 = vsub.s32 0, %v8006
    %v8008 = vrot.slane %v8003, %v8007
    %v8074 = vunpack.c.l.b16 %v7939
    %v8075 = vunpack.c.l.b16 %v7940
    %v8076 = vunpack.c.l.b16 %v7941
    %v8077 = vunpack.c.l.b16 %v7942
    %v8078 = vunpack.c.l.b16 %v7943
    %v8079 = vunpack.c.l.b16 %v7944
    %v8080 = vunpack.c.l.b16 %v7945
    %v8081 = vunpack.c.l.b16 %v7946
    %v8082 = vunpack.c.l.b16 %v7947
    %v8083 = vunpack.c.l.b16 %v7948
    %v8084 = vunpack.c.l.b16 %v7949
    %v8085 = vunpack.c.l.b16 %v7950
    %v8086 = vunpack.c.l.b16 %v7951
    %v8087 = vunpack.c.l.b16 %v7952
    %v8088 = vunpack.c.l.b16 %v7953
    %v8089 = vunpack.c.l.b16 %v7954
    %v8090 = vunpack.c.l.b16 %v7955
    %v8091 = vunpack.c.l.b16 %v7956
    %v8092 = vunpack.c.l.b16 %v7957
    %v8093 = vunpack.c.l.b16 %v7958
    %v8094 = vunpack.c.l.b16 %v7959
    %v8095 = vunpack.c.l.b16 %v7960
    %v8096 = vunpack.c.l.b16 %v7961
    %v8097 = vunpack.c.l.b16 %v7962
    %v8098 = vunpack.c.l.b16 %v7963
    %v8099 = vunpack.c.l.b16 %v7964
    %v8100 = vunpack.c.l.b16 %v7965
    %v8101 = vunpack.c.l.b16 %v7966
    %v8102 = vunpack.c.l.b16 %v7967
    %v8103 = vunpack.c.l.b16 %v7968
    %v8104 = vunpack.c.l.b16 %v7969
    %v8105 = vunpack.c.l.b16 %v7970
    %v8106 = vunpack.c.l.b16 %v7971
    %v8107 = vunpack.c.l.b16 %v7972
    %v8108 = vunpack.c.l.b16 %v7973
    %v8109 = vunpack.c.l.b16 %v7974
    %v8110 = vunpack.c.l.b16 %v7975
    %v8111 = vunpack.c.l.b16 %v7976
    %v8112 = vunpack.c.l.b16 %v7977
    %v8113 = vunpack.c.l.b16 %v7978
    %v8114 = vunpack.c.l.b16 %v7979
    %v8115 = vunpack.c.l.b16 %v7980
    %v8116 = vunpack.c.l.b16 %v7981
    %v8117 = vunpack.c.l.b16 %v7982
    %v8118 = vunpack.c.l.b16 %v7983
    %v8119 = vunpack.c.l.b16 %v7984
    %v8120 = vunpack.c.l.b16 %v7985
    %v8121 = vunpack.c.l.b16 %v7986
    %v8122 = vunpack.c.l.b16 %v7987
    %v8123 = vunpack.c.l.b16 %v7988
    %v8124 = vunpack.c.l.b16 %v7989
    %v8125 = vunpack.c.l.b16 %v7990
    %v8126 = vunpack.c.l.b16 %v7991
    %v8127 = vunpack.c.l.b16 %v7992
    %v8128 = vunpack.c.l.b16 %v7993
    %v8129 = vunpack.c.l.b16 %v7994
    %v8130 = vunpack.c.l.b16 %v7995
    %v8131 = vunpack.c.l.b16 %v7996
    %v8132 = vunpack.c.l.b16 %v7997
    %v8133 = vunpack.c.l.b16 %v7998
    %v8134 = vunpack.c.l.b16 %v7999
    %v8135 = vunpack.c.l.b16 %v8000
    %v8136 = vunpack.c.l.b16 %v8001
    %v8137 = vunpack.c.l.b16 %v8002
    %v8138 = vpack.c.b16 %v8075, %v8074
    %v8139 = vpack.c.b16 %v8077, %v8076
    %v8140 = vpack.c.b16 %v8079, %v8078
    %v8141 = vpack.c.b16 %v8081, %v8080
    %v8142 = vpack.c.b16 %v8083, %v8082
    %v8143 = vpack.c.b16 %v8085, %v8084
    %v8144 = vpack.c.b16 %v8087, %v8086
    %v8145 = vpack.c.b16 %v8089, %v8088
    %v8146 = vpack.c.b16 %v8091, %v8090
    %v8147 = vpack.c.b16 %v8093, %v8092
    %v8148 = vpack.c.b16 %v8095, %v8094
    %v8149 = vpack.c.b16 %v8097, %v8096
    %v8150 = vpack.c.b16 %v8099, %v8098
    %v8151 = vpack.c.b16 %v8101, %v8100
    %v8152 = vpack.c.b16 %v8103, %v8102
    %v8153 = vpack.c.b16 %v8105, %v8104
    %v8154 = vpack.c.b16 %v8107, %v8106
    %v8155 = vpack.c.b16 %v8109, %v8108
    %v8156 = vpack.c.b16 %v8111, %v8110
    %v8157 = vpack.c.b16 %v8113, %v8112
    %v8158 = vpack.c.b16 %v8115, %v8114
    %v8159 = vpack.c.b16 %v8117, %v8116
    %v8160 = vpack.c.b16 %v8119, %v8118
    %v8161 = vpack.c.b16 %v8121, %v8120
    %v8162 = vpack.c.b16 %v8123, %v8122
    %v8163 = vpack.c.b16 %v8125, %v8124
    %v8164 = vpack.c.b16 %v8127, %v8126
    %v8165 = vpack.c.b16 %v8129, %v8128
    %v8166 = vpack.c.b16 %v8131, %v8130
    %v8167 = vpack.c.b16 %v8133, %v8132
    %v8168 = vpack.c.b16 %v8135, %v8134
    %v8169 = vpack.c.b16 %v8137, %v8136
    %8202 = vmatprep.subr.bf16.mxu0 0
    %8203 = vmatpush1.bf16.msra.mxu0 %v8138
    %8204 = vmatprep.subr.bf16.mxu0 0
    %8205 = vmatpush1.bf16.msra.mxu0 %v8139
    %8206 = vmatprep.subr.bf16.mxu0 0
    %8207 = vmatpush1.bf16.msra.mxu0 %v8140
    %8208 = vmatprep.subr.bf16.mxu0 0
    %8209 = vmatpush1.bf16.msra.mxu0 %v8141
    %8210 = vmatprep.subr.bf16.mxu0 0
    %8211 = vmatpush1.bf16.msra.mxu0 %v8142
    %8212 = vmatprep.subr.bf16.mxu0 0
    %8213 = vmatpush1.bf16.msra.mxu0 %v8143
    %8214 = vmatprep.subr.bf16.mxu0 0
    %8215 = vmatpush1.bf16.msra.mxu0 %v8144
    %8216 = vmatprep.subr.bf16.mxu0 0
    %8217 = vmatpush1.bf16.msra.mxu0 %v8145
    %8218 = vmatprep.subr.bf16.mxu0 0
    %8219 = vmatpush1.bf16.msra.mxu0 %v8146
    %8220 = vmatprep.subr.bf16.mxu0 0
    %8221 = vmatpush1.bf16.msra.mxu0 %v8147
    %8222 = vmatprep.subr.bf16.mxu0 0
    %8223 = vmatpush1.bf16.msra.mxu0 %v8148
    %8224 = vmatprep.subr.bf16.mxu0 0
    %8225 = vmatpush1.bf16.msra.mxu0 %v8149
    %8226 = vmatprep.subr.bf16.mxu0 0
    %8227 = vmatpush1.bf16.msra.mxu0 %v8150
    %8228 = vmatprep.subr.bf16.mxu0 0
    %8229 = vmatpush1.bf16.msra.mxu0 %v8151
    %8230 = vmatprep.subr.bf16.mxu0 0
    %8231 = vmatpush1.bf16.msra.mxu0 %v8152
    %8232 = vmatprep.subr.bf16.mxu0 0
    %8233 = vmatpush1.bf16.msra.mxu0 %v8153
    %8234 = vmatprep.mubr.bf16.mxu0 %v7936
    %8235 = vmatmul.mubr.bf16.gmra.mrb[0].mxu0 %v7935
    %v8236 = vpop.f32.mrb[0].mxu0
    %v8237 = vadd.f32 %v8008, %v8236
    %v8238 = vpop.f32.mrb[0].mxu0
    %v8239 = vpop.f32.mrb[0].mxu0
    %v8240 = vpop.f32.mrb[0].mxu0
    %8241 = vdwg.mxu0
    %8242 = vmatprep.subr.bf16.mxu0 0
    %8243 = vmatpush1.bf16.msra.mxu0 %v8154
    %8244 = vmatprep.subr.bf16.mxu0 0
    %8245 = vmatpush1.bf16.msra.mxu0 %v8155
    %8246 = vmatprep.subr.bf16.mxu0 0
    %8247 = vmatpush1.bf16.msra.mxu0 %v8156
    %8248 = vmatprep.subr.bf16.mxu0 0
    %8249 = vmatpush1.bf16.msra.mxu0 %v8157
    %8250 = vmatprep.subr.bf16.mxu0 0
    %8251 = vmatpush1.bf16.msra.mxu0 %v8158
    %8252 = vmatprep.subr.bf16.mxu0 0
    %8253 = vmatpush1.bf16.msra.mxu0 %v8159
    %8254 = vmatprep.subr.bf16.mxu0 0
    %8255 = vmatpush1.bf16.msra.mxu0 %v8160
    %8256 = vmatprep.subr.bf16.mxu0 0
    %8257 = vmatpush1.bf16.msra.mxu0 %v8161
    %8258 = vmatprep.subr.bf16.mxu0 0
    %8259 = vmatpush1.bf16.msra.mxu0 %v8162
    %8260 = vmatprep.subr.bf16.mxu0 0
    %8261 = vmatpush1.bf16.msra.mxu0 %v8163
    %8262 = vmatprep.subr.bf16.mxu0 0
    %8263 = vmatpush1.bf16.msra.mxu0 %v8164
    %8264 = vmatprep.subr.bf16.mxu0 0
    %8265 = vmatpush1.bf16.msra.mxu0 %v8165
    %8266 = vmatprep.subr.bf16.mxu0 0
    %8267 = vmatpush1.bf16.msra.mxu0 %v8166
    %8268 = vmatprep.subr.bf16.mxu0 0
    %8269 = vmatpush1.bf16.msra.mxu0 %v8167
    %8270 = vmatprep.subr.bf16.mxu0 0
    %8271 = vmatpush1.bf16.msra.mxu0 %v8168
    %8272 = vmatprep.subr.bf16.mxu0 0
    %8273 = vmatpush1.bf16.msra.mxu0 %v8169
    %8274 = vmatprep.mubr.bf16.mxu0 %v7938
    %8275 = vmatmul.mubr.bf16.gmra.mrb[0].mxu0 %v7937
    %v8276 = vpop.f32.mrb[0].mxu0
    %v8277 = vadd.f32 %v8237, %v8276
    %v8278 = vpop.f32.mrb[0].mxu0
    %v8279 = vpop.f32.mrb[0].mxu0
    %v8280 = vpop.f32.mrb[0].mxu0
    %8281 = vdwg.mxu0
    %v8282 = vmax.f32 %v8277, 0.0
    %v8283 = vpack.c.bf16 %v8282, %v8282
    %v8284 = vld [vmem:[%s8] sm:$0xf]
    %v8285 = vld [vmem:[%s8 + $0x4] sm:$0xf]
    %v8286 = vld [vmem:[%s8 + $0x8] sm:$0xf]
    %v8287 = vld [vmem:[%s8 + $0xc] sm:$0xf]
    %v8288 = vld [vmem:[%s8 + $0x10] sm:$0xf]
    %v8289 = vld [vmem:[%s8 + $0x14] sm:$0xf]
    %v8290 = vld [vmem:[%s8 + $0x18] sm:$0xf]
    %v8291 = vld [vmem:[%s8 + $0x1c] sm:$0xf]
    %v8292 = vld [vmem:[%s8 + $0x20] sm:$0xf]
    %v8293 = vld [vmem:[%s8 + $0x24] sm:$0xf]
    %v8294 = vld [vmem:[%s8 + $0x28] sm:$0xf]
    %v8295 = vld [vmem:[%s8 + $0x2c] sm:$0xf]
    %v8296 = vld [vmem:[%s8 + $0x30] sm:$0xf]
    %v8297 = vld [vmem:[%s8 + $0x34] sm:$0xf]
    %v8298 = vld [vmem:[%s8 + $0x38] sm:$0xf]
    %v8299 = vld [vmem:[%s9] sm:$0x1]
    %v8301 = vlaneseq
    %v8302 = vshrl.u32 %v8301, 7
    %v8303 = vsub.s32 0, %v8302
    %v8304 = vrot.slane %v8299, %v8303
    %v8321 = vunpack.c.l.b16 %v8284
    %v8322 = vunpack.c.l.b16 %v8285
    %v8323 = vunpack.c.l.b16 %v8286
    %v8324 = vunpack.c.l.b16 %v8287
    %v8325 = vunpack.c.l.b16 %v8288
    %v8326 = vunpack.c.l.b16 %v8289
    %v8327 = vunpack.c.l.b16 %v8290
    %v8328 = vunpack.c.l.b16 %v8291
    %v8329 = vunpack.c.l.b16 %v8292
    %v8330 = vunpack.c.l.b16 %v8293
    %v8331 = vunpack.c.l.b16 %v8294
    %v8332 = vunpack.c.l.b16 %v8295
    %v8333 = vunpack.c.l.b16 %v8296
    %v8334 = vunpack.c.l.b16 %v8297
    %v8335 = vunpack.c.l.b16 %v8298
    %v8336 = vpack.c.b16 %v8322, %v8321
    %v8337 = vpack.c.b16 %v8324, %v8323
    %v8338 = vpack.c.b16 %v8326, %v8325
    %v8339 = vpack.c.b16 %v8328, %v8327
    %v8340 = vpack.c.b16 %v8330, %v8329
    %v8341 = vpack.c.b16 %v8332, %v8331
    %v8342 = vpack.c.b16 %v8334, %v8333
    %v8343 = vpack.c.b16 %v8335, %v8335
    %v8352 = vsel %vm5023, %v8283, 0
    %v8355 = vsel %vm3989, %v8343, 0
    %8357 = vmatprep.subr.bf16.mxu0 0
    %8358 = vmatpush1.bf16.msra.mxu0 %v8336
    %8359 = vmatprep.subr.bf16.mxu0 0
    %8360 = vmatpush1.bf16.msra.mxu0 %v8337
    %8361 = vmatprep.subr.bf16.mxu0 0
    %8362 = vmatpush1.bf16.msra.mxu0 %v8338
    %8363 = vmatprep.subr.bf16.mxu0 0
    %8364 = vmatpush1.bf16.msra.mxu0 %v8339
    %8365 = vmatprep.subr.bf16.mxu0 0
    %8366 = vmatpush1.bf16.msra.mxu0 %v8340
    %8367 = vmatprep.subr.bf16.mxu0 0
    %8368 = vmatpush1.bf16.msra.mxu0 %v8341
    %8369 = vmatprep.subr.bf16.mxu0 0
    %8370 = vmatpush1.bf16.msra.mxu0 %v8342
    %8371 = vmatprep.subr.bf16.mxu0 0
    %8372 = vmatpush1.bf16.msra.mxu0 %v8355
    %8373 = vmatprep.subr.bf16.mxu0 0
    %8374 = vmatpush1.bf16.msra.mxu0 0
    %8375 = vmatprep.subr.bf16.mxu0 0
    %8376 = vmatpush1.bf16.msra.mxu0 0
    %8377 = vmatprep.subr.bf16.mxu0 0
    %8378 = vmatpush1.bf16.msra.mxu0 0
    %8379 = vmatprep.subr.bf16.mxu0 0
    %8380 = vmatpush1.bf16.msra.mxu0 0
    %8381 = vmatprep.subr.bf16.mxu0 0
    %8382 = vmatpush1.bf16.msra.mxu0 0
    %8383 = vmatprep.subr.bf16.mxu0 0
    %8384 = vmatpush1.bf16.msra.mxu0 0
    %8385 = vmatprep.subr.bf16.mxu0 0
    %8386 = vmatpush1.bf16.msra.mxu0 0
    %8387 = vmatprep.subr.bf16.mxu0 0
    %8388 = vmatpush1.bf16.msra.mxu0 0
    %8389 = vmatprep.mubr.bf16.mxu0 0
    %8390 = vmatmul.mubr.bf16.gmra.mrb[0].mxu0 %v8352
    %v8391 = vpop.f32.mrb[0].mxu0
    %v8392 = vadd.f32 %v8304, %v8391
    %v8393 = vpop.f32.mrb[0].mxu0
    %v8394 = vpop.f32.mrb[0].mxu0
    %v8395 = vpop.f32.mrb[0].mxu0
    %8396 = vdwg.mxu0
    %v8397 = vmax.f32 %v8392, 0.0
    %v8398 = vpack.c.bf16 %v8397, %v8397
    %v8399 = vld [vmem:[%s10] sm:$0xf]
    %v8400 = vld [vmem:[%s10 + $0x4] sm:$0xf]
    %v8401 = vld [vmem:[%s10 + $0x8] sm:$0xf]
    %v8402 = vld [vmem:[%s10 + $0xc] sm:$0xf]
    %v8403 = vld [vmem:[%s10 + $0x10] sm:$0xf]
    %v8404 = vld [vmem:[%s10 + $0x14] sm:$0xf]
    %v8405 = vld [vmem:[%s10 + $0x18] sm:$0xf]
    %v8406 = vld [vmem:[%s10 + $0x1c] sm:$0xf]
    %v8407 = vld [vmem:[%s10 + $0x20] sm:$0xf]
    %v8408 = vld [vmem:[%s10 + $0x24] sm:$0xf]
    %v8409 = vld [vmem:[%s10 + $0x28] sm:$0x3]
    %v8410 = vld [vmem:[%s11] sm:$0x1]
    %v8412 = vlaneseq
    %v8413 = vshrl.u32 %v8412, 7
    %v8414 = vsub.s32 0, %v8413
    %v8415 = vrot.slane %v8410, %v8414
    %v8428 = vunpack.c.l.b16 %v8399
    %v8429 = vunpack.c.l.b16 %v8400
    %v8430 = vunpack.c.l.b16 %v8401
    %v8431 = vunpack.c.l.b16 %v8402
    %v8432 = vunpack.c.l.b16 %v8403
    %v8433 = vunpack.c.l.b16 %v8404
    %v8434 = vunpack.c.l.b16 %v8405
    %v8435 = vunpack.c.l.b16 %v8406
    %v8436 = vunpack.c.l.b16 %v8407
    %v8437 = vunpack.c.l.b16 %v8408
    %v8438 = vunpack.c.l.b16 %v8409
    %v8439 = vpack.c.b16 %v8429, %v8428
    %v8440 = vpack.c.b16 %v8431, %v8430
    %v8441 = vpack.c.b16 %v8433, %v8432
    %v8442 = vpack.c.b16 %v8435, %v8434
    %v8443 = vpack.c.b16 %v8437, %v8436
    %v8444 = vpack.c.b16 %v8438, %v8438
    %vm8450 = vcmask 687104
    %v8452 = vsel %vm8450, %v8398, 0
    %vm8454 = vcmask 1041408
    %v8456 = vsel %vm8454, %v8444, 0
    %8458 = vmatprep.subr.bf16.mxu0 0
    %8459 = vmatpush1.bf16.msra.mxu0 %v8439
    %8460 = vmatprep.subr.bf16.mxu0 0
    %8461 = vmatpush1.bf16.msra.mxu0 %v8440
    %8462 = vmatprep.subr.bf16.mxu0 0
    %8463 = vmatpush1.bf16.msra.mxu0 %v8441
    %8464 = vmatprep.subr.bf16.mxu0 0
    %8465 = vmatpush1.bf16.msra.mxu0 %v8442
    %8466 = vmatprep.subr.bf16.mxu0 0
    %8467 = vmatpush1.bf16.msra.mxu0 %v8443
    %8468 = vmatprep.subr.bf16.mxu0 0
    %8469 = vmatpush1.bf16.msra.mxu0 %v8456
    %8470 = vmatprep.subr.bf16.mxu0 0
    %8471 = vmatpush1.bf16.msra.mxu0 0
    %8472 = vmatprep.subr.bf16.mxu0 0
    %8473 = vmatpush1.bf16.msra.mxu0 0
    %8474 = vmatprep.subr.bf16.mxu0 0
    %8475 = vmatpush1.bf16.msra.mxu0 0
    %8476 = vmatprep.subr.bf16.mxu0 0
    %8477 = vmatpush1.bf16.msra.mxu0 0
    %8478 = vmatprep.subr.bf16.mxu0 0
    %8479 = vmatpush1.bf16.msra.mxu0 0
    %8480 = vmatprep.subr.bf16.mxu0 0
    %8481 = vmatpush1.bf16.msra.mxu0 0
    %8482 = vmatprep.subr.bf16.mxu0 0
    %8483 = vmatpush1.bf16.msra.mxu0 0
    %8484 = vmatprep.subr.bf16.mxu0 0
    %8485 = vmatpush1.bf16.msra.mxu0 0
    %8486 = vmatprep.subr.bf16.mxu0 0
    %8487 = vmatpush1.bf16.msra.mxu0 0
    %8488 = vmatprep.subr.bf16.mxu0 0
    %8489 = vmatpush1.bf16.msra.mxu0 0
    %8490 = vmatprep.mubr.bf16.mxu0 0
    %8491 = vmatmul.mubr.bf16.gmra.mrb[0].mxu0 %v8452
    %v8492 = vpop.f32.mrb[0].mxu0
    %v8493 = vadd.f32 %v8415, %v8492
    %v8494 = vpop.f32.mrb[0].mxu0
    %v8495 = vpop.f32.mrb[0].mxu0
    %v8496 = vpop.f32.mrb[0].mxu0
    %8497 = vdwg.mxu0
    %vm8498 = vcmask 74752
    %v8499 = vsel %vm8498, %v8493, -inf
    %v8500 = vrot.slane %v8499, 4
    %v8501 = vmax.f32 %v8499, %v8500
    %v8502 = vrot.slane %v8501, 2
    %v8503 = vmax.f32 %v8501, %v8502
    %v8504 = vrot.slane %v8503, 1
    %v8505 = vmax.f32 %v8503, %v8504
    %v8506 = vsub.f32 %v8493, %v8505
    %v8507 = vmul.f32 %v8506, 1.442695
    %v8508 = vpow.pop %v8507
    %v8509 = vsel %vm8498, %v8508, 0.0
    %v8510 = vrot.slane %v8509, 4
    %v8511 = vadd.f32 %v8509, %v8510
    %v8512 = vrot.slane %v8511, 2
    %v8513 = vadd.f32 %v8511, %v8512
    %v8514 = vrot.slane %v8513, 1
    %v8515 = vadd.f32 %v8513, %v8514
    %v8516 = vlog2.pop %v8515
    %v8517 = vmul.f32 %v8516, 0.6931472
    %v8518 = vadd.f32 %v8505, %v8517
    %v8519 = vsub.f32 %v8493, %v8518
    %8520 = vst.msk [vmem:[#allocation5] sm:$0x3] %vm8498, %v8519
    // Predicated region
    $region50: #{lenet_forward.1} parent=1 // pred_check
      _
    $region51: #{lenet_forward.1} parent=1 // pred_check_branch
      %8522 = sbr.rel (0) target = $region53
    $region52: #{lenet_forward.1} parent=1 // pred_region
      %s8524 = ssub.s32 32, 32
      %8525 = vsyncadd [#allocation6], %s8524
      %s8527 = sshll.u32 [#allocation5], 4
      %s8528 = int_to_ptr.vmem [resolvable:$true] %s8527
      %8530 = dma.vmem_to_hbm [thread:$0]  %s8528, 32, %s12, [#allocation6]
    $region53: #{lenet_forward.1} parent=1 // pred_fallthru
      _
    // Predicated region
    $region54: #{lenet_forward.1} parent=1 // pred_check
      _
    $region55: #{lenet_forward.1} parent=1 // pred_check_branch
      %8532 = sbr.rel (0) target = $region57
    $region56: #{lenet_forward.1} parent=1 // pred_region
      %8533 = dma.done [#allocation6], 32
    $region57: #{lenet_forward.1} parent=1 // pred_fallthru
      _
    %8534 = vsyncpa [#allocation6], 1

</llo_original>
